<compile_context>
chip_gen: v5e
topology: v5e:2x2
jax: 0.10.0
libtpu: 0.0.40
codegen_flags: <defaults>
</compile_context>

<pallas_src>
import functools

import jax
import jax.numpy as jnp
import numpy as np
from jax.experimental import pallas as pl
from jax.experimental.pallas import tpu as pltpu

LN_EPS = 1e-5  # nn.LayerNorm default

_STACK_KEYS = ("ln1_g", "ln1_b", "w1", "b1", "sgu_g", "sgu_b",
               "wsp", "bsp", "w2", "b2")


# ------------------------------------------------------------- VMEM budgeting
def _vmem_limit_bytes():
    # ~75% of the physical per-core VMEM (=> ~96 MiB v5e/v6e, ~48 MiB v7x),
    # capped at 110 MiB for headroom.
    try:
        cap = pltpu.get_tpu_info().vmem_capacity_bytes
    except Exception:  # conservative fallback if the query is unavailable
        cap = 64 * 1024 * 1024
    return int(min(cap * 3 // 4, 110 * 1024 * 1024))


def _compiler_params(dimension_semantics):
    return pltpu.CompilerParams(dimension_semantics=dimension_semantics,
                                vmem_limit_bytes=_vmem_limit_bytes())


# ---------------------------------------------------------------- kernel math
def _layernorm(x, g, b):
    # single-pass LN: one reduction pass computing E[x] and E[x^2]
    mu = jnp.mean(x, axis=-1, keepdims=True)
    ex2 = jnp.mean(x * x, axis=-1, keepdims=True)
    var = ex2 - mu * mu
    return (x - mu) * jax.lax.rsqrt(var + LN_EPS) * g + b


def _gelu(x):
    # NOTE: PyTorch F.gelu default is erf-exact; tanh approximation used here
    # (EUP-friendly); numerical difference ~1e-3.
    c = 0.7978845608028654  # sqrt(2/pi)
    return 0.5 * x * (1.0 + jnp.tanh(c * (x + 0.044715 * x * x * x)))


# ------------------------------------------------- fused gMLP stack (L layers)
def gmlp_stack_kernel(x_ref, ln1g_ref, ln1b_ref, w1_ref, b1_ref,
                      sgug_ref, sgub_ref, wsp_ref, bsp_ref, w2_ref, b2_ref,
                      o_ref, h_ref):
    l = pl.program_id(1)

    # layer 0: load this row-tile's activation (bf16 -> f32 resident scratch)
    @pl.when(l == 0)
    def _():
        h_ref[...] = x_ref[...].astype(jnp.float32)

    x = h_ref[...]                            # (TB*S, D) f32, residual input
    S = wsp_ref.shape[1]
    TB = x.shape[0] // S
    F = w1_ref.shape[2]
    F2 = F // 2

    # pre-norm + fused channel projection 1 (single (TBS,D)@(D,F) dot) + GELU
    y = _layernorm(x, ln1g_ref[0], ln1b_ref[0])
    yb = y.astype(jnp.bfloat16)
    uv = jnp.dot(yb, w1_ref[0], preferred_element_type=jnp.float32) + b1_ref[0]
    uv = _gelu(uv)
    u = uv[:, :F2]                            # lane-tile-aligned slices
    v = uv[:, F2:]

    # Spatial Gating Unit: LN(v), spatial matmul over seq, gate, proj2,
    # residual — per sequence, writing straight into the resident scratch
    # (no concatenate / extra (TBS,F/2) temporary).
    v = _layernorm(v, sgug_ref[0], sgub_ref[0])
    vb = v.astype(jnp.bfloat16)               # (TB*S, F/2)
    wsp = wsp_ref[0]                          # (S, S) bf16
    bsp = bsp_ref[0]                          # (S, 1) f32
    w2 = w2_ref[0]                            # (F/2, D) bf16
    b2 = b2_ref[0]                            # (1, D) f32

    for bi in range(TB):                      # static unroll, TB is small
        lo, hi = bi * S, (bi + 1) * S
        gate = jnp.dot(wsp, vb[lo:hi, :],
                       preferred_element_type=jnp.float32) + bsp
        z = (u[lo:hi, :] * gate).astype(jnp.bfloat16)
        out = jnp.dot(z, w2, preferred_element_type=jnp.float32) + b2
        h_ref[lo:hi, :] = out + x[lo:hi, :]

    @pl.when(l == pl.num_programs(1) - 1)
    def _():
        o_ref[...] = h_ref[...].astype(o_ref.dtype)


def gmlp_stack(x2d, stack, *, seq_len, batch_tile):
    BS, D = x2d.shape
    L = stack["w1"].shape[0]
    TBS = batch_tile * seq_len
    assert BS % TBS == 0, (BS, TBS)

    w_specs = [pl.BlockSpec((1,) + stack[k].shape[1:], lambda b, l: (l, 0, 0))
               for k in _STACK_KEYS]
    return pl.pallas_call(
        gmlp_stack_kernel,
        out_shape=jax.ShapeDtypeStruct((BS, D), jnp.bfloat16),
        grid=(BS // TBS, L),
        in_specs=[pl.BlockSpec((TBS, D), lambda b, l: (b, 0))] + w_specs,
        out_specs=pl.BlockSpec((TBS, D), lambda b, l: (b, 0)),
        scratch_shapes=[pltpu.VMEM((TBS, D), jnp.float32)],
        compiler_params=_compiler_params(("parallel", "arbitrary")),
    )(x2d, *[stack[k] for k in _STACK_KEYS])


# ------------------------------------------- MLM head (vocab-tiled LogSoftmax)
def head_logits_lse_kernel(x_ref, w_ref, b_ref, logits_ref, lse_ref,
                           m_sc, l_sc):
    v_idx = pl.program_id(1)

    @pl.when(v_idx == 0)
    def _():
        m_sc[...] = jnp.full(m_sc.shape, -jnp.inf, jnp.float32)
        l_sc[...] = jnp.zeros(l_sc.shape, jnp.float32)

    logits = jnp.dot(x_ref[...], w_ref[...],
                     preferred_element_type=jnp.float32) + b_ref[...]
    logits_ref[...] = logits.astype(logits_ref.dtype)   # lane-dense bf16 slab

    m_prev = m_sc[...]
    m_new = jnp.maximum(m_prev, jnp.max(logits, axis=-1, keepdims=True))
    l_sc[...] = (l_sc[...] * jnp.exp(m_prev - m_new)
                 + jnp.sum(jnp.exp(logits - m_new), axis=-1, keepdims=True))
    m_sc[...] = m_new

    @pl.when(v_idx == pl.num_programs(1) - 1)
    def _():
        lse_ref[...] = m_sc[...] + jnp.log(l_sc[...])


def head_logprob_kernel(logits_ref, lse_ref, o_ref):
    # pure elementwise pass: no matmul, no second stream of head_w
    o_ref[...] = (logits_ref[...].astype(jnp.float32)
                  - lse_ref[...]).astype(o_ref.dtype)


def mlm_head(x2d, w, b, *, tm, tv):
    BS, D = x2d.shape
    V = w.shape[1]
    assert BS % tm == 0 and V % tv == 0, (BS, tm, V, tv)
    grid = (BS // tm, V // tv)

    # pass 1: tiled matmul (head_w streamed exactly once) emitting bf16 logit
    # tiles + online logsumexp over the vocab axis
    logits, lse = pl.pallas_call(
        head_logits_lse_kernel,
        out_shape=(jax.ShapeDtypeStruct((BS, V), jnp.bfloat16),
                   jax.ShapeDtypeStruct((BS, 1), jnp.float32)),
        grid=grid,
        in_specs=[
            pl.BlockSpec((tm, D), lambda i, v: (i, 0)),
            pl.BlockSpec((D, tv), lambda i, v: (0, v)),
            pl.BlockSpec((1, tv), lambda i, v: (0, v)),
        ],
        out_specs=(pl.BlockSpec((tm, tv), lambda i, v: (i, v)),
                   pl.BlockSpec((tm, 1), lambda i, v: (i, 0))),
        scratch_shapes=[pltpu.VMEM((tm, 1), jnp.float32),
                        pltpu.VMEM((tm, 1), jnp.float32)],
        compiler_params=_compiler_params(("parallel", "arbitrary")),
    )(x2d, w, b)

    # pass 2: elementwise log-probs, bf16 output (halves the largest HBM write)
    return pl.pallas_call(
        head_logprob_kernel,
        out_shape=jax.ShapeDtypeStruct((BS, V), jnp.bfloat16),
        grid=grid,
        in_specs=[
            pl.BlockSpec((tm, tv), lambda i, v: (i, v)),
            pl.BlockSpec((tm, 1), lambda i, v: (i, 0)),
        ],
        out_specs=pl.BlockSpec((tm, tv), lambda i, v: (i, v)),
        compiler_params=_compiler_params(("parallel", "parallel")),
    )(logits, lse)


# -------------------------------------------------------------- params / glue
def sinusoidal_pos_encoding(seq_len, d_model):
    pos = np.arange(seq_len)[:, None].astype(np.float32)
    i = np.arange(d_model)[None, :].astype(np.float32)
    angle = pos / np.power(10000.0, (2.0 * np.floor(i / 2.0)) / d_model)
    pe = np.where(i % 2 == 0, np.sin(angle), np.cos(angle))
    return jnp.asarray(pe, dtype=jnp.float32)


def init_params(key, vocab_size, d_model, d_ffn, seq_len, num_layers):
    half = d_ffn // 2
    ks = jax.random.split(key, num_layers + 2)

    def uniform(k, shape, fan_in):
        bound = 1.0 / np.sqrt(fan_in)
        return jax.random.uniform(k, shape, jnp.float32, -bound, bound)

    acc = {k: [] for k in _STACK_KEYS}
    for l in range(num_layers):
        k = jax.random.split(ks[l], 6)
        acc["ln1_g"].append(jnp.ones((1, d_model), jnp.float32))
        acc["ln1_b"].append(jnp.zeros((1, d_model), jnp.float32))
        acc["w1"].append(uniform(k[0], (d_model, d_ffn), d_model)
                         .astype(jnp.bfloat16))
        acc["b1"].append(uniform(k[1], (1, d_ffn), d_model))
        acc["sgu_g"].append(jnp.ones((1, half), jnp.float32))
        acc["sgu_b"].append(jnp.zeros((1, half), jnp.float32))
        # gMLP SGU init: near-zero spatial weight, bias = 1.0
        acc["wsp"].append((uniform(k[2], (seq_len, seq_len), seq_len) * 1e-2
                           ).astype(jnp.bfloat16))
        acc["bsp"].append(jnp.ones((seq_len, 1), jnp.float32))
        acc["w2"].append(uniform(k[3], (half, d_model), half).astype(jnp.bfloat16))
        acc["b2"].append(uniform(k[4], (1, d_model), half))

    kh = jax.random.split(ks[num_layers], 2)
    return {
        "embed_table": jax.random.normal(ks[num_layers + 1],
                                         (vocab_size, d_model), jnp.float32),
        "pos_enc": sinusoidal_pos_encoding(seq_len, d_model),
        "stack": {k: jnp.stack(v) for k, v in acc.items()},
        "head_w": uniform(kh[0], (d_model, vocab_size), d_model).astype(jnp.bfloat16),
        "head_b": uniform(kh[1], (1, vocab_size), d_model),
    }


def _divisor_tile(n, target):
    t = max(1, min(n, target))
    while n % t:
        t -= 1
    return t


def _pick_batch_tile(B, S, target_rows=1024):
    bt = max(1, min(B, max(1, target_rows // S)))
    while B % bt:
        bt -= 1
    # keep >= 2 batch tiles when the batch allows it (v7x megacore sharding)
    if bt == B and bt > 1:
        half = bt // 2
        while half > 1 and B % half:
            half -= 1
        bt = max(1, half)
    return bt


def _pick_head_tm(BS, target=512):
    tm = _divisor_tile(BS, target)
    if tm == BS and BS > 256:           # keep >= 2 row tiles for megacore
        tm = _divisor_tile(BS, BS // 2)
    return tm


def gmlp_language_model(tokens, params, *, output_logits=True,
                        batch_tile=None, head_tm=None, head_tv=None):
    B, S = tokens.shape
    D = params["embed_table"].shape[1]
    V = params["head_w"].shape[1]

    # TransformerEmbedding: token gather + sinusoidal pos-enc (XLA glue);
    # dropout p=0.1 is identity at inference.  bf16 at the kernel boundary.
    emb = params["embed_table"][tokens] + params["pos_enc"][None, :, :]
    x2d = emb.reshape(B * S, D).astype(jnp.bfloat16)

    if batch_tile is None:
        batch_tile = _pick_batch_tile(B, S)
    enc = gmlp_stack(x2d, params["stack"], seq_len=S, batch_tile=batch_tile)

    if not output_logits:
        return enc.reshape(B, S, D).astype(jnp.float32)

    tm = head_tm if head_tm is not None else _pick_head_tm(B * S)
    tv = head_tv if head_tv is not None else _divisor_tile(V, 1024)
    logp = mlm_head(enc, params["head_w"], params["head_b"], tm=tm, tv=tv)
    return logp.reshape(B, S, V)


# -------------------------------------------------- pure-JAX reference (check)
def _reference_forward(tokens, params):
    emb = params["embed_table"][tokens] + params["pos_enc"][None, :, :]
    B, S, D = emb.shape
    h = emb.reshape(B * S, D).astype(jnp.bfloat16).astype(jnp.float32)
    st = params["stack"]
    L, _, F = st["w1"].shape
    F2 = F // 2
    for l in range(L):
        x = h
        y = _layernorm(x, st["ln1_g"][l], st["ln1_b"][l])
        yb = y.astype(jnp.bfloat16)
        uv = jnp.dot(yb, st["w1"][l], preferred_element_type=jnp.float32) + st["b1"][l]
        uv = _gelu(uv)
        u, v = uv[:, :F2], uv[:, F2:]
        v = _layernorm(v, st["sgu_g"][l], st["sgu_b"][l])
        vb = v.astype(jnp.bfloat16).reshape(B, S, F2)
        gate = jnp.einsum("st,btf->bsf", st["wsp"][l], vb,
                          preferred_element_type=jnp.float32) + st["bsp"][l][None, :, :]
        z = u * gate.reshape(B * S, F2)
        out = jnp.dot(z.astype(jnp.bfloat16), st["w2"][l],
                      preferred_element_type=jnp.float32) + st["b2"][l]
        h = out + x
    logits = jnp.dot(h.astype(jnp.bfloat16), params["head_w"],
                     preferred_element_type=jnp.float32) + params["head_b"]
    return jax.nn.log_softmax(logits, axis=-1).reshape(B, S, -1)


# -------------------------------------------------------------------- __main__
if __name__ == "__main__":
    VOCAB, D_MODEL, D_FFN, SEQ_LEN, N_LAYERS = 1024, 128, 256, 128, 3
    BATCH = 4

    key = jax.random.PRNGKey(0)
    k_tok, k_par = jax.random.split(key)
    tokens = jax.random.randint(k_tok, (BATCH, SEQ_LEN), 0, VOCAB, dtype=jnp.int32)
    params = init_params(k_par, VOCAB, D_MODEL, D_FFN, SEQ_LEN, N_LAYERS)

    fwd = jax.jit(functools.partial(gmlp_language_model, output_logits=True))
    out = jax.block_until_ready(fwd(tokens, params))

    assert out.shape == (BATCH, SEQ_LEN, VOCAB), out.shape
    out_f32 = out.astype(jnp.float32)
    assert bool(jnp.all(jnp.isfinite(out_f32)))
    # log-softmax rows must sum to ~1 in prob space (bf16 output tolerance)
    assert bool(jnp.allclose(jnp.sum(jnp.exp(out_f32), axis=-1), 1.0, atol=3e-2))
    # match a pure-JAX reference with identical (bf16-matmul / f32-acc) numerics
    ref = jax.jit(_reference_forward)(tokens, params)
    max_err = float(jnp.max(jnp.abs(out_f32 - ref)))
    assert bool(jnp.allclose(out_f32, ref, atol=3e-2, rtol=3e-2)), max_err
    print("KERNEL_OK")
</pallas_src>

<mosaic_0001>
module attributes {stable_mosaic.version = 11 : i64} {
  func.func @gmlp_stack_kernel(%arg0: i32, %arg1: i32, %arg2: memref<256x128xbf16, #tpu.memory_space<vmem>>, %arg3: memref<1x1x128xf32, #tpu.memory_space<vmem>>, %arg4: memref<1x1x128xf32, #tpu.memory_space<vmem>>, %arg5: memref<1x128x256xbf16, #tpu.memory_space<vmem>>, %arg6: memref<1x1x256xf32, #tpu.memory_space<vmem>>, %arg7: memref<1x1x128xf32, #tpu.memory_space<vmem>>, %arg8: memref<1x1x128xf32, #tpu.memory_space<vmem>>, %arg9: memref<1x128x128xbf16, #tpu.memory_space<vmem>>, %arg10: memref<1x128x1xf32, #tpu.memory_space<vmem>>, %arg11: memref<1x128x128xbf16, #tpu.memory_space<vmem>>, %arg12: memref<1x1x128xf32, #tpu.memory_space<vmem>>, %arg13: memref<256x128xbf16, #tpu.memory_space<vmem>>, %arg14: memref<256x128xf32, #tpu.memory_space<vmem>>) attributes {dimension_semantics = [#tpu.dimension_semantics<parallel>, #tpu.dimension_semantics<arbitrary>], iteration_bounds = array<i64: 2, 3>, scalar_prefetch = 0 : i64, scratch_operands = 1 : i64, tpu.core_type = #tpu.core_type<tc>, window_params = [{transform_indices = @transform_0, window_bounds = array<i64: 256, 128>}, {transform_indices = @transform_1, window_bounds = array<i64: 1, 1, 128>}, {transform_indices = @transform_2, window_bounds = array<i64: 1, 1, 128>}, {transform_indices = @transform_3, window_bounds = array<i64: 1, 128, 256>}, {transform_indices = @transform_4, window_bounds = array<i64: 1, 1, 256>}, {transform_indices = @transform_5, window_bounds = array<i64: 1, 1, 128>}, {transform_indices = @transform_6, window_bounds = array<i64: 1, 1, 128>}, {transform_indices = @transform_7, window_bounds = array<i64: 1, 128, 128>}, {transform_indices = @transform_8, window_bounds = array<i64: 1, 128, 1>}, {transform_indices = @transform_9, window_bounds = array<i64: 1, 128, 128>}, {transform_indices = @transform_10, window_bounds = array<i64: 1, 1, 128>}, {transform_indices = @transform_11, window_bounds = array<i64: 256, 128>}]} {
    %c0_i32 = arith.constant 0 : i32
    %0 = arith.cmpi eq, %arg1, %c0_i32 : i32
    %1 = arith.extui %0 : i1 to i32
    %c0_i32_0 = arith.constant 0 : i32
    %2 = arith.cmpi ne, %1, %c0_i32_0 : i32
    scf.if %2 {
      %c0_54 = arith.constant 0 : index
      %c0_55 = arith.constant 0 : index
      %117 = vector.load %arg2[%c0_54, %c0_55] : memref<256x128xbf16, #tpu.memory_space<vmem>>, vector<256x128xbf16>
      %118 = arith.extf %117 : vector<256x128xbf16> to vector<256x128xf32>
      %c0_56 = arith.constant 0 : index
      %c0_57 = arith.constant 0 : index
      %119 = vector.load %arg14[%c0_56, %c0_57] : memref<256x128xf32, #tpu.memory_space<vmem>>, vector<256x128xf32>
      tpu.vector_store %arg14[%c0_56, %c0_57], %118 {strides = array<i32>} : memref<256x128xf32, #tpu.memory_space<vmem>>, vector<256x128xf32>,
    } else {
    }
    %c0 = arith.constant 0 : index
    %c0_1 = arith.constant 0 : index
    %3 = vector.load %arg14[%c0, %c0_1] : memref<256x128xf32, #tpu.memory_space<vmem>>, vector<256x128xf32>
    %c0_2 = arith.constant 0 : index
    %c0_3 = arith.constant 0 : index
    %c0_4 = arith.constant 0 : index
    %4 = vector.load %arg3[%c0_2, %c0_3, %c0_4] : memref<1x1x128xf32, #tpu.memory_space<vmem>>, vector<1x1x128xf32>
    %5 = vector.shape_cast %4 : vector<1x1x128xf32> to vector<1x128xf32>
    %c0_5 = arith.constant 0 : index
    %c0_6 = arith.constant 0 : index
    %c0_7 = arith.constant 0 : index
    %6 = vector.load %arg4[%c0_5, %c0_6, %c0_7] : memref<1x1x128xf32, #tpu.memory_space<vmem>>, vector<1x1x128xf32>
    %7 = vector.shape_cast %6 : vector<1x1x128xf32> to vector<1x128xf32>
    %cst = arith.constant dense<0.000000e+00> : vector<256xf32>
    %8 = vector.multi_reduction <add>, %3, %cst [1] : vector<256x128xf32> to vector<256xf32>
    %9 = vector.shape_cast %8 : vector<256xf32> to vector<256x1xf32>
    %cst_8 = arith.constant 1.280000e+02 : f32
    %10 = vector.broadcast %cst_8 : f32 to vector<256x1xf32>
    %11 = arith.divf %9, %10 : vector<256x1xf32>
    %12 = arith.mulf %3, %3 : vector<256x128xf32>
    %cst_9 = arith.constant dense<0.000000e+00> : vector<256xf32>
    %13 = vector.multi_reduction <add>, %12, %cst_9 [1] : vector<256x128xf32> to vector<256xf32>
    %14 = vector.shape_cast %13 : vector<256xf32> to vector<256x1xf32>
    %cst_10 = arith.constant 1.280000e+02 : f32
    %15 = vector.broadcast %cst_10 : f32 to vector<256x1xf32>
    %16 = arith.divf %14, %15 : vector<256x1xf32>
    %17 = arith.mulf %11, %11 : vector<256x1xf32>
    %18 = arith.subf %16, %17 : vector<256x1xf32>
    %19 = vector.broadcast %11 : vector<256x1xf32> to vector<256x128xf32>
    %20 = arith.subf %3, %19 : vector<256x128xf32>
    %cst_11 = arith.constant 9.99999974E-6 : f32
    %21 = vector.broadcast %cst_11 : f32 to vector<256x1xf32>
    %22 = arith.addf %18, %21 : vector<256x1xf32>
    %23 = math.rsqrt %22 : vector<256x1xf32>
    %24 = vector.broadcast %23 : vector<256x1xf32> to vector<256x128xf32>
    %25 = arith.mulf %20, %24 : vector<256x128xf32>
    %26 = vector.broadcast %5 : vector<1x128xf32> to vector<256x128xf32>
    %27 = arith.mulf %25, %26 : vector<256x128xf32>
    %28 = vector.broadcast %7 : vector<1x128xf32> to vector<256x128xf32>
    %29 = arith.addf %27, %28 : vector<256x128xf32>
    %30 = arith.truncf %29 : vector<256x128xf32> to vector<256x128xbf16>
    %c0_12 = arith.constant 0 : index
    %c0_13 = arith.constant 0 : index
    %c0_14 = arith.constant 0 : index
    %31 = vector.load %arg5[%c0_12, %c0_13, %c0_14] : memref<1x128x256xbf16, #tpu.memory_space<vmem>>, vector<1x128x256xbf16>
    %32 = vector.shape_cast %31 : vector<1x128x256xbf16> to vector<128x256xbf16>
    %cst_15 = arith.constant dense<0.000000e+00> : vector<256x256xf32>
    %33 = tpu.matmul %30, %32, %cst_15 {dimension_numbers = #tpu.dot_dimension_numbers<[1], [0], [0], [1], [0, 0, 1, 1], [], []>} : vector<256x128xbf16>, vector<128x256xbf16>, vector<256x256xf32> -> vector<256x256xf32>
    %c0_16 = arith.constant 0 : index
    %c0_17 = arith.constant 0 : index
    %c0_18 = arith.constant 0 : index
    %34 = vector.load %arg6[%c0_16, %c0_17, %c0_18] : memref<1x1x256xf32, #tpu.memory_space<vmem>>, vector<1x1x256xf32>
    %35 = vector.shape_cast %34 : vector<1x1x256xf32> to vector<1x256xf32>
    %36 = vector.broadcast %35 : vector<1x256xf32> to vector<256x256xf32>
    %37 = arith.addf %33, %36 : vector<256x256xf32>
    %cst_19 = arith.constant 5.000000e-01 : f32
    %38 = vector.broadcast %cst_19 : f32 to vector<256x256xf32>
    %39 = arith.mulf %38, %37 : vector<256x256xf32>
    %cst_20 = arith.constant 4.471500e-02 : f32
    %40 = vector.broadcast %cst_20 : f32 to vector<256x256xf32>
    %41 = arith.mulf %40, %37 : vector<256x256xf32>
    %42 = arith.mulf %41, %37 : vector<256x256xf32>
    %43 = arith.mulf %42, %37 : vector<256x256xf32>
    %44 = arith.addf %37, %43 : vector<256x256xf32>
    %cst_21 = arith.constant 0.797884583 : f32
    %45 = vector.broadcast %cst_21 : f32 to vector<256x256xf32>
    %46 = arith.mulf %45, %44 : vector<256x256xf32>
    %47 = math.tanh %46 : vector<256x256xf32>
    %cst_22 = arith.constant 1.000000e+00 : f32
    %48 = vector.broadcast %cst_22 : f32 to vector<256x256xf32>
    %49 = arith.addf %48, %47 : vector<256x256xf32>
    %50 = arith.mulf %39, %49 : vector<256x256xf32>
    %51 = vector.extract_strided_slice %50 {offsets = [0, 0], sizes = [256, 128], strides = [1, 1]} : vector<256x256xf32> to vector<256x128xf32>
    %52 = vector.extract_strided_slice %50 {offsets = [0, 128], sizes = [256, 128], strides = [1, 1]} : vector<256x256xf32> to vector<256x128xf32>
    %c0_23 = arith.constant 0 : index
    %c0_24 = arith.constant 0 : index
    %c0_25 = arith.constant 0 : index
    %53 = vector.load %arg7[%c0_23, %c0_24, %c0_25] : memref<1x1x128xf32, #tpu.memory_space<vmem>>, vector<1x1x128xf32>
    %54 = vector.shape_cast %53 : vector<1x1x128xf32> to vector<1x128xf32>
    %c0_26 = arith.constant 0 : index
    %c0_27 = arith.constant 0 : index
    %c0_28 = arith.constant 0 : index
    %55 = vector.load %arg8[%c0_26, %c0_27, %c0_28] : memref<1x1x128xf32, #tpu.memory_space<vmem>>, vector<1x1x128xf32>
    %56 = vector.shape_cast %55 : vector<1x1x128xf32> to vector<1x128xf32>
    %cst_29 = arith.constant dense<0.000000e+00> : vector<256xf32>
    %57 = vector.multi_reduction <add>, %52, %cst_29 [1] : vector<256x128xf32> to vector<256xf32>
    %58 = vector.shape_cast %57 : vector<256xf32> to vector<256x1xf32>
    %cst_30 = arith.constant 1.280000e+02 : f32
    %59 = vector.broadcast %cst_30 : f32 to vector<256x1xf32>
    %60 = arith.divf %58, %59 : vector<256x1xf32>
    %61 = arith.mulf %52, %52 : vector<256x128xf32>
    %cst_31 = arith.constant dense<0.000000e+00> : vector<256xf32>
    %62 = vector.multi_reduction <add>, %61, %cst_31 [1] : vector<256x128xf32> to vector<256xf32>
    %63 = vector.shape_cast %62 : vector<256xf32> to vector<256x1xf32>
    %cst_32 = arith.constant 1.280000e+02 : f32
    %64 = vector.broadcast %cst_32 : f32 to vector<256x1xf32>
    %65 = arith.divf %63, %64 : vector<256x1xf32>
    %66 = arith.mulf %60, %60 : vector<256x1xf32>
    %67 = arith.subf %65, %66 : vector<256x1xf32>
    %68 = vector.broadcast %60 : vector<256x1xf32> to vector<256x128xf32>
    %69 = arith.subf %52, %68 : vector<256x128xf32>
    %cst_33 = arith.constant 9.99999974E-6 : f32
    %70 = vector.broadcast %cst_33 : f32 to vector<256x1xf32>
    %71 = arith.addf %67, %70 : vector<256x1xf32>
    %72 = math.rsqrt %71 : vector<256x1xf32>
    %73 = vector.broadcast %72 : vector<256x1xf32> to vector<256x128xf32>
    %74 = arith.mulf %69, %73 : vector<256x128xf32>
    %75 = vector.broadcast %54 : vector<1x128xf32> to vector<256x128xf32>
    %76 = arith.mulf %74, %75 : vector<256x128xf32>
    %77 = vector.broadcast %56 : vector<1x128xf32> to vector<256x128xf32>
    %78 = arith.addf %76, %77 : vector<256x128xf32>
    %79 = arith.truncf %78 : vector<256x128xf32> to vector<256x128xbf16>
    %c0_34 = arith.constant 0 : index
    %c0_35 = arith.constant 0 : index
    %c0_36 = arith.constant 0 : index
    %80 = vector.load %arg9[%c0_34, %c0_35, %c0_36] : memref<1x128x128xbf16, #tpu.memory_space<vmem>>, vector<1x128x128xbf16>
    %81 = vector.shape_cast %80 : vector<1x128x128xbf16> to vector<128x128xbf16>
    %c0_37 = arith.constant 0 : index
    %c0_38 = arith.constant 0 : index
    %c0_39 = arith.constant 0 : index
    %82 = vector.load %arg10[%c0_37, %c0_38, %c0_39] : memref<1x128x1xf32, #tpu.memory_space<vmem>>, vector<1x128x1xf32>
    %83 = vector.shape_cast %82 : vector<1x128x1xf32> to vector<128x1xf32>
    %c0_40 = arith.constant 0 : index
    %c0_41 = arith.constant 0 : index
    %c0_42 = arith.constant 0 : index
    %84 = vector.load %arg11[%c0_40, %c0_41, %c0_42] : memref<1x128x128xbf16, #tpu.memory_space<vmem>>, vector<1x128x128xbf16>
    %85 = vector.shape_cast %84 : vector<1x128x128xbf16> to vector<128x128xbf16>
    %c0_43 = arith.constant 0 : index
    %c0_44 = arith.constant 0 : index
    %c0_45 = arith.constant 0 : index
    %86 = vector.load %arg12[%c0_43, %c0_44, %c0_45] : memref<1x1x128xf32, #tpu.memory_space<vmem>>, vector<1x1x128xf32>
    %87 = vector.shape_cast %86 : vector<1x1x128xf32> to vector<1x128xf32>
    %88 = vector.extract_strided_slice %79 {offsets = [0, 0], sizes = [128, 128], strides = [1, 1]} : vector<256x128xbf16> to vector<128x128xbf16>
    %cst_46 = arith.constant dense<0.000000e+00> : vector<128x128xf32>
    %89 = tpu.matmul %81, %88, %cst_46 {dimension_numbers = #tpu.dot_dimension_numbers<[1], [0], [0], [1], [0, 0, 1, 1], [], []>} : vector<128x128xbf16>, vector<128x128xbf16>, vector<128x128xf32> -> vector<128x128xf32>
    %90 = vector.broadcast %83 : vector<128x1xf32> to vector<128x128xf32>
    %91 = arith.addf %89, %90 : vector<128x128xf32>
    %92 = vector.extract_strided_slice %51 {offsets = [0, 0], sizes = [128, 128], strides = [1, 1]} : vector<256x128xf32> to vector<128x128xf32>
    %93 = arith.mulf %92, %91 : vector<128x128xf32>
    %94 = arith.truncf %93 : vector<128x128xf32> to vector<128x128xbf16>
    %cst_47 = arith.constant dense<0.000000e+00> : vector<128x128xf32>
    %95 = tpu.matmul %94, %85, %cst_47 {dimension_numbers = #tpu.dot_dimension_numbers<[1], [0], [0], [1], [0, 0, 1, 1], [], []>} : vector<128x128xbf16>, vector<128x128xbf16>, vector<128x128xf32> -> vector<128x128xf32>
    %96 = vector.broadcast %87 : vector<1x128xf32> to vector<128x128xf32>
    %97 = arith.addf %95, %96 : vector<128x128xf32>
    %98 = vector.extract_strided_slice %3 {offsets = [0, 0], sizes = [128, 128], strides = [1, 1]} : vector<256x128xf32> to vector<128x128xf32>
    %99 = arith.addf %97, %98 : vector<128x128xf32>
    %c0_48 = arith.constant 0 : index
    %c0_49 = arith.constant 0 : index
    %100 = vector.load %arg14[%c0_48, %c0_49] : memref<256x128xf32, #tpu.memory_space<vmem>>, vector<128x128xf32>
    tpu.vector_store %arg14[%c0_48, %c0_49], %99 {strides = array<i32>} : memref<256x128xf32, #tpu.memory_space<vmem>>, vector<128x128xf32>,
    %101 = vector.extract_strided_slice %79 {offsets = [128, 0], sizes = [128, 128], strides = [1, 1]} : vector<256x128xbf16> to vector<128x128xbf16>
    %cst_50 = arith.constant dense<0.000000e+00> : vector<128x128xf32>
    %102 = tpu.matmul %81, %101, %cst_50 {dimension_numbers = #tpu.dot_dimension_numbers<[1], [0], [0], [1], [0, 0, 1, 1], [], []>} : vector<128x128xbf16>, vector<128x128xbf16>, vector<128x128xf32> -> vector<128x128xf32>
    %103 = vector.broadcast %83 : vector<128x1xf32> to vector<128x128xf32>
    %104 = arith.addf %102, %103 : vector<128x128xf32>
    %105 = vector.extract_strided_slice %51 {offsets = [128, 0], sizes = [128, 128], strides = [1, 1]} : vector<256x128xf32> to vector<128x128xf32>
    %106 = arith.mulf %105, %104 : vector<128x128xf32>
    %107 = arith.truncf %106 : vector<128x128xf32> to vector<128x128xbf16>
    %cst_51 = arith.constant dense<0.000000e+00> : vector<128x128xf32>
    %108 = tpu.matmul %107, %85, %cst_51 {dimension_numbers = #tpu.dot_dimension_numbers<[1], [0], [0], [1], [0, 0, 1, 1], [], []>} : vector<128x128xbf16>, vector<128x128xbf16>, vector<128x128xf32> -> vector<128x128xf32>
    %109 = vector.broadcast %87 : vector<1x128xf32> to vector<128x128xf32>
    %110 = arith.addf %108, %109 : vector<128x128xf32>
    %111 = vector.extract_strided_slice %3 {offsets = [128, 0], sizes = [128, 128], strides = [1, 1]} : vector<256x128xf32> to vector<128x128xf32>
    %112 = arith.addf %110, %111 : vector<128x128xf32>
    %c128 = arith.constant 128 : index
    %c0_52 = arith.constant 0 : index
    %113 = vector.load %arg14[%c128, %c0_52] : memref<256x128xf32, #tpu.memory_space<vmem>>, vector<128x128xf32>
    tpu.vector_store %arg14[%c128, %c0_52], %112 {strides = array<i32>} : memref<256x128xf32, #tpu.memory_space<vmem>>, vector<128x128xf32>,
    %c2_i32 = arith.constant 2 : i32
    %114 = arith.cmpi eq, %arg1, %c2_i32 : i32
    %115 = arith.extui %114 : i1 to i32
    %c0_i32_53 = arith.constant 0 : i32
    %116 = arith.cmpi ne, %115, %c0_i32_53 : i32
    scf.if %116 {
      %c0_54 = arith.constant 0 : index
      %c0_55 = arith.constant 0 : index
      %117 = vector.load %arg14[%c0_54, %c0_55] : memref<256x128xf32, #tpu.memory_space<vmem>>, vector<256x128xf32>
      %118 = arith.truncf %117 : vector<256x128xf32> to vector<256x128xbf16>
      %c0_56 = arith.constant 0 : index
      %c0_57 = arith.constant 0 : index
      %119 = vector.load %arg13[%c0_56, %c0_57] : memref<256x128xbf16, #tpu.memory_space<vmem>>, vector<256x128xbf16>
      tpu.vector_store %arg13[%c0_56, %c0_57], %118 {strides = array<i32>} : memref<256x128xbf16, #tpu.memory_space<vmem>>, vector<256x128xbf16>,
    } else {
    }
    return
  }
  func.func @transform_0(%arg0: i32, %arg1: i32) -> (i32, i32) {
    %c0_i32 = arith.constant 0 : i32
    %c0_i32_0 = arith.constant 0 : i32
    return %arg0, %c0_i32 : i32, i32
  }
  func.func @transform_1(%arg0: i32, %arg1: i32) -> (i32, i32, i32) {
    %c0_i32 = arith.constant 0 : i32
    %c0_i32_0 = arith.constant 0 : i32
    %c0_i32_1 = arith.constant 0 : i32
    return %arg1, %c0_i32, %c0_i32_0 : i32, i32, i32
  }
  func.func @transform_2(%arg0: i32, %arg1: i32) -> (i32, i32, i32) {
    %c0_i32 = arith.constant 0 : i32
    %c0_i32_0 = arith.constant 0 : i32
    %c0_i32_1 = arith.constant 0 : i32
    return %arg1, %c0_i32, %c0_i32_0 : i32, i32, i32
  }
  func.func @transform_3(%arg0: i32, %arg1: i32) -> (i32, i32, i32) {
    %c0_i32 = arith.constant 0 : i32
    %c0_i32_0 = arith.constant 0 : i32
    %c0_i32_1 = arith.constant 0 : i32
    return %arg1, %c0_i32, %c0_i32_0 : i32, i32, i32
  }
  func.func @transform_4(%arg0: i32, %arg1: i32) -> (i32, i32, i32) {
    %c0_i32 = arith.constant 0 : i32
    %c0_i32_0 = arith.constant 0 : i32
    %c0_i32_1 = arith.constant 0 : i32
    return %arg1, %c0_i32, %c0_i32_0 : i32, i32, i32
  }
  func.func @transform_5(%arg0: i32, %arg1: i32) -> (i32, i32, i32) {
    %c0_i32 = arith.constant 0 : i32
    %c0_i32_0 = arith.constant 0 : i32
    %c0_i32_1 = arith.constant 0 : i32
    return %arg1, %c0_i32, %c0_i32_0 : i32, i32, i32
  }
  func.func @transform_6(%arg0: i32, %arg1: i32) -> (i32, i32, i32) {
    %c0_i32 = arith.constant 0 : i32
    %c0_i32_0 = arith.constant 0 : i32
    %c0_i32_1 = arith.constant 0 : i32
    return %arg1, %c0_i32, %c0_i32_0 : i32, i32, i32
  }
  func.func @transform_7(%arg0: i32, %arg1: i32) -> (i32, i32, i32) {
    %c0_i32 = arith.constant 0 : i32
    %c0_i32_0 = arith.constant 0 : i32
    %c0_i32_1 = arith.constant 0 : i32
    return %arg1, %c0_i32, %c0_i32_0 : i32, i32, i32
  }
  func.func @transform_8(%arg0: i32, %arg1: i32) -> (i32, i32, i32) {
    %c0_i32 = arith.constant 0 : i32
    %c0_i32_0 = arith.constant 0 : i32
    %c0_i32_1 = arith.constant 0 : i32
    return %arg1, %c0_i32, %c0_i32_0 : i32, i32, i32
  }
  func.func @transform_9(%arg0: i32, %arg1: i32) -> (i32, i32, i32) {
    %c0_i32 = arith.constant 0 : i32
    %c0_i32_0 = arith.constant 0 : i32
    %c0_i32_1 = arith.constant 0 : i32
    return %arg1, %c0_i32, %c0_i32_0 : i32, i32, i32
  }
  func.func @transform_10(%arg0: i32, %arg1: i32) -> (i32, i32, i32) {
    %c0_i32 = arith.constant 0 : i32
    %c0_i32_0 = arith.constant 0 : i32
    %c0_i32_1 = arith.constant 0 : i32
    return %arg1, %c0_i32, %c0_i32_0 : i32, i32, i32
  }
  func.func @transform_11(%arg0: i32, %arg1: i32) -> (i32, i32) {
    %c0_i32 = arith.constant 0 : i32
    %c0_i32_0 = arith.constant 0 : i32
    return %arg0, %c0_i32 : i32, i32
  }
}

module attributes {stable_mosaic.version = 11 : i64} {
  func.func @head_logprob_kernel(%arg0: i32, %arg1: i32, %arg2: memref<256x1024xbf16, #tpu.memory_space<vmem>>, %arg3: memref<256x1xf32, #tpu.memory_space<vmem>>, %arg4: memref<256x1024xbf16, #tpu.memory_space<vmem>>) attributes {dimension_semantics = [#tpu.dimension_semantics<parallel>, #tpu.dimension_semantics<parallel>], iteration_bounds = array<i64: 2, 1>, scalar_prefetch = 0 : i64, scratch_operands = 0 : i64, tpu.core_type = #tpu.core_type<tc>, window_params = [{transform_indices = @transform_0, window_bounds = array<i64: 256, 1024>}, {transform_indices = @transform_1, window_bounds = array<i64: 256, 1>}, {transform_indices = @transform_2, window_bounds = array<i64: 256, 1024>}]} {
    %c0 = arith.constant 0 : index
    %c0_0 = arith.constant 0 : index
    %0 = vector.load %arg2[%c0, %c0_0] : memref<256x1024xbf16, #tpu.memory_space<vmem>>, vector<256x1024xbf16>
    %1 = arith.extf %0 : vector<256x1024xbf16> to vector<256x1024xf32>
    %c0_1 = arith.constant 0 : index
    %c0_2 = arith.constant 0 : index
    %2 = vector.load %arg3[%c0_1, %c0_2] : memref<256x1xf32, #tpu.memory_space<vmem>>, vector<256x1xf32>
    %3 = vector.broadcast %2 : vector<256x1xf32> to vector<256x1024xf32>
    %4 = arith.subf %1, %3 : vector<256x1024xf32>
    %5 = arith.truncf %4 : vector<256x1024xf32> to vector<256x1024xbf16>
    %c0_3 = arith.constant 0 : index
    %c0_4 = arith.constant 0 : index
    %6 = vector.load %arg4[%c0_3, %c0_4] : memref<256x1024xbf16, #tpu.memory_space<vmem>>, vector<256x1024xbf16>
    tpu.vector_store %arg4[%c0_3, %c0_4], %5 {strides = array<i32>} : memref<256x1024xbf16, #tpu.memory_space<vmem>>, vector<256x1024xbf16>,
    return
  }
  func.func @transform_0(%arg0: i32, %arg1: i32) -> (i32, i32) {
    %c0_i32 = arith.constant 0 : i32
    return %arg0, %arg1 : i32, i32
  }
  func.func @transform_1(%arg0: i32, %arg1: i32) -> (i32, i32) {
    %c0_i32 = arith.constant 0 : i32
    %c0_i32_0 = arith.constant 0 : i32
    return %arg0, %c0_i32 : i32, i32
  }
  func.func @transform_2(%arg0: i32, %arg1: i32) -> (i32, i32) {
    %c0_i32 = arith.constant 0 : i32
    return %arg0, %arg1 : i32, i32
  }
}

module attributes {stable_mosaic.version = 11 : i64} {
  func.func @head_logits_lse_kernel(%arg0: i32, %arg1: i32, %arg2: memref<256x128xbf16, #tpu.memory_space<vmem>>, %arg3: memref<128x1024xbf16, #tpu.memory_space<vmem>>, %arg4: memref<1x1024xf32, #tpu.memory_space<vmem>>, %arg5: memref<256x1024xbf16, #tpu.memory_space<vmem>>, %arg6: memref<256x1xf32, #tpu.memory_space<vmem>>, %arg7: memref<256x1xf32, #tpu.memory_space<vmem>>, %arg8: memref<256x1xf32, #tpu.memory_space<vmem>>) attributes {dimension_semantics = [#tpu.dimension_semantics<parallel>, #tpu.dimension_semantics<arbitrary>], iteration_bounds = array<i64: 2, 1>, scalar_prefetch = 0 : i64, scratch_operands = 2 : i64, tpu.core_type = #tpu.core_type<tc>, window_params = [{transform_indices = @transform_0, window_bounds = array<i64: 256, 128>}, {transform_indices = @transform_1, window_bounds = array<i64: 128, 1024>}, {transform_indices = @transform_2, window_bounds = array<i64: 1, 1024>}, {transform_indices = @transform_3, window_bounds = array<i64: 256, 1024>}, {transform_indices = @transform_4, window_bounds = array<i64: 256, 1>}]} {
    %c0_i32 = arith.constant 0 : i32
    %0 = arith.cmpi eq, %arg1, %c0_i32 : i32
    %1 = arith.extui %0 : i1 to i32
    %c0_i32_0 = arith.constant 0 : i32
    %2 = arith.cmpi ne, %1, %c0_i32_0 : i32
    scf.if %2 {
      %cst_20 = arith.constant 0xFF800000 : f32
      %30 = vector.broadcast %cst_20 : f32 to vector<256x1xf32>
      %c0_21 = arith.constant 0 : index
      %c0_22 = arith.constant 0 : index
      %31 = vector.load %arg7[%c0_21, %c0_22] : memref<256x1xf32, #tpu.memory_space<vmem>>, vector<256x1xf32>
      tpu.vector_store %arg7[%c0_21, %c0_22], %30 {strides = array<i32>} : memref<256x1xf32, #tpu.memory_space<vmem>>, vector<256x1xf32>,
      %cst_23 = arith.constant 0.000000e+00 : f32
      %32 = vector.broadcast %cst_23 : f32 to vector<256x1xf32>
      %c0_24 = arith.constant 0 : index
      %c0_25 = arith.constant 0 : index
      %33 = vector.load %arg8[%c0_24, %c0_25] : memref<256x1xf32, #tpu.memory_space<vmem>>, vector<256x1xf32>
      tpu.vector_store %arg8[%c0_24, %c0_25], %32 {strides = array<i32>} : memref<256x1xf32, #tpu.memory_space<vmem>>, vector<256x1xf32>,
    } else {
    }
    %c0 = arith.constant 0 : index
    %c0_1 = arith.constant 0 : index
    %3 = vector.load %arg2[%c0, %c0_1] : memref<256x128xbf16, #tpu.memory_space<vmem>>, vector<256x128xbf16>
    %c0_2 = arith.constant 0 : index
    %c0_3 = arith.constant 0 : index
    %4 = vector.load %arg3[%c0_2, %c0_3] : memref<128x1024xbf16, #tpu.memory_space<vmem>>, vector<128x1024xbf16>
    %cst = arith.constant dense<0.000000e+00> : vector<256x1024xf32>
    %5 = tpu.matmul %3, %4, %cst {dimension_numbers = #tpu.dot_dimension_numbers<[1], [0], [0], [1], [0, 0, 1, 1], [], []>} : vector<256x128xbf16>, vector<128x1024xbf16>, vector<256x1024xf32> -> vector<256x1024xf32>
    %c0_4 = arith.constant 0 : index
    %c0_5 = arith.constant 0 : index
    %6 = vector.load %arg4[%c0_4, %c0_5] : memref<1x1024xf32, #tpu.memory_space<vmem>>, vector<1x1024xf32>
    %7 = vector.broadcast %6 : vector<1x1024xf32> to vector<256x1024xf32>
    %8 = arith.addf %5, %7 : vector<256x1024xf32>
    %9 = arith.truncf %8 : vector<256x1024xf32> to vector<256x1024xbf16>
    %c0_6 = arith.constant 0 : index
    %c0_7 = arith.constant 0 : index
    %10 = vector.load %arg5[%c0_6, %c0_7] : memref<256x1024xbf16, #tpu.memory_space<vmem>>, vector<256x1024xbf16>
    tpu.vector_store %arg5[%c0_6, %c0_7], %9 {strides = array<i32>} : memref<256x1024xbf16, #tpu.memory_space<vmem>>, vector<256x1024xbf16>,
    %c0_8 = arith.constant 0 : index
    %c0_9 = arith.constant 0 : index
    %11 = vector.load %arg7[%c0_8, %c0_9] : memref<256x1xf32, #tpu.memory_space<vmem>>, vector<256x1xf32>
    %cst_10 = arith.constant dense<0xFF800000> : vector<256xf32>
    %12 = vector.multi_reduction <maximumf>, %8, %cst_10 [1] : vector<256x1024xf32> to vector<256xf32>
    %13 = vector.shape_cast %12 : vector<256xf32> to vector<256x1xf32>
    %14 = arith.maximumf %11, %13 : vector<256x1xf32>
    %c0_11 = arith.constant 0 : index
    %c0_12 = arith.constant 0 : index
    %15 = vector.load %arg8[%c0_11, %c0_12] : memref<256x1xf32, #tpu.memory_space<vmem>>, vector<256x1xf32>
    %16 = arith.subf %11, %14 : vector<256x1xf32>
    %17 = math.exp %16 : vector<256x1xf32>
    %18 = arith.mulf %15, %17 : vector<256x1xf32>
    %19 = vector.broadcast %14 : vector<256x1xf32> to vector<256x1024xf32>
    %20 = arith.subf %8, %19 : vector<256x1024xf32>
    %21 = math.exp %20 : vector<256x1024xf32>
    %cst_13 = arith.constant dense<0.000000e+00> : vector<256xf32>
    %22 = vector.multi_reduction <add>, %21, %cst_13 [1] : vector<256x1024xf32> to vector<256xf32>
    %23 = vector.shape_cast %22 : vector<256xf32> to vector<256x1xf32>
    %24 = arith.addf %18, %23 : vector<256x1xf32>
    %c0_14 = arith.constant 0 : index
    %c0_15 = arith.constant 0 : index
    %25 = vector.load %arg8[%c0_14, %c0_15] : memref<256x1xf32, #tpu.memory_space<vmem>>, vector<256x1xf32>
    tpu.vector_store %arg8[%c0_14, %c0_15], %24 {strides = array<i32>} : memref<256x1xf32, #tpu.memory_space<vmem>>, vector<256x1xf32>,
    %c0_16 = arith.constant 0 : index
    %c0_17 = arith.constant 0 : index
    %26 = vector.load %arg7[%c0_16, %c0_17] : memref<256x1xf32, #tpu.memory_space<vmem>>, vector<256x1xf32>
    tpu.vector_store %arg7[%c0_16, %c0_17], %14 {strides = array<i32>} : memref<256x1xf32, #tpu.memory_space<vmem>>, vector<256x1xf32>,
    %c0_i32_18 = arith.constant 0 : i32
    %27 = arith.cmpi eq, %arg1, %c0_i32_18 : i32
    %28 = arith.extui %27 : i1 to i32
    %c0_i32_19 = arith.constant 0 : i32
    %29 = arith.cmpi ne, %28, %c0_i32_19 : i32
    scf.if %29 {
      %c0_20 = arith.constant 0 : index
      %c0_21 = arith.constant 0 : index
      %30 = vector.load %arg7[%c0_20, %c0_21] : memref<256x1xf32, #tpu.memory_space<vmem>>, vector<256x1xf32>
      %c0_22 = arith.constant 0 : index
      %c0_23 = arith.constant 0 : index
      %31 = vector.load %arg8[%c0_22, %c0_23] : memref<256x1xf32, #tpu.memory_space<vmem>>, vector<256x1xf32>
      %32 = math.log %31 : vector<256x1xf32>
      %33 = arith.addf %30, %32 : vector<256x1xf32>
      %c0_24 = arith.constant 0 : index
      %c0_25 = arith.constant 0 : index
      %34 = vector.load %arg6[%c0_24, %c0_25] : memref<256x1xf32, #tpu.memory_space<vmem>>, vector<256x1xf32>
      tpu.vector_store %arg6[%c0_24, %c0_25], %33 {strides = array<i32>} : memref<256x1xf32, #tpu.memory_space<vmem>>, vector<256x1xf32>,
    } else {
    }
    return
  }
  func.func @transform_0(%arg0: i32, %arg1: i32) -> (i32, i32) {
    %c0_i32 = arith.constant 0 : i32
    %c0_i32_0 = arith.constant 0 : i32
    return %arg0, %c0_i32 : i32, i32
  }
  func.func @transform_1(%arg0: i32, %arg1: i32) -> (i32, i32) {
    %c0_i32 = arith.constant 0 : i32
    %c0_i32_0 = arith.constant 0 : i32
    return %c0_i32, %arg1 : i32, i32
  }
  func.func @transform_2(%arg0: i32, %arg1: i32) -> (i32, i32) {
    %c0_i32 = arith.constant 0 : i32
    %c0_i32_0 = arith.constant 0 : i32
    return %c0_i32, %arg1 : i32, i32
  }
  func.func @transform_3(%arg0: i32, %arg1: i32) -> (i32, i32) {
    %c0_i32 = arith.constant 0 : i32
    return %arg0, %arg1 : i32, i32
  }
  func.func @transform_4(%arg0: i32, %arg1: i32) -> (i32, i32) {
    %c0_i32 = arith.constant 0 : i32
    %c0_i32_0 = arith.constant 0 : i32
    return %arg0, %c0_i32 : i32, i32
  }
}

</mosaic_0001>

<llo_original>
// kernel: gmlp_language_model.5
$region0: #{gmlp_language_model.5}
  #allocation0 [shape = 'u32[]', space=smem, size = 0x4, offset = 0x4, fixed_abs, tag = 'smem constant byte address 0x4 - core index']
  #allocation1 [shape = 'u32[72,128]{1,0:T(1,128)}', space=vmem, size = 0x9000, scoped, tag = 'internal scratch']
  %s0 = inlined_call_operand.vmem [shape: bf16[512,1024], index: 0, kind: input, shape index: {}]
  %s1 = inlined_call_operand.vmem [shape: f32[512,1], index: 1, kind: input, shape index: {}]
  %s2 = inlined_call_operand.hbm [shape: bf16[512,1024], index: 2, kind: output, shape index: {}]
  %s3 = sld [smem:[#allocation0]]
  $region41: #{gmlp_language_model.5} parent=0
    _
  %s5 = ssub.s32 1, %s3
  %s6 = scalar_select 0, %s5, %s3
  $region1: #{gmlp_language_model.5} parent=0
    #allocation2 [shape = 'u8[1048576]{0}', space=vmem, size = 0x100000, scoped, tag = 'output window, operand 0']
    #allocation3 [shape = 's32[2]{0}', space=sflag, size = 0x8, scoped, tag = 'scoped memory for gmlp_language_model.5']
    %7 = vsyncpa [#allocation3], 0
    %s8 = scalar_lea.sflag [#allocation3], 1
    %9 = vsyncpa %s8, 0
    loop: start=0, step=1, limit=4
    $region2: #{gmlp_language_model.5} parent=1 // loop_pre_header
      _
    $region3: #{gmlp_language_model.5} parent=1 // loop_header
      %s11 = sphi 0, %s15
      %p12 = scmp.ge.s32.totalorder %s11, 4
      %s18 = sphi 0, %s30
      %s19 = sphi 0, %s26
      %s20 = sphi 0, %s18
      %s21 = sphi 0, %s19
      %s22 = sphi 0, %s20
      %s23 = sphi 0, %s21
      %s35 = sphi 0, %s37
      %s38 = sphi 0, %s35
      %s39 = sphi 0, %s38
      %s55 = sphi 0, %s39
      %s61 = sphi 0, %s63
      %s64 = sphi 0, %s61
      %s65 = sphi 0, %s64
      %s81 = sphi 0, %s65
      %s89 = sphi 0, %s91
      %s92 = sphi 0, %s89
      %s93 = sphi 0, %s92
      %s109 = sphi 0, %s93
    $region4: #{gmlp_language_model.5} parent=1 // loop_header_branch
      %14 = sbr.rel (%p12) target = $region8
    $region5: #{gmlp_language_model.5} parent=1 // loop_body
      %s16 = ssub.s32 %s11, 1
      %s17 = ssub.s32 %s11, 2
      %s24 = sadd.s32 1, %s19
      %p25 = scmp.ge.s32.totalorder %s24, 1
      %s26 = scalar_select %p25, 0, %s24
      %s27 = sadd.s32 1, %s18
      %s28 = scalar_select %p25, %s27, %s18
      %p29 = scmp.ge.s32.totalorder %s28, 2
      %s30 = scalar_select %p29, 0, %s28
      %s31 = ssub.s32 %s18, %s30
      %s32 = ssub.s32 %s19, %s26
      %s33 = sor.u32 %s31, %s32
      %p34 = scmp.eq.s32.totalorder %s33, 0
      %s36 = sadd.s32 %s35, 1
      %s37 = scalar_select %p34, %s35, %s36
      %p40 = pneg %p34
      %p41 = scmp.eq.s32.totalorder %s11, 1
      %p42 = por %p40, %p41
      %p43 = scmp.ne.s32.totalorder %s35, %s38
      %p44 = scmp.eq.s32.totalorder %s11, 0
      %p45 = por %p43, %p44
      %p46 = scmp.ne.s32.totalorder %s35, %s38
      %p47 = scmp.eq.s32.totalorder %s16, 1
      %p48 = por %p46, %p47
      %p49 = scmp.ne.s32.totalorder %s38, %s39
      %p50 = scmp.eq.s32.totalorder %s16, 0
      %p51 = por %p49, %p50
      %p52 = scmp.ne.s32.totalorder %s38, %s39
      %p53 = scmp.eq.s32.totalorder %s17, 1
      %p54 = por %p52, %p53
      %p56 = scmp.ne.s32.totalorder %s39, %s55
      %p57 = scmp.eq.s32.totalorder %s17, 0
      %p58 = por %p56, %p57
      %s59 = ssub.s32 %s18, %s30
      %p60 = scmp.eq.s32.totalorder %s59, 0
      %s62 = sadd.s32 %s61, 1
      %s63 = scalar_select %p60, %s61, %s62
      %p66 = pneg %p60
      %p67 = scmp.eq.s32.totalorder %s11, 1
      %p68 = por %p66, %p67
      %p69 = scmp.ne.s32.totalorder %s61, %s64
      %p70 = scmp.eq.s32.totalorder %s11, 0
      %p71 = por %p69, %p70
      %p72 = scmp.ne.s32.totalorder %s61, %s64
      %p73 = scmp.eq.s32.totalorder %s16, 1
      %p74 = por %p72, %p73
      %p75 = scmp.ne.s32.totalorder %s64, %s65
      %p76 = scmp.eq.s32.totalorder %s16, 0
      %p77 = por %p75, %p76
      %p78 = scmp.ne.s32.totalorder %s64, %s65
      %p79 = scmp.eq.s32.totalorder %s17, 1
      %p80 = por %p78, %p79
      %p82 = scmp.ne.s32.totalorder %s65, %s81
      %p83 = scmp.eq.s32.totalorder %s17, 0
      %p84 = por %p82, %p83
      %s85 = ssub.s32 %s18, %s30
      %s86 = ssub.s32 %s19, %s26
      %s87 = sor.u32 %s85, %s86
      %p88 = scmp.eq.s32.totalorder %s87, 0
      %s90 = sadd.s32 %s89, 1
      %s91 = scalar_select %p88, %s89, %s90
      %p94 = pneg %p88
      %p95 = scmp.eq.s32.totalorder %s11, 1
      %p96 = por %p94, %p95
      %p97 = scmp.ne.s32.totalorder %s89, %s92
      %p98 = scmp.eq.s32.totalorder %s11, 0
      %p99 = por %p97, %p98
      %p100 = scmp.ne.s32.totalorder %s89, %s92
      %p101 = scmp.eq.s32.totalorder %s16, 1
      %p102 = por %p100, %p101
      %p103 = scmp.ne.s32.totalorder %s92, %s93
      %p104 = scmp.eq.s32.totalorder %s16, 0
      %p105 = por %p103, %p104
      %p106 = scmp.ne.s32.totalorder %s92, %s93
      %p107 = scmp.eq.s32.totalorder %s17, 1
      %p108 = por %p106, %p107
      %p110 = scmp.ne.s32.totalorder %s93, %s109
      %p111 = scmp.eq.s32.totalorder %s17, 0
      %p112 = por %p110, %p111
      %p113 = scmp.le.s32.totalorder 1, %s11
      %p114 = scmp.lt.s32.totalorder %s11, 3
      %p115 = pnand %p113, %p114
      %p116 = pneg %p115
      // Predicated region
      $region9: #{gmlp_language_model.5} parent=5 // pred_check
        _
      $region10: #{gmlp_language_model.5} parent=5 // pred_check_branch
        %118 = sbr.rel (%p115) target = $region12
      $region11: #{gmlp_language_model.5} parent=5 // pred_region
        %s119 = ssub.s32 %s11, 1
      $region12: #{gmlp_language_model.5} parent=5 // pred_fallthru
        _
      %p120 = scmp.lt.s32.totalorder %s11, 2
      // Predicated region
      $region13: #{gmlp_language_model.5} parent=5 // pred_check
        %p121 = pneg %p120
      $region14: #{gmlp_language_model.5} parent=5 // pred_check_branch
        %123 = sbr.rel (%p121) target = $region16
      $region15: #{gmlp_language_model.5} parent=5 // pred_region
        // Predicated region
        $region17: #{gmlp_language_model.5} parent=15 // pred_check
          %p124 = pneg %p45
        $region18: #{gmlp_language_model.5} parent=15 // pred_check_branch
          %126 = sbr.rel (%p124) target = $region20
        $region19: #{gmlp_language_model.5} parent=15 // pred_region
          %s127 = smul.u32 32, %s18
          %s128 = smul.u32 8, %s19
          %p129 = scmp.lt.s32.totalorder %s127, 63
          %s130 = scalar_select %p129, %s127, 63
          %p131 = scmp.lt.s32.totalorder %s128, 7
          %s132 = scalar_select %p131, %s128, 7
          %s133 = smul.addr %s130, 8
          %s134 = sadd.s32 %s132, %s133
          %s135 = smul.addr %s134, 4
          %s136 = scalar_lea.vmem %s0, %s135
          %s137 = smul.u32 32, %s18
          %s138 = smul.u32 8, %s19
        $region20: #{gmlp_language_model.5} parent=15 // pred_fallthru
          _
        // Predicated region
        $region21: #{gmlp_language_model.5} parent=15 // pred_check
          %p139 = pneg %p71
        $region22: #{gmlp_language_model.5} parent=15 // pred_check_branch
          %141 = sbr.rel (%p139) target = $region24
        $region23: #{gmlp_language_model.5} parent=15 // pred_region
          %s142 = smul.u32 32, %s18
          %p143 = scmp.lt.s32.totalorder %s142, 63
          %s144 = scalar_select %p143, %s142, 63
          %s145 = smul.addr %s144, 8
          %s146 = scalar_lea.vmem %s1, %s145
          %s147 = smul.u32 32, %s18
        $region24: #{gmlp_language_model.5} parent=15 // pred_fallthru
          _
      $region16: #{gmlp_language_model.5} parent=5 // pred_fallthru
        _
      %p148 = scmp.le.s32.totalorder 1, %s11
      %p149 = scmp.lt.s32.totalorder %s11, 3
      %p150 = pnand %p148, %p149
      %p151 = pneg %p150
      // Predicated region
      $region25: #{gmlp_language_model.5} parent=5 // pred_check
        _
      $region26: #{gmlp_language_model.5} parent=5 // pred_check_branch
        %153 = sbr.rel (%p150) target = $region28
      $region27: #{gmlp_language_model.5} parent=5 // pred_region
        %s154 = ssub.s32 %s11, 1
        %s155 = smul.u32 32, %s20
        %s156 = smul.u32 8, %s21
        %p157 = scmp.lt.s32.totalorder %s155, 63
        %s158 = scalar_select %p157, %s155, 63
        %p159 = scmp.lt.s32.totalorder %s156, 7
        %s160 = scalar_select %p159, %s156, 7
        %s161 = smul.addr %s158, 8
        %s162 = sadd.s32 %s160, %s161
        %s163 = smul.addr %s162, 4
        %s164 = scalar_lea.vmem %s0, %s163
        %p165 = pneg %p51
        %p166 = pneg %p48
        %s167 = smul.u32 32, %s20
        %p168 = scmp.lt.s32.totalorder %s167, 63
        %s169 = scalar_select %p168, %s167, 63
        %s170 = smul.addr %s169, 8
        %s171 = scalar_lea.vmem %s1, %s170
        %p172 = pneg %p77
        %p173 = pneg %p74
        %p174 = pneg %p105
        %p175 = pneg %p102
        %s176 = sand.u32 %s92, 1
        %s177 = scalar_lea.sflag [#allocation3], %s176
        %s178 = sand.u32 %s92, 1
        %s179 = smul.addr %s178, 1024
        %s180 = scalar_lea.vmem [#allocation2], %s179
        %s181 = smul.u32 32, %s20
        %s182 = smul.u32 8, %s21
        %p183 = scmp.lt.s32.totalorder %s181, 63
        %s184 = scalar_select %p183, %s181, 63
        %p185 = scmp.lt.s32.totalorder %s182, 7
        %s186 = scalar_select %p185, %s182, 7
        %s187 = smul.addr %s184, 8
        %s188 = sadd.s32 %s186, %s187
        %s189 = smul.addr %s188, 4
        %s190 = scalar_lea.vmem %s0, %s189
        %s191 = smul.u32 32, %s20
        %s192 = smul.u32 8, %s21
        %s193 = smul.u32 32, %s20
        %p194 = scmp.lt.s32.totalorder %s193, 63
        %s195 = scalar_select %p194, %s193, 63
        %s196 = smul.addr %s195, 8
        %s197 = scalar_lea.vmem %s1, %s196
        %s198 = smul.u32 32, %s20
        %s199 = smul.u32 32, %s20
        %s200 = smul.u32 8, %s21
        %v201 = vld [vmem:[%s190] sm:$0xff]
        %v202 = vld [vmem:[%s190 + $0x8] sm:$0xff]
        %v203 = vld [vmem:[%s190 + $0x10] sm:$0xff]
        %v204 = vld [vmem:[%s190 + $0x18] sm:$0xff]
        %v205 = vld [vmem:[%s190 + $0x20] sm:$0xff]
        %v206 = vld [vmem:[%s190 + $0x28] sm:$0xff]
        %v207 = vld [vmem:[%s190 + $0x30] sm:$0xff]
        %v208 = vld [vmem:[%s190 + $0x38] sm:$0xff]
        %v209 = vld [vmem:[%s190 + $0x40] sm:$0xff]
        %v210 = vld [vmem:[%s190 + $0x48] sm:$0xff]
        %v211 = vld [vmem:[%s190 + $0x50] sm:$0xff]
        %v212 = vld [vmem:[%s190 + $0x58] sm:$0xff]
        %v213 = vld [vmem:[%s190 + $0x60] sm:$0xff]
        %v214 = vld [vmem:[%s190 + $0x68] sm:$0xff]
        %v215 = vld [vmem:[%s190 + $0x70] sm:$0xff]
        %v216 = vld [vmem:[%s190 + $0x78] sm:$0xff]
        %v217 = vld [vmem:[%s190 + $0x80] sm:$0xff]
        %v218 = vld [vmem:[%s190 + $0x88] sm:$0xff]
        %v219 = vld [vmem:[%s190 + $0x90] sm:$0xff]
        %v220 = vld [vmem:[%s190 + $0x98] sm:$0xff]
        %v221 = vld [vmem:[%s190 + $0xa0] sm:$0xff]
        %v222 = vld [vmem:[%s190 + $0xa8] sm:$0xff]
        %v223 = vld [vmem:[%s190 + $0xb0] sm:$0xff]
        %v224 = vld [vmem:[%s190 + $0xb8] sm:$0xff]
        %v225 = vld [vmem:[%s190 + $0xc0] sm:$0xff]
        %v226 = vld [vmem:[%s190 + $0xc8] sm:$0xff]
        %v227 = vld [vmem:[%s190 + $0xd0] sm:$0xff]
        %v228 = vld [vmem:[%s190 + $0xd8] sm:$0xff]
        %v229 = vld [vmem:[%s190 + $0xe0] sm:$0xff]
        %v230 = vld [vmem:[%s190 + $0xe8] sm:$0xff]
        %v231 = vld [vmem:[%s190 + $0xf0] sm:$0xff]
        %v232 = vld [vmem:[%s190 + $0xf8] sm:$0xff]
        %v233 = vld [vmem:[%s190 + $0x100] sm:$0xff]
        %v234 = vld [vmem:[%s190 + $0x108] sm:$0xff]
        %v235 = vld [vmem:[%s190 + $0x110] sm:$0xff]
        %v236 = vld [vmem:[%s190 + $0x118] sm:$0xff]
        %v237 = vld [vmem:[%s190 + $0x120] sm:$0xff]
        %v238 = vld [vmem:[%s190 + $0x128] sm:$0xff]
        %v239 = vld [vmem:[%s190 + $0x130] sm:$0xff]
        %v240 = vld [vmem:[%s190 + $0x138] sm:$0xff]
        %v241 = vld [vmem:[%s190 + $0x140] sm:$0xff]
        %v242 = vld [vmem:[%s190 + $0x148] sm:$0xff]
        %v243 = vld [vmem:[%s190 + $0x150] sm:$0xff]
        %v244 = vld [vmem:[%s190 + $0x158] sm:$0xff]
        %v245 = vld [vmem:[%s190 + $0x160] sm:$0xff]
        %v246 = vld [vmem:[%s190 + $0x168] sm:$0xff]
        %v247 = vld [vmem:[%s190 + $0x170] sm:$0xff]
        %v248 = vld [vmem:[%s190 + $0x178] sm:$0xff]
        %v249 = vld [vmem:[%s190 + $0x180] sm:$0xff]
        %v250 = vld [vmem:[%s190 + $0x188] sm:$0xff]
        %v251 = vld [vmem:[%s190 + $0x190] sm:$0xff]
        %v252 = vld [vmem:[%s190 + $0x198] sm:$0xff]
        %v253 = vld [vmem:[%s190 + $0x1a0] sm:$0xff]
        %v254 = vld [vmem:[%s190 + $0x1a8] sm:$0xff]
        %v255 = vld [vmem:[%s190 + $0x1b0] sm:$0xff]
        %v256 = vld [vmem:[%s190 + $0x1b8] sm:$0xff]
        %v257 = vld [vmem:[%s190 + $0x1c0] sm:$0xff]
        %v258 = vld [vmem:[%s190 + $0x1c8] sm:$0xff]
        %v259 = vld [vmem:[%s190 + $0x1d0] sm:$0xff]
        %v260 = vld [vmem:[%s190 + $0x1d8] sm:$0xff]
        %v261 = vld [vmem:[%s190 + $0x1e0] sm:$0xff]
        %v262 = vld [vmem:[%s190 + $0x1e8] sm:$0xff]
        %v263 = vld [vmem:[%s190 + $0x1f0] sm:$0xff]
        %v264 = vld [vmem:[%s190 + $0x1f8] sm:$0xff]
        %v265 = vld [vmem:[%s190 + $0x200] sm:$0xff]
        %v266 = vld [vmem:[%s190 + $0x208] sm:$0xff]
        %v267 = vld [vmem:[%s190 + $0x210] sm:$0xff]
        %v268 = vld [vmem:[%s190 + $0x218] sm:$0xff]
        %v269 = vld [vmem:[%s190 + $0x220] sm:$0xff]
        %v270 = vld [vmem:[%s190 + $0x228] sm:$0xff]
        %v271 = vld [vmem:[%s190 + $0x230] sm:$0xff]
        %v272 = vld [vmem:[%s190 + $0x238] sm:$0xff]
        %v273 = vld [vmem:[%s190 + $0x240] sm:$0xff]
        %v274 = vld [vmem:[%s190 + $0x248] sm:$0xff]
        %v275 = vld [vmem:[%s190 + $0x250] sm:$0xff]
        %v276 = vld [vmem:[%s190 + $0x258] sm:$0xff]
        %v277 = vld [vmem:[%s190 + $0x260] sm:$0xff]
        %v278 = vld [vmem:[%s190 + $0x268] sm:$0xff]
        %v279 = vld [vmem:[%s190 + $0x270] sm:$0xff]
        %v280 = vld [vmem:[%s190 + $0x278] sm:$0xff]
        %v281 = vld [vmem:[%s190 + $0x280] sm:$0xff]
        %v282 = vld [vmem:[%s190 + $0x288] sm:$0xff]
        %v283 = vld [vmem:[%s190 + $0x290] sm:$0xff]
        %v284 = vld [vmem:[%s190 + $0x298] sm:$0xff]
        %v285 = vld [vmem:[%s190 + $0x2a0] sm:$0xff]
        %v286 = vld [vmem:[%s190 + $0x2a8] sm:$0xff]
        %v287 = vld [vmem:[%s190 + $0x2b0] sm:$0xff]
        %v288 = vld [vmem:[%s190 + $0x2b8] sm:$0xff]
        %v289 = vld [vmem:[%s190 + $0x2c0] sm:$0xff]
        %v290 = vld [vmem:[%s190 + $0x2c8] sm:$0xff]
        %v291 = vld [vmem:[%s190 + $0x2d0] sm:$0xff]
        %v292 = vld [vmem:[%s190 + $0x2d8] sm:$0xff]
        %v293 = vld [vmem:[%s190 + $0x2e0] sm:$0xff]
        %v294 = vld [vmem:[%s190 + $0x2e8] sm:$0xff]
        %v295 = vld [vmem:[%s190 + $0x2f0] sm:$0xff]
        %v296 = vld [vmem:[%s190 + $0x2f8] sm:$0xff]
        %v297 = vld [vmem:[%s190 + $0x300] sm:$0xff]
        %v298 = vld [vmem:[%s190 + $0x308] sm:$0xff]
        %v299 = vld [vmem:[%s190 + $0x310] sm:$0xff]
        %v300 = vld [vmem:[%s190 + $0x318] sm:$0xff]
        %v301 = vld [vmem:[%s190 + $0x320] sm:$0xff]
        %v302 = vld [vmem:[%s190 + $0x328] sm:$0xff]
        %v303 = vld [vmem:[%s190 + $0x330] sm:$0xff]
        %v304 = vld [vmem:[%s190 + $0x338] sm:$0xff]
        %v305 = vld [vmem:[%s190 + $0x340] sm:$0xff]
        %v306 = vld [vmem:[%s190 + $0x348] sm:$0xff]
        %v307 = vld [vmem:[%s190 + $0x350] sm:$0xff]
        %v308 = vld [vmem:[%s190 + $0x358] sm:$0xff]
        %v309 = vld [vmem:[%s190 + $0x360] sm:$0xff]
        %v310 = vld [vmem:[%s190 + $0x368] sm:$0xff]
        %v311 = vld [vmem:[%s190 + $0x370] sm:$0xff]
        %v312 = vld [vmem:[%s190 + $0x378] sm:$0xff]
        %v313 = vld [vmem:[%s190 + $0x380] sm:$0xff]
        %v314 = vld [vmem:[%s190 + $0x388] sm:$0xff]
        %v315 = vld [vmem:[%s190 + $0x390] sm:$0xff]
        %v316 = vld [vmem:[%s190 + $0x398] sm:$0xff]
        %v317 = vld [vmem:[%s190 + $0x3a0] sm:$0xff]
        %v318 = vld [vmem:[%s190 + $0x3a8] sm:$0xff]
        %v319 = vld [vmem:[%s190 + $0x3b0] sm:$0xff]
        %v320 = vld [vmem:[%s190 + $0x3b8] sm:$0xff]
        %v321 = vld [vmem:[%s190 + $0x3c0] sm:$0xff]
        %v322 = vld [vmem:[%s190 + $0x3c8] sm:$0xff]
        %v323 = vld [vmem:[%s190 + $0x3d0] sm:$0xff]
        %v324 = vld [vmem:[%s190 + $0x3d8] sm:$0xff]
        %v325 = vld [vmem:[%s190 + $0x3e0] sm:$0xff]
        %v326 = vld [vmem:[%s190 + $0x3e8] sm:$0xff]
        %v327 = vld [vmem:[%s190 + $0x3f0] sm:$0xff]
        %v328 = vld [vmem:[%s190 + $0x3f8] sm:$0xff]
        %v329 = vunpack.c.l.bf16 %v201
        %v330 = vunpack.c.h.bf16 %v201
        %v331 = vunpack.c.l.bf16 %v202
        %v332 = vunpack.c.h.bf16 %v202
        %v333 = vunpack.c.l.bf16 %v203
        %v334 = vunpack.c.h.bf16 %v203
        %v335 = vunpack.c.l.bf16 %v204
        %v336 = vunpack.c.h.bf16 %v204
        %v337 = vunpack.c.l.bf16 %v205
        %v338 = vunpack.c.h.bf16 %v205
        %v339 = vunpack.c.l.bf16 %v206
        %v340 = vunpack.c.h.bf16 %v206
        %v341 = vunpack.c.l.bf16 %v207
        %v342 = vunpack.c.h.bf16 %v207
        %v343 = vunpack.c.l.bf16 %v208
        %v344 = vunpack.c.h.bf16 %v208
        %v345 = vunpack.c.l.bf16 %v209
        %v346 = vunpack.c.h.bf16 %v209
        %v347 = vunpack.c.l.bf16 %v210
        %v348 = vunpack.c.h.bf16 %v210
        %v349 = vunpack.c.l.bf16 %v211
        %v350 = vunpack.c.h.bf16 %v211
        %v351 = vunpack.c.l.bf16 %v212
        %v352 = vunpack.c.h.bf16 %v212
        %v353 = vunpack.c.l.bf16 %v213
        %v354 = vunpack.c.h.bf16 %v213
        %v355 = vunpack.c.l.bf16 %v214
        %v356 = vunpack.c.h.bf16 %v214
        %v357 = vunpack.c.l.bf16 %v215
        %v358 = vunpack.c.h.bf16 %v215
        %v359 = vunpack.c.l.bf16 %v216
        %v360 = vunpack.c.h.bf16 %v216
        %v361 = vunpack.c.l.bf16 %v217
        %v362 = vunpack.c.h.bf16 %v217
        %v363 = vunpack.c.l.bf16 %v218
        %v364 = vunpack.c.h.bf16 %v218
        %v365 = vunpack.c.l.bf16 %v219
        %v366 = vunpack.c.h.bf16 %v219
        %v367 = vunpack.c.l.bf16 %v220
        %v368 = vunpack.c.h.bf16 %v220
        %v369 = vunpack.c.l.bf16 %v221
        %v370 = vunpack.c.h.bf16 %v221
        %v371 = vunpack.c.l.bf16 %v222
        %v372 = vunpack.c.h.bf16 %v222
        %v373 = vunpack.c.l.bf16 %v223
        %v374 = vunpack.c.h.bf16 %v223
        %v375 = vunpack.c.l.bf16 %v224
        %v376 = vunpack.c.h.bf16 %v224
        %v377 = vunpack.c.l.bf16 %v225
        %v378 = vunpack.c.h.bf16 %v225
        %v379 = vunpack.c.l.bf16 %v226
        %v380 = vunpack.c.h.bf16 %v226
        %v381 = vunpack.c.l.bf16 %v227
        %v382 = vunpack.c.h.bf16 %v227
        %v383 = vunpack.c.l.bf16 %v228
        %v384 = vunpack.c.h.bf16 %v228
        %v385 = vunpack.c.l.bf16 %v229
        %v386 = vunpack.c.h.bf16 %v229
        %v387 = vunpack.c.l.bf16 %v230
        %v388 = vunpack.c.h.bf16 %v230
        %v389 = vunpack.c.l.bf16 %v231
        %v390 = vunpack.c.h.bf16 %v231
        %v391 = vunpack.c.l.bf16 %v232
        %v392 = vunpack.c.h.bf16 %v232
        %v393 = vunpack.c.l.bf16 %v233
        %v394 = vunpack.c.h.bf16 %v233
        %v395 = vunpack.c.l.bf16 %v234
        %v396 = vunpack.c.h.bf16 %v234
        %v397 = vunpack.c.l.bf16 %v235
        %v398 = vunpack.c.h.bf16 %v235
        %v399 = vunpack.c.l.bf16 %v236
        %v400 = vunpack.c.h.bf16 %v236
        %v401 = vunpack.c.l.bf16 %v237
        %v402 = vunpack.c.h.bf16 %v237
        %v403 = vunpack.c.l.bf16 %v238
        %v404 = vunpack.c.h.bf16 %v238
        %v405 = vunpack.c.l.bf16 %v239
        %v406 = vunpack.c.h.bf16 %v239
        %v407 = vunpack.c.l.bf16 %v240
        %v408 = vunpack.c.h.bf16 %v240
        %v409 = vunpack.c.l.bf16 %v241
        %v410 = vunpack.c.h.bf16 %v241
        %v411 = vunpack.c.l.bf16 %v242
        %v412 = vunpack.c.h.bf16 %v242
        %v413 = vunpack.c.l.bf16 %v243
        %v414 = vunpack.c.h.bf16 %v243
        %v415 = vunpack.c.l.bf16 %v244
        %v416 = vunpack.c.h.bf16 %v244
        %v417 = vunpack.c.l.bf16 %v245
        %v418 = vunpack.c.h.bf16 %v245
        %v419 = vunpack.c.l.bf16 %v246
        %v420 = vunpack.c.h.bf16 %v246
        %v421 = vunpack.c.l.bf16 %v247
        %v422 = vunpack.c.h.bf16 %v247
        %v423 = vunpack.c.l.bf16 %v248
        %v424 = vunpack.c.h.bf16 %v248
        %v425 = vunpack.c.l.bf16 %v249
        %v426 = vunpack.c.h.bf16 %v249
        %v427 = vunpack.c.l.bf16 %v250
        %v428 = vunpack.c.h.bf16 %v250
        %v429 = vunpack.c.l.bf16 %v251
        %v430 = vunpack.c.h.bf16 %v251
        %v431 = vunpack.c.l.bf16 %v252
        %v432 = vunpack.c.h.bf16 %v252
        %v433 = vunpack.c.l.bf16 %v253
        %v434 = vunpack.c.h.bf16 %v253
        %v435 = vunpack.c.l.bf16 %v254
        %v436 = vunpack.c.h.bf16 %v254
        %v437 = vunpack.c.l.bf16 %v255
        %v438 = vunpack.c.h.bf16 %v255
        %v439 = vunpack.c.l.bf16 %v256
        %v440 = vunpack.c.h.bf16 %v256
        %v441 = vunpack.c.l.bf16 %v257
        %v442 = vunpack.c.h.bf16 %v257
        %v443 = vunpack.c.l.bf16 %v258
        %v444 = vunpack.c.h.bf16 %v258
        %v445 = vunpack.c.l.bf16 %v259
        %v446 = vunpack.c.h.bf16 %v259
        %v447 = vunpack.c.l.bf16 %v260
        %v448 = vunpack.c.h.bf16 %v260
        %v449 = vunpack.c.l.bf16 %v261
        %v450 = vunpack.c.h.bf16 %v261
        %v451 = vunpack.c.l.bf16 %v262
        %v452 = vunpack.c.h.bf16 %v262
        %v453 = vunpack.c.l.bf16 %v263
        %v454 = vunpack.c.h.bf16 %v263
        %v455 = vunpack.c.l.bf16 %v264
        %v456 = vunpack.c.h.bf16 %v264
        %v457 = vunpack.c.l.bf16 %v265
        %v458 = vunpack.c.h.bf16 %v265
        %v459 = vunpack.c.l.bf16 %v266
        %v460 = vunpack.c.h.bf16 %v266
        %v461 = vunpack.c.l.bf16 %v267
        %v462 = vunpack.c.h.bf16 %v267
        %v463 = vunpack.c.l.bf16 %v268
        %v464 = vunpack.c.h.bf16 %v268
        %v465 = vunpack.c.l.bf16 %v269
        %v466 = vunpack.c.h.bf16 %v269
        %v467 = vunpack.c.l.bf16 %v270
        %v468 = vunpack.c.h.bf16 %v270
        %v469 = vunpack.c.l.bf16 %v271
        %v470 = vunpack.c.h.bf16 %v271
        %v471 = vunpack.c.l.bf16 %v272
        %v472 = vunpack.c.h.bf16 %v272
        %v473 = vunpack.c.l.bf16 %v273
        %v474 = vunpack.c.h.bf16 %v273
        %v475 = vunpack.c.l.bf16 %v274
        %v476 = vunpack.c.h.bf16 %v274
        %v477 = vunpack.c.l.bf16 %v275
        %v478 = vunpack.c.h.bf16 %v275
        %v479 = vunpack.c.l.bf16 %v276
        %v480 = vunpack.c.h.bf16 %v276
        %v481 = vunpack.c.l.bf16 %v277
        %v482 = vunpack.c.h.bf16 %v277
        %v483 = vunpack.c.l.bf16 %v278
        %v484 = vunpack.c.h.bf16 %v278
        %v485 = vunpack.c.l.bf16 %v279
        %v486 = vunpack.c.h.bf16 %v279
        %v487 = vunpack.c.l.bf16 %v280
        %v488 = vunpack.c.h.bf16 %v280
        %v489 = vunpack.c.l.bf16 %v281
        %v490 = vunpack.c.h.bf16 %v281
        %v491 = vunpack.c.l.bf16 %v282
        %v492 = vunpack.c.h.bf16 %v282
        %v493 = vunpack.c.l.bf16 %v283
        %v494 = vunpack.c.h.bf16 %v283
        %v495 = vunpack.c.l.bf16 %v284
        %v496 = vunpack.c.h.bf16 %v284
        %v497 = vunpack.c.l.bf16 %v285
        %v498 = vunpack.c.h.bf16 %v285
        %v499 = vunpack.c.l.bf16 %v286
        %v500 = vunpack.c.h.bf16 %v286
        %v501 = vunpack.c.l.bf16 %v287
        %v502 = vunpack.c.h.bf16 %v287
        %v503 = vunpack.c.l.bf16 %v288
        %v504 = vunpack.c.h.bf16 %v288
        %v505 = vunpack.c.l.bf16 %v289
        %v506 = vunpack.c.h.bf16 %v289
        %v507 = vunpack.c.l.bf16 %v290
        %v508 = vunpack.c.h.bf16 %v290
        %v509 = vunpack.c.l.bf16 %v291
        %v510 = vunpack.c.h.bf16 %v291
        %v511 = vunpack.c.l.bf16 %v292
        %v512 = vunpack.c.h.bf16 %v292
        %v513 = vunpack.c.l.bf16 %v293
        %v514 = vunpack.c.h.bf16 %v293
        %v515 = vunpack.c.l.bf16 %v294
        %v516 = vunpack.c.h.bf16 %v294
        %v517 = vunpack.c.l.bf16 %v295
        %v518 = vunpack.c.h.bf16 %v295
        %v519 = vunpack.c.l.bf16 %v296
        %v520 = vunpack.c.h.bf16 %v296
        %v521 = vunpack.c.l.bf16 %v297
        %v522 = vunpack.c.h.bf16 %v297
        %v523 = vunpack.c.l.bf16 %v298
        %v524 = vunpack.c.h.bf16 %v298
        %v525 = vunpack.c.l.bf16 %v299
        %v526 = vunpack.c.h.bf16 %v299
        %v527 = vunpack.c.l.bf16 %v300
        %v528 = vunpack.c.h.bf16 %v300
        %v529 = vunpack.c.l.bf16 %v301
        %v530 = vunpack.c.h.bf16 %v301
        %v531 = vunpack.c.l.bf16 %v302
        %v532 = vunpack.c.h.bf16 %v302
        %v533 = vunpack.c.l.bf16 %v303
        %v534 = vunpack.c.h.bf16 %v303
        %v535 = vunpack.c.l.bf16 %v304
        %v536 = vunpack.c.h.bf16 %v304
        %v537 = vunpack.c.l.bf16 %v305
        %v538 = vunpack.c.h.bf16 %v305
        %v539 = vunpack.c.l.bf16 %v306
        %v540 = vunpack.c.h.bf16 %v306
        %v541 = vunpack.c.l.bf16 %v307
        %v542 = vunpack.c.h.bf16 %v307
        %v543 = vunpack.c.l.bf16 %v308
        %v544 = vunpack.c.h.bf16 %v308
        %v545 = vunpack.c.l.bf16 %v309
        %v546 = vunpack.c.h.bf16 %v309
        %v547 = vunpack.c.l.bf16 %v310
        %v548 = vunpack.c.h.bf16 %v310
        %v549 = vunpack.c.l.bf16 %v311
        %v550 = vunpack.c.h.bf16 %v311
        %v551 = vunpack.c.l.bf16 %v312
        %v552 = vunpack.c.h.bf16 %v312
        %v553 = vunpack.c.l.bf16 %v313
        %v554 = vunpack.c.h.bf16 %v313
        %v555 = vunpack.c.l.bf16 %v314
        %v556 = vunpack.c.h.bf16 %v314
        %v557 = vunpack.c.l.bf16 %v315
        %v558 = vunpack.c.h.bf16 %v315
        %v559 = vunpack.c.l.bf16 %v316
        %v560 = vunpack.c.h.bf16 %v316
        %v561 = vunpack.c.l.bf16 %v317
        %v562 = vunpack.c.h.bf16 %v317
        %v563 = vunpack.c.l.bf16 %v318
        %v564 = vunpack.c.h.bf16 %v318
        %v565 = vunpack.c.l.bf16 %v319
        %v566 = vunpack.c.h.bf16 %v319
        %v567 = vunpack.c.l.bf16 %v320
        %v568 = vunpack.c.h.bf16 %v320
        %v569 = vunpack.c.l.bf16 %v321
        %v570 = vunpack.c.h.bf16 %v321
        %v571 = vunpack.c.l.bf16 %v322
        %v572 = vunpack.c.h.bf16 %v322
        %v573 = vunpack.c.l.bf16 %v323
        %v574 = vunpack.c.h.bf16 %v323
        %v575 = vunpack.c.l.bf16 %v324
        %v576 = vunpack.c.h.bf16 %v324
        %v577 = vunpack.c.l.bf16 %v325
        %v578 = vunpack.c.h.bf16 %v325
        %v579 = vunpack.c.l.bf16 %v326
        %v580 = vunpack.c.h.bf16 %v326
        %v581 = vunpack.c.l.bf16 %v327
        %v582 = vunpack.c.h.bf16 %v327
        %v583 = vunpack.c.l.bf16 %v328
        %v584 = vunpack.c.h.bf16 %v328
        %v585 = vld [vmem:[%s197] sm:$0xff]
        %v586 = vld [vmem:[%s197 + $0x8] sm:$0xff]
        %v587 = vld [vmem:[%s197 + $0x10] sm:$0xff]
        %v588 = vld [vmem:[%s197 + $0x18] sm:$0xff]
        %v589 = vld [vmem:[%s197 + $0x20] sm:$0xff]
        %v590 = vld [vmem:[%s197 + $0x28] sm:$0xff]
        %v591 = vld [vmem:[%s197 + $0x30] sm:$0xff]
        %v592 = vld [vmem:[%s197 + $0x38] sm:$0xff]
        %v593 = vld [vmem:[%s197 + $0x40] sm:$0xff]
        %v594 = vld [vmem:[%s197 + $0x48] sm:$0xff]
        %v595 = vld [vmem:[%s197 + $0x50] sm:$0xff]
        %v596 = vld [vmem:[%s197 + $0x58] sm:$0xff]
        %v597 = vld [vmem:[%s197 + $0x60] sm:$0xff]
        %v598 = vld [vmem:[%s197 + $0x68] sm:$0xff]
        %v599 = vld [vmem:[%s197 + $0x70] sm:$0xff]
        %v600 = vld [vmem:[%s197 + $0x78] sm:$0xff]
        %v601 = vld [vmem:[%s197 + $0x80] sm:$0xff]
        %v602 = vld [vmem:[%s197 + $0x88] sm:$0xff]
        %v603 = vld [vmem:[%s197 + $0x90] sm:$0xff]
        %v604 = vld [vmem:[%s197 + $0x98] sm:$0xff]
        %v605 = vld [vmem:[%s197 + $0xa0] sm:$0xff]
        %v606 = vld [vmem:[%s197 + $0xa8] sm:$0xff]
        %v607 = vld [vmem:[%s197 + $0xb0] sm:$0xff]
        %v608 = vld [vmem:[%s197 + $0xb8] sm:$0xff]
        %v609 = vld [vmem:[%s197 + $0xc0] sm:$0xff]
        %v610 = vld [vmem:[%s197 + $0xc8] sm:$0xff]
        %v611 = vld [vmem:[%s197 + $0xd0] sm:$0xff]
        %v612 = vld [vmem:[%s197 + $0xd8] sm:$0xff]
        %v613 = vld [vmem:[%s197 + $0xe0] sm:$0xff]
        %v614 = vld [vmem:[%s197 + $0xe8] sm:$0xff]
        %v615 = vld [vmem:[%s197 + $0xf0] sm:$0xff]
        %v616 = vld [vmem:[%s197 + $0xf8] sm:$0xff]
        %618 = vset.pattern.permute.xlu0 0
        %619 = vperm.xlu0 %618, %v585
        %v620 = vpop.permute.xlu0 %619
        %623 = vset.pattern.permute.xlu0 0
        %624 = vperm.xlu0 %623, %v586
        %v625 = vpop.permute.xlu0 %624
        %628 = vset.pattern.permute.xlu0 0
        %629 = vperm.xlu0 %628, %v587
        %v630 = vpop.permute.xlu0 %629
        %633 = vset.pattern.permute.xlu0 0
        %634 = vperm.xlu0 %633, %v588
        %v635 = vpop.permute.xlu0 %634
        %638 = vset.pattern.permute.xlu0 0
        %639 = vperm.xlu0 %638, %v589
        %v640 = vpop.permute.xlu0 %639
        %643 = vset.pattern.permute.xlu0 0
        %644 = vperm.xlu0 %643, %v590
        %v645 = vpop.permute.xlu0 %644
        %648 = vset.pattern.permute.xlu0 0
        %649 = vperm.xlu0 %648, %v591
        %v650 = vpop.permute.xlu0 %649
        %653 = vset.pattern.permute.xlu0 0
        %654 = vperm.xlu0 %653, %v592
        %v655 = vpop.permute.xlu0 %654
        %658 = vset.pattern.permute.xlu0 0
        %659 = vperm.xlu0 %658, %v593
        %v660 = vpop.permute.xlu0 %659
        %663 = vset.pattern.permute.xlu0 0
        %664 = vperm.xlu0 %663, %v594
        %v665 = vpop.permute.xlu0 %664
        %668 = vset.pattern.permute.xlu0 0
        %669 = vperm.xlu0 %668, %v595
        %v670 = vpop.permute.xlu0 %669
        %673 = vset.pattern.permute.xlu0 0
        %674 = vperm.xlu0 %673, %v596
        %v675 = vpop.permute.xlu0 %674
        %678 = vset.pattern.permute.xlu0 0
        %679 = vperm.xlu0 %678, %v597
        %v680 = vpop.permute.xlu0 %679
        %683 = vset.pattern.permute.xlu0 0
        %684 = vperm.xlu0 %683, %v598
        %v685 = vpop.permute.xlu0 %684
        %688 = vset.pattern.permute.xlu0 0
        %689 = vperm.xlu0 %688, %v599
        %v690 = vpop.permute.xlu0 %689
        %693 = vset.pattern.permute.xlu0 0
        %694 = vperm.xlu0 %693, %v600
        %v695 = vpop.permute.xlu0 %694
        %698 = vset.pattern.permute.xlu0 0
        %699 = vperm.xlu0 %698, %v601
        %v700 = vpop.permute.xlu0 %699
        %703 = vset.pattern.permute.xlu0 0
        %704 = vperm.xlu0 %703, %v602
        %v705 = vpop.permute.xlu0 %704
        %708 = vset.pattern.permute.xlu0 0
        %709 = vperm.xlu0 %708, %v603
        %v710 = vpop.permute.xlu0 %709
        %713 = vset.pattern.permute.xlu0 0
        %714 = vperm.xlu0 %713, %v604
        %v715 = vpop.permute.xlu0 %714
        %718 = vset.pattern.permute.xlu0 0
        %719 = vperm.xlu0 %718, %v605
        %v720 = vpop.permute.xlu0 %719
        %723 = vset.pattern.permute.xlu0 0
        %724 = vperm.xlu0 %723, %v606
        %v725 = vpop.permute.xlu0 %724
        %728 = vset.pattern.permute.xlu0 0
        %729 = vperm.xlu0 %728, %v607
        %v730 = vpop.permute.xlu0 %729
        %733 = vset.pattern.permute.xlu0 0
        %734 = vperm.xlu0 %733, %v608
        %v735 = vpop.permute.xlu0 %734
        %738 = vset.pattern.permute.xlu0 0
        %739 = vperm.xlu0 %738, %v609
        %v740 = vpop.permute.xlu0 %739
        %743 = vset.pattern.permute.xlu0 0
        %744 = vperm.xlu0 %743, %v610
        %v745 = vpop.permute.xlu0 %744
        %748 = vset.pattern.permute.xlu0 0
        %749 = vperm.xlu0 %748, %v611
        %v750 = vpop.permute.xlu0 %749
        %753 = vset.pattern.permute.xlu0 0
        %754 = vperm.xlu0 %753, %v612
        %v755 = vpop.permute.xlu0 %754
        %758 = vset.pattern.permute.xlu0 0
        %759 = vperm.xlu0 %758, %v613
        %v760 = vpop.permute.xlu0 %759
        %763 = vset.pattern.permute.xlu0 0
        %764 = vperm.xlu0 %763, %v614
        %v765 = vpop.permute.xlu0 %764
        %768 = vset.pattern.permute.xlu0 0
        %769 = vperm.xlu0 %768, %v615
        %v770 = vpop.permute.xlu0 %769
        %773 = vset.pattern.permute.xlu0 0
        %774 = vperm.xlu0 %773, %v616
        %v775 = vpop.permute.xlu0 %774
        %v777 = vsub.f32 %v329, %v620
        %v778 = vsub.f32 %v330, %v620
        %v779 = vsub.f32 %v331, %v620
        %v780 = vsub.f32 %v332, %v620
        %v781 = vsub.f32 %v333, %v620
        %v782 = vsub.f32 %v334, %v620
        %v783 = vsub.f32 %v335, %v620
        %v784 = vsub.f32 %v336, %v620
        %v785 = vsub.f32 %v337, %v625
        %v786 = vsub.f32 %v338, %v625
        %v787 = vsub.f32 %v339, %v625
        %v788 = vsub.f32 %v340, %v625
        %v789 = vsub.f32 %v341, %v625
        %v790 = vsub.f32 %v342, %v625
        %v791 = vsub.f32 %v343, %v625
        %v792 = vsub.f32 %v344, %v625
        %v793 = vsub.f32 %v345, %v630
        %v794 = vsub.f32 %v346, %v630
        %v795 = vsub.f32 %v347, %v630
        %v796 = vsub.f32 %v348, %v630
        %v797 = vsub.f32 %v349, %v630
        %v798 = vsub.f32 %v350, %v630
        %v799 = vsub.f32 %v351, %v630
        %v800 = vsub.f32 %v352, %v630
        %v801 = vsub.f32 %v353, %v635
        %v802 = vsub.f32 %v354, %v635
        %v803 = vsub.f32 %v355, %v635
        %v804 = vsub.f32 %v356, %v635
        %v805 = vsub.f32 %v357, %v635
        %v806 = vsub.f32 %v358, %v635
        %v807 = vsub.f32 %v359, %v635
        %v808 = vsub.f32 %v360, %v635
        %v809 = vsub.f32 %v361, %v640
        %v810 = vsub.f32 %v362, %v640
        %v811 = vsub.f32 %v363, %v640
        %v812 = vsub.f32 %v364, %v640
        %v813 = vsub.f32 %v365, %v640
        %v814 = vsub.f32 %v366, %v640
        %v815 = vsub.f32 %v367, %v640
        %v816 = vsub.f32 %v368, %v640
        %v817 = vsub.f32 %v369, %v645
        %v818 = vsub.f32 %v370, %v645
        %v819 = vsub.f32 %v371, %v645
        %v820 = vsub.f32 %v372, %v645
        %v821 = vsub.f32 %v373, %v645
        %v822 = vsub.f32 %v374, %v645
        %v823 = vsub.f32 %v375, %v645
        %v824 = vsub.f32 %v376, %v645
        %v825 = vsub.f32 %v377, %v650
        %v826 = vsub.f32 %v378, %v650
        %v827 = vsub.f32 %v379, %v650
        %v828 = vsub.f32 %v380, %v650
        %v829 = vsub.f32 %v381, %v650
        %v830 = vsub.f32 %v382, %v650
        %v831 = vsub.f32 %v383, %v650
        %v832 = vsub.f32 %v384, %v650
        %v833 = vsub.f32 %v385, %v655
        %v834 = vsub.f32 %v386, %v655
        %v835 = vsub.f32 %v387, %v655
        %v836 = vsub.f32 %v388, %v655
        %v837 = vsub.f32 %v389, %v655
        %v838 = vsub.f32 %v390, %v655
        %v839 = vsub.f32 %v391, %v655
        %v840 = vsub.f32 %v392, %v655
        %v841 = vsub.f32 %v393, %v660
        %v842 = vsub.f32 %v394, %v660
        %v843 = vsub.f32 %v395, %v660
        %v844 = vsub.f32 %v396, %v660
        %v845 = vsub.f32 %v397, %v660
        %v846 = vsub.f32 %v398, %v660
        %v847 = vsub.f32 %v399, %v660
        %v848 = vsub.f32 %v400, %v660
        %v849 = vsub.f32 %v401, %v665
        %v850 = vsub.f32 %v402, %v665
        %v851 = vsub.f32 %v403, %v665
        %v852 = vsub.f32 %v404, %v665
        %v853 = vsub.f32 %v405, %v665
        %v854 = vsub.f32 %v406, %v665
        %v855 = vsub.f32 %v407, %v665
        %v856 = vsub.f32 %v408, %v665
        %v857 = vsub.f32 %v409, %v670
        %v858 = vsub.f32 %v410, %v670
        %v859 = vsub.f32 %v411, %v670
        %v860 = vsub.f32 %v412, %v670
        %v861 = vsub.f32 %v413, %v670
        %v862 = vsub.f32 %v414, %v670
        %v863 = vsub.f32 %v415, %v670
        %v864 = vsub.f32 %v416, %v670
        %v865 = vsub.f32 %v417, %v675
        %v866 = vsub.f32 %v418, %v675
        %v867 = vsub.f32 %v419, %v675
        %v868 = vsub.f32 %v420, %v675
        %v869 = vsub.f32 %v421, %v675
        %v870 = vsub.f32 %v422, %v675
        %v871 = vsub.f32 %v423, %v675
        %v872 = vsub.f32 %v424, %v675
        %v873 = vsub.f32 %v425, %v680
        %v874 = vsub.f32 %v426, %v680
        %v875 = vsub.f32 %v427, %v680
        %v876 = vsub.f32 %v428, %v680
        %v877 = vsub.f32 %v429, %v680
        %v878 = vsub.f32 %v430, %v680
        %v879 = vsub.f32 %v431, %v680
        %v880 = vsub.f32 %v432, %v680
        %v881 = vsub.f32 %v433, %v685
        %v882 = vsub.f32 %v434, %v685
        %v883 = vsub.f32 %v435, %v685
        %v884 = vsub.f32 %v436, %v685
        %v885 = vsub.f32 %v437, %v685
        %v886 = vsub.f32 %v438, %v685
        %v887 = vsub.f32 %v439, %v685
        %v888 = vsub.f32 %v440, %v685
        %v889 = vsub.f32 %v441, %v690
        %v890 = vsub.f32 %v442, %v690
        %v891 = vsub.f32 %v443, %v690
        %v892 = vsub.f32 %v444, %v690
        %v893 = vsub.f32 %v445, %v690
        %v894 = vsub.f32 %v446, %v690
        %v895 = vsub.f32 %v447, %v690
        %v896 = vsub.f32 %v448, %v690
        %v897 = vsub.f32 %v449, %v695
        %v898 = vsub.f32 %v450, %v695
        %v899 = vsub.f32 %v451, %v695
        %v900 = vsub.f32 %v452, %v695
        %v901 = vsub.f32 %v453, %v695
        %v902 = vsub.f32 %v454, %v695
        %v903 = vsub.f32 %v455, %v695
        %v904 = vsub.f32 %v456, %v695
        %v905 = vsub.f32 %v457, %v700
        %v906 = vsub.f32 %v458, %v700
        %v907 = vsub.f32 %v459, %v700
        %v908 = vsub.f32 %v460, %v700
        %v909 = vsub.f32 %v461, %v700
        %v910 = vsub.f32 %v462, %v700
        %v911 = vsub.f32 %v463, %v700
        %v912 = vsub.f32 %v464, %v700
        %v913 = vsub.f32 %v465, %v705
        %v914 = vsub.f32 %v466, %v705
        %v915 = vsub.f32 %v467, %v705
        %v916 = vsub.f32 %v468, %v705
        %v917 = vsub.f32 %v469, %v705
        %v918 = vsub.f32 %v470, %v705
        %v919 = vsub.f32 %v471, %v705
        %v920 = vsub.f32 %v472, %v705
        %v921 = vsub.f32 %v473, %v710
        %v922 = vsub.f32 %v474, %v710
        %v923 = vsub.f32 %v475, %v710
        %v924 = vsub.f32 %v476, %v710
        %v925 = vsub.f32 %v477, %v710
        %v926 = vsub.f32 %v478, %v710
        %v927 = vsub.f32 %v479, %v710
        %v928 = vsub.f32 %v480, %v710
        %v929 = vsub.f32 %v481, %v715
        %v930 = vsub.f32 %v482, %v715
        %v931 = vsub.f32 %v483, %v715
        %v932 = vsub.f32 %v484, %v715
        %v933 = vsub.f32 %v485, %v715
        %v934 = vsub.f32 %v486, %v715
        %v935 = vsub.f32 %v487, %v715
        %v936 = vsub.f32 %v488, %v715
        %v937 = vsub.f32 %v489, %v720
        %v938 = vsub.f32 %v490, %v720
        %v939 = vsub.f32 %v491, %v720
        %v940 = vsub.f32 %v492, %v720
        %v941 = vsub.f32 %v493, %v720
        %v942 = vsub.f32 %v494, %v720
        %v943 = vsub.f32 %v495, %v720
        %v944 = vsub.f32 %v496, %v720
        %v945 = vsub.f32 %v497, %v725
        %v946 = vsub.f32 %v498, %v725
        %v947 = vsub.f32 %v499, %v725
        %v948 = vsub.f32 %v500, %v725
        %v949 = vsub.f32 %v501, %v725
        %v950 = vsub.f32 %v502, %v725
        %v951 = vsub.f32 %v503, %v725
        %v952 = vsub.f32 %v504, %v725
        %v953 = vsub.f32 %v505, %v730
        %v954 = vsub.f32 %v506, %v730
        %v955 = vsub.f32 %v507, %v730
        %v956 = vsub.f32 %v508, %v730
        %v957 = vsub.f32 %v509, %v730
        %v958 = vsub.f32 %v510, %v730
        %v959 = vsub.f32 %v511, %v730
        %v960 = vsub.f32 %v512, %v730
        %v961 = vsub.f32 %v513, %v735
        %v962 = vsub.f32 %v514, %v735
        %v963 = vsub.f32 %v515, %v735
        %v964 = vsub.f32 %v516, %v735
        %v965 = vsub.f32 %v517, %v735
        %v966 = vsub.f32 %v518, %v735
        %v967 = vsub.f32 %v519, %v735
        %v968 = vsub.f32 %v520, %v735
        %v969 = vsub.f32 %v521, %v740
        %v970 = vsub.f32 %v522, %v740
        %v971 = vsub.f32 %v523, %v740
        %v972 = vsub.f32 %v524, %v740
        %v973 = vsub.f32 %v525, %v740
        %v974 = vsub.f32 %v526, %v740
        %v975 = vsub.f32 %v527, %v740
        %v976 = vsub.f32 %v528, %v740
        %v977 = vsub.f32 %v529, %v745
        %v978 = vsub.f32 %v530, %v745
        %v979 = vsub.f32 %v531, %v745
        %v980 = vsub.f32 %v532, %v745
        %v981 = vsub.f32 %v533, %v745
        %v982 = vsub.f32 %v534, %v745
        %v983 = vsub.f32 %v535, %v745
        %v984 = vsub.f32 %v536, %v745
        %v985 = vsub.f32 %v537, %v750
        %v986 = vsub.f32 %v538, %v750
        %v987 = vsub.f32 %v539, %v750
        %v988 = vsub.f32 %v540, %v750
        %v989 = vsub.f32 %v541, %v750
        %v990 = vsub.f32 %v542, %v750
        %v991 = vsub.f32 %v543, %v750
        %v992 = vsub.f32 %v544, %v750
        %v993 = vsub.f32 %v545, %v755
        %v994 = vsub.f32 %v546, %v755
        %v995 = vsub.f32 %v547, %v755
        %v996 = vsub.f32 %v548, %v755
        %v997 = vsub.f32 %v549, %v755
        %v998 = vsub.f32 %v550, %v755
        %v999 = vsub.f32 %v551, %v755
        %v1000 = vsub.f32 %v552, %v755
        %v1001 = vsub.f32 %v553, %v760
        %v1002 = vsub.f32 %v554, %v760
        %v1003 = vsub.f32 %v555, %v760
        %v1004 = vsub.f32 %v556, %v760
        %v1005 = vsub.f32 %v557, %v760
        %v1006 = vsub.f32 %v558, %v760
        %v1007 = vsub.f32 %v559, %v760
        %v1008 = vsub.f32 %v560, %v760
        %v1009 = vsub.f32 %v561, %v765
        %v1010 = vsub.f32 %v562, %v765
        %v1011 = vsub.f32 %v563, %v765
        %v1012 = vsub.f32 %v564, %v765
        %v1013 = vsub.f32 %v565, %v765
        %v1014 = vsub.f32 %v566, %v765
        %v1015 = vsub.f32 %v567, %v765
        %v1016 = vsub.f32 %v568, %v765
        %v1017 = vsub.f32 %v569, %v770
        %v1018 = vsub.f32 %v570, %v770
        %v1019 = vsub.f32 %v571, %v770
        %v1020 = vsub.f32 %v572, %v770
        %v1021 = vsub.f32 %v573, %v770
        %v1022 = vsub.f32 %v574, %v770
        %v1023 = vsub.f32 %v575, %v770
        %v1024 = vsub.f32 %v576, %v770
        %v1025 = vsub.f32 %v577, %v775
        %v1026 = vsub.f32 %v578, %v775
        %v1027 = vsub.f32 %v579, %v775
        %v1028 = vsub.f32 %v580, %v775
        %v1029 = vsub.f32 %v581, %v775
        %v1030 = vsub.f32 %v582, %v775
        %v1031 = vsub.f32 %v583, %v775
        %v1032 = vsub.f32 %v584, %v775
        %v1033 = vpack.c.bf16 %v778, %v777
        %v1034 = vpack.c.bf16 %v780, %v779
        %v1035 = vpack.c.bf16 %v782, %v781
        %v1036 = vpack.c.bf16 %v784, %v783
        %v1037 = vpack.c.bf16 %v786, %v785
        %v1038 = vpack.c.bf16 %v788, %v787
        %v1039 = vpack.c.bf16 %v790, %v789
        %v1040 = vpack.c.bf16 %v792, %v791
        %v1041 = vpack.c.bf16 %v794, %v793
        %v1042 = vpack.c.bf16 %v796, %v795
        %v1043 = vpack.c.bf16 %v798, %v797
        %v1044 = vpack.c.bf16 %v800, %v799
        %v1045 = vpack.c.bf16 %v802, %v801
        %v1046 = vpack.c.bf16 %v804, %v803
        %v1047 = vpack.c.bf16 %v806, %v805
        %v1048 = vpack.c.bf16 %v808, %v807
        %v1049 = vpack.c.bf16 %v810, %v809
        %v1050 = vpack.c.bf16 %v812, %v811
        %v1051 = vpack.c.bf16 %v814, %v813
        %v1052 = vpack.c.bf16 %v816, %v815
        %v1053 = vpack.c.bf16 %v818, %v817
        %v1054 = vpack.c.bf16 %v820, %v819
        %v1055 = vpack.c.bf16 %v822, %v821
        %v1056 = vpack.c.bf16 %v824, %v823
        %v1057 = vpack.c.bf16 %v826, %v825
        %v1058 = vpack.c.bf16 %v828, %v827
        %v1059 = vpack.c.bf16 %v830, %v829
        %v1060 = vpack.c.bf16 %v832, %v831
        %v1061 = vpack.c.bf16 %v834, %v833
        %v1062 = vpack.c.bf16 %v836, %v835
        %v1063 = vpack.c.bf16 %v838, %v837
        %v1064 = vpack.c.bf16 %v840, %v839
        %v1065 = vpack.c.bf16 %v842, %v841
        %v1066 = vpack.c.bf16 %v844, %v843
        %v1067 = vpack.c.bf16 %v846, %v845
        %v1068 = vpack.c.bf16 %v848, %v847
        %v1069 = vpack.c.bf16 %v850, %v849
        %v1070 = vpack.c.bf16 %v852, %v851
        %v1071 = vpack.c.bf16 %v854, %v853
        %v1072 = vpack.c.bf16 %v856, %v855
        %v1073 = vpack.c.bf16 %v858, %v857
        %v1074 = vpack.c.bf16 %v860, %v859
        %v1075 = vpack.c.bf16 %v862, %v861
        %v1076 = vpack.c.bf16 %v864, %v863
        %v1077 = vpack.c.bf16 %v866, %v865
        %v1078 = vpack.c.bf16 %v868, %v867
        %v1079 = vpack.c.bf16 %v870, %v869
        %v1080 = vpack.c.bf16 %v872, %v871
        %v1081 = vpack.c.bf16 %v874, %v873
        %v1082 = vpack.c.bf16 %v876, %v875
        %v1083 = vpack.c.bf16 %v878, %v877
        %v1084 = vpack.c.bf16 %v880, %v879
        %v1085 = vpack.c.bf16 %v882, %v881
        %v1086 = vpack.c.bf16 %v884, %v883
        %v1087 = vpack.c.bf16 %v886, %v885
        %v1088 = vpack.c.bf16 %v888, %v887
        %v1089 = vpack.c.bf16 %v890, %v889
        %v1090 = vpack.c.bf16 %v892, %v891
        %v1091 = vpack.c.bf16 %v894, %v893
        %v1092 = vpack.c.bf16 %v896, %v895
        %v1093 = vpack.c.bf16 %v898, %v897
        %v1094 = vpack.c.bf16 %v900, %v899
        %v1095 = vpack.c.bf16 %v902, %v901
        %v1096 = vpack.c.bf16 %v904, %v903
        %v1097 = vpack.c.bf16 %v906, %v905
        %v1098 = vpack.c.bf16 %v908, %v907
        %v1099 = vpack.c.bf16 %v910, %v909
        %v1100 = vpack.c.bf16 %v912, %v911
        %v1101 = vpack.c.bf16 %v914, %v913
        %v1102 = vpack.c.bf16 %v916, %v915
        %v1103 = vpack.c.bf16 %v918, %v917
        %v1104 = vpack.c.bf16 %v920, %v919
        %v1105 = vpack.c.bf16 %v922, %v921
        %v1106 = vpack.c.bf16 %v924, %v923
        %v1107 = vpack.c.bf16 %v926, %v925
        %v1108 = vpack.c.bf16 %v928, %v927
        %v1109 = vpack.c.bf16 %v930, %v929
        %v1110 = vpack.c.bf16 %v932, %v931
        %v1111 = vpack.c.bf16 %v934, %v933
        %v1112 = vpack.c.bf16 %v936, %v935
        %v1113 = vpack.c.bf16 %v938, %v937
        %v1114 = vpack.c.bf16 %v940, %v939
        %v1115 = vpack.c.bf16 %v942, %v941
        %v1116 = vpack.c.bf16 %v944, %v943
        %v1117 = vpack.c.bf16 %v946, %v945
        %v1118 = vpack.c.bf16 %v948, %v947
        %v1119 = vpack.c.bf16 %v950, %v949
        %v1120 = vpack.c.bf16 %v952, %v951
        %v1121 = vpack.c.bf16 %v954, %v953
        %v1122 = vpack.c.bf16 %v956, %v955
        %v1123 = vpack.c.bf16 %v958, %v957
        %v1124 = vpack.c.bf16 %v960, %v959
        %v1125 = vpack.c.bf16 %v962, %v961
        %v1126 = vpack.c.bf16 %v964, %v963
        %v1127 = vpack.c.bf16 %v966, %v965
        %v1128 = vpack.c.bf16 %v968, %v967
        %v1129 = vpack.c.bf16 %v970, %v969
        %v1130 = vpack.c.bf16 %v972, %v971
        %v1131 = vpack.c.bf16 %v974, %v973
        %v1132 = vpack.c.bf16 %v976, %v975
        %v1133 = vpack.c.bf16 %v978, %v977
        %v1134 = vpack.c.bf16 %v980, %v979
        %v1135 = vpack.c.bf16 %v982, %v981
        %v1136 = vpack.c.bf16 %v984, %v983
        %v1137 = vpack.c.bf16 %v986, %v985
        %v1138 = vpack.c.bf16 %v988, %v987
        %v1139 = vpack.c.bf16 %v990, %v989
        %v1140 = vpack.c.bf16 %v992, %v991
        %v1141 = vpack.c.bf16 %v994, %v993
        %v1142 = vpack.c.bf16 %v996, %v995
        %v1143 = vpack.c.bf16 %v998, %v997
        %v1144 = vpack.c.bf16 %v1000, %v999
        %v1145 = vpack.c.bf16 %v1002, %v1001
        %v1146 = vpack.c.bf16 %v1004, %v1003
        %v1147 = vpack.c.bf16 %v1006, %v1005
        %v1148 = vpack.c.bf16 %v1008, %v1007
        %v1149 = vpack.c.bf16 %v1010, %v1009
        %v1150 = vpack.c.bf16 %v1012, %v1011
        %v1151 = vpack.c.bf16 %v1014, %v1013
        %v1152 = vpack.c.bf16 %v1016, %v1015
        %v1153 = vpack.c.bf16 %v1018, %v1017
        %v1154 = vpack.c.bf16 %v1020, %v1019
        %v1155 = vpack.c.bf16 %v1022, %v1021
        %v1156 = vpack.c.bf16 %v1024, %v1023
        %v1157 = vpack.c.bf16 %v1026, %v1025
        %v1158 = vpack.c.bf16 %v1028, %v1027
        %v1159 = vpack.c.bf16 %v1030, %v1029
        %v1160 = vpack.c.bf16 %v1032, %v1031
        %1161 = vst [vmem:[%s180] sm:$0xff] %v1033
        %1162 = vst [vmem:[%s180 + $0x8] sm:$0xff] %v1034
        %1163 = vst [vmem:[%s180 + $0x10] sm:$0xff] %v1035
        %1164 = vst [vmem:[%s180 + $0x18] sm:$0xff] %v1036
        %1165 = vst [vmem:[%s180 + $0x20] sm:$0xff] %v1037
        %1166 = vst [vmem:[%s180 + $0x28] sm:$0xff] %v1038
        %1167 = vst [vmem:[%s180 + $0x30] sm:$0xff] %v1039
        %1168 = vst [vmem:[%s180 + $0x38] sm:$0xff] %v1040
        %1169 = vst [vmem:[%s180 + $0x40] sm:$0xff] %v1041
        %1170 = vst [vmem:[%s180 + $0x48] sm:$0xff] %v1042
        %1171 = vst [vmem:[%s180 + $0x50] sm:$0xff] %v1043
        %1172 = vst [vmem:[%s180 + $0x58] sm:$0xff] %v1044
        %1173 = vst [vmem:[%s180 + $0x60] sm:$0xff] %v1045
        %1174 = vst [vmem:[%s180 + $0x68] sm:$0xff] %v1046
        %1175 = vst [vmem:[%s180 + $0x70] sm:$0xff] %v1047
        %1176 = vst [vmem:[%s180 + $0x78] sm:$0xff] %v1048
        %1177 = vst [vmem:[%s180 + $0x80] sm:$0xff] %v1049
        %1178 = vst [vmem:[%s180 + $0x88] sm:$0xff] %v1050
        %1179 = vst [vmem:[%s180 + $0x90] sm:$0xff] %v1051
        %1180 = vst [vmem:[%s180 + $0x98] sm:$0xff] %v1052
        %1181 = vst [vmem:[%s180 + $0xa0] sm:$0xff] %v1053
        %1182 = vst [vmem:[%s180 + $0xa8] sm:$0xff] %v1054
        %1183 = vst [vmem:[%s180 + $0xb0] sm:$0xff] %v1055
        %1184 = vst [vmem:[%s180 + $0xb8] sm:$0xff] %v1056
        %1185 = vst [vmem:[%s180 + $0xc0] sm:$0xff] %v1057
        %1186 = vst [vmem:[%s180 + $0xc8] sm:$0xff] %v1058
        %1187 = vst [vmem:[%s180 + $0xd0] sm:$0xff] %v1059
        %1188 = vst [vmem:[%s180 + $0xd8] sm:$0xff] %v1060
        %1189 = vst [vmem:[%s180 + $0xe0] sm:$0xff] %v1061
        %1190 = vst [vmem:[%s180 + $0xe8] sm:$0xff] %v1062
        %1191 = vst [vmem:[%s180 + $0xf0] sm:$0xff] %v1063
        %1192 = vst [vmem:[%s180 + $0xf8] sm:$0xff] %v1064
        %1193 = vst [vmem:[%s180 + $0x100] sm:$0xff] %v1065
        %1194 = vst [vmem:[%s180 + $0x108] sm:$0xff] %v1066
        %1195 = vst [vmem:[%s180 + $0x110] sm:$0xff] %v1067
        %1196 = vst [vmem:[%s180 + $0x118] sm:$0xff] %v1068
        %1197 = vst [vmem:[%s180 + $0x120] sm:$0xff] %v1069
        %1198 = vst [vmem:[%s180 + $0x128] sm:$0xff] %v1070
        %1199 = vst [vmem:[%s180 + $0x130] sm:$0xff] %v1071
        %1200 = vst [vmem:[%s180 + $0x138] sm:$0xff] %v1072
        %1201 = vst [vmem:[%s180 + $0x140] sm:$0xff] %v1073
        %1202 = vst [vmem:[%s180 + $0x148] sm:$0xff] %v1074
        %1203 = vst [vmem:[%s180 + $0x150] sm:$0xff] %v1075
        %1204 = vst [vmem:[%s180 + $0x158] sm:$0xff] %v1076
        %1205 = vst [vmem:[%s180 + $0x160] sm:$0xff] %v1077
        %1206 = vst [vmem:[%s180 + $0x168] sm:$0xff] %v1078
        %1207 = vst [vmem:[%s180 + $0x170] sm:$0xff] %v1079
        %1208 = vst [vmem:[%s180 + $0x178] sm:$0xff] %v1080
        %1209 = vst [vmem:[%s180 + $0x180] sm:$0xff] %v1081
        %1210 = vst [vmem:[%s180 + $0x188] sm:$0xff] %v1082
        %1211 = vst [vmem:[%s180 + $0x190] sm:$0xff] %v1083
        %1212 = vst [vmem:[%s180 + $0x198] sm:$0xff] %v1084
        %1213 = vst [vmem:[%s180 + $0x1a0] sm:$0xff] %v1085
        %1214 = vst [vmem:[%s180 + $0x1a8] sm:$0xff] %v1086
        %1215 = vst [vmem:[%s180 + $0x1b0] sm:$0xff] %v1087
        %1216 = vst [vmem:[%s180 + $0x1b8] sm:$0xff] %v1088
        %1217 = vst [vmem:[%s180 + $0x1c0] sm:$0xff] %v1089
        %1218 = vst [vmem:[%s180 + $0x1c8] sm:$0xff] %v1090
        %1219 = vst [vmem:[%s180 + $0x1d0] sm:$0xff] %v1091
        %1220 = vst [vmem:[%s180 + $0x1d8] sm:$0xff] %v1092
        %1221 = vst [vmem:[%s180 + $0x1e0] sm:$0xff] %v1093
        %1222 = vst [vmem:[%s180 + $0x1e8] sm:$0xff] %v1094
        %1223 = vst [vmem:[%s180 + $0x1f0] sm:$0xff] %v1095
        %1224 = vst [vmem:[%s180 + $0x1f8] sm:$0xff] %v1096
        %1225 = vst [vmem:[%s180 + $0x200] sm:$0xff] %v1097
        %1226 = vst [vmem:[%s180 + $0x208] sm:$0xff] %v1098
        %1227 = vst [vmem:[%s180 + $0x210] sm:$0xff] %v1099
        %1228 = vst [vmem:[%s180 + $0x218] sm:$0xff] %v1100
        %1229 = vst [vmem:[%s180 + $0x220] sm:$0xff] %v1101
        %1230 = vst [vmem:[%s180 + $0x228] sm:$0xff] %v1102
        %1231 = vst [vmem:[%s180 + $0x230] sm:$0xff] %v1103
        %1232 = vst [vmem:[%s180 + $0x238] sm:$0xff] %v1104
        %1233 = vst [vmem:[%s180 + $0x240] sm:$0xff] %v1105
        %1234 = vst [vmem:[%s180 + $0x248] sm:$0xff] %v1106
        %1235 = vst [vmem:[%s180 + $0x250] sm:$0xff] %v1107
        %1236 = vst [vmem:[%s180 + $0x258] sm:$0xff] %v1108
        %1237 = vst [vmem:[%s180 + $0x260] sm:$0xff] %v1109
        %1238 = vst [vmem:[%s180 + $0x268] sm:$0xff] %v1110
        %1239 = vst [vmem:[%s180 + $0x270] sm:$0xff] %v1111
        %1240 = vst [vmem:[%s180 + $0x278] sm:$0xff] %v1112
        %1241 = vst [vmem:[%s180 + $0x280] sm:$0xff] %v1113
        %1242 = vst [vmem:[%s180 + $0x288] sm:$0xff] %v1114
        %1243 = vst [vmem:[%s180 + $0x290] sm:$0xff] %v1115
        %1244 = vst [vmem:[%s180 + $0x298] sm:$0xff] %v1116
        %1245 = vst [vmem:[%s180 + $0x2a0] sm:$0xff] %v1117
        %1246 = vst [vmem:[%s180 + $0x2a8] sm:$0xff] %v1118
        %1247 = vst [vmem:[%s180 + $0x2b0] sm:$0xff] %v1119
        %1248 = vst [vmem:[%s180 + $0x2b8] sm:$0xff] %v1120
        %1249 = vst [vmem:[%s180 + $0x2c0] sm:$0xff] %v1121
        %1250 = vst [vmem:[%s180 + $0x2c8] sm:$0xff] %v1122
        %1251 = vst [vmem:[%s180 + $0x2d0] sm:$0xff] %v1123
        %1252 = vst [vmem:[%s180 + $0x2d8] sm:$0xff] %v1124
        %1253 = vst [vmem:[%s180 + $0x2e0] sm:$0xff] %v1125
        %1254 = vst [vmem:[%s180 + $0x2e8] sm:$0xff] %v1126
        %1255 = vst [vmem:[%s180 + $0x2f0] sm:$0xff] %v1127
        %1256 = vst [vmem:[%s180 + $0x2f8] sm:$0xff] %v1128
        %1257 = vst [vmem:[%s180 + $0x300] sm:$0xff] %v1129
        %1258 = vst [vmem:[%s180 + $0x308] sm:$0xff] %v1130
        %1259 = vst [vmem:[%s180 + $0x310] sm:$0xff] %v1131
        %1260 = vst [vmem:[%s180 + $0x318] sm:$0xff] %v1132
        %1261 = vst [vmem:[%s180 + $0x320] sm:$0xff] %v1133
        %1262 = vst [vmem:[%s180 + $0x328] sm:$0xff] %v1134
        %1263 = vst [vmem:[%s180 + $0x330] sm:$0xff] %v1135
        %1264 = vst [vmem:[%s180 + $0x338] sm:$0xff] %v1136
        %1265 = vst [vmem:[%s180 + $0x340] sm:$0xff] %v1137
        %1266 = vst [vmem:[%s180 + $0x348] sm:$0xff] %v1138
        %1267 = vst [vmem:[%s180 + $0x350] sm:$0xff] %v1139
        %1268 = vst [vmem:[%s180 + $0x358] sm:$0xff] %v1140
        %1269 = vst [vmem:[%s180 + $0x360] sm:$0xff] %v1141
        %1270 = vst [vmem:[%s180 + $0x368] sm:$0xff] %v1142
        %1271 = vst [vmem:[%s180 + $0x370] sm:$0xff] %v1143
        %1272 = vst [vmem:[%s180 + $0x378] sm:$0xff] %v1144
        %1273 = vst [vmem:[%s180 + $0x380] sm:$0xff] %v1145
        %1274 = vst [vmem:[%s180 + $0x388] sm:$0xff] %v1146
        %1275 = vst [vmem:[%s180 + $0x390] sm:$0xff] %v1147
        %1276 = vst [vmem:[%s180 + $0x398] sm:$0xff] %v1148
        %1277 = vst [vmem:[%s180 + $0x3a0] sm:$0xff] %v1149
        %1278 = vst [vmem:[%s180 + $0x3a8] sm:$0xff] %v1150
        %1279 = vst [vmem:[%s180 + $0x3b0] sm:$0xff] %v1151
        %1280 = vst [vmem:[%s180 + $0x3b8] sm:$0xff] %v1152
        %1281 = vst [vmem:[%s180 + $0x3c0] sm:$0xff] %v1153
        %1282 = vst [vmem:[%s180 + $0x3c8] sm:$0xff] %v1154
        %1283 = vst [vmem:[%s180 + $0x3d0] sm:$0xff] %v1155
        %1284 = vst [vmem:[%s180 + $0x3d8] sm:$0xff] %v1156
        %1285 = vst [vmem:[%s180 + $0x3e0] sm:$0xff] %v1157
        %1286 = vst [vmem:[%s180 + $0x3e8] sm:$0xff] %v1158
        %1287 = vst [vmem:[%s180 + $0x3f0] sm:$0xff] %v1159
        %1288 = vst [vmem:[%s180 + $0x3f8] sm:$0xff] %v1160
        %s1289 = sand.u32 %s92, 1
        %s1290 = scalar_lea.sflag [#allocation3], %s1289
        %s1291 = sand.u32 %s92, 1
        %s1292 = smul.addr %s1291, 1024
        %s1293 = scalar_lea.vmem [#allocation2], %s1292
        // Predicated region
        $region29: #{gmlp_language_model.5} parent=27 // pred_check
          %p1294 = pneg %p102
        $region30: #{gmlp_language_model.5} parent=27 // pred_check_branch
          %1296 = sbr.rel (%p1294) target = $region32
        $region31: #{gmlp_language_model.5} parent=27 // pred_region
          %s1297 = smul.u32 32, %s20
          %s1298 = smul.u32 8, %s21
          %1300 = vsyncadd %s1290, 0
          %s1301 = smul.addr %s1297, 8
          %s1302 = sadd.s32 %s1298, %s1301
          %s1303 = smul.addr %s1302, 4
          %s1304 = scalar_lea.hbm %s2, %s1303
          %s1305 = sshll.u32 %s1293, 4
          %s1306 = int_to_ptr.vmem [resolvable:$true] %s1305
          %s1307 = sshll.u32 %s1304, 4
          %s1308 = int_to_ptr.hbm [resolvable:$true] %s1307
          %1313 = dma.vmem_to_hbm [thread:$0]  %s1306, 16384, %s1308, %s1290, 512, 512, 32
        $region32: #{gmlp_language_model.5} parent=27 // pred_fallthru
          _
      $region28: #{gmlp_language_model.5} parent=5 // pred_fallthru
        _
      %p1314 = scmp.le.s32.totalorder 2, %s11
      // Predicated region
      $region33: #{gmlp_language_model.5} parent=5 // pred_check
        %p1315 = pneg %p1314
      $region34: #{gmlp_language_model.5} parent=5 // pred_check_branch
        %1317 = sbr.rel (%p1315) target = $region36
      $region35: #{gmlp_language_model.5} parent=5 // pred_region
        %s1318 = ssub.s32 %s11, 2
        // Predicated region
        $region37: #{gmlp_language_model.5} parent=35 // pred_check
          %p1319 = pneg %p108
        $region38: #{gmlp_language_model.5} parent=35 // pred_check_branch
          %1321 = sbr.rel (%p1319) target = $region40
        $region39: #{gmlp_language_model.5} parent=35 // pred_region
          %s1322 = sand.u32 %s93, 1
          %s1323 = scalar_lea.sflag [#allocation3], %s1322
          %s1324 = sand.u32 %s93, 1
          %s1325 = smul.addr %s1324, 1024
          %s1326 = scalar_lea.vmem [#allocation2], %s1325
          %1328 = dma.done %s1323, 16384
        $region40: #{gmlp_language_model.5} parent=35 // pred_fallthru
          _
      $region36: #{gmlp_language_model.5} parent=5 // pred_fallthru
        _
    $region6: #{gmlp_language_model.5} parent=1 // loop_footer
      %s15 = sadd.s32 1, %s11
    $region7: #{gmlp_language_model.5} parent=1 // loop_footer_branch
      %10 = sbr.rel target = $region3
    $region8: #{gmlp_language_model.5} parent=1 // loop_exit
      _
    %1329 = vsyncpa [#allocation3], 1
    %s1330 = scalar_lea.sflag [#allocation3], 1
    %1331 = vsyncpa %s1330, 1

// kernel: gmlp_language_model.3
$region0: #{gmlp_language_model.3}
  #allocation0 [shape = 'u32[]', space=smem, size = 0x4, offset = 0x4, fixed_abs, tag = 'smem constant byte address 0x4 - core index']
  #allocation1 [shape = 'u32[72,128]{1,0:T(1,128)}', space=vmem, size = 0x9000, scoped, tag = 'internal scratch']
  #allocation2 [shape = 'f32[256,128]{1,0:T(8,128)}', space=vmem, size = 0x20000, scoped, tag = 'scratch operand']
  %s0 = inlined_call_operand.vmem [shape: bf16[512,128], index: 0, kind: input, shape index: {}]
  %s1 = inlined_call_operand.vmem [shape: f32[3,1,128], index: 1, kind: input, shape index: {}]
  %s2 = inlined_call_operand.vmem [shape: f32[3,1,128], index: 2, kind: input, shape index: {}]
  %s3 = inlined_call_operand.vmem [shape: bf16[3,128,256], index: 3, kind: input, shape index: {}]
  %s4 = inlined_call_operand.vmem [shape: f32[3,1,256], index: 4, kind: input, shape index: {}]
  %s5 = inlined_call_operand.vmem [shape: f32[3,1,128], index: 5, kind: input, shape index: {}]
  %s6 = inlined_call_operand.vmem [shape: f32[3,1,128], index: 6, kind: input, shape index: {}]
  %s7 = inlined_call_operand.vmem [shape: bf16[3,128,128], index: 7, kind: input, shape index: {}]
  %s8 = inlined_call_operand.vmem [shape: f32[3,128,1], index: 8, kind: input, shape index: {}]
  %s9 = inlined_call_operand.vmem [shape: bf16[3,128,128], index: 9, kind: input, shape index: {}]
  %s10 = inlined_call_operand.vmem [shape: f32[3,1,128], index: 10, kind: input, shape index: {}]
  %s11 = inlined_call_operand.vmem [shape: bf16[512,128], index: 11, kind: output, shape index: {}]
  %s12 = sld [smem:[#allocation0]]
  $region85: #{gmlp_language_model.3} parent=0
    _
  %s14 = ssub.s32 1, %s12
  %s15 = scalar_select 0, %s14, %s12
  loop: start=0, step=1, limit=8
  $region2: #{gmlp_language_model.3} parent=0 // loop_pre_header
    _
  $region3: #{gmlp_language_model.3} parent=0 // loop_header
    %s17 = sphi 0, %s21
    %p18 = scmp.ge.s32.totalorder %s17, 8
    %s24 = sphi 0, %s36
    %s25 = sphi 0, %s32
    %s26 = sphi 0, %s24
    %s27 = sphi 0, %s25
    %s28 = sphi 0, %s26
    %s29 = sphi 0, %s27
    %s39 = sphi 0, %s41
    %s42 = sphi 0, %s39
    %s43 = sphi 0, %s42
    %s59 = sphi 0, %s43
    %s65 = sphi 0, %s67
    %s68 = sphi 0, %s65
    %s69 = sphi 0, %s68
    %s85 = sphi 0, %s69
    %s91 = sphi 0, %s93
    %s94 = sphi 0, %s91
    %s95 = sphi 0, %s94
    %s111 = sphi 0, %s95
    %s117 = sphi 0, %s119
    %s120 = sphi 0, %s117
    %s121 = sphi 0, %s120
    %s137 = sphi 0, %s121
    %s143 = sphi 0, %s145
    %s146 = sphi 0, %s143
    %s147 = sphi 0, %s146
    %s163 = sphi 0, %s147
    %s169 = sphi 0, %s171
    %s172 = sphi 0, %s169
    %s173 = sphi 0, %s172
    %s189 = sphi 0, %s173
    %s195 = sphi 0, %s197
    %s198 = sphi 0, %s195
    %s199 = sphi 0, %s198
    %s215 = sphi 0, %s199
    %s221 = sphi 0, %s223
    %s224 = sphi 0, %s221
    %s225 = sphi 0, %s224
    %s241 = sphi 0, %s225
    %s247 = sphi 0, %s249
    %s250 = sphi 0, %s247
    %s251 = sphi 0, %s250
    %s267 = sphi 0, %s251
    %s273 = sphi 0, %s275
    %s276 = sphi 0, %s273
    %s277 = sphi 0, %s276
    %s293 = sphi 0, %s277
    %s299 = sphi 0, %s301
    %s302 = sphi 0, %s299
    %s303 = sphi 0, %s302
    %s319 = sphi 0, %s303
    %s325 = sphi 0, %s327
    %s328 = sphi 0, %s325
    %s329 = sphi 0, %s328
    %s345 = sphi 0, %s329
  $region4: #{gmlp_language_model.3} parent=0 // loop_header_branch
    %20 = sbr.rel (%p18) target = $region8
  $region5: #{gmlp_language_model.3} parent=0 // loop_body
    %s22 = ssub.s32 %s17, 1
    %s23 = ssub.s32 %s17, 2
    %s30 = sadd.s32 1, %s25
    %p31 = scmp.ge.s32.totalorder %s30, 3
    %s32 = scalar_select %p31, 0, %s30
    %s33 = sadd.s32 1, %s24
    %s34 = scalar_select %p31, %s33, %s24
    %p35 = scmp.ge.s32.totalorder %s34, 2
    %s36 = scalar_select %p35, 0, %s34
    %s37 = ssub.s32 %s24, %s36
    %p38 = scmp.eq.s32.totalorder %s37, 0
    %s40 = sadd.s32 %s39, 1
    %s41 = scalar_select %p38, %s39, %s40
    %p44 = pneg %p38
    %p45 = scmp.eq.s32.totalorder %s17, 5
    %p46 = por %p44, %p45
    %p47 = scmp.ne.s32.totalorder %s39, %s42
    %p48 = scmp.eq.s32.totalorder %s17, 0
    %p49 = por %p47, %p48
    %p50 = scmp.ne.s32.totalorder %s39, %s42
    %p51 = scmp.eq.s32.totalorder %s22, 5
    %p52 = por %p50, %p51
    %p53 = scmp.ne.s32.totalorder %s42, %s43
    %p54 = scmp.eq.s32.totalorder %s22, 0
    %p55 = por %p53, %p54
    %p56 = scmp.ne.s32.totalorder %s42, %s43
    %p57 = scmp.eq.s32.totalorder %s23, 5
    %p58 = por %p56, %p57
    %p60 = scmp.ne.s32.totalorder %s43, %s59
    %p61 = scmp.eq.s32.totalorder %s23, 0
    %p62 = por %p60, %p61
    %s63 = ssub.s32 %s25, %s32
    %p64 = scmp.eq.s32.totalorder %s63, 0
    %s66 = sadd.s32 %s65, 1
    %s67 = scalar_select %p64, %s65, %s66
    %p70 = pneg %p64
    %p71 = scmp.eq.s32.totalorder %s17, 5
    %p72 = por %p70, %p71
    %p73 = scmp.ne.s32.totalorder %s65, %s68
    %p74 = scmp.eq.s32.totalorder %s17, 0
    %p75 = por %p73, %p74
    %p76 = scmp.ne.s32.totalorder %s65, %s68
    %p77 = scmp.eq.s32.totalorder %s22, 5
    %p78 = por %p76, %p77
    %p79 = scmp.ne.s32.totalorder %s68, %s69
    %p80 = scmp.eq.s32.totalorder %s22, 0
    %p81 = por %p79, %p80
    %p82 = scmp.ne.s32.totalorder %s68, %s69
    %p83 = scmp.eq.s32.totalorder %s23, 5
    %p84 = por %p82, %p83
    %p86 = scmp.ne.s32.totalorder %s69, %s85
    %p87 = scmp.eq.s32.totalorder %s23, 0
    %p88 = por %p86, %p87
    %s89 = ssub.s32 %s25, %s32
    %p90 = scmp.eq.s32.totalorder %s89, 0
    %s92 = sadd.s32 %s91, 1
    %s93 = scalar_select %p90, %s91, %s92
    %p96 = pneg %p90
    %p97 = scmp.eq.s32.totalorder %s17, 5
    %p98 = por %p96, %p97
    %p99 = scmp.ne.s32.totalorder %s91, %s94
    %p100 = scmp.eq.s32.totalorder %s17, 0
    %p101 = por %p99, %p100
    %p102 = scmp.ne.s32.totalorder %s91, %s94
    %p103 = scmp.eq.s32.totalorder %s22, 5
    %p104 = por %p102, %p103
    %p105 = scmp.ne.s32.totalorder %s94, %s95
    %p106 = scmp.eq.s32.totalorder %s22, 0
    %p107 = por %p105, %p106
    %p108 = scmp.ne.s32.totalorder %s94, %s95
    %p109 = scmp.eq.s32.totalorder %s23, 5
    %p110 = por %p108, %p109
    %p112 = scmp.ne.s32.totalorder %s95, %s111
    %p113 = scmp.eq.s32.totalorder %s23, 0
    %p114 = por %p112, %p113
    %s115 = ssub.s32 %s25, %s32
    %p116 = scmp.eq.s32.totalorder %s115, 0
    %s118 = sadd.s32 %s117, 1
    %s119 = scalar_select %p116, %s117, %s118
    %p122 = pneg %p116
    %p123 = scmp.eq.s32.totalorder %s17, 5
    %p124 = por %p122, %p123
    %p125 = scmp.ne.s32.totalorder %s117, %s120
    %p126 = scmp.eq.s32.totalorder %s17, 0
    %p127 = por %p125, %p126
    %p128 = scmp.ne.s32.totalorder %s117, %s120
    %p129 = scmp.eq.s32.totalorder %s22, 5
    %p130 = por %p128, %p129
    %p131 = scmp.ne.s32.totalorder %s120, %s121
    %p132 = scmp.eq.s32.totalorder %s22, 0
    %p133 = por %p131, %p132
    %p134 = scmp.ne.s32.totalorder %s120, %s121
    %p135 = scmp.eq.s32.totalorder %s23, 5
    %p136 = por %p134, %p135
    %p138 = scmp.ne.s32.totalorder %s121, %s137
    %p139 = scmp.eq.s32.totalorder %s23, 0
    %p140 = por %p138, %p139
    %s141 = ssub.s32 %s25, %s32
    %p142 = scmp.eq.s32.totalorder %s141, 0
    %s144 = sadd.s32 %s143, 1
    %s145 = scalar_select %p142, %s143, %s144
    %p148 = pneg %p142
    %p149 = scmp.eq.s32.totalorder %s17, 5
    %p150 = por %p148, %p149
    %p151 = scmp.ne.s32.totalorder %s143, %s146
    %p152 = scmp.eq.s32.totalorder %s17, 0
    %p153 = por %p151, %p152
    %p154 = scmp.ne.s32.totalorder %s143, %s146
    %p155 = scmp.eq.s32.totalorder %s22, 5
    %p156 = por %p154, %p155
    %p157 = scmp.ne.s32.totalorder %s146, %s147
    %p158 = scmp.eq.s32.totalorder %s22, 0
    %p159 = por %p157, %p158
    %p160 = scmp.ne.s32.totalorder %s146, %s147
    %p161 = scmp.eq.s32.totalorder %s23, 5
    %p162 = por %p160, %p161
    %p164 = scmp.ne.s32.totalorder %s147, %s163
    %p165 = scmp.eq.s32.totalorder %s23, 0
    %p166 = por %p164, %p165
    %s167 = ssub.s32 %s25, %s32
    %p168 = scmp.eq.s32.totalorder %s167, 0
    %s170 = sadd.s32 %s169, 1
    %s171 = scalar_select %p168, %s169, %s170
    %p174 = pneg %p168
    %p175 = scmp.eq.s32.totalorder %s17, 5
    %p176 = por %p174, %p175
    %p177 = scmp.ne.s32.totalorder %s169, %s172
    %p178 = scmp.eq.s32.totalorder %s17, 0
    %p179 = por %p177, %p178
    %p180 = scmp.ne.s32.totalorder %s169, %s172
    %p181 = scmp.eq.s32.totalorder %s22, 5
    %p182 = por %p180, %p181
    %p183 = scmp.ne.s32.totalorder %s172, %s173
    %p184 = scmp.eq.s32.totalorder %s22, 0
    %p185 = por %p183, %p184
    %p186 = scmp.ne.s32.totalorder %s172, %s173
    %p187 = scmp.eq.s32.totalorder %s23, 5
    %p188 = por %p186, %p187
    %p190 = scmp.ne.s32.totalorder %s173, %s189
    %p191 = scmp.eq.s32.totalorder %s23, 0
    %p192 = por %p190, %p191
    %s193 = ssub.s32 %s25, %s32
    %p194 = scmp.eq.s32.totalorder %s193, 0
    %s196 = sadd.s32 %s195, 1
    %s197 = scalar_select %p194, %s195, %s196
    %p200 = pneg %p194
    %p201 = scmp.eq.s32.totalorder %s17, 5
    %p202 = por %p200, %p201
    %p203 = scmp.ne.s32.totalorder %s195, %s198
    %p204 = scmp.eq.s32.totalorder %s17, 0
    %p205 = por %p203, %p204
    %p206 = scmp.ne.s32.totalorder %s195, %s198
    %p207 = scmp.eq.s32.totalorder %s22, 5
    %p208 = por %p206, %p207
    %p209 = scmp.ne.s32.totalorder %s198, %s199
    %p210 = scmp.eq.s32.totalorder %s22, 0
    %p211 = por %p209, %p210
    %p212 = scmp.ne.s32.totalorder %s198, %s199
    %p213 = scmp.eq.s32.totalorder %s23, 5
    %p214 = por %p212, %p213
    %p216 = scmp.ne.s32.totalorder %s199, %s215
    %p217 = scmp.eq.s32.totalorder %s23, 0
    %p218 = por %p216, %p217
    %s219 = ssub.s32 %s25, %s32
    %p220 = scmp.eq.s32.totalorder %s219, 0
    %s222 = sadd.s32 %s221, 1
    %s223 = scalar_select %p220, %s221, %s222
    %p226 = pneg %p220
    %p227 = scmp.eq.s32.totalorder %s17, 5
    %p228 = por %p226, %p227
    %p229 = scmp.ne.s32.totalorder %s221, %s224
    %p230 = scmp.eq.s32.totalorder %s17, 0
    %p231 = por %p229, %p230
    %p232 = scmp.ne.s32.totalorder %s221, %s224
    %p233 = scmp.eq.s32.totalorder %s22, 5
    %p234 = por %p232, %p233
    %p235 = scmp.ne.s32.totalorder %s224, %s225
    %p236 = scmp.eq.s32.totalorder %s22, 0
    %p237 = por %p235, %p236
    %p238 = scmp.ne.s32.totalorder %s224, %s225
    %p239 = scmp.eq.s32.totalorder %s23, 5
    %p240 = por %p238, %p239
    %p242 = scmp.ne.s32.totalorder %s225, %s241
    %p243 = scmp.eq.s32.totalorder %s23, 0
    %p244 = por %p242, %p243
    %s245 = ssub.s32 %s25, %s32
    %p246 = scmp.eq.s32.totalorder %s245, 0
    %s248 = sadd.s32 %s247, 1
    %s249 = scalar_select %p246, %s247, %s248
    %p252 = pneg %p246
    %p253 = scmp.eq.s32.totalorder %s17, 5
    %p254 = por %p252, %p253
    %p255 = scmp.ne.s32.totalorder %s247, %s250
    %p256 = scmp.eq.s32.totalorder %s17, 0
    %p257 = por %p255, %p256
    %p258 = scmp.ne.s32.totalorder %s247, %s250
    %p259 = scmp.eq.s32.totalorder %s22, 5
    %p260 = por %p258, %p259
    %p261 = scmp.ne.s32.totalorder %s250, %s251
    %p262 = scmp.eq.s32.totalorder %s22, 0
    %p263 = por %p261, %p262
    %p264 = scmp.ne.s32.totalorder %s250, %s251
    %p265 = scmp.eq.s32.totalorder %s23, 5
    %p266 = por %p264, %p265
    %p268 = scmp.ne.s32.totalorder %s251, %s267
    %p269 = scmp.eq.s32.totalorder %s23, 0
    %p270 = por %p268, %p269
    %s271 = ssub.s32 %s25, %s32
    %p272 = scmp.eq.s32.totalorder %s271, 0
    %s274 = sadd.s32 %s273, 1
    %s275 = scalar_select %p272, %s273, %s274
    %p278 = pneg %p272
    %p279 = scmp.eq.s32.totalorder %s17, 5
    %p280 = por %p278, %p279
    %p281 = scmp.ne.s32.totalorder %s273, %s276
    %p282 = scmp.eq.s32.totalorder %s17, 0
    %p283 = por %p281, %p282
    %p284 = scmp.ne.s32.totalorder %s273, %s276
    %p285 = scmp.eq.s32.totalorder %s22, 5
    %p286 = por %p284, %p285
    %p287 = scmp.ne.s32.totalorder %s276, %s277
    %p288 = scmp.eq.s32.totalorder %s22, 0
    %p289 = por %p287, %p288
    %p290 = scmp.ne.s32.totalorder %s276, %s277
    %p291 = scmp.eq.s32.totalorder %s23, 5
    %p292 = por %p290, %p291
    %p294 = scmp.ne.s32.totalorder %s277, %s293
    %p295 = scmp.eq.s32.totalorder %s23, 0
    %p296 = por %p294, %p295
    %s297 = ssub.s32 %s25, %s32
    %p298 = scmp.eq.s32.totalorder %s297, 0
    %s300 = sadd.s32 %s299, 1
    %s301 = scalar_select %p298, %s299, %s300
    %p304 = pneg %p298
    %p305 = scmp.eq.s32.totalorder %s17, 5
    %p306 = por %p304, %p305
    %p307 = scmp.ne.s32.totalorder %s299, %s302
    %p308 = scmp.eq.s32.totalorder %s17, 0
    %p309 = por %p307, %p308
    %p310 = scmp.ne.s32.totalorder %s299, %s302
    %p311 = scmp.eq.s32.totalorder %s22, 5
    %p312 = por %p310, %p311
    %p313 = scmp.ne.s32.totalorder %s302, %s303
    %p314 = scmp.eq.s32.totalorder %s22, 0
    %p315 = por %p313, %p314
    %p316 = scmp.ne.s32.totalorder %s302, %s303
    %p317 = scmp.eq.s32.totalorder %s23, 5
    %p318 = por %p316, %p317
    %p320 = scmp.ne.s32.totalorder %s303, %s319
    %p321 = scmp.eq.s32.totalorder %s23, 0
    %p322 = por %p320, %p321
    %s323 = ssub.s32 %s24, %s36
    %p324 = scmp.eq.s32.totalorder %s323, 0
    %s326 = sadd.s32 %s325, 1
    %s327 = scalar_select %p324, %s325, %s326
    %p330 = pneg %p324
    %p331 = scmp.eq.s32.totalorder %s17, 5
    %p332 = por %p330, %p331
    %p333 = scmp.ne.s32.totalorder %s325, %s328
    %p334 = scmp.eq.s32.totalorder %s17, 0
    %p335 = por %p333, %p334
    %p336 = scmp.ne.s32.totalorder %s325, %s328
    %p337 = scmp.eq.s32.totalorder %s22, 5
    %p338 = por %p336, %p337
    %p339 = scmp.ne.s32.totalorder %s328, %s329
    %p340 = scmp.eq.s32.totalorder %s22, 0
    %p341 = por %p339, %p340
    %p342 = scmp.ne.s32.totalorder %s328, %s329
    %p343 = scmp.eq.s32.totalorder %s23, 5
    %p344 = por %p342, %p343
    %p346 = scmp.ne.s32.totalorder %s329, %s345
    %p347 = scmp.eq.s32.totalorder %s23, 0
    %p348 = por %p346, %p347
    %p349 = scmp.le.s32.totalorder 1, %s17
    %p350 = scmp.lt.s32.totalorder %s17, 7
    %p351 = pnand %p349, %p350
    %p352 = pneg %p351
    // Predicated region
    $region9: #{gmlp_language_model.3} parent=5 // pred_check
      _
    $region10: #{gmlp_language_model.3} parent=5 // pred_check_branch
      %354 = sbr.rel (%p351) target = $region12
    $region11: #{gmlp_language_model.3} parent=5 // pred_region
      %s355 = ssub.s32 %s17, 1
    $region12: #{gmlp_language_model.3} parent=5 // pred_fallthru
      _
    %p356 = scmp.lt.s32.totalorder %s17, 6
    // Predicated region
    $region13: #{gmlp_language_model.3} parent=5 // pred_check
      %p357 = pneg %p356
    $region14: #{gmlp_language_model.3} parent=5 // pred_check_branch
      %359 = sbr.rel (%p357) target = $region16
    $region15: #{gmlp_language_model.3} parent=5 // pred_region
      // Predicated region
      $region17: #{gmlp_language_model.3} parent=15 // pred_check
        %p360 = pneg %p49
      $region18: #{gmlp_language_model.3} parent=15 // pred_check_branch
        %362 = sbr.rel (%p360) target = $region20
      $region19: #{gmlp_language_model.3} parent=15 // pred_region
        %s363 = smul.u32 32, %s24
        %p364 = scmp.lt.s32.totalorder %s363, 63
        %s365 = scalar_select %p364, %s363, 63
        %s366 = smul.addr %s365, 4
        %s367 = scalar_lea.vmem %s0, %s366
        %s368 = smul.u32 32, %s24
      $region20: #{gmlp_language_model.3} parent=15 // pred_fallthru
        _
      // Predicated region
      $region21: #{gmlp_language_model.3} parent=15 // pred_check
        %p369 = pneg %p75
      $region22: #{gmlp_language_model.3} parent=15 // pred_check_branch
        %371 = sbr.rel (%p369) target = $region24
      $region23: #{gmlp_language_model.3} parent=15 // pred_region
        %p372 = scmp.lt.s32.totalorder %s25, 2
        %s373 = scalar_select %p372, %s25, 2
        %s374 = scalar_lea.vmem %s1, %s373
      $region24: #{gmlp_language_model.3} parent=15 // pred_fallthru
        _
      // Predicated region
      $region25: #{gmlp_language_model.3} parent=15 // pred_check
        %p375 = pneg %p101
      $region26: #{gmlp_language_model.3} parent=15 // pred_check_branch
        %377 = sbr.rel (%p375) target = $region28
      $region27: #{gmlp_language_model.3} parent=15 // pred_region
        %p378 = scmp.lt.s32.totalorder %s25, 2
        %s379 = scalar_select %p378, %s25, 2
        %s380 = scalar_lea.vmem %s2, %s379
      $region28: #{gmlp_language_model.3} parent=15 // pred_fallthru
        _
      // Predicated region
      $region29: #{gmlp_language_model.3} parent=15 // pred_check
        %p381 = pneg %p127
      $region30: #{gmlp_language_model.3} parent=15 // pred_check_branch
        %383 = sbr.rel (%p381) target = $region32
      $region31: #{gmlp_language_model.3} parent=15 // pred_region
        %p384 = scmp.lt.s32.totalorder %s25, 2
        %s385 = scalar_select %p384, %s25, 2
        %s386 = smul.addr %s385, 32
        %s387 = smul.addr %s386, 4
        %s388 = scalar_lea.vmem %s3, %s387
      $region32: #{gmlp_language_model.3} parent=15 // pred_fallthru
        _
      // Predicated region
      $region33: #{gmlp_language_model.3} parent=15 // pred_check
        %p389 = pneg %p153
      $region34: #{gmlp_language_model.3} parent=15 // pred_check_branch
        %391 = sbr.rel (%p389) target = $region36
      $region35: #{gmlp_language_model.3} parent=15 // pred_region
        %p392 = scmp.lt.s32.totalorder %s25, 2
        %s393 = scalar_select %p392, %s25, 2
        %s394 = smul.addr %s393, 2
        %s395 = scalar_lea.vmem %s4, %s394
      $region36: #{gmlp_language_model.3} parent=15 // pred_fallthru
        _
      // Predicated region
      $region37: #{gmlp_language_model.3} parent=15 // pred_check
        %p396 = pneg %p179
      $region38: #{gmlp_language_model.3} parent=15 // pred_check_branch
        %398 = sbr.rel (%p396) target = $region40
      $region39: #{gmlp_language_model.3} parent=15 // pred_region
        %p399 = scmp.lt.s32.totalorder %s25, 2
        %s400 = scalar_select %p399, %s25, 2
        %s401 = scalar_lea.vmem %s5, %s400
      $region40: #{gmlp_language_model.3} parent=15 // pred_fallthru
        _
      // Predicated region
      $region41: #{gmlp_language_model.3} parent=15 // pred_check
        %p402 = pneg %p205
      $region42: #{gmlp_language_model.3} parent=15 // pred_check_branch
        %404 = sbr.rel (%p402) target = $region44
      $region43: #{gmlp_language_model.3} parent=15 // pred_region
        %p405 = scmp.lt.s32.totalorder %s25, 2
        %s406 = scalar_select %p405, %s25, 2
        %s407 = scalar_lea.vmem %s6, %s406
      $region44: #{gmlp_language_model.3} parent=15 // pred_fallthru
        _
      // Predicated region
      $region45: #{gmlp_language_model.3} parent=15 // pred_check
        %p408 = pneg %p231
      $region46: #{gmlp_language_model.3} parent=15 // pred_check_branch
        %410 = sbr.rel (%p408) target = $region48
      $region47: #{gmlp_language_model.3} parent=15 // pred_region
        %p411 = scmp.lt.s32.totalorder %s25, 2
        %s412 = scalar_select %p411, %s25, 2
        %s413 = smul.addr %s412, 16
        %s414 = smul.addr %s413, 4
        %s415 = scalar_lea.vmem %s7, %s414
      $region48: #{gmlp_language_model.3} parent=15 // pred_fallthru
        _
      // Predicated region
      $region49: #{gmlp_language_model.3} parent=15 // pred_check
        %p416 = pneg %p257
      $region50: #{gmlp_language_model.3} parent=15 // pred_check_branch
        %418 = sbr.rel (%p416) target = $region52
      $region51: #{gmlp_language_model.3} parent=15 // pred_region
        %p419 = scmp.lt.s32.totalorder %s25, 2
        %s420 = scalar_select %p419, %s25, 2
        %s421 = smul.addr %s420, 16
        %s422 = smul.addr %s421, 8
        %s423 = scalar_lea.vmem %s8, %s422
      $region52: #{gmlp_language_model.3} parent=15 // pred_fallthru
        _
      // Predicated region
      $region53: #{gmlp_language_model.3} parent=15 // pred_check
        %p424 = pneg %p283
      $region54: #{gmlp_language_model.3} parent=15 // pred_check_branch
        %426 = sbr.rel (%p424) target = $region56
      $region55: #{gmlp_language_model.3} parent=15 // pred_region
        %p427 = scmp.lt.s32.totalorder %s25, 2
        %s428 = scalar_select %p427, %s25, 2
        %s429 = smul.addr %s428, 16
        %s430 = smul.addr %s429, 4
        %s431 = scalar_lea.vmem %s9, %s430
      $region56: #{gmlp_language_model.3} parent=15 // pred_fallthru
        _
      // Predicated region
      $region57: #{gmlp_language_model.3} parent=15 // pred_check
        %p432 = pneg %p309
      $region58: #{gmlp_language_model.3} parent=15 // pred_check_branch
        %434 = sbr.rel (%p432) target = $region60
      $region59: #{gmlp_language_model.3} parent=15 // pred_region
        %p435 = scmp.lt.s32.totalorder %s25, 2
        %s436 = scalar_select %p435, %s25, 2
        %s437 = scalar_lea.vmem %s10, %s436
      $region60: #{gmlp_language_model.3} parent=15 // pred_fallthru
        _
    $region16: #{gmlp_language_model.3} parent=5 // pred_fallthru
      _
    %p438 = scmp.le.s32.totalorder 1, %s17
    %p439 = scmp.lt.s32.totalorder %s17, 7
    %p440 = pnand %p438, %p439
    %p441 = pneg %p440
    // Predicated region
    $region61: #{gmlp_language_model.3} parent=5 // pred_check
      _
    $region62: #{gmlp_language_model.3} parent=5 // pred_check_branch
      %443 = sbr.rel (%p440) target = $region64
    $region63: #{gmlp_language_model.3} parent=5 // pred_region
      %s444 = ssub.s32 %s17, 1
      %s445 = smul.u32 32, %s26
      %p446 = scmp.lt.s32.totalorder %s445, 63
      %s447 = scalar_select %p446, %s445, 63
      %s448 = smul.addr %s447, 4
      %s449 = scalar_lea.vmem %s0, %s448
      %p450 = pneg %p55
      %p451 = pneg %p52
      %p452 = scmp.lt.s32.totalorder %s27, 2
      %s453 = scalar_select %p452, %s27, 2
      %s454 = scalar_lea.vmem %s1, %s453
      %p455 = pneg %p81
      %p456 = pneg %p78
      %p457 = scmp.lt.s32.totalorder %s27, 2
      %s458 = scalar_select %p457, %s27, 2
      %s459 = scalar_lea.vmem %s2, %s458
      %p460 = pneg %p107
      %p461 = pneg %p104
      %p462 = scmp.lt.s32.totalorder %s27, 2
      %s463 = scalar_select %p462, %s27, 2
      %s464 = smul.addr %s463, 32
      %s465 = smul.addr %s464, 4
      %s466 = scalar_lea.vmem %s3, %s465
      %p467 = pneg %p133
      %p468 = pneg %p130
      %p469 = scmp.lt.s32.totalorder %s27, 2
      %s470 = scalar_select %p469, %s27, 2
      %s471 = smul.addr %s470, 2
      %s472 = scalar_lea.vmem %s4, %s471
      %p473 = pneg %p159
      %p474 = pneg %p156
      %p475 = scmp.lt.s32.totalorder %s27, 2
      %s476 = scalar_select %p475, %s27, 2
      %s477 = scalar_lea.vmem %s5, %s476
      %p478 = pneg %p185
      %p479 = pneg %p182
      %p480 = scmp.lt.s32.totalorder %s27, 2
      %s481 = scalar_select %p480, %s27, 2
      %s482 = scalar_lea.vmem %s6, %s481
      %p483 = pneg %p211
      %p484 = pneg %p208
      %p485 = scmp.lt.s32.totalorder %s27, 2
      %s486 = scalar_select %p485, %s27, 2
      %s487 = smul.addr %s486, 16
      %s488 = smul.addr %s487, 4
      %s489 = scalar_lea.vmem %s7, %s488
      %p490 = pneg %p237
      %p491 = pneg %p234
      %p492 = scmp.lt.s32.totalorder %s27, 2
      %s493 = scalar_select %p492, %s27, 2
      %s494 = smul.addr %s493, 16
      %s495 = smul.addr %s494, 8
      %s496 = scalar_lea.vmem %s8, %s495
      %p497 = pneg %p263
      %p498 = pneg %p260
      %p499 = scmp.lt.s32.totalorder %s27, 2
      %s500 = scalar_select %p499, %s27, 2
      %s501 = smul.addr %s500, 16
      %s502 = smul.addr %s501, 4
      %s503 = scalar_lea.vmem %s9, %s502
      %p504 = pneg %p289
      %p505 = pneg %p286
      %p506 = scmp.lt.s32.totalorder %s27, 2
      %s507 = scalar_select %p506, %s27, 2
      %s508 = scalar_lea.vmem %s10, %s507
      %p509 = pneg %p315
      %p510 = pneg %p312
      %p511 = pneg %p341
      %p512 = pneg %p338
      %s513 = smul.u32 32, %s26
      %p514 = scmp.lt.s32.totalorder %s513, 63
      %s515 = scalar_select %p514, %s513, 63
      %s516 = smul.addr %s515, 4
      %s517 = scalar_lea.vmem %s11, %s516
      %s518 = smul.u32 32, %s26
      %p519 = scmp.lt.s32.totalorder %s518, 63
      %s520 = scalar_select %p519, %s518, 63
      %s521 = smul.addr %s520, 4
      %s522 = scalar_lea.vmem %s0, %s521
      %s523 = smul.u32 32, %s26
      %p524 = scmp.lt.s32.totalorder %s27, 2
      %s525 = scalar_select %p524, %s27, 2
      %s526 = scalar_lea.vmem %s1, %s525
      %p527 = scmp.lt.s32.totalorder %s27, 2
      %s528 = scalar_select %p527, %s27, 2
      %s529 = scalar_lea.vmem %s2, %s528
      %p530 = scmp.lt.s32.totalorder %s27, 2
      %s531 = scalar_select %p530, %s27, 2
      %s532 = smul.addr %s531, 32
      %s533 = smul.addr %s532, 4
      %s534 = scalar_lea.vmem %s3, %s533
      %p535 = scmp.lt.s32.totalorder %s27, 2
      %s536 = scalar_select %p535, %s27, 2
      %s537 = smul.addr %s536, 2
      %s538 = scalar_lea.vmem %s4, %s537
      %p539 = scmp.lt.s32.totalorder %s27, 2
      %s540 = scalar_select %p539, %s27, 2
      %s541 = scalar_lea.vmem %s5, %s540
      %p542 = scmp.lt.s32.totalorder %s27, 2
      %s543 = scalar_select %p542, %s27, 2
      %s544 = scalar_lea.vmem %s6, %s543
      %p545 = scmp.lt.s32.totalorder %s27, 2
      %s546 = scalar_select %p545, %s27, 2
      %s547 = smul.addr %s546, 16
      %s548 = smul.addr %s547, 4
      %s549 = scalar_lea.vmem %s7, %s548
      %p550 = scmp.lt.s32.totalorder %s27, 2
      %s551 = scalar_select %p550, %s27, 2
      %s552 = smul.addr %s551, 16
      %s553 = smul.addr %s552, 8
      %s554 = scalar_lea.vmem %s8, %s553
      %p555 = scmp.lt.s32.totalorder %s27, 2
      %s556 = scalar_select %p555, %s27, 2
      %s557 = smul.addr %s556, 16
      %s558 = smul.addr %s557, 4
      %s559 = scalar_lea.vmem %s9, %s558
      %p560 = scmp.lt.s32.totalorder %s27, 2
      %s561 = scalar_select %p560, %s27, 2
      %s562 = scalar_lea.vmem %s10, %s561
      %s563 = smul.u32 32, %s26
      %p564 = scmp.lt.s32.totalorder %s563, 63
      %s565 = scalar_select %p564, %s563, 63
      %s566 = smul.addr %s565, 4
      %s567 = scalar_lea.vmem %s11, %s566
      %s568 = smul.u32 32, %s26
      %p569 = scmp.eq.s32.totalorder %s27, 0
      // Predicated region
      $region65: #{gmlp_language_model.3} parent=63 // pred_check
        %p570 = pneg %p569
      $region66: #{gmlp_language_model.3} parent=63 // pred_check_branch
        %572 = sbr.rel (%p570) target = $region68
      $region67: #{gmlp_language_model.3} parent=63 // pred_region
        %v573 = vld [vmem:[%s522] sm:$0xf]
        %v574 = vld [vmem:[%s522 + $0x4] sm:$0xf]
        %v575 = vld [vmem:[%s522 + $0x8] sm:$0xf]
        %v576 = vld [vmem:[%s522 + $0xc] sm:$0xf]
        %v577 = vld [vmem:[%s522 + $0x10] sm:$0xf]
        %v578 = vld [vmem:[%s522 + $0x14] sm:$0xf]
        %v579 = vld [vmem:[%s522 + $0x18] sm:$0xf]
        %v580 = vld [vmem:[%s522 + $0x1c] sm:$0xf]
        %v581 = vld [vmem:[%s522 + $0x20] sm:$0xf]
        %v582 = vld [vmem:[%s522 + $0x24] sm:$0xf]
        %v583 = vld [vmem:[%s522 + $0x28] sm:$0xf]
        %v584 = vld [vmem:[%s522 + $0x2c] sm:$0xf]
        %v585 = vld [vmem:[%s522 + $0x30] sm:$0xf]
        %v586 = vld [vmem:[%s522 + $0x34] sm:$0xf]
        %v587 = vld [vmem:[%s522 + $0x38] sm:$0xf]
        %v588 = vld [vmem:[%s522 + $0x3c] sm:$0xf]
        %v589 = vld [vmem:[%s522 + $0x40] sm:$0xf]
        %v590 = vld [vmem:[%s522 + $0x44] sm:$0xf]
        %v591 = vld [vmem:[%s522 + $0x48] sm:$0xf]
        %v592 = vld [vmem:[%s522 + $0x4c] sm:$0xf]
        %v593 = vld [vmem:[%s522 + $0x50] sm:$0xf]
        %v594 = vld [vmem:[%s522 + $0x54] sm:$0xf]
        %v595 = vld [vmem:[%s522 + $0x58] sm:$0xf]
        %v596 = vld [vmem:[%s522 + $0x5c] sm:$0xf]
        %v597 = vld [vmem:[%s522 + $0x60] sm:$0xf]
        %v598 = vld [vmem:[%s522 + $0x64] sm:$0xf]
        %v599 = vld [vmem:[%s522 + $0x68] sm:$0xf]
        %v600 = vld [vmem:[%s522 + $0x6c] sm:$0xf]
        %v601 = vld [vmem:[%s522 + $0x70] sm:$0xf]
        %v602 = vld [vmem:[%s522 + $0x74] sm:$0xf]
        %v603 = vld [vmem:[%s522 + $0x78] sm:$0xf]
        %v604 = vld [vmem:[%s522 + $0x7c] sm:$0xf]
        %v605 = vunpack.c.l.bf16 %v573
        %v606 = vunpack.c.l.bf16 %v574
        %v607 = vunpack.c.l.bf16 %v575
        %v608 = vunpack.c.l.bf16 %v576
        %v609 = vunpack.c.l.bf16 %v577
        %v610 = vunpack.c.l.bf16 %v578
        %v611 = vunpack.c.l.bf16 %v579
        %v612 = vunpack.c.l.bf16 %v580
        %v613 = vunpack.c.l.bf16 %v581
        %v614 = vunpack.c.l.bf16 %v582
        %v615 = vunpack.c.l.bf16 %v583
        %v616 = vunpack.c.l.bf16 %v584
        %v617 = vunpack.c.l.bf16 %v585
        %v618 = vunpack.c.l.bf16 %v586
        %v619 = vunpack.c.l.bf16 %v587
        %v620 = vunpack.c.l.bf16 %v588
        %v621 = vunpack.c.l.bf16 %v589
        %v622 = vunpack.c.l.bf16 %v590
        %v623 = vunpack.c.l.bf16 %v591
        %v624 = vunpack.c.l.bf16 %v592
        %v625 = vunpack.c.l.bf16 %v593
        %v626 = vunpack.c.l.bf16 %v594
        %v627 = vunpack.c.l.bf16 %v595
        %v628 = vunpack.c.l.bf16 %v596
        %v629 = vunpack.c.l.bf16 %v597
        %v630 = vunpack.c.l.bf16 %v598
        %v631 = vunpack.c.l.bf16 %v599
        %v632 = vunpack.c.l.bf16 %v600
        %v633 = vunpack.c.l.bf16 %v601
        %v634 = vunpack.c.l.bf16 %v602
        %v635 = vunpack.c.l.bf16 %v603
        %v636 = vunpack.c.l.bf16 %v604
        %637 = vst [vmem:[#allocation2] sm:$0xff] %v605
        %638 = vst [vmem:[#allocation2 + $0x8] sm:$0xff] %v606
        %639 = vst [vmem:[#allocation2 + $0x10] sm:$0xff] %v607
        %640 = vst [vmem:[#allocation2 + $0x18] sm:$0xff] %v608
        %641 = vst [vmem:[#allocation2 + $0x20] sm:$0xff] %v609
        %642 = vst [vmem:[#allocation2 + $0x28] sm:$0xff] %v610
        %643 = vst [vmem:[#allocation2 + $0x30] sm:$0xff] %v611
        %644 = vst [vmem:[#allocation2 + $0x38] sm:$0xff] %v612
        %645 = vst [vmem:[#allocation2 + $0x40] sm:$0xff] %v613
        %646 = vst [vmem:[#allocation2 + $0x48] sm:$0xff] %v614
        %647 = vst [vmem:[#allocation2 + $0x50] sm:$0xff] %v615
        %648 = vst [vmem:[#allocation2 + $0x58] sm:$0xff] %v616
        %649 = vst [vmem:[#allocation2 + $0x60] sm:$0xff] %v617
        %650 = vst [vmem:[#allocation2 + $0x68] sm:$0xff] %v618
        %651 = vst [vmem:[#allocation2 + $0x70] sm:$0xff] %v619
        %652 = vst [vmem:[#allocation2 + $0x78] sm:$0xff] %v620
        %653 = vst [vmem:[#allocation2 + $0x80] sm:$0xff] %v621
        %654 = vst [vmem:[#allocation2 + $0x88] sm:$0xff] %v622
        %655 = vst [vmem:[#allocation2 + $0x90] sm:$0xff] %v623
        %656 = vst [vmem:[#allocation2 + $0x98] sm:$0xff] %v624
        %657 = vst [vmem:[#allocation2 + $0xa0] sm:$0xff] %v625
        %658 = vst [vmem:[#allocation2 + $0xa8] sm:$0xff] %v626
        %659 = vst [vmem:[#allocation2 + $0xb0] sm:$0xff] %v627
        %660 = vst [vmem:[#allocation2 + $0xb8] sm:$0xff] %v628
        %661 = vst [vmem:[#allocation2 + $0xc0] sm:$0xff] %v629
        %662 = vst [vmem:[#allocation2 + $0xc8] sm:$0xff] %v630
        %663 = vst [vmem:[#allocation2 + $0xd0] sm:$0xff] %v631
        %664 = vst [vmem:[#allocation2 + $0xd8] sm:$0xff] %v632
        %665 = vst [vmem:[#allocation2 + $0xe0] sm:$0xff] %v633
        %666 = vst [vmem:[#allocation2 + $0xe8] sm:$0xff] %v634
        %667 = vst [vmem:[#allocation2 + $0xf0] sm:$0xff] %v635
        %668 = vst [vmem:[#allocation2 + $0xf8] sm:$0xff] %v636
      $region68: #{gmlp_language_model.3} parent=63 // pred_fallthru
        _
      %v669 = vld [vmem:[#allocation2] sm:$0xff]
      %v670 = vld [vmem:[#allocation2 + $0x8] sm:$0xff]
      %v671 = vld [vmem:[#allocation2 + $0x10] sm:$0xff]
      %v672 = vld [vmem:[#allocation2 + $0x18] sm:$0xff]
      %v673 = vld [vmem:[#allocation2 + $0x20] sm:$0xff]
      %v674 = vld [vmem:[#allocation2 + $0x28] sm:$0xff]
      %v675 = vld [vmem:[#allocation2 + $0x30] sm:$0xff]
      %v676 = vld [vmem:[#allocation2 + $0x38] sm:$0xff]
      %v677 = vld [vmem:[#allocation2 + $0x40] sm:$0xff]
      %v678 = vld [vmem:[#allocation2 + $0x48] sm:$0xff]
      %v679 = vld [vmem:[#allocation2 + $0x50] sm:$0xff]
      %v680 = vld [vmem:[#allocation2 + $0x58] sm:$0xff]
      %v681 = vld [vmem:[#allocation2 + $0x60] sm:$0xff]
      %v682 = vld [vmem:[#allocation2 + $0x68] sm:$0xff]
      %v683 = vld [vmem:[#allocation2 + $0x70] sm:$0xff]
      %v684 = vld [vmem:[#allocation2 + $0x78] sm:$0xff]
      %v685 = vld [vmem:[#allocation2 + $0x80] sm:$0xff]
      %v686 = vld [vmem:[#allocation2 + $0x88] sm:$0xff]
      %v687 = vld [vmem:[#allocation2 + $0x90] sm:$0xff]
      %v688 = vld [vmem:[#allocation2 + $0x98] sm:$0xff]
      %v689 = vld [vmem:[#allocation2 + $0xa0] sm:$0xff]
      %v690 = vld [vmem:[#allocation2 + $0xa8] sm:$0xff]
      %v691 = vld [vmem:[#allocation2 + $0xb0] sm:$0xff]
      %v692 = vld [vmem:[#allocation2 + $0xb8] sm:$0xff]
      %v693 = vld [vmem:[#allocation2 + $0xc0] sm:$0xff]
      %v694 = vld [vmem:[#allocation2 + $0xc8] sm:$0xff]
      %v695 = vld [vmem:[#allocation2 + $0xd0] sm:$0xff]
      %v696 = vld [vmem:[#allocation2 + $0xd8] sm:$0xff]
      %v697 = vld [vmem:[#allocation2 + $0xe0] sm:$0xff]
      %v698 = vld [vmem:[#allocation2 + $0xe8] sm:$0xff]
      %v699 = vld [vmem:[#allocation2 + $0xf0] sm:$0xff]
      %v700 = vld [vmem:[#allocation2 + $0xf8] sm:$0xff]
      %v701 = vld [vmem:[%s526] sm:$0x1]
      %v702 = vld [vmem:[%s529] sm:$0x1]
      %703 = vadd.xlane.f32.xlu0 %v669
      %v704 = vpop.xlane.xlu0 %703
      %705 = vadd.xlane.f32.xlu0 %v670
      %v706 = vpop.xlane.xlu0 %705
      %707 = vadd.xlane.f32.xlu0 %v671
      %v708 = vpop.xlane.xlu0 %707
      %709 = vadd.xlane.f32.xlu0 %v672
      %v710 = vpop.xlane.xlu0 %709
      %711 = vadd.xlane.f32.xlu0 %v673
      %v712 = vpop.xlane.xlu0 %711
      %713 = vadd.xlane.f32.xlu0 %v674
      %v714 = vpop.xlane.xlu0 %713
      %715 = vadd.xlane.f32.xlu0 %v675
      %v716 = vpop.xlane.xlu0 %715
      %717 = vadd.xlane.f32.xlu0 %v676
      %v718 = vpop.xlane.xlu0 %717
      %719 = vadd.xlane.f32.xlu0 %v677
      %v720 = vpop.xlane.xlu0 %719
      %721 = vadd.xlane.f32.xlu0 %v678
      %v722 = vpop.xlane.xlu0 %721
      %723 = vadd.xlane.f32.xlu0 %v679
      %v724 = vpop.xlane.xlu0 %723
      %725 = vadd.xlane.f32.xlu0 %v680
      %v726 = vpop.xlane.xlu0 %725
      %727 = vadd.xlane.f32.xlu0 %v681
      %v728 = vpop.xlane.xlu0 %727
      %729 = vadd.xlane.f32.xlu0 %v682
      %v730 = vpop.xlane.xlu0 %729
      %731 = vadd.xlane.f32.xlu0 %v683
      %v732 = vpop.xlane.xlu0 %731
      %733 = vadd.xlane.f32.xlu0 %v684
      %v734 = vpop.xlane.xlu0 %733
      %735 = vadd.xlane.f32.xlu0 %v685
      %v736 = vpop.xlane.xlu0 %735
      %737 = vadd.xlane.f32.xlu0 %v686
      %v738 = vpop.xlane.xlu0 %737
      %739 = vadd.xlane.f32.xlu0 %v687
      %v740 = vpop.xlane.xlu0 %739
      %741 = vadd.xlane.f32.xlu0 %v688
      %v742 = vpop.xlane.xlu0 %741
      %743 = vadd.xlane.f32.xlu0 %v689
      %v744 = vpop.xlane.xlu0 %743
      %745 = vadd.xlane.f32.xlu0 %v690
      %v746 = vpop.xlane.xlu0 %745
      %747 = vadd.xlane.f32.xlu0 %v691
      %v748 = vpop.xlane.xlu0 %747
      %749 = vadd.xlane.f32.xlu0 %v692
      %v750 = vpop.xlane.xlu0 %749
      %751 = vadd.xlane.f32.xlu0 %v693
      %v752 = vpop.xlane.xlu0 %751
      %753 = vadd.xlane.f32.xlu0 %v694
      %v754 = vpop.xlane.xlu0 %753
      %755 = vadd.xlane.f32.xlu0 %v695
      %v756 = vpop.xlane.xlu0 %755
      %757 = vadd.xlane.f32.xlu0 %v696
      %v758 = vpop.xlane.xlu0 %757
      %759 = vadd.xlane.f32.xlu0 %v697
      %v760 = vpop.xlane.xlu0 %759
      %761 = vadd.xlane.f32.xlu0 %v698
      %v762 = vpop.xlane.xlu0 %761
      %763 = vadd.xlane.f32.xlu0 %v699
      %v764 = vpop.xlane.xlu0 %763
      %765 = vadd.xlane.f32.xlu0 %v700
      %v766 = vpop.xlane.xlu0 %765
      %v767 = vrcp.pop 128.0
      %v768 = vmul.f32 128.0, %v767
      %v769 = vsub.f32 1.0, %v768
      %v770 = vmul.f32 %v767, %v769
      %v771 = vadd.f32 %v767, %v770
      %vm772 = vweird.f32 %v767
      %v773 = vsel %vm772, %v767, %v771
      %v774 = vmul.f32 %v704, %v773
      %v775 = vmul.f32 %v706, %v773
      %v776 = vmul.f32 %v708, %v773
      %v777 = vmul.f32 %v710, %v773
      %v778 = vmul.f32 %v712, %v773
      %v779 = vmul.f32 %v714, %v773
      %v780 = vmul.f32 %v716, %v773
      %v781 = vmul.f32 %v718, %v773
      %v782 = vmul.f32 %v720, %v773
      %v783 = vmul.f32 %v722, %v773
      %v784 = vmul.f32 %v724, %v773
      %v785 = vmul.f32 %v726, %v773
      %v786 = vmul.f32 %v728, %v773
      %v787 = vmul.f32 %v730, %v773
      %v788 = vmul.f32 %v732, %v773
      %v789 = vmul.f32 %v734, %v773
      %v790 = vmul.f32 %v736, %v773
      %v791 = vmul.f32 %v738, %v773
      %v792 = vmul.f32 %v740, %v773
      %v793 = vmul.f32 %v742, %v773
      %v794 = vmul.f32 %v744, %v773
      %v795 = vmul.f32 %v746, %v773
      %v796 = vmul.f32 %v748, %v773
      %v797 = vmul.f32 %v750, %v773
      %v798 = vmul.f32 %v752, %v773
      %v799 = vmul.f32 %v754, %v773
      %v800 = vmul.f32 %v756, %v773
      %v801 = vmul.f32 %v758, %v773
      %v802 = vmul.f32 %v760, %v773
      %v803 = vmul.f32 %v762, %v773
      %v804 = vmul.f32 %v764, %v773
      %v805 = vmul.f32 %v766, %v773
      %v806 = vmul.f32 %v669, %v669
      %v807 = vmul.f32 %v670, %v670
      %v808 = vmul.f32 %v671, %v671
      %v809 = vmul.f32 %v672, %v672
      %v810 = vmul.f32 %v673, %v673
      %v811 = vmul.f32 %v674, %v674
      %v812 = vmul.f32 %v675, %v675
      %v813 = vmul.f32 %v676, %v676
      %v814 = vmul.f32 %v677, %v677
      %v815 = vmul.f32 %v678, %v678
      %v816 = vmul.f32 %v679, %v679
      %v817 = vmul.f32 %v680, %v680
      %v818 = vmul.f32 %v681, %v681
      %v819 = vmul.f32 %v682, %v682
      %v820 = vmul.f32 %v683, %v683
      %v821 = vmul.f32 %v684, %v684
      %v822 = vmul.f32 %v685, %v685
      %v823 = vmul.f32 %v686, %v686
      %v824 = vmul.f32 %v687, %v687
      %v825 = vmul.f32 %v688, %v688
      %v826 = vmul.f32 %v689, %v689
      %v827 = vmul.f32 %v690, %v690
      %v828 = vmul.f32 %v691, %v691
      %v829 = vmul.f32 %v692, %v692
      %v830 = vmul.f32 %v693, %v693
      %v831 = vmul.f32 %v694, %v694
      %v832 = vmul.f32 %v695, %v695
      %v833 = vmul.f32 %v696, %v696
      %v834 = vmul.f32 %v697, %v697
      %v835 = vmul.f32 %v698, %v698
      %v836 = vmul.f32 %v699, %v699
      %v837 = vmul.f32 %v700, %v700
      %838 = vadd.xlane.f32.xlu0 %v806
      %v839 = vpop.xlane.xlu0 %838
      %840 = vadd.xlane.f32.xlu0 %v807
      %v841 = vpop.xlane.xlu0 %840
      %842 = vadd.xlane.f32.xlu0 %v808
      %v843 = vpop.xlane.xlu0 %842
      %844 = vadd.xlane.f32.xlu0 %v809
      %v845 = vpop.xlane.xlu0 %844
      %846 = vadd.xlane.f32.xlu0 %v810
      %v847 = vpop.xlane.xlu0 %846
      %848 = vadd.xlane.f32.xlu0 %v811
      %v849 = vpop.xlane.xlu0 %848
      %850 = vadd.xlane.f32.xlu0 %v812
      %v851 = vpop.xlane.xlu0 %850
      %852 = vadd.xlane.f32.xlu0 %v813
      %v853 = vpop.xlane.xlu0 %852
      %854 = vadd.xlane.f32.xlu0 %v814
      %v855 = vpop.xlane.xlu0 %854
      %856 = vadd.xlane.f32.xlu0 %v815
      %v857 = vpop.xlane.xlu0 %856
      %858 = vadd.xlane.f32.xlu0 %v816
      %v859 = vpop.xlane.xlu0 %858
      %860 = vadd.xlane.f32.xlu0 %v817
      %v861 = vpop.xlane.xlu0 %860
      %862 = vadd.xlane.f32.xlu0 %v818
      %v863 = vpop.xlane.xlu0 %862
      %864 = vadd.xlane.f32.xlu0 %v819
      %v865 = vpop.xlane.xlu0 %864
      %866 = vadd.xlane.f32.xlu0 %v820
      %v867 = vpop.xlane.xlu0 %866
      %868 = vadd.xlane.f32.xlu0 %v821
      %v869 = vpop.xlane.xlu0 %868
      %870 = vadd.xlane.f32.xlu0 %v822
      %v871 = vpop.xlane.xlu0 %870
      %872 = vadd.xlane.f32.xlu0 %v823
      %v873 = vpop.xlane.xlu0 %872
      %874 = vadd.xlane.f32.xlu0 %v824
      %v875 = vpop.xlane.xlu0 %874
      %876 = vadd.xlane.f32.xlu0 %v825
      %v877 = vpop.xlane.xlu0 %876
      %878 = vadd.xlane.f32.xlu0 %v826
      %v879 = vpop.xlane.xlu0 %878
      %880 = vadd.xlane.f32.xlu0 %v827
      %v881 = vpop.xlane.xlu0 %880
      %882 = vadd.xlane.f32.xlu0 %v828
      %v883 = vpop.xlane.xlu0 %882
      %884 = vadd.xlane.f32.xlu0 %v829
      %v885 = vpop.xlane.xlu0 %884
      %886 = vadd.xlane.f32.xlu0 %v830
      %v887 = vpop.xlane.xlu0 %886
      %888 = vadd.xlane.f32.xlu0 %v831
      %v889 = vpop.xlane.xlu0 %888
      %890 = vadd.xlane.f32.xlu0 %v832
      %v891 = vpop.xlane.xlu0 %890
      %892 = vadd.xlane.f32.xlu0 %v833
      %v893 = vpop.xlane.xlu0 %892
      %894 = vadd.xlane.f32.xlu0 %v834
      %v895 = vpop.xlane.xlu0 %894
      %896 = vadd.xlane.f32.xlu0 %v835
      %v897 = vpop.xlane.xlu0 %896
      %898 = vadd.xlane.f32.xlu0 %v836
      %v899 = vpop.xlane.xlu0 %898
      %900 = vadd.xlane.f32.xlu0 %v837
      %v901 = vpop.xlane.xlu0 %900
      %v902 = vmul.f32 %v839, %v773
      %v903 = vmul.f32 %v841, %v773
      %v904 = vmul.f32 %v843, %v773
      %v905 = vmul.f32 %v845, %v773
      %v906 = vmul.f32 %v847, %v773
      %v907 = vmul.f32 %v849, %v773
      %v908 = vmul.f32 %v851, %v773
      %v909 = vmul.f32 %v853, %v773
      %v910 = vmul.f32 %v855, %v773
      %v911 = vmul.f32 %v857, %v773
      %v912 = vmul.f32 %v859, %v773
      %v913 = vmul.f32 %v861, %v773
      %v914 = vmul.f32 %v863, %v773
      %v915 = vmul.f32 %v865, %v773
      %v916 = vmul.f32 %v867, %v773
      %v917 = vmul.f32 %v869, %v773
      %v918 = vmul.f32 %v871, %v773
      %v919 = vmul.f32 %v873, %v773
      %v920 = vmul.f32 %v875, %v773
      %v921 = vmul.f32 %v877, %v773
      %v922 = vmul.f32 %v879, %v773
      %v923 = vmul.f32 %v881, %v773
      %v924 = vmul.f32 %v883, %v773
      %v925 = vmul.f32 %v885, %v773
      %v926 = vmul.f32 %v887, %v773
      %v927 = vmul.f32 %v889, %v773
      %v928 = vmul.f32 %v891, %v773
      %v929 = vmul.f32 %v893, %v773
      %v930 = vmul.f32 %v895, %v773
      %v931 = vmul.f32 %v897, %v773
      %v932 = vmul.f32 %v899, %v773
      %v933 = vmul.f32 %v901, %v773
      %v934 = vmul.f32 %v774, %v774
      %v935 = vmul.f32 %v775, %v775
      %v936 = vmul.f32 %v776, %v776
      %v937 = vmul.f32 %v777, %v777
      %v938 = vmul.f32 %v778, %v778
      %v939 = vmul.f32 %v779, %v779
      %v940 = vmul.f32 %v780, %v780
      %v941 = vmul.f32 %v781, %v781
      %v942 = vmul.f32 %v782, %v782
      %v943 = vmul.f32 %v783, %v783
      %v944 = vmul.f32 %v784, %v784
      %v945 = vmul.f32 %v785, %v785
      %v946 = vmul.f32 %v786, %v786
      %v947 = vmul.f32 %v787, %v787
      %v948 = vmul.f32 %v788, %v788
      %v949 = vmul.f32 %v789, %v789
      %v950 = vmul.f32 %v790, %v790
      %v951 = vmul.f32 %v791, %v791
      %v952 = vmul.f32 %v792, %v792
      %v953 = vmul.f32 %v793, %v793
      %v954 = vmul.f32 %v794, %v794
      %v955 = vmul.f32 %v795, %v795
      %v956 = vmul.f32 %v796, %v796
      %v957 = vmul.f32 %v797, %v797
      %v958 = vmul.f32 %v798, %v798
      %v959 = vmul.f32 %v799, %v799
      %v960 = vmul.f32 %v800, %v800
      %v961 = vmul.f32 %v801, %v801
      %v962 = vmul.f32 %v802, %v802
      %v963 = vmul.f32 %v803, %v803
      %v964 = vmul.f32 %v804, %v804
      %v965 = vmul.f32 %v805, %v805
      %v966 = vsub.f32 %v902, %v934
      %v967 = vsub.f32 %v903, %v935
      %v968 = vsub.f32 %v904, %v936
      %v969 = vsub.f32 %v905, %v937
      %v970 = vsub.f32 %v906, %v938
      %v971 = vsub.f32 %v907, %v939
      %v972 = vsub.f32 %v908, %v940
      %v973 = vsub.f32 %v909, %v941
      %v974 = vsub.f32 %v910, %v942
      %v975 = vsub.f32 %v911, %v943
      %v976 = vsub.f32 %v912, %v944
      %v977 = vsub.f32 %v913, %v945
      %v978 = vsub.f32 %v914, %v946
      %v979 = vsub.f32 %v915, %v947
      %v980 = vsub.f32 %v916, %v948
      %v981 = vsub.f32 %v917, %v949
      %v982 = vsub.f32 %v918, %v950
      %v983 = vsub.f32 %v919, %v951
      %v984 = vsub.f32 %v920, %v952
      %v985 = vsub.f32 %v921, %v953
      %v986 = vsub.f32 %v922, %v954
      %v987 = vsub.f32 %v923, %v955
      %v988 = vsub.f32 %v924, %v956
      %v989 = vsub.f32 %v925, %v957
      %v990 = vsub.f32 %v926, %v958
      %v991 = vsub.f32 %v927, %v959
      %v992 = vsub.f32 %v928, %v960
      %v993 = vsub.f32 %v929, %v961
      %v994 = vsub.f32 %v930, %v962
      %v995 = vsub.f32 %v931, %v963
      %v996 = vsub.f32 %v932, %v964
      %v997 = vsub.f32 %v933, %v965
      %v998 = vsub.f32 %v669, %v774
      %v999 = vsub.f32 %v670, %v775
      %v1000 = vsub.f32 %v671, %v776
      %v1001 = vsub.f32 %v672, %v777
      %v1002 = vsub.f32 %v673, %v778
      %v1003 = vsub.f32 %v674, %v779
      %v1004 = vsub.f32 %v675, %v780
      %v1005 = vsub.f32 %v676, %v781
      %v1006 = vsub.f32 %v677, %v782
      %v1007 = vsub.f32 %v678, %v783
      %v1008 = vsub.f32 %v679, %v784
      %v1009 = vsub.f32 %v680, %v785
      %v1010 = vsub.f32 %v681, %v786
      %v1011 = vsub.f32 %v682, %v787
      %v1012 = vsub.f32 %v683, %v788
      %v1013 = vsub.f32 %v684, %v789
      %v1014 = vsub.f32 %v685, %v790
      %v1015 = vsub.f32 %v686, %v791
      %v1016 = vsub.f32 %v687, %v792
      %v1017 = vsub.f32 %v688, %v793
      %v1018 = vsub.f32 %v689, %v794
      %v1019 = vsub.f32 %v690, %v795
      %v1020 = vsub.f32 %v691, %v796
      %v1021 = vsub.f32 %v692, %v797
      %v1022 = vsub.f32 %v693, %v798
      %v1023 = vsub.f32 %v694, %v799
      %v1024 = vsub.f32 %v695, %v800
      %v1025 = vsub.f32 %v696, %v801
      %v1026 = vsub.f32 %v697, %v802
      %v1027 = vsub.f32 %v698, %v803
      %v1028 = vsub.f32 %v699, %v804
      %v1029 = vsub.f32 %v700, %v805
      %v1030 = vadd.f32 %v966, 1e-05
      %v1031 = vadd.f32 %v967, 1e-05
      %v1032 = vadd.f32 %v968, 1e-05
      %v1033 = vadd.f32 %v969, 1e-05
      %v1034 = vadd.f32 %v970, 1e-05
      %v1035 = vadd.f32 %v971, 1e-05
      %v1036 = vadd.f32 %v972, 1e-05
      %v1037 = vadd.f32 %v973, 1e-05
      %v1038 = vadd.f32 %v974, 1e-05
      %v1039 = vadd.f32 %v975, 1e-05
      %v1040 = vadd.f32 %v976, 1e-05
      %v1041 = vadd.f32 %v977, 1e-05
      %v1042 = vadd.f32 %v978, 1e-05
      %v1043 = vadd.f32 %v979, 1e-05
      %v1044 = vadd.f32 %v980, 1e-05
      %v1045 = vadd.f32 %v981, 1e-05
      %v1046 = vadd.f32 %v982, 1e-05
      %v1047 = vadd.f32 %v983, 1e-05
      %v1048 = vadd.f32 %v984, 1e-05
      %v1049 = vadd.f32 %v985, 1e-05
      %v1050 = vadd.f32 %v986, 1e-05
      %v1051 = vadd.f32 %v987, 1e-05
      %v1052 = vadd.f32 %v988, 1e-05
      %v1053 = vadd.f32 %v989, 1e-05
      %v1054 = vadd.f32 %v990, 1e-05
      %v1055 = vadd.f32 %v991, 1e-05
      %v1056 = vadd.f32 %v992, 1e-05
      %v1057 = vadd.f32 %v993, 1e-05
      %v1058 = vadd.f32 %v994, 1e-05
      %v1059 = vadd.f32 %v995, 1e-05
      %v1060 = vadd.f32 %v996, 1e-05
      %v1061 = vadd.f32 %v997, 1e-05
      %v1062 = vrsqrt.pop %v1030
      %v1063 = vmul.f32 %v1062, %v1030
      %v1064 = vmul.f32 %v1063, %v1062
      %v1065 = vmul.f32 0.5, %v1064
      %v1066 = vsub.f32 1.5, %v1065
      %v1067 = vmul.f32 %v1062, %v1066
      %vm1068 = vweird.f32 %v1030
      %vm1069 = vweird.f32 %v1062
      %vm1070 = vmor %vm1068, %vm1069
      %v1071 = vsel %vm1070, %v1062, %v1067
      %v1072 = vrsqrt.pop %v1031
      %v1073 = vmul.f32 %v1072, %v1031
      %v1074 = vmul.f32 %v1073, %v1072
      %v1075 = vmul.f32 0.5, %v1074
      %v1076 = vsub.f32 1.5, %v1075
      %v1077 = vmul.f32 %v1072, %v1076
      %vm1078 = vweird.f32 %v1031
      %vm1079 = vweird.f32 %v1072
      %vm1080 = vmor %vm1078, %vm1079
      %v1081 = vsel %vm1080, %v1072, %v1077
      %v1082 = vrsqrt.pop %v1032
      %v1083 = vmul.f32 %v1082, %v1032
      %v1084 = vmul.f32 %v1083, %v1082
      %v1085 = vmul.f32 0.5, %v1084
      %v1086 = vsub.f32 1.5, %v1085
      %v1087 = vmul.f32 %v1082, %v1086
      %vm1088 = vweird.f32 %v1032
      %vm1089 = vweird.f32 %v1082
      %vm1090 = vmor %vm1088, %vm1089
      %v1091 = vsel %vm1090, %v1082, %v1087
      %v1092 = vrsqrt.pop %v1033
      %v1093 = vmul.f32 %v1092, %v1033
      %v1094 = vmul.f32 %v1093, %v1092
      %v1095 = vmul.f32 0.5, %v1094
      %v1096 = vsub.f32 1.5, %v1095
      %v1097 = vmul.f32 %v1092, %v1096
      %vm1098 = vweird.f32 %v1033
      %vm1099 = vweird.f32 %v1092
      %vm1100 = vmor %vm1098, %vm1099
      %v1101 = vsel %vm1100, %v1092, %v1097
      %v1102 = vrsqrt.pop %v1034
      %v1103 = vmul.f32 %v1102, %v1034
      %v1104 = vmul.f32 %v1103, %v1102
      %v1105 = vmul.f32 0.5, %v1104
      %v1106 = vsub.f32 1.5, %v1105
      %v1107 = vmul.f32 %v1102, %v1106
      %vm1108 = vweird.f32 %v1034
      %vm1109 = vweird.f32 %v1102
      %vm1110 = vmor %vm1108, %vm1109
      %v1111 = vsel %vm1110, %v1102, %v1107
      %v1112 = vrsqrt.pop %v1035
      %v1113 = vmul.f32 %v1112, %v1035
      %v1114 = vmul.f32 %v1113, %v1112
      %v1115 = vmul.f32 0.5, %v1114
      %v1116 = vsub.f32 1.5, %v1115
      %v1117 = vmul.f32 %v1112, %v1116
      %vm1118 = vweird.f32 %v1035
      %vm1119 = vweird.f32 %v1112
      %vm1120 = vmor %vm1118, %vm1119
      %v1121 = vsel %vm1120, %v1112, %v1117
      %v1122 = vrsqrt.pop %v1036
      %v1123 = vmul.f32 %v1122, %v1036
      %v1124 = vmul.f32 %v1123, %v1122
      %v1125 = vmul.f32 0.5, %v1124
      %v1126 = vsub.f32 1.5, %v1125
      %v1127 = vmul.f32 %v1122, %v1126
      %vm1128 = vweird.f32 %v1036
      %vm1129 = vweird.f32 %v1122
      %vm1130 = vmor %vm1128, %vm1129
      %v1131 = vsel %vm1130, %v1122, %v1127
      %v1132 = vrsqrt.pop %v1037
      %v1133 = vmul.f32 %v1132, %v1037
      %v1134 = vmul.f32 %v1133, %v1132
      %v1135 = vmul.f32 0.5, %v1134
      %v1136 = vsub.f32 1.5, %v1135
      %v1137 = vmul.f32 %v1132, %v1136
      %vm1138 = vweird.f32 %v1037
      %vm1139 = vweird.f32 %v1132
      %vm1140 = vmor %vm1138, %vm1139
      %v1141 = vsel %vm1140, %v1132, %v1137
      %v1142 = vrsqrt.pop %v1038
      %v1143 = vmul.f32 %v1142, %v1038
      %v1144 = vmul.f32 %v1143, %v1142
      %v1145 = vmul.f32 0.5, %v1144
      %v1146 = vsub.f32 1.5, %v1145
      %v1147 = vmul.f32 %v1142, %v1146
      %vm1148 = vweird.f32 %v1038
      %vm1149 = vweird.f32 %v1142
      %vm1150 = vmor %vm1148, %vm1149
      %v1151 = vsel %vm1150, %v1142, %v1147
      %v1152 = vrsqrt.pop %v1039
      %v1153 = vmul.f32 %v1152, %v1039
      %v1154 = vmul.f32 %v1153, %v1152
      %v1155 = vmul.f32 0.5, %v1154
      %v1156 = vsub.f32 1.5, %v1155
      %v1157 = vmul.f32 %v1152, %v1156
      %vm1158 = vweird.f32 %v1039
      %vm1159 = vweird.f32 %v1152
      %vm1160 = vmor %vm1158, %vm1159
      %v1161 = vsel %vm1160, %v1152, %v1157
      %v1162 = vrsqrt.pop %v1040
      %v1163 = vmul.f32 %v1162, %v1040
      %v1164 = vmul.f32 %v1163, %v1162
      %v1165 = vmul.f32 0.5, %v1164
      %v1166 = vsub.f32 1.5, %v1165
      %v1167 = vmul.f32 %v1162, %v1166
      %vm1168 = vweird.f32 %v1040
      %vm1169 = vweird.f32 %v1162
      %vm1170 = vmor %vm1168, %vm1169
      %v1171 = vsel %vm1170, %v1162, %v1167
      %v1172 = vrsqrt.pop %v1041
      %v1173 = vmul.f32 %v1172, %v1041
      %v1174 = vmul.f32 %v1173, %v1172
      %v1175 = vmul.f32 0.5, %v1174
      %v1176 = vsub.f32 1.5, %v1175
      %v1177 = vmul.f32 %v1172, %v1176
      %vm1178 = vweird.f32 %v1041
      %vm1179 = vweird.f32 %v1172
      %vm1180 = vmor %vm1178, %vm1179
      %v1181 = vsel %vm1180, %v1172, %v1177
      %v1182 = vrsqrt.pop %v1042
      %v1183 = vmul.f32 %v1182, %v1042
      %v1184 = vmul.f32 %v1183, %v1182
      %v1185 = vmul.f32 0.5, %v1184
      %v1186 = vsub.f32 1.5, %v1185
      %v1187 = vmul.f32 %v1182, %v1186
      %vm1188 = vweird.f32 %v1042
      %vm1189 = vweird.f32 %v1182
      %vm1190 = vmor %vm1188, %vm1189
      %v1191 = vsel %vm1190, %v1182, %v1187
      %v1192 = vrsqrt.pop %v1043
      %v1193 = vmul.f32 %v1192, %v1043
      %v1194 = vmul.f32 %v1193, %v1192
      %v1195 = vmul.f32 0.5, %v1194
      %v1196 = vsub.f32 1.5, %v1195
      %v1197 = vmul.f32 %v1192, %v1196
      %vm1198 = vweird.f32 %v1043
      %vm1199 = vweird.f32 %v1192
      %vm1200 = vmor %vm1198, %vm1199
      %v1201 = vsel %vm1200, %v1192, %v1197
      %v1202 = vrsqrt.pop %v1044
      %v1203 = vmul.f32 %v1202, %v1044
      %v1204 = vmul.f32 %v1203, %v1202
      %v1205 = vmul.f32 0.5, %v1204
      %v1206 = vsub.f32 1.5, %v1205
      %v1207 = vmul.f32 %v1202, %v1206
      %vm1208 = vweird.f32 %v1044
      %vm1209 = vweird.f32 %v1202
      %vm1210 = vmor %vm1208, %vm1209
      %v1211 = vsel %vm1210, %v1202, %v1207
      %v1212 = vrsqrt.pop %v1045
      %v1213 = vmul.f32 %v1212, %v1045
      %v1214 = vmul.f32 %v1213, %v1212
      %v1215 = vmul.f32 0.5, %v1214
      %v1216 = vsub.f32 1.5, %v1215
      %v1217 = vmul.f32 %v1212, %v1216
      %vm1218 = vweird.f32 %v1045
      %vm1219 = vweird.f32 %v1212
      %vm1220 = vmor %vm1218, %vm1219
      %v1221 = vsel %vm1220, %v1212, %v1217
      %v1222 = vrsqrt.pop %v1046
      %v1223 = vmul.f32 %v1222, %v1046
      %v1224 = vmul.f32 %v1223, %v1222
      %v1225 = vmul.f32 0.5, %v1224
      %v1226 = vsub.f32 1.5, %v1225
      %v1227 = vmul.f32 %v1222, %v1226
      %vm1228 = vweird.f32 %v1046
      %vm1229 = vweird.f32 %v1222
      %vm1230 = vmor %vm1228, %vm1229
      %v1231 = vsel %vm1230, %v1222, %v1227
      %v1232 = vrsqrt.pop %v1047
      %v1233 = vmul.f32 %v1232, %v1047
      %v1234 = vmul.f32 %v1233, %v1232
      %v1235 = vmul.f32 0.5, %v1234
      %v1236 = vsub.f32 1.5, %v1235
      %v1237 = vmul.f32 %v1232, %v1236
      %vm1238 = vweird.f32 %v1047
      %vm1239 = vweird.f32 %v1232
      %vm1240 = vmor %vm1238, %vm1239
      %v1241 = vsel %vm1240, %v1232, %v1237
      %v1242 = vrsqrt.pop %v1048
      %v1243 = vmul.f32 %v1242, %v1048
      %v1244 = vmul.f32 %v1243, %v1242
      %v1245 = vmul.f32 0.5, %v1244
      %v1246 = vsub.f32 1.5, %v1245
      %v1247 = vmul.f32 %v1242, %v1246
      %vm1248 = vweird.f32 %v1048
      %vm1249 = vweird.f32 %v1242
      %vm1250 = vmor %vm1248, %vm1249
      %v1251 = vsel %vm1250, %v1242, %v1247
      %v1252 = vrsqrt.pop %v1049
      %v1253 = vmul.f32 %v1252, %v1049
      %v1254 = vmul.f32 %v1253, %v1252
      %v1255 = vmul.f32 0.5, %v1254
      %v1256 = vsub.f32 1.5, %v1255
      %v1257 = vmul.f32 %v1252, %v1256
      %vm1258 = vweird.f32 %v1049
      %vm1259 = vweird.f32 %v1252
      %vm1260 = vmor %vm1258, %vm1259
      %v1261 = vsel %vm1260, %v1252, %v1257
      %v1262 = vrsqrt.pop %v1050
      %v1263 = vmul.f32 %v1262, %v1050
      %v1264 = vmul.f32 %v1263, %v1262
      %v1265 = vmul.f32 0.5, %v1264
      %v1266 = vsub.f32 1.5, %v1265
      %v1267 = vmul.f32 %v1262, %v1266
      %vm1268 = vweird.f32 %v1050
      %vm1269 = vweird.f32 %v1262
      %vm1270 = vmor %vm1268, %vm1269
      %v1271 = vsel %vm1270, %v1262, %v1267
      %v1272 = vrsqrt.pop %v1051
      %v1273 = vmul.f32 %v1272, %v1051
      %v1274 = vmul.f32 %v1273, %v1272
      %v1275 = vmul.f32 0.5, %v1274
      %v1276 = vsub.f32 1.5, %v1275
      %v1277 = vmul.f32 %v1272, %v1276
      %vm1278 = vweird.f32 %v1051
      %vm1279 = vweird.f32 %v1272
      %vm1280 = vmor %vm1278, %vm1279
      %v1281 = vsel %vm1280, %v1272, %v1277
      %v1282 = vrsqrt.pop %v1052
      %v1283 = vmul.f32 %v1282, %v1052
      %v1284 = vmul.f32 %v1283, %v1282
      %v1285 = vmul.f32 0.5, %v1284
      %v1286 = vsub.f32 1.5, %v1285
      %v1287 = vmul.f32 %v1282, %v1286
      %vm1288 = vweird.f32 %v1052
      %vm1289 = vweird.f32 %v1282
      %vm1290 = vmor %vm1288, %vm1289
      %v1291 = vsel %vm1290, %v1282, %v1287
      %v1292 = vrsqrt.pop %v1053
      %v1293 = vmul.f32 %v1292, %v1053
      %v1294 = vmul.f32 %v1293, %v1292
      %v1295 = vmul.f32 0.5, %v1294
      %v1296 = vsub.f32 1.5, %v1295
      %v1297 = vmul.f32 %v1292, %v1296
      %vm1298 = vweird.f32 %v1053
      %vm1299 = vweird.f32 %v1292
      %vm1300 = vmor %vm1298, %vm1299
      %v1301 = vsel %vm1300, %v1292, %v1297
      %v1302 = vrsqrt.pop %v1054
      %v1303 = vmul.f32 %v1302, %v1054
      %v1304 = vmul.f32 %v1303, %v1302
      %v1305 = vmul.f32 0.5, %v1304
      %v1306 = vsub.f32 1.5, %v1305
      %v1307 = vmul.f32 %v1302, %v1306
      %vm1308 = vweird.f32 %v1054
      %vm1309 = vweird.f32 %v1302
      %vm1310 = vmor %vm1308, %vm1309
      %v1311 = vsel %vm1310, %v1302, %v1307
      %v1312 = vrsqrt.pop %v1055
      %v1313 = vmul.f32 %v1312, %v1055
      %v1314 = vmul.f32 %v1313, %v1312
      %v1315 = vmul.f32 0.5, %v1314
      %v1316 = vsub.f32 1.5, %v1315
      %v1317 = vmul.f32 %v1312, %v1316
      %vm1318 = vweird.f32 %v1055
      %vm1319 = vweird.f32 %v1312
      %vm1320 = vmor %vm1318, %vm1319
      %v1321 = vsel %vm1320, %v1312, %v1317
      %v1322 = vrsqrt.pop %v1056
      %v1323 = vmul.f32 %v1322, %v1056
      %v1324 = vmul.f32 %v1323, %v1322
      %v1325 = vmul.f32 0.5, %v1324
      %v1326 = vsub.f32 1.5, %v1325
      %v1327 = vmul.f32 %v1322, %v1326
      %vm1328 = vweird.f32 %v1056
      %vm1329 = vweird.f32 %v1322
      %vm1330 = vmor %vm1328, %vm1329
      %v1331 = vsel %vm1330, %v1322, %v1327
      %v1332 = vrsqrt.pop %v1057
      %v1333 = vmul.f32 %v1332, %v1057
      %v1334 = vmul.f32 %v1333, %v1332
      %v1335 = vmul.f32 0.5, %v1334
      %v1336 = vsub.f32 1.5, %v1335
      %v1337 = vmul.f32 %v1332, %v1336
      %vm1338 = vweird.f32 %v1057
      %vm1339 = vweird.f32 %v1332
      %vm1340 = vmor %vm1338, %vm1339
      %v1341 = vsel %vm1340, %v1332, %v1337
      %v1342 = vrsqrt.pop %v1058
      %v1343 = vmul.f32 %v1342, %v1058
      %v1344 = vmul.f32 %v1343, %v1342
      %v1345 = vmul.f32 0.5, %v1344
      %v1346 = vsub.f32 1.5, %v1345
      %v1347 = vmul.f32 %v1342, %v1346
      %vm1348 = vweird.f32 %v1058
      %vm1349 = vweird.f32 %v1342
      %vm1350 = vmor %vm1348, %vm1349
      %v1351 = vsel %vm1350, %v1342, %v1347
      %v1352 = vrsqrt.pop %v1059
      %v1353 = vmul.f32 %v1352, %v1059
      %v1354 = vmul.f32 %v1353, %v1352
      %v1355 = vmul.f32 0.5, %v1354
      %v1356 = vsub.f32 1.5, %v1355
      %v1357 = vmul.f32 %v1352, %v1356
      %vm1358 = vweird.f32 %v1059
      %vm1359 = vweird.f32 %v1352
      %vm1360 = vmor %vm1358, %vm1359
      %v1361 = vsel %vm1360, %v1352, %v1357
      %v1362 = vrsqrt.pop %v1060
      %v1363 = vmul.f32 %v1362, %v1060
      %v1364 = vmul.f32 %v1363, %v1362
      %v1365 = vmul.f32 0.5, %v1364
      %v1366 = vsub.f32 1.5, %v1365
      %v1367 = vmul.f32 %v1362, %v1366
      %vm1368 = vweird.f32 %v1060
      %vm1369 = vweird.f32 %v1362
      %vm1370 = vmor %vm1368, %vm1369
      %v1371 = vsel %vm1370, %v1362, %v1367
      %v1372 = vrsqrt.pop %v1061
      %v1373 = vmul.f32 %v1372, %v1061
      %v1374 = vmul.f32 %v1373, %v1372
      %v1375 = vmul.f32 0.5, %v1374
      %v1376 = vsub.f32 1.5, %v1375
      %v1377 = vmul.f32 %v1372, %v1376
      %vm1378 = vweird.f32 %v1061
      %vm1379 = vweird.f32 %v1372
      %vm1380 = vmor %vm1378, %vm1379
      %v1381 = vsel %vm1380, %v1372, %v1377
      %v1382 = vmul.f32 %v998, %v1071
      %v1383 = vmul.f32 %v999, %v1081
      %v1384 = vmul.f32 %v1000, %v1091
      %v1385 = vmul.f32 %v1001, %v1101
      %v1386 = vmul.f32 %v1002, %v1111
      %v1387 = vmul.f32 %v1003, %v1121
      %v1388 = vmul.f32 %v1004, %v1131
      %v1389 = vmul.f32 %v1005, %v1141
      %v1390 = vmul.f32 %v1006, %v1151
      %v1391 = vmul.f32 %v1007, %v1161
      %v1392 = vmul.f32 %v1008, %v1171
      %v1393 = vmul.f32 %v1009, %v1181
      %v1394 = vmul.f32 %v1010, %v1191
      %v1395 = vmul.f32 %v1011, %v1201
      %v1396 = vmul.f32 %v1012, %v1211
      %v1397 = vmul.f32 %v1013, %v1221
      %v1398 = vmul.f32 %v1014, %v1231
      %v1399 = vmul.f32 %v1015, %v1241
      %v1400 = vmul.f32 %v1016, %v1251
      %v1401 = vmul.f32 %v1017, %v1261
      %v1402 = vmul.f32 %v1018, %v1271
      %v1403 = vmul.f32 %v1019, %v1281
      %v1404 = vmul.f32 %v1020, %v1291
      %v1405 = vmul.f32 %v1021, %v1301
      %v1406 = vmul.f32 %v1022, %v1311
      %v1407 = vmul.f32 %v1023, %v1321
      %v1408 = vmul.f32 %v1024, %v1331
      %v1409 = vmul.f32 %v1025, %v1341
      %v1410 = vmul.f32 %v1026, %v1351
      %v1411 = vmul.f32 %v1027, %v1361
      %v1412 = vmul.f32 %v1028, %v1371
      %v1413 = vmul.f32 %v1029, %v1381
      %v1415 = vperm.slane %v701, 0
      %v1417 = vmul.f32 %v1382, %v1415
      %v1418 = vmul.f32 %v1383, %v1415
      %v1419 = vmul.f32 %v1384, %v1415
      %v1420 = vmul.f32 %v1385, %v1415
      %v1421 = vmul.f32 %v1386, %v1415
      %v1422 = vmul.f32 %v1387, %v1415
      %v1423 = vmul.f32 %v1388, %v1415
      %v1424 = vmul.f32 %v1389, %v1415
      %v1425 = vmul.f32 %v1390, %v1415
      %v1426 = vmul.f32 %v1391, %v1415
      %v1427 = vmul.f32 %v1392, %v1415
      %v1428 = vmul.f32 %v1393, %v1415
      %v1429 = vmul.f32 %v1394, %v1415
      %v1430 = vmul.f32 %v1395, %v1415
      %v1431 = vmul.f32 %v1396, %v1415
      %v1432 = vmul.f32 %v1397, %v1415
      %v1433 = vmul.f32 %v1398, %v1415
      %v1434 = vmul.f32 %v1399, %v1415
      %v1435 = vmul.f32 %v1400, %v1415
      %v1436 = vmul.f32 %v1401, %v1415
      %v1437 = vmul.f32 %v1402, %v1415
      %v1438 = vmul.f32 %v1403, %v1415
      %v1439 = vmul.f32 %v1404, %v1415
      %v1440 = vmul.f32 %v1405, %v1415
      %v1441 = vmul.f32 %v1406, %v1415
      %v1442 = vmul.f32 %v1407, %v1415
      %v1443 = vmul.f32 %v1408, %v1415
      %v1444 = vmul.f32 %v1409, %v1415
      %v1445 = vmul.f32 %v1410, %v1415
      %v1446 = vmul.f32 %v1411, %v1415
      %v1447 = vmul.f32 %v1412, %v1415
      %v1448 = vmul.f32 %v1413, %v1415
      %v1450 = vperm.slane %v702, 0
      %v1452 = vadd.f32 %v1417, %v1450
      %v1453 = vadd.f32 %v1418, %v1450
      %v1454 = vadd.f32 %v1419, %v1450
      %v1455 = vadd.f32 %v1420, %v1450
      %v1456 = vadd.f32 %v1421, %v1450
      %v1457 = vadd.f32 %v1422, %v1450
      %v1458 = vadd.f32 %v1423, %v1450
      %v1459 = vadd.f32 %v1424, %v1450
      %v1460 = vadd.f32 %v1425, %v1450
      %v1461 = vadd.f32 %v1426, %v1450
      %v1462 = vadd.f32 %v1427, %v1450
      %v1463 = vadd.f32 %v1428, %v1450
      %v1464 = vadd.f32 %v1429, %v1450
      %v1465 = vadd.f32 %v1430, %v1450
      %v1466 = vadd.f32 %v1431, %v1450
      %v1467 = vadd.f32 %v1432, %v1450
      %v1468 = vadd.f32 %v1433, %v1450
      %v1469 = vadd.f32 %v1434, %v1450
      %v1470 = vadd.f32 %v1435, %v1450
      %v1471 = vadd.f32 %v1436, %v1450
      %v1472 = vadd.f32 %v1437, %v1450
      %v1473 = vadd.f32 %v1438, %v1450
      %v1474 = vadd.f32 %v1439, %v1450
      %v1475 = vadd.f32 %v1440, %v1450
      %v1476 = vadd.f32 %v1441, %v1450
      %v1477 = vadd.f32 %v1442, %v1450
      %v1478 = vadd.f32 %v1443, %v1450
      %v1479 = vadd.f32 %v1444, %v1450
      %v1480 = vadd.f32 %v1445, %v1450
      %v1481 = vadd.f32 %v1446, %v1450
      %v1482 = vadd.f32 %v1447, %v1450
      %v1483 = vadd.f32 %v1448, %v1450
      %v1484 = vpack.c.bf16 %v1453, %v1452
      %v1485 = vpack.c.bf16 %v1455, %v1454
      %v1486 = vpack.c.bf16 %v1457, %v1456
      %v1487 = vpack.c.bf16 %v1459, %v1458
      %v1488 = vpack.c.bf16 %v1461, %v1460
      %v1489 = vpack.c.bf16 %v1463, %v1462
      %v1490 = vpack.c.bf16 %v1465, %v1464
      %v1491 = vpack.c.bf16 %v1467, %v1466
      %v1492 = vpack.c.bf16 %v1469, %v1468
      %v1493 = vpack.c.bf16 %v1471, %v1470
      %v1494 = vpack.c.bf16 %v1473, %v1472
      %v1495 = vpack.c.bf16 %v1475, %v1474
      %v1496 = vpack.c.bf16 %v1477, %v1476
      %v1497 = vpack.c.bf16 %v1479, %v1478
      %v1498 = vpack.c.bf16 %v1481, %v1480
      %v1499 = vpack.c.bf16 %v1483, %v1482
      %v1500 = vld [vmem:[%s534] sm:$0xff]
      %v1501 = vld [vmem:[%s534 + $0x8] sm:$0xff]
      %v1502 = vld [vmem:[%s534 + $0x10] sm:$0xff]
      %v1503 = vld [vmem:[%s534 + $0x18] sm:$0xff]
      %v1504 = vld [vmem:[%s534 + $0x20] sm:$0xff]
      %v1505 = vld [vmem:[%s534 + $0x28] sm:$0xff]
      %v1506 = vld [vmem:[%s534 + $0x30] sm:$0xff]
      %v1507 = vld [vmem:[%s534 + $0x38] sm:$0xff]
      %v1508 = vld [vmem:[%s534 + $0x40] sm:$0xff]
      %v1509 = vld [vmem:[%s534 + $0x48] sm:$0xff]
      %v1510 = vld [vmem:[%s534 + $0x50] sm:$0xff]
      %v1511 = vld [vmem:[%s534 + $0x58] sm:$0xff]
      %v1512 = vld [vmem:[%s534 + $0x60] sm:$0xff]
      %v1513 = vld [vmem:[%s534 + $0x68] sm:$0xff]
      %v1514 = vld [vmem:[%s534 + $0x70] sm:$0xff]
      %v1515 = vld [vmem:[%s534 + $0x78] sm:$0xff]
      %v1516 = vld [vmem:[%s538] sm:$0x3]
      %v1518 = vperm.slane %v1516, 0
      %v1519 = vperm.slane %v1516, 1
      %v1538 = vunpack.c.l.b16 %v1500
      %v1539 = vunpack.c.h.b16 %v1500
      %v1540 = vunpack.c.l.b16 %v1501
      %v1541 = vunpack.c.h.b16 %v1501
      %v1542 = vunpack.c.l.b16 %v1502
      %v1543 = vunpack.c.h.b16 %v1502
      %v1544 = vunpack.c.l.b16 %v1503
      %v1545 = vunpack.c.h.b16 %v1503
      %v1546 = vunpack.c.l.b16 %v1504
      %v1547 = vunpack.c.h.b16 %v1504
      %v1548 = vunpack.c.l.b16 %v1505
      %v1549 = vunpack.c.h.b16 %v1505
      %v1550 = vunpack.c.l.b16 %v1506
      %v1551 = vunpack.c.h.b16 %v1506
      %v1552 = vunpack.c.l.b16 %v1507
      %v1553 = vunpack.c.h.b16 %v1507
      %v1554 = vunpack.c.l.b16 %v1508
      %v1555 = vunpack.c.h.b16 %v1508
      %v1556 = vunpack.c.l.b16 %v1509
      %v1557 = vunpack.c.h.b16 %v1509
      %v1558 = vunpack.c.l.b16 %v1510
      %v1559 = vunpack.c.h.b16 %v1510
      %v1560 = vunpack.c.l.b16 %v1511
      %v1561 = vunpack.c.h.b16 %v1511
      %v1562 = vunpack.c.l.b16 %v1512
      %v1563 = vunpack.c.h.b16 %v1512
      %v1564 = vunpack.c.l.b16 %v1513
      %v1565 = vunpack.c.h.b16 %v1513
      %v1566 = vunpack.c.l.b16 %v1514
      %v1567 = vunpack.c.h.b16 %v1514
      %v1568 = vunpack.c.l.b16 %v1515
      %v1569 = vunpack.c.h.b16 %v1515
      %v1570 = vpack.c.b16 %v1540, %v1538
      %v1571 = vpack.c.b16 %v1541, %v1539
      %v1572 = vpack.c.b16 %v1544, %v1542
      %v1573 = vpack.c.b16 %v1545, %v1543
      %v1574 = vpack.c.b16 %v1548, %v1546
      %v1575 = vpack.c.b16 %v1549, %v1547
      %v1576 = vpack.c.b16 %v1552, %v1550
      %v1577 = vpack.c.b16 %v1553, %v1551
      %v1578 = vpack.c.b16 %v1556, %v1554
      %v1579 = vpack.c.b16 %v1557, %v1555
      %v1580 = vpack.c.b16 %v1560, %v1558
      %v1581 = vpack.c.b16 %v1561, %v1559
      %v1582 = vpack.c.b16 %v1564, %v1562
      %v1583 = vpack.c.b16 %v1565, %v1563
      %v1584 = vpack.c.b16 %v1568, %v1566
      %v1585 = vpack.c.b16 %v1569, %v1567
      %1602 = vmatpush.bf16.msra.mxu0 %v1584
      %1603 = vmatpush.bf16.msra.mxu0 %v1582
      %1604 = vmatpush.bf16.msra.mxu0 %v1580
      %1605 = vmatpush.bf16.msra.mxu0 %v1578
      %1606 = vmatpush.bf16.msra.mxu0 %v1576
      %1607 = vmatpush.bf16.msra.mxu0 %v1574
      %1608 = vmatpush.bf16.msra.mxu0 %v1572
      %1609 = vmatpush.bf16.msra.mxu0 %v1570
      %1610 = vmatmul.bf16.gmra.mxu0 %v1484
      %v1611 = vpop.f32.mrf.mxu0
      %v1612 = vadd.f32 %v1518, %v1611
      %v1613 = vpop.f32.mrf.mxu0
      %v1614 = vadd.f32 %v1518, %v1613
      %1615 = vmatmul.bf16.gmra.mxu0 %v1485
      %v1616 = vpop.f32.mrf.mxu0
      %v1617 = vadd.f32 %v1518, %v1616
      %v1618 = vpop.f32.mrf.mxu0
      %v1619 = vadd.f32 %v1518, %v1618
      %1620 = vmatmul.bf16.gmra.mxu0 %v1486
      %v1621 = vpop.f32.mrf.mxu0
      %v1622 = vadd.f32 %v1518, %v1621
      %v1623 = vpop.f32.mrf.mxu0
      %v1624 = vadd.f32 %v1518, %v1623
      %1625 = vmatmul.bf16.gmra.mxu0 %v1487
      %v1626 = vpop.f32.mrf.mxu0
      %v1627 = vadd.f32 %v1518, %v1626
      %v1628 = vpop.f32.mrf.mxu0
      %v1629 = vadd.f32 %v1518, %v1628
      %1630 = vmatmul.bf16.gmra.mxu0 %v1488
      %v1631 = vpop.f32.mrf.mxu0
      %v1632 = vadd.f32 %v1518, %v1631
      %v1633 = vpop.f32.mrf.mxu0
      %v1634 = vadd.f32 %v1518, %v1633
      %1635 = vmatmul.bf16.gmra.mxu0 %v1489
      %v1636 = vpop.f32.mrf.mxu0
      %v1637 = vadd.f32 %v1518, %v1636
      %v1638 = vpop.f32.mrf.mxu0
      %v1639 = vadd.f32 %v1518, %v1638
      %1640 = vmatmul.bf16.gmra.mxu0 %v1490
      %v1641 = vpop.f32.mrf.mxu0
      %v1642 = vadd.f32 %v1518, %v1641
      %v1643 = vpop.f32.mrf.mxu0
      %v1644 = vadd.f32 %v1518, %v1643
      %1645 = vmatmul.bf16.gmra.mxu0 %v1491
      %v1646 = vpop.f32.mrf.mxu0
      %v1647 = vadd.f32 %v1518, %v1646
      %v1648 = vpop.f32.mrf.mxu0
      %v1649 = vadd.f32 %v1518, %v1648
      %1650 = vmatmul.bf16.gmra.mxu0 %v1492
      %v1651 = vpop.f32.mrf.mxu0
      %v1652 = vadd.f32 %v1518, %v1651
      %v1653 = vpop.f32.mrf.mxu0
      %v1654 = vadd.f32 %v1518, %v1653
      %1655 = vmatmul.bf16.gmra.mxu0 %v1493
      %v1656 = vpop.f32.mrf.mxu0
      %v1657 = vadd.f32 %v1518, %v1656
      %v1658 = vpop.f32.mrf.mxu0
      %v1659 = vadd.f32 %v1518, %v1658
      %1660 = vmatmul.bf16.gmra.mxu0 %v1494
      %v1661 = vpop.f32.mrf.mxu0
      %v1662 = vadd.f32 %v1518, %v1661
      %v1663 = vpop.f32.mrf.mxu0
      %v1664 = vadd.f32 %v1518, %v1663
      %1665 = vmatmul.bf16.gmra.mxu0 %v1495
      %v1666 = vpop.f32.mrf.mxu0
      %v1667 = vadd.f32 %v1518, %v1666
      %v1668 = vpop.f32.mrf.mxu0
      %v1669 = vadd.f32 %v1518, %v1668
      %1670 = vmatmul.bf16.gmra.mxu0 %v1496
      %v1671 = vpop.f32.mrf.mxu0
      %v1672 = vadd.f32 %v1518, %v1671
      %v1673 = vpop.f32.mrf.mxu0
      %v1674 = vadd.f32 %v1518, %v1673
      %1675 = vmatmul.bf16.gmra.mxu0 %v1497
      %v1676 = vpop.f32.mrf.mxu0
      %v1677 = vadd.f32 %v1518, %v1676
      %v1678 = vpop.f32.mrf.mxu0
      %v1679 = vadd.f32 %v1518, %v1678
      %1680 = vmatmul.bf16.gmra.mxu0 %v1498
      %v1681 = vpop.f32.mrf.mxu0
      %v1682 = vadd.f32 %v1518, %v1681
      %v1683 = vpop.f32.mrf.mxu0
      %v1684 = vadd.f32 %v1518, %v1683
      %1685 = vmatmul.bf16.gmra.mxu0 %v1499
      %v1686 = vpop.f32.mrf.mxu0
      %v1687 = vadd.f32 %v1518, %v1686
      %v1688 = vpop.f32.mrf.mxu0
      %v1689 = vadd.f32 %v1518, %v1688
      %1690 = vdwg.mxu0
      %1691 = vmatpush.bf16.msra.mxu0 %v1585
      %1692 = vmatpush.bf16.msra.mxu0 %v1583
      %1693 = vmatpush.bf16.msra.mxu0 %v1581
      %1694 = vmatpush.bf16.msra.mxu0 %v1579
      %1695 = vmatpush.bf16.msra.mxu0 %v1577
      %1696 = vmatpush.bf16.msra.mxu0 %v1575
      %1697 = vmatpush.bf16.msra.mxu0 %v1573
      %1698 = vmatpush.bf16.msra.mxu0 %v1571
      %1699 = vmatmul.bf16.gmra.mxu0 %v1484
      %v1700 = vpop.f32.mrf.mxu0
      %v1701 = vadd.f32 %v1519, %v1700
      %v1702 = vpop.f32.mrf.mxu0
      %v1703 = vadd.f32 %v1519, %v1702
      %1704 = vmatmul.bf16.gmra.mxu0 %v1485
      %v1705 = vpop.f32.mrf.mxu0
      %v1706 = vadd.f32 %v1519, %v1705
      %v1707 = vpop.f32.mrf.mxu0
      %v1708 = vadd.f32 %v1519, %v1707
      %1709 = vmatmul.bf16.gmra.mxu0 %v1486
      %v1710 = vpop.f32.mrf.mxu0
      %v1711 = vadd.f32 %v1519, %v1710
      %v1712 = vpop.f32.mrf.mxu0
      %v1713 = vadd.f32 %v1519, %v1712
      %1714 = vmatmul.bf16.gmra.mxu0 %v1487
      %v1715 = vpop.f32.mrf.mxu0
      %v1716 = vadd.f32 %v1519, %v1715
      %v1717 = vpop.f32.mrf.mxu0
      %v1718 = vadd.f32 %v1519, %v1717
      %1719 = vmatmul.bf16.gmra.mxu0 %v1488
      %v1720 = vpop.f32.mrf.mxu0
      %v1721 = vadd.f32 %v1519, %v1720
      %v1722 = vpop.f32.mrf.mxu0
      %v1723 = vadd.f32 %v1519, %v1722
      %1724 = vmatmul.bf16.gmra.mxu0 %v1489
      %v1725 = vpop.f32.mrf.mxu0
      %v1726 = vadd.f32 %v1519, %v1725
      %v1727 = vpop.f32.mrf.mxu0
      %v1728 = vadd.f32 %v1519, %v1727
      %1729 = vmatmul.bf16.gmra.mxu0 %v1490
      %v1730 = vpop.f32.mrf.mxu0
      %v1731 = vadd.f32 %v1519, %v1730
      %v1732 = vpop.f32.mrf.mxu0
      %v1733 = vadd.f32 %v1519, %v1732
      %1734 = vmatmul.bf16.gmra.mxu0 %v1491
      %v1735 = vpop.f32.mrf.mxu0
      %v1736 = vadd.f32 %v1519, %v1735
      %v1737 = vpop.f32.mrf.mxu0
      %v1738 = vadd.f32 %v1519, %v1737
      %1739 = vmatmul.bf16.gmra.mxu0 %v1492
      %v1740 = vpop.f32.mrf.mxu0
      %v1741 = vadd.f32 %v1519, %v1740
      %v1742 = vpop.f32.mrf.mxu0
      %v1743 = vadd.f32 %v1519, %v1742
      %1744 = vmatmul.bf16.gmra.mxu0 %v1493
      %v1745 = vpop.f32.mrf.mxu0
      %v1746 = vadd.f32 %v1519, %v1745
      %v1747 = vpop.f32.mrf.mxu0
      %v1748 = vadd.f32 %v1519, %v1747
      %1749 = vmatmul.bf16.gmra.mxu0 %v1494
      %v1750 = vpop.f32.mrf.mxu0
      %v1751 = vadd.f32 %v1519, %v1750
      %v1752 = vpop.f32.mrf.mxu0
      %v1753 = vadd.f32 %v1519, %v1752
      %1754 = vmatmul.bf16.gmra.mxu0 %v1495
      %v1755 = vpop.f32.mrf.mxu0
      %v1756 = vadd.f32 %v1519, %v1755
      %v1757 = vpop.f32.mrf.mxu0
      %v1758 = vadd.f32 %v1519, %v1757
      %1759 = vmatmul.bf16.gmra.mxu0 %v1496
      %v1760 = vpop.f32.mrf.mxu0
      %v1761 = vadd.f32 %v1519, %v1760
      %v1762 = vpop.f32.mrf.mxu0
      %v1763 = vadd.f32 %v1519, %v1762
      %1764 = vmatmul.bf16.gmra.mxu0 %v1497
      %v1765 = vpop.f32.mrf.mxu0
      %v1766 = vadd.f32 %v1519, %v1765
      %v1767 = vpop.f32.mrf.mxu0
      %v1768 = vadd.f32 %v1519, %v1767
      %1769 = vmatmul.bf16.gmra.mxu0 %v1498
      %v1770 = vpop.f32.mrf.mxu0
      %v1771 = vadd.f32 %v1519, %v1770
      %v1772 = vpop.f32.mrf.mxu0
      %v1773 = vadd.f32 %v1519, %v1772
      %1774 = vmatmul.bf16.gmra.mxu0 %v1499
      %v1775 = vpop.f32.mrf.mxu0
      %v1776 = vadd.f32 %v1519, %v1775
      %v1777 = vpop.f32.mrf.mxu0
      %v1778 = vadd.f32 %v1519, %v1777
      %1779 = vdwg.mxu0
      %v1780 = vmul.f32 %v1612, 0.5
      %v1781 = vmul.f32 %v1701, 0.5
      %v1782 = vmul.f32 %v1614, 0.5
      %v1783 = vmul.f32 %v1703, 0.5
      %v1784 = vmul.f32 %v1617, 0.5
      %v1785 = vmul.f32 %v1706, 0.5
      %v1786 = vmul.f32 %v1619, 0.5
      %v1787 = vmul.f32 %v1708, 0.5
      %v1788 = vmul.f32 %v1622, 0.5
      %v1789 = vmul.f32 %v1711, 0.5
      %v1790 = vmul.f32 %v1624, 0.5
      %v1791 = vmul.f32 %v1713, 0.5
      %v1792 = vmul.f32 %v1627, 0.5
      %v1793 = vmul.f32 %v1716, 0.5
      %v1794 = vmul.f32 %v1629, 0.5
      %v1795 = vmul.f32 %v1718, 0.5
      %v1796 = vmul.f32 %v1632, 0.5
      %v1797 = vmul.f32 %v1721, 0.5
      %v1798 = vmul.f32 %v1634, 0.5
      %v1799 = vmul.f32 %v1723, 0.5
      %v1800 = vmul.f32 %v1637, 0.5
      %v1801 = vmul.f32 %v1726, 0.5
      %v1802 = vmul.f32 %v1639, 0.5
      %v1803 = vmul.f32 %v1728, 0.5
      %v1804 = vmul.f32 %v1642, 0.5
      %v1805 = vmul.f32 %v1731, 0.5
      %v1806 = vmul.f32 %v1644, 0.5
      %v1807 = vmul.f32 %v1733, 0.5
      %v1808 = vmul.f32 %v1647, 0.5
      %v1809 = vmul.f32 %v1736, 0.5
      %v1810 = vmul.f32 %v1649, 0.5
      %v1811 = vmul.f32 %v1738, 0.5
      %v1812 = vmul.f32 %v1652, 0.5
      %v1813 = vmul.f32 %v1741, 0.5
      %v1814 = vmul.f32 %v1654, 0.5
      %v1815 = vmul.f32 %v1743, 0.5
      %v1816 = vmul.f32 %v1657, 0.5
      %v1817 = vmul.f32 %v1746, 0.5
      %v1818 = vmul.f32 %v1659, 0.5
      %v1819 = vmul.f32 %v1748, 0.5
      %v1820 = vmul.f32 %v1662, 0.5
      %v1821 = vmul.f32 %v1751, 0.5
      %v1822 = vmul.f32 %v1664, 0.5
      %v1823 = vmul.f32 %v1753, 0.5
      %v1824 = vmul.f32 %v1667, 0.5
      %v1825 = vmul.f32 %v1756, 0.5
      %v1826 = vmul.f32 %v1669, 0.5
      %v1827 = vmul.f32 %v1758, 0.5
      %v1828 = vmul.f32 %v1672, 0.5
      %v1829 = vmul.f32 %v1761, 0.5
      %v1830 = vmul.f32 %v1674, 0.5
      %v1831 = vmul.f32 %v1763, 0.5
      %v1832 = vmul.f32 %v1677, 0.5
      %v1833 = vmul.f32 %v1766, 0.5
      %v1834 = vmul.f32 %v1679, 0.5
      %v1835 = vmul.f32 %v1768, 0.5
      %v1836 = vmul.f32 %v1682, 0.5
      %v1837 = vmul.f32 %v1771, 0.5
      %v1838 = vmul.f32 %v1684, 0.5
      %v1839 = vmul.f32 %v1773, 0.5
      %v1840 = vmul.f32 %v1687, 0.5
      %v1841 = vmul.f32 %v1776, 0.5
      %v1842 = vmul.f32 %v1689, 0.5
      %v1843 = vmul.f32 %v1778, 0.5
      %v1844 = vmul.f32 %v1612, 0.044715
      %v1845 = vmul.f32 %v1701, 0.044715
      %v1846 = vmul.f32 %v1614, 0.044715
      %v1847 = vmul.f32 %v1703, 0.044715
      %v1848 = vmul.f32 %v1617, 0.044715
      %v1849 = vmul.f32 %v1706, 0.044715
      %v1850 = vmul.f32 %v1619, 0.044715
      %v1851 = vmul.f32 %v1708, 0.044715
      %v1852 = vmul.f32 %v1622, 0.044715
      %v1853 = vmul.f32 %v1711, 0.044715
      %v1854 = vmul.f32 %v1624, 0.044715
      %v1855 = vmul.f32 %v1713, 0.044715
      %v1856 = vmul.f32 %v1627, 0.044715
      %v1857 = vmul.f32 %v1716, 0.044715
      %v1858 = vmul.f32 %v1629, 0.044715
      %v1859 = vmul.f32 %v1718, 0.044715
      %v1860 = vmul.f32 %v1632, 0.044715
      %v1861 = vmul.f32 %v1721, 0.044715
      %v1862 = vmul.f32 %v1634, 0.044715
      %v1863 = vmul.f32 %v1723, 0.044715
      %v1864 = vmul.f32 %v1637, 0.044715
      %v1865 = vmul.f32 %v1726, 0.044715
      %v1866 = vmul.f32 %v1639, 0.044715
      %v1867 = vmul.f32 %v1728, 0.044715
      %v1868 = vmul.f32 %v1642, 0.044715
      %v1869 = vmul.f32 %v1731, 0.044715
      %v1870 = vmul.f32 %v1644, 0.044715
      %v1871 = vmul.f32 %v1733, 0.044715
      %v1872 = vmul.f32 %v1647, 0.044715
      %v1873 = vmul.f32 %v1736, 0.044715
      %v1874 = vmul.f32 %v1649, 0.044715
      %v1875 = vmul.f32 %v1738, 0.044715
      %v1876 = vmul.f32 %v1652, 0.044715
      %v1877 = vmul.f32 %v1741, 0.044715
      %v1878 = vmul.f32 %v1654, 0.044715
      %v1879 = vmul.f32 %v1743, 0.044715
      %v1880 = vmul.f32 %v1657, 0.044715
      %v1881 = vmul.f32 %v1746, 0.044715
      %v1882 = vmul.f32 %v1659, 0.044715
      %v1883 = vmul.f32 %v1748, 0.044715
      %v1884 = vmul.f32 %v1662, 0.044715
      %v1885 = vmul.f32 %v1751, 0.044715
      %v1886 = vmul.f32 %v1664, 0.044715
      %v1887 = vmul.f32 %v1753, 0.044715
      %v1888 = vmul.f32 %v1667, 0.044715
      %v1889 = vmul.f32 %v1756, 0.044715
      %v1890 = vmul.f32 %v1669, 0.044715
      %v1891 = vmul.f32 %v1758, 0.044715
      %v1892 = vmul.f32 %v1672, 0.044715
      %v1893 = vmul.f32 %v1761, 0.044715
      %v1894 = vmul.f32 %v1674, 0.044715
      %v1895 = vmul.f32 %v1763, 0.044715
      %v1896 = vmul.f32 %v1677, 0.044715
      %v1897 = vmul.f32 %v1766, 0.044715
      %v1898 = vmul.f32 %v1679, 0.044715
      %v1899 = vmul.f32 %v1768, 0.044715
      %v1900 = vmul.f32 %v1682, 0.044715
      %v1901 = vmul.f32 %v1771, 0.044715
      %v1902 = vmul.f32 %v1684, 0.044715
      %v1903 = vmul.f32 %v1773, 0.044715
      %v1904 = vmul.f32 %v1687, 0.044715
      %v1905 = vmul.f32 %v1776, 0.044715
      %v1906 = vmul.f32 %v1689, 0.044715
      %v1907 = vmul.f32 %v1778, 0.044715
      %v1908 = vmul.f32 %v1844, %v1612
      %v1909 = vmul.f32 %v1845, %v1701
      %v1910 = vmul.f32 %v1846, %v1614
      %v1911 = vmul.f32 %v1847, %v1703
      %v1912 = vmul.f32 %v1848, %v1617
      %v1913 = vmul.f32 %v1849, %v1706
      %v1914 = vmul.f32 %v1850, %v1619
      %v1915 = vmul.f32 %v1851, %v1708
      %v1916 = vmul.f32 %v1852, %v1622
      %v1917 = vmul.f32 %v1853, %v1711
      %v1918 = vmul.f32 %v1854, %v1624
      %v1919 = vmul.f32 %v1855, %v1713
      %v1920 = vmul.f32 %v1856, %v1627
      %v1921 = vmul.f32 %v1857, %v1716
      %v1922 = vmul.f32 %v1858, %v1629
      %v1923 = vmul.f32 %v1859, %v1718
      %v1924 = vmul.f32 %v1860, %v1632
      %v1925 = vmul.f32 %v1861, %v1721
      %v1926 = vmul.f32 %v1862, %v1634
      %v1927 = vmul.f32 %v1863, %v1723
      %v1928 = vmul.f32 %v1864, %v1637
      %v1929 = vmul.f32 %v1865, %v1726
      %v1930 = vmul.f32 %v1866, %v1639
      %v1931 = vmul.f32 %v1867, %v1728
      %v1932 = vmul.f32 %v1868, %v1642
      %v1933 = vmul.f32 %v1869, %v1731
      %v1934 = vmul.f32 %v1870, %v1644
      %v1935 = vmul.f32 %v1871, %v1733
      %v1936 = vmul.f32 %v1872, %v1647
      %v1937 = vmul.f32 %v1873, %v1736
      %v1938 = vmul.f32 %v1874, %v1649
      %v1939 = vmul.f32 %v1875, %v1738
      %v1940 = vmul.f32 %v1876, %v1652
      %v1941 = vmul.f32 %v1877, %v1741
      %v1942 = vmul.f32 %v1878, %v1654
      %v1943 = vmul.f32 %v1879, %v1743
      %v1944 = vmul.f32 %v1880, %v1657
      %v1945 = vmul.f32 %v1881, %v1746
      %v1946 = vmul.f32 %v1882, %v1659
      %v1947 = vmul.f32 %v1883, %v1748
      %v1948 = vmul.f32 %v1884, %v1662
      %v1949 = vmul.f32 %v1885, %v1751
      %v1950 = vmul.f32 %v1886, %v1664
      %v1951 = vmul.f32 %v1887, %v1753
      %v1952 = vmul.f32 %v1888, %v1667
      %v1953 = vmul.f32 %v1889, %v1756
      %v1954 = vmul.f32 %v1890, %v1669
      %v1955 = vmul.f32 %v1891, %v1758
      %v1956 = vmul.f32 %v1892, %v1672
      %v1957 = vmul.f32 %v1893, %v1761
      %v1958 = vmul.f32 %v1894, %v1674
      %v1959 = vmul.f32 %v1895, %v1763
      %v1960 = vmul.f32 %v1896, %v1677
      %v1961 = vmul.f32 %v1897, %v1766
      %v1962 = vmul.f32 %v1898, %v1679
      %v1963 = vmul.f32 %v1899, %v1768
      %v1964 = vmul.f32 %v1900, %v1682
      %v1965 = vmul.f32 %v1901, %v1771
      %v1966 = vmul.f32 %v1902, %v1684
      %v1967 = vmul.f32 %v1903, %v1773
      %v1968 = vmul.f32 %v1904, %v1687
      %v1969 = vmul.f32 %v1905, %v1776
      %v1970 = vmul.f32 %v1906, %v1689
      %v1971 = vmul.f32 %v1907, %v1778
      %v1972 = vmul.f32 %v1908, %v1612
      %v1973 = vmul.f32 %v1909, %v1701
      %v1974 = vmul.f32 %v1910, %v1614
      %v1975 = vmul.f32 %v1911, %v1703
      %v1976 = vmul.f32 %v1912, %v1617
      %v1977 = vmul.f32 %v1913, %v1706
      %v1978 = vmul.f32 %v1914, %v1619
      %v1979 = vmul.f32 %v1915, %v1708
      %v1980 = vmul.f32 %v1916, %v1622
      %v1981 = vmul.f32 %v1917, %v1711
      %v1982 = vmul.f32 %v1918, %v1624
      %v1983 = vmul.f32 %v1919, %v1713
      %v1984 = vmul.f32 %v1920, %v1627
      %v1985 = vmul.f32 %v1921, %v1716
      %v1986 = vmul.f32 %v1922, %v1629
      %v1987 = vmul.f32 %v1923, %v1718
      %v1988 = vmul.f32 %v1924, %v1632
      %v1989 = vmul.f32 %v1925, %v1721
      %v1990 = vmul.f32 %v1926, %v1634
      %v1991 = vmul.f32 %v1927, %v1723
      %v1992 = vmul.f32 %v1928, %v1637
      %v1993 = vmul.f32 %v1929, %v1726
      %v1994 = vmul.f32 %v1930, %v1639
      %v1995 = vmul.f32 %v1931, %v1728
      %v1996 = vmul.f32 %v1932, %v1642
      %v1997 = vmul.f32 %v1933, %v1731
      %v1998 = vmul.f32 %v1934, %v1644
      %v1999 = vmul.f32 %v1935, %v1733
      %v2000 = vmul.f32 %v1936, %v1647
      %v2001 = vmul.f32 %v1937, %v1736
      %v2002 = vmul.f32 %v1938, %v1649
      %v2003 = vmul.f32 %v1939, %v1738
      %v2004 = vmul.f32 %v1940, %v1652
      %v2005 = vmul.f32 %v1941, %v1741
      %v2006 = vmul.f32 %v1942, %v1654
      %v2007 = vmul.f32 %v1943, %v1743
      %v2008 = vmul.f32 %v1944, %v1657
      %v2009 = vmul.f32 %v1945, %v1746
      %v2010 = vmul.f32 %v1946, %v1659
      %v2011 = vmul.f32 %v1947, %v1748
      %v2012 = vmul.f32 %v1948, %v1662
      %v2013 = vmul.f32 %v1949, %v1751
      %v2014 = vmul.f32 %v1950, %v1664
      %v2015 = vmul.f32 %v1951, %v1753
      %v2016 = vmul.f32 %v1952, %v1667
      %v2017 = vmul.f32 %v1953, %v1756
      %v2018 = vmul.f32 %v1954, %v1669
      %v2019 = vmul.f32 %v1955, %v1758
      %v2020 = vmul.f32 %v1956, %v1672
      %v2021 = vmul.f32 %v1957, %v1761
      %v2022 = vmul.f32 %v1958, %v1674
      %v2023 = vmul.f32 %v1959, %v1763
      %v2024 = vmul.f32 %v1960, %v1677
      %v2025 = vmul.f32 %v1961, %v1766
      %v2026 = vmul.f32 %v1962, %v1679
      %v2027 = vmul.f32 %v1963, %v1768
      %v2028 = vmul.f32 %v1964, %v1682
      %v2029 = vmul.f32 %v1965, %v1771
      %v2030 = vmul.f32 %v1966, %v1684
      %v2031 = vmul.f32 %v1967, %v1773
      %v2032 = vmul.f32 %v1968, %v1687
      %v2033 = vmul.f32 %v1969, %v1776
      %v2034 = vmul.f32 %v1970, %v1689
      %v2035 = vmul.f32 %v1971, %v1778
      %v2036 = vadd.f32 %v1612, %v1972
      %v2037 = vadd.f32 %v1701, %v1973
      %v2038 = vadd.f32 %v1614, %v1974
      %v2039 = vadd.f32 %v1703, %v1975
      %v2040 = vadd.f32 %v1617, %v1976
      %v2041 = vadd.f32 %v1706, %v1977
      %v2042 = vadd.f32 %v1619, %v1978
      %v2043 = vadd.f32 %v1708, %v1979
      %v2044 = vadd.f32 %v1622, %v1980
      %v2045 = vadd.f32 %v1711, %v1981
      %v2046 = vadd.f32 %v1624, %v1982
      %v2047 = vadd.f32 %v1713, %v1983
      %v2048 = vadd.f32 %v1627, %v1984
      %v2049 = vadd.f32 %v1716, %v1985
      %v2050 = vadd.f32 %v1629, %v1986
      %v2051 = vadd.f32 %v1718, %v1987
      %v2052 = vadd.f32 %v1632, %v1988
      %v2053 = vadd.f32 %v1721, %v1989
      %v2054 = vadd.f32 %v1634, %v1990
      %v2055 = vadd.f32 %v1723, %v1991
      %v2056 = vadd.f32 %v1637, %v1992
      %v2057 = vadd.f32 %v1726, %v1993
      %v2058 = vadd.f32 %v1639, %v1994
      %v2059 = vadd.f32 %v1728, %v1995
      %v2060 = vadd.f32 %v1642, %v1996
      %v2061 = vadd.f32 %v1731, %v1997
      %v2062 = vadd.f32 %v1644, %v1998
      %v2063 = vadd.f32 %v1733, %v1999
      %v2064 = vadd.f32 %v1647, %v2000
      %v2065 = vadd.f32 %v1736, %v2001
      %v2066 = vadd.f32 %v1649, %v2002
      %v2067 = vadd.f32 %v1738, %v2003
      %v2068 = vadd.f32 %v1652, %v2004
      %v2069 = vadd.f32 %v1741, %v2005
      %v2070 = vadd.f32 %v1654, %v2006
      %v2071 = vadd.f32 %v1743, %v2007
      %v2072 = vadd.f32 %v1657, %v2008
      %v2073 = vadd.f32 %v1746, %v2009
      %v2074 = vadd.f32 %v1659, %v2010
      %v2075 = vadd.f32 %v1748, %v2011
      %v2076 = vadd.f32 %v1662, %v2012
      %v2077 = vadd.f32 %v1751, %v2013
      %v2078 = vadd.f32 %v1664, %v2014
      %v2079 = vadd.f32 %v1753, %v2015
      %v2080 = vadd.f32 %v1667, %v2016
      %v2081 = vadd.f32 %v1756, %v2017
      %v2082 = vadd.f32 %v1669, %v2018
      %v2083 = vadd.f32 %v1758, %v2019
      %v2084 = vadd.f32 %v1672, %v2020
      %v2085 = vadd.f32 %v1761, %v2021
      %v2086 = vadd.f32 %v1674, %v2022
      %v2087 = vadd.f32 %v1763, %v2023
      %v2088 = vadd.f32 %v1677, %v2024
      %v2089 = vadd.f32 %v1766, %v2025
      %v2090 = vadd.f32 %v1679, %v2026
      %v2091 = vadd.f32 %v1768, %v2027
      %v2092 = vadd.f32 %v1682, %v2028
      %v2093 = vadd.f32 %v1771, %v2029
      %v2094 = vadd.f32 %v1684, %v2030
      %v2095 = vadd.f32 %v1773, %v2031
      %v2096 = vadd.f32 %v1687, %v2032
      %v2097 = vadd.f32 %v1776, %v2033
      %v2098 = vadd.f32 %v1689, %v2034
      %v2099 = vadd.f32 %v1778, %v2035
      %v2100 = vmul.f32 %v2036, 0.7978846
      %v2101 = vmul.f32 %v2037, 0.7978846
      %v2102 = vmul.f32 %v2038, 0.7978846
      %v2103 = vmul.f32 %v2039, 0.7978846
      %v2104 = vmul.f32 %v2040, 0.7978846
      %v2105 = vmul.f32 %v2041, 0.7978846
      %v2106 = vmul.f32 %v2042, 0.7978846
      %v2107 = vmul.f32 %v2043, 0.7978846
      %v2108 = vmul.f32 %v2044, 0.7978846
      %v2109 = vmul.f32 %v2045, 0.7978846
      %v2110 = vmul.f32 %v2046, 0.7978846
      %v2111 = vmul.f32 %v2047, 0.7978846
      %v2112 = vmul.f32 %v2048, 0.7978846
      %v2113 = vmul.f32 %v2049, 0.7978846
      %v2114 = vmul.f32 %v2050, 0.7978846
      %v2115 = vmul.f32 %v2051, 0.7978846
      %v2116 = vmul.f32 %v2052, 0.7978846
      %v2117 = vmul.f32 %v2053, 0.7978846
      %v2118 = vmul.f32 %v2054, 0.7978846
      %v2119 = vmul.f32 %v2055, 0.7978846
      %v2120 = vmul.f32 %v2056, 0.7978846
      %v2121 = vmul.f32 %v2057, 0.7978846
      %v2122 = vmul.f32 %v2058, 0.7978846
      %v2123 = vmul.f32 %v2059, 0.7978846
      %v2124 = vmul.f32 %v2060, 0.7978846
      %v2125 = vmul.f32 %v2061, 0.7978846
      %v2126 = vmul.f32 %v2062, 0.7978846
      %v2127 = vmul.f32 %v2063, 0.7978846
      %v2128 = vmul.f32 %v2064, 0.7978846
      %v2129 = vmul.f32 %v2065, 0.7978846
      %v2130 = vmul.f32 %v2066, 0.7978846
      %v2131 = vmul.f32 %v2067, 0.7978846
      %v2132 = vmul.f32 %v2068, 0.7978846
      %v2133 = vmul.f32 %v2069, 0.7978846
      %v2134 = vmul.f32 %v2070, 0.7978846
      %v2135 = vmul.f32 %v2071, 0.7978846
      %v2136 = vmul.f32 %v2072, 0.7978846
      %v2137 = vmul.f32 %v2073, 0.7978846
      %v2138 = vmul.f32 %v2074, 0.7978846
      %v2139 = vmul.f32 %v2075, 0.7978846
      %v2140 = vmul.f32 %v2076, 0.7978846
      %v2141 = vmul.f32 %v2077, 0.7978846
      %v2142 = vmul.f32 %v2078, 0.7978846
      %v2143 = vmul.f32 %v2079, 0.7978846
      %v2144 = vmul.f32 %v2080, 0.7978846
      %v2145 = vmul.f32 %v2081, 0.7978846
      %v2146 = vmul.f32 %v2082, 0.7978846
      %v2147 = vmul.f32 %v2083, 0.7978846
      %v2148 = vmul.f32 %v2084, 0.7978846
      %v2149 = vmul.f32 %v2085, 0.7978846
      %v2150 = vmul.f32 %v2086, 0.7978846
      %v2151 = vmul.f32 %v2087, 0.7978846
      %v2152 = vmul.f32 %v2088, 0.7978846
      %v2153 = vmul.f32 %v2089, 0.7978846
      %v2154 = vmul.f32 %v2090, 0.7978846
      %v2155 = vmul.f32 %v2091, 0.7978846
      %v2156 = vmul.f32 %v2092, 0.7978846
      %v2157 = vmul.f32 %v2093, 0.7978846
      %v2158 = vmul.f32 %v2094, 0.7978846
      %v2159 = vmul.f32 %v2095, 0.7978846
      %v2160 = vmul.f32 %v2096, 0.7978846
      %v2161 = vmul.f32 %v2097, 0.7978846
      %v2162 = vmul.f32 %v2098, 0.7978846
      %v2163 = vmul.f32 %v2099, 0.7978846
      %v2164 = vtanh.pop %v2100
      %v2165 = vtanh.pop %v2101
      %v2166 = vtanh.pop %v2102
      %v2167 = vtanh.pop %v2103
      %v2168 = vtanh.pop %v2104
      %v2169 = vtanh.pop %v2105
      %v2170 = vtanh.pop %v2106
      %v2171 = vtanh.pop %v2107
      %v2172 = vtanh.pop %v2108
      %v2173 = vtanh.pop %v2109
      %v2174 = vtanh.pop %v2110
      %v2175 = vtanh.pop %v2111
      %v2176 = vtanh.pop %v2112
      %v2177 = vtanh.pop %v2113
      %v2178 = vtanh.pop %v2114
      %v2179 = vtanh.pop %v2115
      %v2180 = vtanh.pop %v2116
      %v2181 = vtanh.pop %v2117
      %v2182 = vtanh.pop %v2118
      %v2183 = vtanh.pop %v2119
      %v2184 = vtanh.pop %v2120
      %v2185 = vtanh.pop %v2121
      %v2186 = vtanh.pop %v2122
      %v2187 = vtanh.pop %v2123
      %v2188 = vtanh.pop %v2124
      %v2189 = vtanh.pop %v2125
      %v2190 = vtanh.pop %v2126
      %v2191 = vtanh.pop %v2127
      %v2192 = vtanh.pop %v2128
      %v2193 = vtanh.pop %v2129
      %v2194 = vtanh.pop %v2130
      %v2195 = vtanh.pop %v2131
      %v2196 = vtanh.pop %v2132
      %v2197 = vtanh.pop %v2133
      %v2198 = vtanh.pop %v2134
      %v2199 = vtanh.pop %v2135
      %v2200 = vtanh.pop %v2136
      %v2201 = vtanh.pop %v2137
      %v2202 = vtanh.pop %v2138
      %v2203 = vtanh.pop %v2139
      %v2204 = vtanh.pop %v2140
      %v2205 = vtanh.pop %v2141
      %v2206 = vtanh.pop %v2142
      %v2207 = vtanh.pop %v2143
      %v2208 = vtanh.pop %v2144
      %v2209 = vtanh.pop %v2145
      %v2210 = vtanh.pop %v2146
      %v2211 = vtanh.pop %v2147
      %v2212 = vtanh.pop %v2148
      %v2213 = vtanh.pop %v2149
      %v2214 = vtanh.pop %v2150
      %v2215 = vtanh.pop %v2151
      %v2216 = vtanh.pop %v2152
      %v2217 = vtanh.pop %v2153
      %v2218 = vtanh.pop %v2154
      %v2219 = vtanh.pop %v2155
      %v2220 = vtanh.pop %v2156
      %v2221 = vtanh.pop %v2157
      %v2222 = vtanh.pop %v2158
      %v2223 = vtanh.pop %v2159
      %v2224 = vtanh.pop %v2160
      %v2225 = vtanh.pop %v2161
      %v2226 = vtanh.pop %v2162
      %v2227 = vtanh.pop %v2163
      %v2228 = vadd.f32 %v2164, 1.0
      %v2229 = vadd.f32 %v2165, 1.0
      %v2230 = vadd.f32 %v2166, 1.0
      %v2231 = vadd.f32 %v2167, 1.0
      %v2232 = vadd.f32 %v2168, 1.0
      %v2233 = vadd.f32 %v2169, 1.0
      %v2234 = vadd.f32 %v2170, 1.0
      %v2235 = vadd.f32 %v2171, 1.0
      %v2236 = vadd.f32 %v2172, 1.0
      %v2237 = vadd.f32 %v2173, 1.0
      %v2238 = vadd.f32 %v2174, 1.0
      %v2239 = vadd.f32 %v2175, 1.0
      %v2240 = vadd.f32 %v2176, 1.0
      %v2241 = vadd.f32 %v2177, 1.0
      %v2242 = vadd.f32 %v2178, 1.0
      %v2243 = vadd.f32 %v2179, 1.0
      %v2244 = vadd.f32 %v2180, 1.0
      %v2245 = vadd.f32 %v2181, 1.0
      %v2246 = vadd.f32 %v2182, 1.0
      %v2247 = vadd.f32 %v2183, 1.0
      %v2248 = vadd.f32 %v2184, 1.0
      %v2249 = vadd.f32 %v2185, 1.0
      %v2250 = vadd.f32 %v2186, 1.0
      %v2251 = vadd.f32 %v2187, 1.0
      %v2252 = vadd.f32 %v2188, 1.0
      %v2253 = vadd.f32 %v2189, 1.0
      %v2254 = vadd.f32 %v2190, 1.0
      %v2255 = vadd.f32 %v2191, 1.0
      %v2256 = vadd.f32 %v2192, 1.0
      %v2257 = vadd.f32 %v2193, 1.0
      %v2258 = vadd.f32 %v2194, 1.0
      %v2259 = vadd.f32 %v2195, 1.0
      %v2260 = vadd.f32 %v2196, 1.0
      %v2261 = vadd.f32 %v2197, 1.0
      %v2262 = vadd.f32 %v2198, 1.0
      %v2263 = vadd.f32 %v2199, 1.0
      %v2264 = vadd.f32 %v2200, 1.0
      %v2265 = vadd.f32 %v2201, 1.0
      %v2266 = vadd.f32 %v2202, 1.0
      %v2267 = vadd.f32 %v2203, 1.0
      %v2268 = vadd.f32 %v2204, 1.0
      %v2269 = vadd.f32 %v2205, 1.0
      %v2270 = vadd.f32 %v2206, 1.0
      %v2271 = vadd.f32 %v2207, 1.0
      %v2272 = vadd.f32 %v2208, 1.0
      %v2273 = vadd.f32 %v2209, 1.0
      %v2274 = vadd.f32 %v2210, 1.0
      %v2275 = vadd.f32 %v2211, 1.0
      %v2276 = vadd.f32 %v2212, 1.0
      %v2277 = vadd.f32 %v2213, 1.0
      %v2278 = vadd.f32 %v2214, 1.0
      %v2279 = vadd.f32 %v2215, 1.0
      %v2280 = vadd.f32 %v2216, 1.0
      %v2281 = vadd.f32 %v2217, 1.0
      %v2282 = vadd.f32 %v2218, 1.0
      %v2283 = vadd.f32 %v2219, 1.0
      %v2284 = vadd.f32 %v2220, 1.0
      %v2285 = vadd.f32 %v2221, 1.0
      %v2286 = vadd.f32 %v2222, 1.0
      %v2287 = vadd.f32 %v2223, 1.0
      %v2288 = vadd.f32 %v2224, 1.0
      %v2289 = vadd.f32 %v2225, 1.0
      %v2290 = vadd.f32 %v2226, 1.0
      %v2291 = vadd.f32 %v2227, 1.0
      %v2292 = vmul.f32 %v1780, %v2228
      %v2293 = vmul.f32 %v1781, %v2229
      %v2294 = vmul.f32 %v1782, %v2230
      %v2295 = vmul.f32 %v1783, %v2231
      %v2296 = vmul.f32 %v1784, %v2232
      %v2297 = vmul.f32 %v1785, %v2233
      %v2298 = vmul.f32 %v1786, %v2234
      %v2299 = vmul.f32 %v1787, %v2235
      %v2300 = vmul.f32 %v1788, %v2236
      %v2301 = vmul.f32 %v1789, %v2237
      %v2302 = vmul.f32 %v1790, %v2238
      %v2303 = vmul.f32 %v1791, %v2239
      %v2304 = vmul.f32 %v1792, %v2240
      %v2305 = vmul.f32 %v1793, %v2241
      %v2306 = vmul.f32 %v1794, %v2242
      %v2307 = vmul.f32 %v1795, %v2243
      %v2308 = vmul.f32 %v1796, %v2244
      %v2309 = vmul.f32 %v1797, %v2245
      %v2310 = vmul.f32 %v1798, %v2246
      %v2311 = vmul.f32 %v1799, %v2247
      %v2312 = vmul.f32 %v1800, %v2248
      %v2313 = vmul.f32 %v1801, %v2249
      %v2314 = vmul.f32 %v1802, %v2250
      %v2315 = vmul.f32 %v1803, %v2251
      %v2316 = vmul.f32 %v1804, %v2252
      %v2317 = vmul.f32 %v1805, %v2253
      %v2318 = vmul.f32 %v1806, %v2254
      %v2319 = vmul.f32 %v1807, %v2255
      %v2320 = vmul.f32 %v1808, %v2256
      %v2321 = vmul.f32 %v1809, %v2257
      %v2322 = vmul.f32 %v1810, %v2258
      %v2323 = vmul.f32 %v1811, %v2259
      %v2324 = vmul.f32 %v1812, %v2260
      %v2325 = vmul.f32 %v1813, %v2261
      %v2326 = vmul.f32 %v1814, %v2262
      %v2327 = vmul.f32 %v1815, %v2263
      %v2328 = vmul.f32 %v1816, %v2264
      %v2329 = vmul.f32 %v1817, %v2265
      %v2330 = vmul.f32 %v1818, %v2266
      %v2331 = vmul.f32 %v1819, %v2267
      %v2332 = vmul.f32 %v1820, %v2268
      %v2333 = vmul.f32 %v1821, %v2269
      %v2334 = vmul.f32 %v1822, %v2270
      %v2335 = vmul.f32 %v1823, %v2271
      %v2336 = vmul.f32 %v1824, %v2272
      %v2337 = vmul.f32 %v1825, %v2273
      %v2338 = vmul.f32 %v1826, %v2274
      %v2339 = vmul.f32 %v1827, %v2275
      %v2340 = vmul.f32 %v1828, %v2276
      %v2341 = vmul.f32 %v1829, %v2277
      %v2342 = vmul.f32 %v1830, %v2278
      %v2343 = vmul.f32 %v1831, %v2279
      %v2344 = vmul.f32 %v1832, %v2280
      %v2345 = vmul.f32 %v1833, %v2281
      %v2346 = vmul.f32 %v1834, %v2282
      %v2347 = vmul.f32 %v1835, %v2283
      %v2348 = vmul.f32 %v1836, %v2284
      %v2349 = vmul.f32 %v1837, %v2285
      %v2350 = vmul.f32 %v1838, %v2286
      %v2351 = vmul.f32 %v1839, %v2287
      %v2352 = vmul.f32 %v1840, %v2288
      %v2353 = vmul.f32 %v1841, %v2289
      %v2354 = vmul.f32 %v1842, %v2290
      %v2355 = vmul.f32 %v1843, %v2291
      %v2356 = vld [vmem:[%s541] sm:$0x1]
      %v2357 = vld [vmem:[%s544] sm:$0x1]
      %2358 = vadd.xlane.f32.xlu0 %v2293
      %v2359 = vpop.xlane.xlu0 %2358
      %2360 = vadd.xlane.f32.xlu0 %v2295
      %v2361 = vpop.xlane.xlu0 %2360
      %2362 = vadd.xlane.f32.xlu0 %v2297
      %v2363 = vpop.xlane.xlu0 %2362
      %2364 = vadd.xlane.f32.xlu0 %v2299
      %v2365 = vpop.xlane.xlu0 %2364
      %2366 = vadd.xlane.f32.xlu0 %v2301
      %v2367 = vpop.xlane.xlu0 %2366
      %2368 = vadd.xlane.f32.xlu0 %v2303
      %v2369 = vpop.xlane.xlu0 %2368
      %2370 = vadd.xlane.f32.xlu0 %v2305
      %v2371 = vpop.xlane.xlu0 %2370
      %2372 = vadd.xlane.f32.xlu0 %v2307
      %v2373 = vpop.xlane.xlu0 %2372
      %2374 = vadd.xlane.f32.xlu0 %v2309
      %v2375 = vpop.xlane.xlu0 %2374
      %2376 = vadd.xlane.f32.xlu0 %v2311
      %v2377 = vpop.xlane.xlu0 %2376
      %2378 = vadd.xlane.f32.xlu0 %v2313
      %v2379 = vpop.xlane.xlu0 %2378
      %2380 = vadd.xlane.f32.xlu0 %v2315
      %v2381 = vpop.xlane.xlu0 %2380
      %2382 = vadd.xlane.f32.xlu0 %v2317
      %v2383 = vpop.xlane.xlu0 %2382
      %2384 = vadd.xlane.f32.xlu0 %v2319
      %v2385 = vpop.xlane.xlu0 %2384
      %2386 = vadd.xlane.f32.xlu0 %v2321
      %v2387 = vpop.xlane.xlu0 %2386
      %2388 = vadd.xlane.f32.xlu0 %v2323
      %v2389 = vpop.xlane.xlu0 %2388
      %2390 = vadd.xlane.f32.xlu0 %v2325
      %v2391 = vpop.xlane.xlu0 %2390
      %2392 = vadd.xlane.f32.xlu0 %v2327
      %v2393 = vpop.xlane.xlu0 %2392
      %2394 = vadd.xlane.f32.xlu0 %v2329
      %v2395 = vpop.xlane.xlu0 %2394
      %2396 = vadd.xlane.f32.xlu0 %v2331
      %v2397 = vpop.xlane.xlu0 %2396
      %2398 = vadd.xlane.f32.xlu0 %v2333
      %v2399 = vpop.xlane.xlu0 %2398
      %2400 = vadd.xlane.f32.xlu0 %v2335
      %v2401 = vpop.xlane.xlu0 %2400
      %2402 = vadd.xlane.f32.xlu0 %v2337
      %v2403 = vpop.xlane.xlu0 %2402
      %2404 = vadd.xlane.f32.xlu0 %v2339
      %v2405 = vpop.xlane.xlu0 %2404
      %2406 = vadd.xlane.f32.xlu0 %v2341
      %v2407 = vpop.xlane.xlu0 %2406
      %2408 = vadd.xlane.f32.xlu0 %v2343
      %v2409 = vpop.xlane.xlu0 %2408
      %2410 = vadd.xlane.f32.xlu0 %v2345
      %v2411 = vpop.xlane.xlu0 %2410
      %2412 = vadd.xlane.f32.xlu0 %v2347
      %v2413 = vpop.xlane.xlu0 %2412
      %2414 = vadd.xlane.f32.xlu0 %v2349
      %v2415 = vpop.xlane.xlu0 %2414
      %2416 = vadd.xlane.f32.xlu0 %v2351
      %v2417 = vpop.xlane.xlu0 %2416
      %2418 = vadd.xlane.f32.xlu0 %v2353
      %v2419 = vpop.xlane.xlu0 %2418
      %2420 = vadd.xlane.f32.xlu0 %v2355
      %v2421 = vpop.xlane.xlu0 %2420
      %v2422 = vmul.f32 %v2359, %v773
      %v2423 = vmul.f32 %v2361, %v773
      %v2424 = vmul.f32 %v2363, %v773
      %v2425 = vmul.f32 %v2365, %v773
      %v2426 = vmul.f32 %v2367, %v773
      %v2427 = vmul.f32 %v2369, %v773
      %v2428 = vmul.f32 %v2371, %v773
      %v2429 = vmul.f32 %v2373, %v773
      %v2430 = vmul.f32 %v2375, %v773
      %v2431 = vmul.f32 %v2377, %v773
      %v2432 = vmul.f32 %v2379, %v773
      %v2433 = vmul.f32 %v2381, %v773
      %v2434 = vmul.f32 %v2383, %v773
      %v2435 = vmul.f32 %v2385, %v773
      %v2436 = vmul.f32 %v2387, %v773
      %v2437 = vmul.f32 %v2389, %v773
      %v2438 = vmul.f32 %v2391, %v773
      %v2439 = vmul.f32 %v2393, %v773
      %v2440 = vmul.f32 %v2395, %v773
      %v2441 = vmul.f32 %v2397, %v773
      %v2442 = vmul.f32 %v2399, %v773
      %v2443 = vmul.f32 %v2401, %v773
      %v2444 = vmul.f32 %v2403, %v773
      %v2445 = vmul.f32 %v2405, %v773
      %v2446 = vmul.f32 %v2407, %v773
      %v2447 = vmul.f32 %v2409, %v773
      %v2448 = vmul.f32 %v2411, %v773
      %v2449 = vmul.f32 %v2413, %v773
      %v2450 = vmul.f32 %v2415, %v773
      %v2451 = vmul.f32 %v2417, %v773
      %v2452 = vmul.f32 %v2419, %v773
      %v2453 = vmul.f32 %v2421, %v773
      %v2454 = vmul.f32 %v2293, %v2293
      %v2455 = vmul.f32 %v2295, %v2295
      %v2456 = vmul.f32 %v2297, %v2297
      %v2457 = vmul.f32 %v2299, %v2299
      %v2458 = vmul.f32 %v2301, %v2301
      %v2459 = vmul.f32 %v2303, %v2303
      %v2460 = vmul.f32 %v2305, %v2305
      %v2461 = vmul.f32 %v2307, %v2307
      %v2462 = vmul.f32 %v2309, %v2309
      %v2463 = vmul.f32 %v2311, %v2311
      %v2464 = vmul.f32 %v2313, %v2313
      %v2465 = vmul.f32 %v2315, %v2315
      %v2466 = vmul.f32 %v2317, %v2317
      %v2467 = vmul.f32 %v2319, %v2319
      %v2468 = vmul.f32 %v2321, %v2321
      %v2469 = vmul.f32 %v2323, %v2323
      %v2470 = vmul.f32 %v2325, %v2325
      %v2471 = vmul.f32 %v2327, %v2327
      %v2472 = vmul.f32 %v2329, %v2329
      %v2473 = vmul.f32 %v2331, %v2331
      %v2474 = vmul.f32 %v2333, %v2333
      %v2475 = vmul.f32 %v2335, %v2335
      %v2476 = vmul.f32 %v2337, %v2337
      %v2477 = vmul.f32 %v2339, %v2339
      %v2478 = vmul.f32 %v2341, %v2341
      %v2479 = vmul.f32 %v2343, %v2343
      %v2480 = vmul.f32 %v2345, %v2345
      %v2481 = vmul.f32 %v2347, %v2347
      %v2482 = vmul.f32 %v2349, %v2349
      %v2483 = vmul.f32 %v2351, %v2351
      %v2484 = vmul.f32 %v2353, %v2353
      %v2485 = vmul.f32 %v2355, %v2355
      %2486 = vadd.xlane.f32.xlu0 %v2454
      %v2487 = vpop.xlane.xlu0 %2486
      %2488 = vadd.xlane.f32.xlu0 %v2455
      %v2489 = vpop.xlane.xlu0 %2488
      %2490 = vadd.xlane.f32.xlu0 %v2456
      %v2491 = vpop.xlane.xlu0 %2490
      %2492 = vadd.xlane.f32.xlu0 %v2457
      %v2493 = vpop.xlane.xlu0 %2492
      %2494 = vadd.xlane.f32.xlu0 %v2458
      %v2495 = vpop.xlane.xlu0 %2494
      %2496 = vadd.xlane.f32.xlu0 %v2459
      %v2497 = vpop.xlane.xlu0 %2496
      %2498 = vadd.xlane.f32.xlu0 %v2460
      %v2499 = vpop.xlane.xlu0 %2498
      %2500 = vadd.xlane.f32.xlu0 %v2461
      %v2501 = vpop.xlane.xlu0 %2500
      %2502 = vadd.xlane.f32.xlu0 %v2462
      %v2503 = vpop.xlane.xlu0 %2502
      %2504 = vadd.xlane.f32.xlu0 %v2463
      %v2505 = vpop.xlane.xlu0 %2504
      %2506 = vadd.xlane.f32.xlu0 %v2464
      %v2507 = vpop.xlane.xlu0 %2506
      %2508 = vadd.xlane.f32.xlu0 %v2465
      %v2509 = vpop.xlane.xlu0 %2508
      %2510 = vadd.xlane.f32.xlu0 %v2466
      %v2511 = vpop.xlane.xlu0 %2510
      %2512 = vadd.xlane.f32.xlu0 %v2467
      %v2513 = vpop.xlane.xlu0 %2512
      %2514 = vadd.xlane.f32.xlu0 %v2468
      %v2515 = vpop.xlane.xlu0 %2514
      %2516 = vadd.xlane.f32.xlu0 %v2469
      %v2517 = vpop.xlane.xlu0 %2516
      %2518 = vadd.xlane.f32.xlu0 %v2470
      %v2519 = vpop.xlane.xlu0 %2518
      %2520 = vadd.xlane.f32.xlu0 %v2471
      %v2521 = vpop.xlane.xlu0 %2520
      %2522 = vadd.xlane.f32.xlu0 %v2472
      %v2523 = vpop.xlane.xlu0 %2522
      %2524 = vadd.xlane.f32.xlu0 %v2473
      %v2525 = vpop.xlane.xlu0 %2524
      %2526 = vadd.xlane.f32.xlu0 %v2474
      %v2527 = vpop.xlane.xlu0 %2526
      %2528 = vadd.xlane.f32.xlu0 %v2475
      %v2529 = vpop.xlane.xlu0 %2528
      %2530 = vadd.xlane.f32.xlu0 %v2476
      %v2531 = vpop.xlane.xlu0 %2530
      %2532 = vadd.xlane.f32.xlu0 %v2477
      %v2533 = vpop.xlane.xlu0 %2532
      %2534 = vadd.xlane.f32.xlu0 %v2478
      %v2535 = vpop.xlane.xlu0 %2534
      %2536 = vadd.xlane.f32.xlu0 %v2479
      %v2537 = vpop.xlane.xlu0 %2536
      %2538 = vadd.xlane.f32.xlu0 %v2480
      %v2539 = vpop.xlane.xlu0 %2538
      %2540 = vadd.xlane.f32.xlu0 %v2481
      %v2541 = vpop.xlane.xlu0 %2540
      %2542 = vadd.xlane.f32.xlu0 %v2482
      %v2543 = vpop.xlane.xlu0 %2542
      %2544 = vadd.xlane.f32.xlu0 %v2483
      %v2545 = vpop.xlane.xlu0 %2544
      %2546 = vadd.xlane.f32.xlu0 %v2484
      %v2547 = vpop.xlane.xlu0 %2546
      %2548 = vadd.xlane.f32.xlu0 %v2485
      %v2549 = vpop.xlane.xlu0 %2548
      %v2550 = vmul.f32 %v2487, %v773
      %v2551 = vmul.f32 %v2489, %v773
      %v2552 = vmul.f32 %v2491, %v773
      %v2553 = vmul.f32 %v2493, %v773
      %v2554 = vmul.f32 %v2495, %v773
      %v2555 = vmul.f32 %v2497, %v773
      %v2556 = vmul.f32 %v2499, %v773
      %v2557 = vmul.f32 %v2501, %v773
      %v2558 = vmul.f32 %v2503, %v773
      %v2559 = vmul.f32 %v2505, %v773
      %v2560 = vmul.f32 %v2507, %v773
      %v2561 = vmul.f32 %v2509, %v773
      %v2562 = vmul.f32 %v2511, %v773
      %v2563 = vmul.f32 %v2513, %v773
      %v2564 = vmul.f32 %v2515, %v773
      %v2565 = vmul.f32 %v2517, %v773
      %v2566 = vmul.f32 %v2519, %v773
      %v2567 = vmul.f32 %v2521, %v773
      %v2568 = vmul.f32 %v2523, %v773
      %v2569 = vmul.f32 %v2525, %v773
      %v2570 = vmul.f32 %v2527, %v773
      %v2571 = vmul.f32 %v2529, %v773
      %v2572 = vmul.f32 %v2531, %v773
      %v2573 = vmul.f32 %v2533, %v773
      %v2574 = vmul.f32 %v2535, %v773
      %v2575 = vmul.f32 %v2537, %v773
      %v2576 = vmul.f32 %v2539, %v773
      %v2577 = vmul.f32 %v2541, %v773
      %v2578 = vmul.f32 %v2543, %v773
      %v2579 = vmul.f32 %v2545, %v773
      %v2580 = vmul.f32 %v2547, %v773
      %v2581 = vmul.f32 %v2549, %v773
      %v2582 = vmul.f32 %v2422, %v2422
      %v2583 = vmul.f32 %v2423, %v2423
      %v2584 = vmul.f32 %v2424, %v2424
      %v2585 = vmul.f32 %v2425, %v2425
      %v2586 = vmul.f32 %v2426, %v2426
      %v2587 = vmul.f32 %v2427, %v2427
      %v2588 = vmul.f32 %v2428, %v2428
      %v2589 = vmul.f32 %v2429, %v2429
      %v2590 = vmul.f32 %v2430, %v2430
      %v2591 = vmul.f32 %v2431, %v2431
      %v2592 = vmul.f32 %v2432, %v2432
      %v2593 = vmul.f32 %v2433, %v2433
      %v2594 = vmul.f32 %v2434, %v2434
      %v2595 = vmul.f32 %v2435, %v2435
      %v2596 = vmul.f32 %v2436, %v2436
      %v2597 = vmul.f32 %v2437, %v2437
      %v2598 = vmul.f32 %v2438, %v2438
      %v2599 = vmul.f32 %v2439, %v2439
      %v2600 = vmul.f32 %v2440, %v2440
      %v2601 = vmul.f32 %v2441, %v2441
      %v2602 = vmul.f32 %v2442, %v2442
      %v2603 = vmul.f32 %v2443, %v2443
      %v2604 = vmul.f32 %v2444, %v2444
      %v2605 = vmul.f32 %v2445, %v2445
      %v2606 = vmul.f32 %v2446, %v2446
      %v2607 = vmul.f32 %v2447, %v2447
      %v2608 = vmul.f32 %v2448, %v2448
      %v2609 = vmul.f32 %v2449, %v2449
      %v2610 = vmul.f32 %v2450, %v2450
      %v2611 = vmul.f32 %v2451, %v2451
      %v2612 = vmul.f32 %v2452, %v2452
      %v2613 = vmul.f32 %v2453, %v2453
      %v2614 = vsub.f32 %v2550, %v2582
      %v2615 = vsub.f32 %v2551, %v2583
      %v2616 = vsub.f32 %v2552, %v2584
      %v2617 = vsub.f32 %v2553, %v2585
      %v2618 = vsub.f32 %v2554, %v2586
      %v2619 = vsub.f32 %v2555, %v2587
      %v2620 = vsub.f32 %v2556, %v2588
      %v2621 = vsub.f32 %v2557, %v2589
      %v2622 = vsub.f32 %v2558, %v2590
      %v2623 = vsub.f32 %v2559, %v2591
      %v2624 = vsub.f32 %v2560, %v2592
      %v2625 = vsub.f32 %v2561, %v2593
      %v2626 = vsub.f32 %v2562, %v2594
      %v2627 = vsub.f32 %v2563, %v2595
      %v2628 = vsub.f32 %v2564, %v2596
      %v2629 = vsub.f32 %v2565, %v2597
      %v2630 = vsub.f32 %v2566, %v2598
      %v2631 = vsub.f32 %v2567, %v2599
      %v2632 = vsub.f32 %v2568, %v2600
      %v2633 = vsub.f32 %v2569, %v2601
      %v2634 = vsub.f32 %v2570, %v2602
      %v2635 = vsub.f32 %v2571, %v2603
      %v2636 = vsub.f32 %v2572, %v2604
      %v2637 = vsub.f32 %v2573, %v2605
      %v2638 = vsub.f32 %v2574, %v2606
      %v2639 = vsub.f32 %v2575, %v2607
      %v2640 = vsub.f32 %v2576, %v2608
      %v2641 = vsub.f32 %v2577, %v2609
      %v2642 = vsub.f32 %v2578, %v2610
      %v2643 = vsub.f32 %v2579, %v2611
      %v2644 = vsub.f32 %v2580, %v2612
      %v2645 = vsub.f32 %v2581, %v2613
      %v2646 = vsub.f32 %v2293, %v2422
      %v2647 = vsub.f32 %v2295, %v2423
      %v2648 = vsub.f32 %v2297, %v2424
      %v2649 = vsub.f32 %v2299, %v2425
      %v2650 = vsub.f32 %v2301, %v2426
      %v2651 = vsub.f32 %v2303, %v2427
      %v2652 = vsub.f32 %v2305, %v2428
      %v2653 = vsub.f32 %v2307, %v2429
      %v2654 = vsub.f32 %v2309, %v2430
      %v2655 = vsub.f32 %v2311, %v2431
      %v2656 = vsub.f32 %v2313, %v2432
      %v2657 = vsub.f32 %v2315, %v2433
      %v2658 = vsub.f32 %v2317, %v2434
      %v2659 = vsub.f32 %v2319, %v2435
      %v2660 = vsub.f32 %v2321, %v2436
      %v2661 = vsub.f32 %v2323, %v2437
      %v2662 = vsub.f32 %v2325, %v2438
      %v2663 = vsub.f32 %v2327, %v2439
      %v2664 = vsub.f32 %v2329, %v2440
      %v2665 = vsub.f32 %v2331, %v2441
      %v2666 = vsub.f32 %v2333, %v2442
      %v2667 = vsub.f32 %v2335, %v2443
      %v2668 = vsub.f32 %v2337, %v2444
      %v2669 = vsub.f32 %v2339, %v2445
      %v2670 = vsub.f32 %v2341, %v2446
      %v2671 = vsub.f32 %v2343, %v2447
      %v2672 = vsub.f32 %v2345, %v2448
      %v2673 = vsub.f32 %v2347, %v2449
      %v2674 = vsub.f32 %v2349, %v2450
      %v2675 = vsub.f32 %v2351, %v2451
      %v2676 = vsub.f32 %v2353, %v2452
      %v2677 = vsub.f32 %v2355, %v2453
      %v2678 = vadd.f32 %v2614, 1e-05
      %v2679 = vadd.f32 %v2615, 1e-05
      %v2680 = vadd.f32 %v2616, 1e-05
      %v2681 = vadd.f32 %v2617, 1e-05
      %v2682 = vadd.f32 %v2618, 1e-05
      %v2683 = vadd.f32 %v2619, 1e-05
      %v2684 = vadd.f32 %v2620, 1e-05
      %v2685 = vadd.f32 %v2621, 1e-05
      %v2686 = vadd.f32 %v2622, 1e-05
      %v2687 = vadd.f32 %v2623, 1e-05
      %v2688 = vadd.f32 %v2624, 1e-05
      %v2689 = vadd.f32 %v2625, 1e-05
      %v2690 = vadd.f32 %v2626, 1e-05
      %v2691 = vadd.f32 %v2627, 1e-05
      %v2692 = vadd.f32 %v2628, 1e-05
      %v2693 = vadd.f32 %v2629, 1e-05
      %v2694 = vadd.f32 %v2630, 1e-05
      %v2695 = vadd.f32 %v2631, 1e-05
      %v2696 = vadd.f32 %v2632, 1e-05
      %v2697 = vadd.f32 %v2633, 1e-05
      %v2698 = vadd.f32 %v2634, 1e-05
      %v2699 = vadd.f32 %v2635, 1e-05
      %v2700 = vadd.f32 %v2636, 1e-05
      %v2701 = vadd.f32 %v2637, 1e-05
      %v2702 = vadd.f32 %v2638, 1e-05
      %v2703 = vadd.f32 %v2639, 1e-05
      %v2704 = vadd.f32 %v2640, 1e-05
      %v2705 = vadd.f32 %v2641, 1e-05
      %v2706 = vadd.f32 %v2642, 1e-05
      %v2707 = vadd.f32 %v2643, 1e-05
      %v2708 = vadd.f32 %v2644, 1e-05
      %v2709 = vadd.f32 %v2645, 1e-05
      %v2710 = vrsqrt.pop %v2678
      %v2711 = vmul.f32 %v2710, %v2678
      %v2712 = vmul.f32 %v2711, %v2710
      %v2713 = vmul.f32 0.5, %v2712
      %v2714 = vsub.f32 1.5, %v2713
      %v2715 = vmul.f32 %v2710, %v2714
      %vm2716 = vweird.f32 %v2678
      %vm2717 = vweird.f32 %v2710
      %vm2718 = vmor %vm2716, %vm2717
      %v2719 = vsel %vm2718, %v2710, %v2715
      %v2720 = vrsqrt.pop %v2679
      %v2721 = vmul.f32 %v2720, %v2679
      %v2722 = vmul.f32 %v2721, %v2720
      %v2723 = vmul.f32 0.5, %v2722
      %v2724 = vsub.f32 1.5, %v2723
      %v2725 = vmul.f32 %v2720, %v2724
      %vm2726 = vweird.f32 %v2679
      %vm2727 = vweird.f32 %v2720
      %vm2728 = vmor %vm2726, %vm2727
      %v2729 = vsel %vm2728, %v2720, %v2725
      %v2730 = vrsqrt.pop %v2680
      %v2731 = vmul.f32 %v2730, %v2680
      %v2732 = vmul.f32 %v2731, %v2730
      %v2733 = vmul.f32 0.5, %v2732
      %v2734 = vsub.f32 1.5, %v2733
      %v2735 = vmul.f32 %v2730, %v2734
      %vm2736 = vweird.f32 %v2680
      %vm2737 = vweird.f32 %v2730
      %vm2738 = vmor %vm2736, %vm2737
      %v2739 = vsel %vm2738, %v2730, %v2735
      %v2740 = vrsqrt.pop %v2681
      %v2741 = vmul.f32 %v2740, %v2681
      %v2742 = vmul.f32 %v2741, %v2740
      %v2743 = vmul.f32 0.5, %v2742
      %v2744 = vsub.f32 1.5, %v2743
      %v2745 = vmul.f32 %v2740, %v2744
      %vm2746 = vweird.f32 %v2681
      %vm2747 = vweird.f32 %v2740
      %vm2748 = vmor %vm2746, %vm2747
      %v2749 = vsel %vm2748, %v2740, %v2745
      %v2750 = vrsqrt.pop %v2682
      %v2751 = vmul.f32 %v2750, %v2682
      %v2752 = vmul.f32 %v2751, %v2750
      %v2753 = vmul.f32 0.5, %v2752
      %v2754 = vsub.f32 1.5, %v2753
      %v2755 = vmul.f32 %v2750, %v2754
      %vm2756 = vweird.f32 %v2682
      %vm2757 = vweird.f32 %v2750
      %vm2758 = vmor %vm2756, %vm2757
      %v2759 = vsel %vm2758, %v2750, %v2755
      %v2760 = vrsqrt.pop %v2683
      %v2761 = vmul.f32 %v2760, %v2683
      %v2762 = vmul.f32 %v2761, %v2760
      %v2763 = vmul.f32 0.5, %v2762
      %v2764 = vsub.f32 1.5, %v2763
      %v2765 = vmul.f32 %v2760, %v2764
      %vm2766 = vweird.f32 %v2683
      %vm2767 = vweird.f32 %v2760
      %vm2768 = vmor %vm2766, %vm2767
      %v2769 = vsel %vm2768, %v2760, %v2765
      %v2770 = vrsqrt.pop %v2684
      %v2771 = vmul.f32 %v2770, %v2684
      %v2772 = vmul.f32 %v2771, %v2770
      %v2773 = vmul.f32 0.5, %v2772
      %v2774 = vsub.f32 1.5, %v2773
      %v2775 = vmul.f32 %v2770, %v2774
      %vm2776 = vweird.f32 %v2684
      %vm2777 = vweird.f32 %v2770
      %vm2778 = vmor %vm2776, %vm2777
      %v2779 = vsel %vm2778, %v2770, %v2775
      %v2780 = vrsqrt.pop %v2685
      %v2781 = vmul.f32 %v2780, %v2685
      %v2782 = vmul.f32 %v2781, %v2780
      %v2783 = vmul.f32 0.5, %v2782
      %v2784 = vsub.f32 1.5, %v2783
      %v2785 = vmul.f32 %v2780, %v2784
      %vm2786 = vweird.f32 %v2685
      %vm2787 = vweird.f32 %v2780
      %vm2788 = vmor %vm2786, %vm2787
      %v2789 = vsel %vm2788, %v2780, %v2785
      %v2790 = vrsqrt.pop %v2686
      %v2791 = vmul.f32 %v2790, %v2686
      %v2792 = vmul.f32 %v2791, %v2790
      %v2793 = vmul.f32 0.5, %v2792
      %v2794 = vsub.f32 1.5, %v2793
      %v2795 = vmul.f32 %v2790, %v2794
      %vm2796 = vweird.f32 %v2686
      %vm2797 = vweird.f32 %v2790
      %vm2798 = vmor %vm2796, %vm2797
      %v2799 = vsel %vm2798, %v2790, %v2795
      %v2800 = vrsqrt.pop %v2687
      %v2801 = vmul.f32 %v2800, %v2687
      %v2802 = vmul.f32 %v2801, %v2800
      %v2803 = vmul.f32 0.5, %v2802
      %v2804 = vsub.f32 1.5, %v2803
      %v2805 = vmul.f32 %v2800, %v2804
      %vm2806 = vweird.f32 %v2687
      %vm2807 = vweird.f32 %v2800
      %vm2808 = vmor %vm2806, %vm2807
      %v2809 = vsel %vm2808, %v2800, %v2805
      %v2810 = vrsqrt.pop %v2688
      %v2811 = vmul.f32 %v2810, %v2688
      %v2812 = vmul.f32 %v2811, %v2810
      %v2813 = vmul.f32 0.5, %v2812
      %v2814 = vsub.f32 1.5, %v2813
      %v2815 = vmul.f32 %v2810, %v2814
      %vm2816 = vweird.f32 %v2688
      %vm2817 = vweird.f32 %v2810
      %vm2818 = vmor %vm2816, %vm2817
      %v2819 = vsel %vm2818, %v2810, %v2815
      %v2820 = vrsqrt.pop %v2689
      %v2821 = vmul.f32 %v2820, %v2689
      %v2822 = vmul.f32 %v2821, %v2820
      %v2823 = vmul.f32 0.5, %v2822
      %v2824 = vsub.f32 1.5, %v2823
      %v2825 = vmul.f32 %v2820, %v2824
      %vm2826 = vweird.f32 %v2689
      %vm2827 = vweird.f32 %v2820
      %vm2828 = vmor %vm2826, %vm2827
      %v2829 = vsel %vm2828, %v2820, %v2825
      %v2830 = vrsqrt.pop %v2690
      %v2831 = vmul.f32 %v2830, %v2690
      %v2832 = vmul.f32 %v2831, %v2830
      %v2833 = vmul.f32 0.5, %v2832
      %v2834 = vsub.f32 1.5, %v2833
      %v2835 = vmul.f32 %v2830, %v2834
      %vm2836 = vweird.f32 %v2690
      %vm2837 = vweird.f32 %v2830
      %vm2838 = vmor %vm2836, %vm2837
      %v2839 = vsel %vm2838, %v2830, %v2835
      %v2840 = vrsqrt.pop %v2691
      %v2841 = vmul.f32 %v2840, %v2691
      %v2842 = vmul.f32 %v2841, %v2840
      %v2843 = vmul.f32 0.5, %v2842
      %v2844 = vsub.f32 1.5, %v2843
      %v2845 = vmul.f32 %v2840, %v2844
      %vm2846 = vweird.f32 %v2691
      %vm2847 = vweird.f32 %v2840
      %vm2848 = vmor %vm2846, %vm2847
      %v2849 = vsel %vm2848, %v2840, %v2845
      %v2850 = vrsqrt.pop %v2692
      %v2851 = vmul.f32 %v2850, %v2692
      %v2852 = vmul.f32 %v2851, %v2850
      %v2853 = vmul.f32 0.5, %v2852
      %v2854 = vsub.f32 1.5, %v2853
      %v2855 = vmul.f32 %v2850, %v2854
      %vm2856 = vweird.f32 %v2692
      %vm2857 = vweird.f32 %v2850
      %vm2858 = vmor %vm2856, %vm2857
      %v2859 = vsel %vm2858, %v2850, %v2855
      %v2860 = vrsqrt.pop %v2693
      %v2861 = vmul.f32 %v2860, %v2693
      %v2862 = vmul.f32 %v2861, %v2860
      %v2863 = vmul.f32 0.5, %v2862
      %v2864 = vsub.f32 1.5, %v2863
      %v2865 = vmul.f32 %v2860, %v2864
      %vm2866 = vweird.f32 %v2693
      %vm2867 = vweird.f32 %v2860
      %vm2868 = vmor %vm2866, %vm2867
      %v2869 = vsel %vm2868, %v2860, %v2865
      %v2870 = vrsqrt.pop %v2694
      %v2871 = vmul.f32 %v2870, %v2694
      %v2872 = vmul.f32 %v2871, %v2870
      %v2873 = vmul.f32 0.5, %v2872
      %v2874 = vsub.f32 1.5, %v2873
      %v2875 = vmul.f32 %v2870, %v2874
      %vm2876 = vweird.f32 %v2694
      %vm2877 = vweird.f32 %v2870
      %vm2878 = vmor %vm2876, %vm2877
      %v2879 = vsel %vm2878, %v2870, %v2875
      %v2880 = vrsqrt.pop %v2695
      %v2881 = vmul.f32 %v2880, %v2695
      %v2882 = vmul.f32 %v2881, %v2880
      %v2883 = vmul.f32 0.5, %v2882
      %v2884 = vsub.f32 1.5, %v2883
      %v2885 = vmul.f32 %v2880, %v2884
      %vm2886 = vweird.f32 %v2695
      %vm2887 = vweird.f32 %v2880
      %vm2888 = vmor %vm2886, %vm2887
      %v2889 = vsel %vm2888, %v2880, %v2885
      %v2890 = vrsqrt.pop %v2696
      %v2891 = vmul.f32 %v2890, %v2696
      %v2892 = vmul.f32 %v2891, %v2890
      %v2893 = vmul.f32 0.5, %v2892
      %v2894 = vsub.f32 1.5, %v2893
      %v2895 = vmul.f32 %v2890, %v2894
      %vm2896 = vweird.f32 %v2696
      %vm2897 = vweird.f32 %v2890
      %vm2898 = vmor %vm2896, %vm2897
      %v2899 = vsel %vm2898, %v2890, %v2895
      %v2900 = vrsqrt.pop %v2697
      %v2901 = vmul.f32 %v2900, %v2697
      %v2902 = vmul.f32 %v2901, %v2900
      %v2903 = vmul.f32 0.5, %v2902
      %v2904 = vsub.f32 1.5, %v2903
      %v2905 = vmul.f32 %v2900, %v2904
      %vm2906 = vweird.f32 %v2697
      %vm2907 = vweird.f32 %v2900
      %vm2908 = vmor %vm2906, %vm2907
      %v2909 = vsel %vm2908, %v2900, %v2905
      %v2910 = vrsqrt.pop %v2698
      %v2911 = vmul.f32 %v2910, %v2698
      %v2912 = vmul.f32 %v2911, %v2910
      %v2913 = vmul.f32 0.5, %v2912
      %v2914 = vsub.f32 1.5, %v2913
      %v2915 = vmul.f32 %v2910, %v2914
      %vm2916 = vweird.f32 %v2698
      %vm2917 = vweird.f32 %v2910
      %vm2918 = vmor %vm2916, %vm2917
      %v2919 = vsel %vm2918, %v2910, %v2915
      %v2920 = vrsqrt.pop %v2699
      %v2921 = vmul.f32 %v2920, %v2699
      %v2922 = vmul.f32 %v2921, %v2920
      %v2923 = vmul.f32 0.5, %v2922
      %v2924 = vsub.f32 1.5, %v2923
      %v2925 = vmul.f32 %v2920, %v2924
      %vm2926 = vweird.f32 %v2699
      %vm2927 = vweird.f32 %v2920
      %vm2928 = vmor %vm2926, %vm2927
      %v2929 = vsel %vm2928, %v2920, %v2925
      %v2930 = vrsqrt.pop %v2700
      %v2931 = vmul.f32 %v2930, %v2700
      %v2932 = vmul.f32 %v2931, %v2930
      %v2933 = vmul.f32 0.5, %v2932
      %v2934 = vsub.f32 1.5, %v2933
      %v2935 = vmul.f32 %v2930, %v2934
      %vm2936 = vweird.f32 %v2700
      %vm2937 = vweird.f32 %v2930
      %vm2938 = vmor %vm2936, %vm2937
      %v2939 = vsel %vm2938, %v2930, %v2935
      %v2940 = vrsqrt.pop %v2701
      %v2941 = vmul.f32 %v2940, %v2701
      %v2942 = vmul.f32 %v2941, %v2940
      %v2943 = vmul.f32 0.5, %v2942
      %v2944 = vsub.f32 1.5, %v2943
      %v2945 = vmul.f32 %v2940, %v2944
      %vm2946 = vweird.f32 %v2701
      %vm2947 = vweird.f32 %v2940
      %vm2948 = vmor %vm2946, %vm2947
      %v2949 = vsel %vm2948, %v2940, %v2945
      %v2950 = vrsqrt.pop %v2702
      %v2951 = vmul.f32 %v2950, %v2702
      %v2952 = vmul.f32 %v2951, %v2950
      %v2953 = vmul.f32 0.5, %v2952
      %v2954 = vsub.f32 1.5, %v2953
      %v2955 = vmul.f32 %v2950, %v2954
      %vm2956 = vweird.f32 %v2702
      %vm2957 = vweird.f32 %v2950
      %vm2958 = vmor %vm2956, %vm2957
      %v2959 = vsel %vm2958, %v2950, %v2955
      %v2960 = vrsqrt.pop %v2703
      %v2961 = vmul.f32 %v2960, %v2703
      %v2962 = vmul.f32 %v2961, %v2960
      %v2963 = vmul.f32 0.5, %v2962
      %v2964 = vsub.f32 1.5, %v2963
      %v2965 = vmul.f32 %v2960, %v2964
      %vm2966 = vweird.f32 %v2703
      %vm2967 = vweird.f32 %v2960
      %vm2968 = vmor %vm2966, %vm2967
      %v2969 = vsel %vm2968, %v2960, %v2965
      %v2970 = vrsqrt.pop %v2704
      %v2971 = vmul.f32 %v2970, %v2704
      %v2972 = vmul.f32 %v2971, %v2970
      %v2973 = vmul.f32 0.5, %v2972
      %v2974 = vsub.f32 1.5, %v2973
      %v2975 = vmul.f32 %v2970, %v2974
      %vm2976 = vweird.f32 %v2704
      %vm2977 = vweird.f32 %v2970
      %vm2978 = vmor %vm2976, %vm2977
      %v2979 = vsel %vm2978, %v2970, %v2975
      %v2980 = vrsqrt.pop %v2705
      %v2981 = vmul.f32 %v2980, %v2705
      %v2982 = vmul.f32 %v2981, %v2980
      %v2983 = vmul.f32 0.5, %v2982
      %v2984 = vsub.f32 1.5, %v2983
      %v2985 = vmul.f32 %v2980, %v2984
      %vm2986 = vweird.f32 %v2705
      %vm2987 = vweird.f32 %v2980
      %vm2988 = vmor %vm2986, %vm2987
      %v2989 = vsel %vm2988, %v2980, %v2985
      %v2990 = vrsqrt.pop %v2706
      %v2991 = vmul.f32 %v2990, %v2706
      %v2992 = vmul.f32 %v2991, %v2990
      %v2993 = vmul.f32 0.5, %v2992
      %v2994 = vsub.f32 1.5, %v2993
      %v2995 = vmul.f32 %v2990, %v2994
      %vm2996 = vweird.f32 %v2706
      %vm2997 = vweird.f32 %v2990
      %vm2998 = vmor %vm2996, %vm2997
      %v2999 = vsel %vm2998, %v2990, %v2995
      %v3000 = vrsqrt.pop %v2707
      %v3001 = vmul.f32 %v3000, %v2707
      %v3002 = vmul.f32 %v3001, %v3000
      %v3003 = vmul.f32 0.5, %v3002
      %v3004 = vsub.f32 1.5, %v3003
      %v3005 = vmul.f32 %v3000, %v3004
      %vm3006 = vweird.f32 %v2707
      %vm3007 = vweird.f32 %v3000
      %vm3008 = vmor %vm3006, %vm3007
      %v3009 = vsel %vm3008, %v3000, %v3005
      %v3010 = vrsqrt.pop %v2708
      %v3011 = vmul.f32 %v3010, %v2708
      %v3012 = vmul.f32 %v3011, %v3010
      %v3013 = vmul.f32 0.5, %v3012
      %v3014 = vsub.f32 1.5, %v3013
      %v3015 = vmul.f32 %v3010, %v3014
      %vm3016 = vweird.f32 %v2708
      %vm3017 = vweird.f32 %v3010
      %vm3018 = vmor %vm3016, %vm3017
      %v3019 = vsel %vm3018, %v3010, %v3015
      %v3020 = vrsqrt.pop %v2709
      %v3021 = vmul.f32 %v3020, %v2709
      %v3022 = vmul.f32 %v3021, %v3020
      %v3023 = vmul.f32 0.5, %v3022
      %v3024 = vsub.f32 1.5, %v3023
      %v3025 = vmul.f32 %v3020, %v3024
      %vm3026 = vweird.f32 %v2709
      %vm3027 = vweird.f32 %v3020
      %vm3028 = vmor %vm3026, %vm3027
      %v3029 = vsel %vm3028, %v3020, %v3025
      %v3030 = vmul.f32 %v2646, %v2719
      %v3031 = vmul.f32 %v2647, %v2729
      %v3032 = vmul.f32 %v2648, %v2739
      %v3033 = vmul.f32 %v2649, %v2749
      %v3034 = vmul.f32 %v2650, %v2759
      %v3035 = vmul.f32 %v2651, %v2769
      %v3036 = vmul.f32 %v2652, %v2779
      %v3037 = vmul.f32 %v2653, %v2789
      %v3038 = vmul.f32 %v2654, %v2799
      %v3039 = vmul.f32 %v2655, %v2809
      %v3040 = vmul.f32 %v2656, %v2819
      %v3041 = vmul.f32 %v2657, %v2829
      %v3042 = vmul.f32 %v2658, %v2839
      %v3043 = vmul.f32 %v2659, %v2849
      %v3044 = vmul.f32 %v2660, %v2859
      %v3045 = vmul.f32 %v2661, %v2869
      %v3046 = vmul.f32 %v2662, %v2879
      %v3047 = vmul.f32 %v2663, %v2889
      %v3048 = vmul.f32 %v2664, %v2899
      %v3049 = vmul.f32 %v2665, %v2909
      %v3050 = vmul.f32 %v2666, %v2919
      %v3051 = vmul.f32 %v2667, %v2929
      %v3052 = vmul.f32 %v2668, %v2939
      %v3053 = vmul.f32 %v2669, %v2949
      %v3054 = vmul.f32 %v2670, %v2959
      %v3055 = vmul.f32 %v2671, %v2969
      %v3056 = vmul.f32 %v2672, %v2979
      %v3057 = vmul.f32 %v2673, %v2989
      %v3058 = vmul.f32 %v2674, %v2999
      %v3059 = vmul.f32 %v2675, %v3009
      %v3060 = vmul.f32 %v2676, %v3019
      %v3061 = vmul.f32 %v2677, %v3029
      %v3063 = vperm.slane %v2356, 0
      %v3065 = vmul.f32 %v3030, %v3063
      %v3066 = vmul.f32 %v3031, %v3063
      %v3067 = vmul.f32 %v3032, %v3063
      %v3068 = vmul.f32 %v3033, %v3063
      %v3069 = vmul.f32 %v3034, %v3063
      %v3070 = vmul.f32 %v3035, %v3063
      %v3071 = vmul.f32 %v3036, %v3063
      %v3072 = vmul.f32 %v3037, %v3063
      %v3073 = vmul.f32 %v3038, %v3063
      %v3074 = vmul.f32 %v3039, %v3063
      %v3075 = vmul.f32 %v3040, %v3063
      %v3076 = vmul.f32 %v3041, %v3063
      %v3077 = vmul.f32 %v3042, %v3063
      %v3078 = vmul.f32 %v3043, %v3063
      %v3079 = vmul.f32 %v3044, %v3063
      %v3080 = vmul.f32 %v3045, %v3063
      %v3081 = vmul.f32 %v3046, %v3063
      %v3082 = vmul.f32 %v3047, %v3063
      %v3083 = vmul.f32 %v3048, %v3063
      %v3084 = vmul.f32 %v3049, %v3063
      %v3085 = vmul.f32 %v3050, %v3063
      %v3086 = vmul.f32 %v3051, %v3063
      %v3087 = vmul.f32 %v3052, %v3063
      %v3088 = vmul.f32 %v3053, %v3063
      %v3089 = vmul.f32 %v3054, %v3063
      %v3090 = vmul.f32 %v3055, %v3063
      %v3091 = vmul.f32 %v3056, %v3063
      %v3092 = vmul.f32 %v3057, %v3063
      %v3093 = vmul.f32 %v3058, %v3063
      %v3094 = vmul.f32 %v3059, %v3063
      %v3095 = vmul.f32 %v3060, %v3063
      %v3096 = vmul.f32 %v3061, %v3063
      %v3098 = vperm.slane %v2357, 0
      %v3100 = vadd.f32 %v3065, %v3098
      %v3101 = vadd.f32 %v3066, %v3098
      %v3102 = vadd.f32 %v3067, %v3098
      %v3103 = vadd.f32 %v3068, %v3098
      %v3104 = vadd.f32 %v3069, %v3098
      %v3105 = vadd.f32 %v3070, %v3098
      %v3106 = vadd.f32 %v3071, %v3098
      %v3107 = vadd.f32 %v3072, %v3098
      %v3108 = vadd.f32 %v3073, %v3098
      %v3109 = vadd.f32 %v3074, %v3098
      %v3110 = vadd.f32 %v3075, %v3098
      %v3111 = vadd.f32 %v3076, %v3098
      %v3112 = vadd.f32 %v3077, %v3098
      %v3113 = vadd.f32 %v3078, %v3098
      %v3114 = vadd.f32 %v3079, %v3098
      %v3115 = vadd.f32 %v3080, %v3098
      %v3116 = vadd.f32 %v3081, %v3098
      %v3117 = vadd.f32 %v3082, %v3098
      %v3118 = vadd.f32 %v3083, %v3098
      %v3119 = vadd.f32 %v3084, %v3098
      %v3120 = vadd.f32 %v3085, %v3098
      %v3121 = vadd.f32 %v3086, %v3098
      %v3122 = vadd.f32 %v3087, %v3098
      %v3123 = vadd.f32 %v3088, %v3098
      %v3124 = vadd.f32 %v3089, %v3098
      %v3125 = vadd.f32 %v3090, %v3098
      %v3126 = vadd.f32 %v3091, %v3098
      %v3127 = vadd.f32 %v3092, %v3098
      %v3128 = vadd.f32 %v3093, %v3098
      %v3129 = vadd.f32 %v3094, %v3098
      %v3130 = vadd.f32 %v3095, %v3098
      %v3131 = vadd.f32 %v3096, %v3098
      %v3132 = vpack.c.bf16 %v3100, %v3100
      %v3133 = vpack.c.bf16 %v3101, %v3101
      %v3134 = vpack.c.bf16 %v3102, %v3102
      %v3135 = vpack.c.bf16 %v3103, %v3103
      %v3136 = vpack.c.bf16 %v3104, %v3104
      %v3137 = vpack.c.bf16 %v3105, %v3105
      %v3138 = vpack.c.bf16 %v3106, %v3106
      %v3139 = vpack.c.bf16 %v3107, %v3107
      %v3140 = vpack.c.bf16 %v3108, %v3108
      %v3141 = vpack.c.bf16 %v3109, %v3109
      %v3142 = vpack.c.bf16 %v3110, %v3110
      %v3143 = vpack.c.bf16 %v3111, %v3111
      %v3144 = vpack.c.bf16 %v3112, %v3112
      %v3145 = vpack.c.bf16 %v3113, %v3113
      %v3146 = vpack.c.bf16 %v3114, %v3114
      %v3147 = vpack.c.bf16 %v3115, %v3115
      %v3148 = vpack.c.bf16 %v3116, %v3116
      %v3149 = vpack.c.bf16 %v3117, %v3117
      %v3150 = vpack.c.bf16 %v3118, %v3118
      %v3151 = vpack.c.bf16 %v3119, %v3119
      %v3152 = vpack.c.bf16 %v3120, %v3120
      %v3153 = vpack.c.bf16 %v3121, %v3121
      %v3154 = vpack.c.bf16 %v3122, %v3122
      %v3155 = vpack.c.bf16 %v3123, %v3123
      %v3156 = vpack.c.bf16 %v3124, %v3124
      %v3157 = vpack.c.bf16 %v3125, %v3125
      %v3158 = vpack.c.bf16 %v3126, %v3126
      %v3159 = vpack.c.bf16 %v3127, %v3127
      %v3160 = vpack.c.bf16 %v3128, %v3128
      %v3161 = vpack.c.bf16 %v3129, %v3129
      %v3162 = vpack.c.bf16 %v3130, %v3130
      %v3163 = vpack.c.bf16 %v3131, %v3131
      %v3164 = vld [vmem:[%s549] sm:$0xf]
      %v3165 = vld [vmem:[%s549 + $0x4] sm:$0xf]
      %v3166 = vld [vmem:[%s549 + $0x8] sm:$0xf]
      %v3167 = vld [vmem:[%s549 + $0xc] sm:$0xf]
      %v3168 = vld [vmem:[%s549 + $0x10] sm:$0xf]
      %v3169 = vld [vmem:[%s549 + $0x14] sm:$0xf]
      %v3170 = vld [vmem:[%s549 + $0x18] sm:$0xf]
      %v3171 = vld [vmem:[%s549 + $0x1c] sm:$0xf]
      %v3172 = vld [vmem:[%s549 + $0x20] sm:$0xf]
      %v3173 = vld [vmem:[%s549 + $0x24] sm:$0xf]
      %v3174 = vld [vmem:[%s549 + $0x28] sm:$0xf]
      %v3175 = vld [vmem:[%s549 + $0x2c] sm:$0xf]
      %v3176 = vld [vmem:[%s549 + $0x30] sm:$0xf]
      %v3177 = vld [vmem:[%s549 + $0x34] sm:$0xf]
      %v3178 = vld [vmem:[%s549 + $0x38] sm:$0xf]
      %v3179 = vld [vmem:[%s549 + $0x3c] sm:$0xf]
      %v3180 = vld [vmem:[%s554] sm:$0xff]
      %v3181 = vld [vmem:[%s554 + $0x8] sm:$0xff]
      %v3182 = vld [vmem:[%s554 + $0x10] sm:$0xff]
      %v3183 = vld [vmem:[%s554 + $0x18] sm:$0xff]
      %v3184 = vld [vmem:[%s554 + $0x20] sm:$0xff]
      %v3185 = vld [vmem:[%s554 + $0x28] sm:$0xff]
      %v3186 = vld [vmem:[%s554 + $0x30] sm:$0xff]
      %v3187 = vld [vmem:[%s554 + $0x38] sm:$0xff]
      %v3188 = vld [vmem:[%s554 + $0x40] sm:$0xff]
      %v3189 = vld [vmem:[%s554 + $0x48] sm:$0xff]
      %v3190 = vld [vmem:[%s554 + $0x50] sm:$0xff]
      %v3191 = vld [vmem:[%s554 + $0x58] sm:$0xff]
      %v3192 = vld [vmem:[%s554 + $0x60] sm:$0xff]
      %v3193 = vld [vmem:[%s554 + $0x68] sm:$0xff]
      %v3194 = vld [vmem:[%s554 + $0x70] sm:$0xff]
      %v3195 = vld [vmem:[%s554 + $0x78] sm:$0xff]
      %v3196 = vld [vmem:[%s559] sm:$0xf]
      %v3197 = vld [vmem:[%s559 + $0x4] sm:$0xf]
      %v3198 = vld [vmem:[%s559 + $0x8] sm:$0xf]
      %v3199 = vld [vmem:[%s559 + $0xc] sm:$0xf]
      %v3200 = vld [vmem:[%s559 + $0x10] sm:$0xf]
      %v3201 = vld [vmem:[%s559 + $0x14] sm:$0xf]
      %v3202 = vld [vmem:[%s559 + $0x18] sm:$0xf]
      %v3203 = vld [vmem:[%s559 + $0x1c] sm:$0xf]
      %v3204 = vld [vmem:[%s559 + $0x20] sm:$0xf]
      %v3205 = vld [vmem:[%s559 + $0x24] sm:$0xf]
      %v3206 = vld [vmem:[%s559 + $0x28] sm:$0xf]
      %v3207 = vld [vmem:[%s559 + $0x2c] sm:$0xf]
      %v3208 = vld [vmem:[%s559 + $0x30] sm:$0xf]
      %v3209 = vld [vmem:[%s559 + $0x34] sm:$0xf]
      %v3210 = vld [vmem:[%s559 + $0x38] sm:$0xf]
      %v3211 = vld [vmem:[%s559 + $0x3c] sm:$0xf]
      %v3212 = vld [vmem:[%s562] sm:$0x1]
      %3214 = vset.pattern.permute.xlu0 0
      %3215 = vperm.xlu0 %3214, %v3180
      %v3216 = vpop.permute.xlu0 %3215
      %3219 = vset.pattern.permute.xlu0 0
      %3220 = vperm.xlu0 %3219, %v3181
      %v3221 = vpop.permute.xlu0 %3220
      %3224 = vset.pattern.permute.xlu0 0
      %3225 = vperm.xlu0 %3224, %v3182
      %v3226 = vpop.permute.xlu0 %3225
      %3229 = vset.pattern.permute.xlu0 0
      %3230 = vperm.xlu0 %3229, %v3183
      %v3231 = vpop.permute.xlu0 %3230
      %3234 = vset.pattern.permute.xlu0 0
      %3235 = vperm.xlu0 %3234, %v3184
      %v3236 = vpop.permute.xlu0 %3235
      %3239 = vset.pattern.permute.xlu0 0
      %3240 = vperm.xlu0 %3239, %v3185
      %v3241 = vpop.permute.xlu0 %3240
      %3244 = vset.pattern.permute.xlu0 0
      %3245 = vperm.xlu0 %3244, %v3186
      %v3246 = vpop.permute.xlu0 %3245
      %3249 = vset.pattern.permute.xlu0 0
      %3250 = vperm.xlu0 %3249, %v3187
      %v3251 = vpop.permute.xlu0 %3250
      %3254 = vset.pattern.permute.xlu0 0
      %3255 = vperm.xlu0 %3254, %v3188
      %v3256 = vpop.permute.xlu0 %3255
      %3259 = vset.pattern.permute.xlu0 0
      %3260 = vperm.xlu0 %3259, %v3189
      %v3261 = vpop.permute.xlu0 %3260
      %3264 = vset.pattern.permute.xlu0 0
      %3265 = vperm.xlu0 %3264, %v3190
      %v3266 = vpop.permute.xlu0 %3265
      %3269 = vset.pattern.permute.xlu0 0
      %3270 = vperm.xlu0 %3269, %v3191
      %v3271 = vpop.permute.xlu0 %3270
      %3274 = vset.pattern.permute.xlu0 0
      %3275 = vperm.xlu0 %3274, %v3192
      %v3276 = vpop.permute.xlu0 %3275
      %3279 = vset.pattern.permute.xlu0 0
      %3280 = vperm.xlu0 %3279, %v3193
      %v3281 = vpop.permute.xlu0 %3280
      %3284 = vset.pattern.permute.xlu0 0
      %3285 = vperm.xlu0 %3284, %v3194
      %v3286 = vpop.permute.xlu0 %3285
      %3289 = vset.pattern.permute.xlu0 0
      %3290 = vperm.xlu0 %3289, %v3195
      %v3291 = vpop.permute.xlu0 %3290
      %v3309 = vunpack.c.l.b16 %v3164
      %v3310 = vunpack.c.l.b16 %v3165
      %v3311 = vunpack.c.l.b16 %v3166
      %v3312 = vunpack.c.l.b16 %v3167
      %v3313 = vunpack.c.l.b16 %v3168
      %v3314 = vunpack.c.l.b16 %v3169
      %v3315 = vunpack.c.l.b16 %v3170
      %v3316 = vunpack.c.l.b16 %v3171
      %v3317 = vunpack.c.l.b16 %v3172
      %v3318 = vunpack.c.l.b16 %v3173
      %v3319 = vunpack.c.l.b16 %v3174
      %v3320 = vunpack.c.l.b16 %v3175
      %v3321 = vunpack.c.l.b16 %v3176
      %v3322 = vunpack.c.l.b16 %v3177
      %v3323 = vunpack.c.l.b16 %v3178
      %v3324 = vunpack.c.l.b16 %v3179
      %v3325 = vpack.c.b16 %v3310, %v3309
      %v3326 = vpack.c.b16 %v3312, %v3311
      %v3327 = vpack.c.b16 %v3314, %v3313
      %v3328 = vpack.c.b16 %v3316, %v3315
      %v3329 = vpack.c.b16 %v3318, %v3317
      %v3330 = vpack.c.b16 %v3320, %v3319
      %v3331 = vpack.c.b16 %v3322, %v3321
      %v3332 = vpack.c.b16 %v3324, %v3323
      %v3357 = vunpack.c.l.b16 %v3132
      %v3358 = vunpack.c.l.b16 %v3133
      %v3359 = vunpack.c.l.b16 %v3134
      %v3360 = vunpack.c.l.b16 %v3135
      %v3361 = vunpack.c.l.b16 %v3136
      %v3362 = vunpack.c.l.b16 %v3137
      %v3363 = vunpack.c.l.b16 %v3138
      %v3364 = vunpack.c.l.b16 %v3139
      %v3365 = vunpack.c.l.b16 %v3140
      %v3366 = vunpack.c.l.b16 %v3141
      %v3367 = vunpack.c.l.b16 %v3142
      %v3368 = vunpack.c.l.b16 %v3143
      %v3369 = vunpack.c.l.b16 %v3144
      %v3370 = vunpack.c.l.b16 %v3145
      %v3371 = vunpack.c.l.b16 %v3146
      %v3372 = vunpack.c.l.b16 %v3147
      %v3373 = vpack.c.b16 %v3358, %v3357
      %v3374 = vpack.c.b16 %v3360, %v3359
      %v3375 = vpack.c.b16 %v3362, %v3361
      %v3376 = vpack.c.b16 %v3364, %v3363
      %v3377 = vpack.c.b16 %v3366, %v3365
      %v3378 = vpack.c.b16 %v3368, %v3367
      %v3379 = vpack.c.b16 %v3370, %v3369
      %v3380 = vpack.c.b16 %v3372, %v3371
      %3389 = vmatpush.bf16.msra.mxu0 %v3380
      %3390 = vmatpush.bf16.msra.mxu0 %v3379
      %3391 = vmatpush.bf16.msra.mxu0 %v3378
      %3392 = vmatpush.bf16.msra.mxu0 %v3377
      %3393 = vmatpush.bf16.msra.mxu0 %v3376
      %3394 = vmatpush.bf16.msra.mxu0 %v3375
      %3395 = vmatpush.bf16.msra.mxu0 %v3374
      %3396 = vmatpush.bf16.msra.mxu0 %v3373
      %3397 = vmatmul.bf16.gmra.mxu0 %v3325
      %v3398 = vpop.f32.mrf.mxu0
      %v3399 = vadd.f32 %v3216, %v3398
      %v3400 = vpop.f32.mrf.mxu0
      %v3401 = vadd.f32 %v3221, %v3400
      %3402 = vmatmul.bf16.gmra.mxu0 %v3326
      %v3403 = vpop.f32.mrf.mxu0
      %v3404 = vadd.f32 %v3226, %v3403
      %v3405 = vpop.f32.mrf.mxu0
      %v3406 = vadd.f32 %v3231, %v3405
      %3407 = vmatmul.bf16.gmra.mxu0 %v3327
      %v3408 = vpop.f32.mrf.mxu0
      %v3409 = vadd.f32 %v3236, %v3408
      %v3410 = vpop.f32.mrf.mxu0
      %v3411 = vadd.f32 %v3241, %v3410
      %3412 = vmatmul.bf16.gmra.mxu0 %v3328
      %v3413 = vpop.f32.mrf.mxu0
      %v3414 = vadd.f32 %v3246, %v3413
      %v3415 = vpop.f32.mrf.mxu0
      %v3416 = vadd.f32 %v3251, %v3415
      %3417 = vmatmul.bf16.gmra.mxu0 %v3329
      %v3418 = vpop.f32.mrf.mxu0
      %v3419 = vadd.f32 %v3256, %v3418
      %v3420 = vpop.f32.mrf.mxu0
      %v3421 = vadd.f32 %v3261, %v3420
      %3422 = vmatmul.bf16.gmra.mxu0 %v3330
      %v3423 = vpop.f32.mrf.mxu0
      %v3424 = vadd.f32 %v3266, %v3423
      %v3425 = vpop.f32.mrf.mxu0
      %v3426 = vadd.f32 %v3271, %v3425
      %3427 = vmatmul.bf16.gmra.mxu0 %v3331
      %v3428 = vpop.f32.mrf.mxu0
      %v3429 = vadd.f32 %v3276, %v3428
      %v3430 = vpop.f32.mrf.mxu0
      %v3431 = vadd.f32 %v3281, %v3430
      %3432 = vmatmul.bf16.gmra.mxu0 %v3332
      %v3433 = vpop.f32.mrf.mxu0
      %v3434 = vadd.f32 %v3286, %v3433
      %v3435 = vpop.f32.mrf.mxu0
      %v3436 = vadd.f32 %v3291, %v3435
      %3437 = vdwg.mxu0
      %v3438 = vmul.f32 %v2292, %v3399
      %v3439 = vmul.f32 %v2294, %v3401
      %v3440 = vmul.f32 %v2296, %v3404
      %v3441 = vmul.f32 %v2298, %v3406
      %v3442 = vmul.f32 %v2300, %v3409
      %v3443 = vmul.f32 %v2302, %v3411
      %v3444 = vmul.f32 %v2304, %v3414
      %v3445 = vmul.f32 %v2306, %v3416
      %v3446 = vmul.f32 %v2308, %v3419
      %v3447 = vmul.f32 %v2310, %v3421
      %v3448 = vmul.f32 %v2312, %v3424
      %v3449 = vmul.f32 %v2314, %v3426
      %v3450 = vmul.f32 %v2316, %v3429
      %v3451 = vmul.f32 %v2318, %v3431
      %v3452 = vmul.f32 %v2320, %v3434
      %v3453 = vmul.f32 %v2322, %v3436
      %v3454 = vpack.c.bf16 %v3439, %v3438
      %v3455 = vpack.c.bf16 %v3441, %v3440
      %v3456 = vpack.c.bf16 %v3443, %v3442
      %v3457 = vpack.c.bf16 %v3445, %v3444
      %v3458 = vpack.c.bf16 %v3447, %v3446
      %v3459 = vpack.c.bf16 %v3449, %v3448
      %v3460 = vpack.c.bf16 %v3451, %v3450
      %v3461 = vpack.c.bf16 %v3453, %v3452
      %v3463 = vperm.slane %v3212, 0
      %v3481 = vunpack.c.l.b16 %v3196
      %v3482 = vunpack.c.l.b16 %v3197
      %v3483 = vunpack.c.l.b16 %v3198
      %v3484 = vunpack.c.l.b16 %v3199
      %v3485 = vunpack.c.l.b16 %v3200
      %v3486 = vunpack.c.l.b16 %v3201
      %v3487 = vunpack.c.l.b16 %v3202
      %v3488 = vunpack.c.l.b16 %v3203
      %v3489 = vunpack.c.l.b16 %v3204
      %v3490 = vunpack.c.l.b16 %v3205
      %v3491 = vunpack.c.l.b16 %v3206
      %v3492 = vunpack.c.l.b16 %v3207
      %v3493 = vunpack.c.l.b16 %v3208
      %v3494 = vunpack.c.l.b16 %v3209
      %v3495 = vunpack.c.l.b16 %v3210
      %v3496 = vunpack.c.l.b16 %v3211
      %v3497 = vpack.c.b16 %v3482, %v3481
      %v3498 = vpack.c.b16 %v3484, %v3483
      %v3499 = vpack.c.b16 %v3486, %v3485
      %v3500 = vpack.c.b16 %v3488, %v3487
      %v3501 = vpack.c.b16 %v3490, %v3489
      %v3502 = vpack.c.b16 %v3492, %v3491
      %v3503 = vpack.c.b16 %v3494, %v3493
      %v3504 = vpack.c.b16 %v3496, %v3495
      %3513 = vmatpush.bf16.msra.mxu0 %v3504
      %3514 = vmatpush.bf16.msra.mxu0 %v3503
      %3515 = vmatpush.bf16.msra.mxu0 %v3502
      %3516 = vmatpush.bf16.msra.mxu0 %v3501
      %3517 = vmatpush.bf16.msra.mxu0 %v3500
      %3518 = vmatpush.bf16.msra.mxu0 %v3499
      %3519 = vmatpush.bf16.msra.mxu0 %v3498
      %3520 = vmatpush.bf16.msra.mxu0 %v3497
      %3521 = vmatmul.bf16.gmra.mxu0 %v3454
      %v3522 = vpop.f32.mrf.mxu0
      %v3523 = vadd.f32 %v3463, %v3522
      %v3524 = vpop.f32.mrf.mxu0
      %v3525 = vadd.f32 %v3463, %v3524
      %3526 = vmatmul.bf16.gmra.mxu0 %v3455
      %v3527 = vpop.f32.mrf.mxu0
      %v3528 = vadd.f32 %v3463, %v3527
      %v3529 = vpop.f32.mrf.mxu0
      %v3530 = vadd.f32 %v3463, %v3529
      %3531 = vmatmul.bf16.gmra.mxu0 %v3456
      %v3532 = vpop.f32.mrf.mxu0
      %v3533 = vadd.f32 %v3463, %v3532
      %v3534 = vpop.f32.mrf.mxu0
      %v3535 = vadd.f32 %v3463, %v3534
      %3536 = vmatmul.bf16.gmra.mxu0 %v3457
      %v3537 = vpop.f32.mrf.mxu0
      %v3538 = vadd.f32 %v3463, %v3537
      %v3539 = vpop.f32.mrf.mxu0
      %v3540 = vadd.f32 %v3463, %v3539
      %3541 = vmatmul.bf16.gmra.mxu0 %v3458
      %v3542 = vpop.f32.mrf.mxu0
      %v3543 = vadd.f32 %v3463, %v3542
      %v3544 = vpop.f32.mrf.mxu0
      %v3545 = vadd.f32 %v3463, %v3544
      %3546 = vmatmul.bf16.gmra.mxu0 %v3459
      %v3547 = vpop.f32.mrf.mxu0
      %v3548 = vadd.f32 %v3463, %v3547
      %v3549 = vpop.f32.mrf.mxu0
      %v3550 = vadd.f32 %v3463, %v3549
      %3551 = vmatmul.bf16.gmra.mxu0 %v3460
      %v3552 = vpop.f32.mrf.mxu0
      %v3553 = vadd.f32 %v3463, %v3552
      %v3554 = vpop.f32.mrf.mxu0
      %v3555 = vadd.f32 %v3463, %v3554
      %3556 = vmatmul.bf16.gmra.mxu0 %v3461
      %v3557 = vpop.f32.mrf.mxu0
      %v3558 = vadd.f32 %v3463, %v3557
      %v3559 = vpop.f32.mrf.mxu0
      %v3560 = vadd.f32 %v3463, %v3559
      %3561 = vdwg.mxu0
      %v3562 = vadd.f32 %v3523, %v669
      %v3563 = vadd.f32 %v3525, %v670
      %v3564 = vadd.f32 %v3528, %v671
      %v3565 = vadd.f32 %v3530, %v672
      %v3566 = vadd.f32 %v3533, %v673
      %v3567 = vadd.f32 %v3535, %v674
      %v3568 = vadd.f32 %v3538, %v675
      %v3569 = vadd.f32 %v3540, %v676
      %v3570 = vadd.f32 %v3543, %v677
      %v3571 = vadd.f32 %v3545, %v678
      %v3572 = vadd.f32 %v3548, %v679
      %v3573 = vadd.f32 %v3550, %v680
      %v3574 = vadd.f32 %v3553, %v681
      %v3575 = vadd.f32 %v3555, %v682
      %v3576 = vadd.f32 %v3558, %v683
      %v3577 = vadd.f32 %v3560, %v684
      %3578 = vst [vmem:[#allocation2] sm:$0xff] %v3562
      %3579 = vst [vmem:[#allocation2 + $0x8] sm:$0xff] %v3563
      %3580 = vst [vmem:[#allocation2 + $0x10] sm:$0xff] %v3564
      %3581 = vst [vmem:[#allocation2 + $0x18] sm:$0xff] %v3565
      %3582 = vst [vmem:[#allocation2 + $0x20] sm:$0xff] %v3566
      %3583 = vst [vmem:[#allocation2 + $0x28] sm:$0xff] %v3567
      %3584 = vst [vmem:[#allocation2 + $0x30] sm:$0xff] %v3568
      %3585 = vst [vmem:[#allocation2 + $0x38] sm:$0xff] %v3569
      %3586 = vst [vmem:[#allocation2 + $0x40] sm:$0xff] %v3570
      %3587 = vst [vmem:[#allocation2 + $0x48] sm:$0xff] %v3571
      %3588 = vst [vmem:[#allocation2 + $0x50] sm:$0xff] %v3572
      %3589 = vst [vmem:[#allocation2 + $0x58] sm:$0xff] %v3573
      %3590 = vst [vmem:[#allocation2 + $0x60] sm:$0xff] %v3574
      %3591 = vst [vmem:[#allocation2 + $0x68] sm:$0xff] %v3575
      %3592 = vst [vmem:[#allocation2 + $0x70] sm:$0xff] %v3576
      %3593 = vst [vmem:[#allocation2 + $0x78] sm:$0xff] %v3577
      %v3610 = vunpack.c.l.b16 %v3148
      %v3611 = vunpack.c.l.b16 %v3149
      %v3612 = vunpack.c.l.b16 %v3150
      %v3613 = vunpack.c.l.b16 %v3151
      %v3614 = vunpack.c.l.b16 %v3152
      %v3615 = vunpack.c.l.b16 %v3153
      %v3616 = vunpack.c.l.b16 %v3154
      %v3617 = vunpack.c.l.b16 %v3155
      %v3618 = vunpack.c.l.b16 %v3156
      %v3619 = vunpack.c.l.b16 %v3157
      %v3620 = vunpack.c.l.b16 %v3158
      %v3621 = vunpack.c.l.b16 %v3159
      %v3622 = vunpack.c.l.b16 %v3160
      %v3623 = vunpack.c.l.b16 %v3161
      %v3624 = vunpack.c.l.b16 %v3162
      %v3625 = vunpack.c.l.b16 %v3163
      %v3626 = vpack.c.b16 %v3611, %v3610
      %v3627 = vpack.c.b16 %v3613, %v3612
      %v3628 = vpack.c.b16 %v3615, %v3614
      %v3629 = vpack.c.b16 %v3617, %v3616
      %v3630 = vpack.c.b16 %v3619, %v3618
      %v3631 = vpack.c.b16 %v3621, %v3620
      %v3632 = vpack.c.b16 %v3623, %v3622
      %v3633 = vpack.c.b16 %v3625, %v3624
      %3642 = vmatpush.bf16.msra.mxu0 %v3633
      %3643 = vmatpush.bf16.msra.mxu0 %v3632
      %3644 = vmatpush.bf16.msra.mxu0 %v3631
      %3645 = vmatpush.bf16.msra.mxu0 %v3630
      %3646 = vmatpush.bf16.msra.mxu0 %v3629
      %3647 = vmatpush.bf16.msra.mxu0 %v3628
      %3648 = vmatpush.bf16.msra.mxu0 %v3627
      %3649 = vmatpush.bf16.msra.mxu0 %v3626
      %3650 = vmatmul.bf16.gmra.mxu0 %v3325
      %v3651 = vpop.f32.mrf.mxu0
      %v3652 = vadd.f32 %v3216, %v3651
      %v3653 = vpop.f32.mrf.mxu0
      %v3654 = vadd.f32 %v3221, %v3653
      %3655 = vmatmul.bf16.gmra.mxu0 %v3326
      %v3656 = vpop.f32.mrf.mxu0
      %v3657 = vadd.f32 %v3226, %v3656
      %v3658 = vpop.f32.mrf.mxu0
      %v3659 = vadd.f32 %v3231, %v3658
      %3660 = vmatmul.bf16.gmra.mxu0 %v3327
      %v3661 = vpop.f32.mrf.mxu0
      %v3662 = vadd.f32 %v3236, %v3661
      %v3663 = vpop.f32.mrf.mxu0
      %v3664 = vadd.f32 %v3241, %v3663
      %3665 = vmatmul.bf16.gmra.mxu0 %v3328
      %v3666 = vpop.f32.mrf.mxu0
      %v3667 = vadd.f32 %v3246, %v3666
      %v3668 = vpop.f32.mrf.mxu0
      %v3669 = vadd.f32 %v3251, %v3668
      %3670 = vmatmul.bf16.gmra.mxu0 %v3329
      %v3671 = vpop.f32.mrf.mxu0
      %v3672 = vadd.f32 %v3256, %v3671
      %v3673 = vpop.f32.mrf.mxu0
      %v3674 = vadd.f32 %v3261, %v3673
      %3675 = vmatmul.bf16.gmra.mxu0 %v3330
      %v3676 = vpop.f32.mrf.mxu0
      %v3677 = vadd.f32 %v3266, %v3676
      %v3678 = vpop.f32.mrf.mxu0
      %v3679 = vadd.f32 %v3271, %v3678
      %3680 = vmatmul.bf16.gmra.mxu0 %v3331
      %v3681 = vpop.f32.mrf.mxu0
      %v3682 = vadd.f32 %v3276, %v3681
      %v3683 = vpop.f32.mrf.mxu0
      %v3684 = vadd.f32 %v3281, %v3683
      %3685 = vmatmul.bf16.gmra.mxu0 %v3332
      %v3686 = vpop.f32.mrf.mxu0
      %v3687 = vadd.f32 %v3286, %v3686
      %v3688 = vpop.f32.mrf.mxu0
      %v3689 = vadd.f32 %v3291, %v3688
      %3690 = vdwg.mxu0
      %v3691 = vmul.f32 %v2324, %v3652
      %v3692 = vmul.f32 %v2326, %v3654
      %v3693 = vmul.f32 %v2328, %v3657
      %v3694 = vmul.f32 %v2330, %v3659
      %v3695 = vmul.f32 %v2332, %v3662
      %v3696 = vmul.f32 %v2334, %v3664
      %v3697 = vmul.f32 %v2336, %v3667
      %v3698 = vmul.f32 %v2338, %v3669
      %v3699 = vmul.f32 %v2340, %v3672
      %v3700 = vmul.f32 %v2342, %v3674
      %v3701 = vmul.f32 %v2344, %v3677
      %v3702 = vmul.f32 %v2346, %v3679
      %v3703 = vmul.f32 %v2348, %v3682
      %v3704 = vmul.f32 %v2350, %v3684
      %v3705 = vmul.f32 %v2352, %v3687
      %v3706 = vmul.f32 %v2354, %v3689
      %v3707 = vpack.c.bf16 %v3692, %v3691
      %v3708 = vpack.c.bf16 %v3694, %v3693
      %v3709 = vpack.c.bf16 %v3696, %v3695
      %v3710 = vpack.c.bf16 %v3698, %v3697
      %v3711 = vpack.c.bf16 %v3700, %v3699
      %v3712 = vpack.c.bf16 %v3702, %v3701
      %v3713 = vpack.c.bf16 %v3704, %v3703
      %v3714 = vpack.c.bf16 %v3706, %v3705
      %3715 = vmatpush.bf16.msra.mxu0 %v3504
      %3716 = vmatpush.bf16.msra.mxu0 %v3503
      %3717 = vmatpush.bf16.msra.mxu0 %v3502
      %3718 = vmatpush.bf16.msra.mxu0 %v3501
      %3719 = vmatpush.bf16.msra.mxu0 %v3500
      %3720 = vmatpush.bf16.msra.mxu0 %v3499
      %3721 = vmatpush.bf16.msra.mxu0 %v3498
      %3722 = vmatpush.bf16.msra.mxu0 %v3497
      %3723 = vmatmul.bf16.gmra.mxu0 %v3707
      %v3724 = vpop.f32.mrf.mxu0
      %v3725 = vadd.f32 %v3463, %v3724
      %v3726 = vpop.f32.mrf.mxu0
      %v3727 = vadd.f32 %v3463, %v3726
      %3728 = vmatmul.bf16.gmra.mxu0 %v3708
      %v3729 = vpop.f32.mrf.mxu0
      %v3730 = vadd.f32 %v3463, %v3729
      %v3731 = vpop.f32.mrf.mxu0
      %v3732 = vadd.f32 %v3463, %v3731
      %3733 = vmatmul.bf16.gmra.mxu0 %v3709
      %v3734 = vpop.f32.mrf.mxu0
      %v3735 = vadd.f32 %v3463, %v3734
      %v3736 = vpop.f32.mrf.mxu0
      %v3737 = vadd.f32 %v3463, %v3736
      %3738 = vmatmul.bf16.gmra.mxu0 %v3710
      %v3739 = vpop.f32.mrf.mxu0
      %v3740 = vadd.f32 %v3463, %v3739
      %v3741 = vpop.f32.mrf.mxu0
      %v3742 = vadd.f32 %v3463, %v3741
      %3743 = vmatmul.bf16.gmra.mxu0 %v3711
      %v3744 = vpop.f32.mrf.mxu0
      %v3745 = vadd.f32 %v3463, %v3744
      %v3746 = vpop.f32.mrf.mxu0
      %v3747 = vadd.f32 %v3463, %v3746
      %3748 = vmatmul.bf16.gmra.mxu0 %v3712
      %v3749 = vpop.f32.mrf.mxu0
      %v3750 = vadd.f32 %v3463, %v3749
      %v3751 = vpop.f32.mrf.mxu0
      %v3752 = vadd.f32 %v3463, %v3751
      %3753 = vmatmul.bf16.gmra.mxu0 %v3713
      %v3754 = vpop.f32.mrf.mxu0
      %v3755 = vadd.f32 %v3463, %v3754
      %v3756 = vpop.f32.mrf.mxu0
      %v3757 = vadd.f32 %v3463, %v3756
      %3758 = vmatmul.bf16.gmra.mxu0 %v3714
      %v3759 = vpop.f32.mrf.mxu0
      %v3760 = vadd.f32 %v3463, %v3759
      %v3761 = vpop.f32.mrf.mxu0
      %v3762 = vadd.f32 %v3463, %v3761
      %3763 = vdwg.mxu0
      %v3764 = vadd.f32 %v3725, %v685
      %v3765 = vadd.f32 %v3727, %v686
      %v3766 = vadd.f32 %v3730, %v687
      %v3767 = vadd.f32 %v3732, %v688
      %v3768 = vadd.f32 %v3735, %v689
      %v3769 = vadd.f32 %v3737, %v690
      %v3770 = vadd.f32 %v3740, %v691
      %v3771 = vadd.f32 %v3742, %v692
      %v3772 = vadd.f32 %v3745, %v693
      %v3773 = vadd.f32 %v3747, %v694
      %v3774 = vadd.f32 %v3750, %v695
      %v3775 = vadd.f32 %v3752, %v696
      %v3776 = vadd.f32 %v3755, %v697
      %v3777 = vadd.f32 %v3757, %v698
      %v3778 = vadd.f32 %v3760, %v699
      %v3779 = vadd.f32 %v3762, %v700
      %3780 = vst [vmem:[#allocation2 + $0x80] sm:$0xff] %v3764
      %3781 = vst [vmem:[#allocation2 + $0x88] sm:$0xff] %v3765
      %3782 = vst [vmem:[#allocation2 + $0x90] sm:$0xff] %v3766
      %3783 = vst [vmem:[#allocation2 + $0x98] sm:$0xff] %v3767
      %3784 = vst [vmem:[#allocation2 + $0xa0] sm:$0xff] %v3768
      %3785 = vst [vmem:[#allocation2 + $0xa8] sm:$0xff] %v3769
      %3786 = vst [vmem:[#allocation2 + $0xb0] sm:$0xff] %v3770
      %3787 = vst [vmem:[#allocation2 + $0xb8] sm:$0xff] %v3771
      %3788 = vst [vmem:[#allocation2 + $0xc0] sm:$0xff] %v3772
      %3789 = vst [vmem:[#allocation2 + $0xc8] sm:$0xff] %v3773
      %3790 = vst [vmem:[#allocation2 + $0xd0] sm:$0xff] %v3774
      %3791 = vst [vmem:[#allocation2 + $0xd8] sm:$0xff] %v3775
      %3792 = vst [vmem:[#allocation2 + $0xe0] sm:$0xff] %v3776
      %3793 = vst [vmem:[#allocation2 + $0xe8] sm:$0xff] %v3777
      %3794 = vst [vmem:[#allocation2 + $0xf0] sm:$0xff] %v3778
      %3795 = vst [vmem:[#allocation2 + $0xf8] sm:$0xff] %v3779
      %p3796 = scmp.eq.s32.totalorder %s27, 2
      // Predicated region
      $region69: #{gmlp_language_model.3} parent=63 // pred_check
        %p3797 = pneg %p3796
      $region70: #{gmlp_language_model.3} parent=63 // pred_check_branch
        %3799 = sbr.rel (%p3797) target = $region72
      $region71: #{gmlp_language_model.3} parent=63 // pred_region
        %v3800 = vld [vmem:[#allocation2] sm:$0xff]
        %v3801 = vld [vmem:[#allocation2 + $0x8] sm:$0xff]
        %v3802 = vld [vmem:[#allocation2 + $0x10] sm:$0xff]
        %v3803 = vld [vmem:[#allocation2 + $0x18] sm:$0xff]
        %v3804 = vld [vmem:[#allocation2 + $0x20] sm:$0xff]
        %v3805 = vld [vmem:[#allocation2 + $0x28] sm:$0xff]
        %v3806 = vld [vmem:[#allocation2 + $0x30] sm:$0xff]
        %v3807 = vld [vmem:[#allocation2 + $0x38] sm:$0xff]
        %v3808 = vld [vmem:[#allocation2 + $0x40] sm:$0xff]
        %v3809 = vld [vmem:[#allocation2 + $0x48] sm:$0xff]
        %v3810 = vld [vmem:[#allocation2 + $0x50] sm:$0xff]
        %v3811 = vld [vmem:[#allocation2 + $0x58] sm:$0xff]
        %v3812 = vld [vmem:[#allocation2 + $0x60] sm:$0xff]
        %v3813 = vld [vmem:[#allocation2 + $0x68] sm:$0xff]
        %v3814 = vld [vmem:[#allocation2 + $0x70] sm:$0xff]
        %v3815 = vld [vmem:[#allocation2 + $0x78] sm:$0xff]
        %v3816 = vld [vmem:[#allocation2 + $0x80] sm:$0xff]
        %v3817 = vld [vmem:[#allocation2 + $0x88] sm:$0xff]
        %v3818 = vld [vmem:[#allocation2 + $0x90] sm:$0xff]
        %v3819 = vld [vmem:[#allocation2 + $0x98] sm:$0xff]
        %v3820 = vld [vmem:[#allocation2 + $0xa0] sm:$0xff]
        %v3821 = vld [vmem:[#allocation2 + $0xa8] sm:$0xff]
        %v3822 = vld [vmem:[#allocation2 + $0xb0] sm:$0xff]
        %v3823 = vld [vmem:[#allocation2 + $0xb8] sm:$0xff]
        %v3824 = vld [vmem:[#allocation2 + $0xc0] sm:$0xff]
        %v3825 = vld [vmem:[#allocation2 + $0xc8] sm:$0xff]
        %v3826 = vld [vmem:[#allocation2 + $0xd0] sm:$0xff]
        %v3827 = vld [vmem:[#allocation2 + $0xd8] sm:$0xff]
        %v3828 = vld [vmem:[#allocation2 + $0xe0] sm:$0xff]
        %v3829 = vld [vmem:[#allocation2 + $0xe8] sm:$0xff]
        %v3830 = vld [vmem:[#allocation2 + $0xf0] sm:$0xff]
        %v3831 = vld [vmem:[#allocation2 + $0xf8] sm:$0xff]
        %v3832 = vpack.c.bf16 %v3800, %v3800
        %v3833 = vpack.c.bf16 %v3801, %v3801
        %v3834 = vpack.c.bf16 %v3802, %v3802
        %v3835 = vpack.c.bf16 %v3803, %v3803
        %v3836 = vpack.c.bf16 %v3804, %v3804
        %v3837 = vpack.c.bf16 %v3805, %v3805
        %v3838 = vpack.c.bf16 %v3806, %v3806
        %v3839 = vpack.c.bf16 %v3807, %v3807
        %v3840 = vpack.c.bf16 %v3808, %v3808
        %v3841 = vpack.c.bf16 %v3809, %v3809
        %v3842 = vpack.c.bf16 %v3810, %v3810
        %v3843 = vpack.c.bf16 %v3811, %v3811
        %v3844 = vpack.c.bf16 %v3812, %v3812
        %v3845 = vpack.c.bf16 %v3813, %v3813
        %v3846 = vpack.c.bf16 %v3814, %v3814
        %v3847 = vpack.c.bf16 %v3815, %v3815
        %v3848 = vpack.c.bf16 %v3816, %v3816
        %v3849 = vpack.c.bf16 %v3817, %v3817
        %v3850 = vpack.c.bf16 %v3818, %v3818
        %v3851 = vpack.c.bf16 %v3819, %v3819
        %v3852 = vpack.c.bf16 %v3820, %v3820
        %v3853 = vpack.c.bf16 %v3821, %v3821
        %v3854 = vpack.c.bf16 %v3822, %v3822
        %v3855 = vpack.c.bf16 %v3823, %v3823
        %v3856 = vpack.c.bf16 %v3824, %v3824
        %v3857 = vpack.c.bf16 %v3825, %v3825
        %v3858 = vpack.c.bf16 %v3826, %v3826
        %v3859 = vpack.c.bf16 %v3827, %v3827
        %v3860 = vpack.c.bf16 %v3828, %v3828
        %v3861 = vpack.c.bf16 %v3829, %v3829
        %v3862 = vpack.c.bf16 %v3830, %v3830
        %v3863 = vpack.c.bf16 %v3831, %v3831
        %3864 = vst [vmem:[%s567] sm:$0xf] %v3832
        %3865 = vst [vmem:[%s567 + $0x4] sm:$0xf] %v3833
        %3866 = vst [vmem:[%s567 + $0x8] sm:$0xf] %v3834
        %3867 = vst [vmem:[%s567 + $0xc] sm:$0xf] %v3835
        %3868 = vst [vmem:[%s567 + $0x10] sm:$0xf] %v3836
        %3869 = vst [vmem:[%s567 + $0x14] sm:$0xf] %v3837
        %3870 = vst [vmem:[%s567 + $0x18] sm:$0xf] %v3838
        %3871 = vst [vmem:[%s567 + $0x1c] sm:$0xf] %v3839
        %3872 = vst [vmem:[%s567 + $0x20] sm:$0xf] %v3840
        %3873 = vst [vmem:[%s567 + $0x24] sm:$0xf] %v3841
        %3874 = vst [vmem:[%s567 + $0x28] sm:$0xf] %v3842
        %3875 = vst [vmem:[%s567 + $0x2c] sm:$0xf] %v3843
        %3876 = vst [vmem:[%s567 + $0x30] sm:$0xf] %v3844
        %3877 = vst [vmem:[%s567 + $0x34] sm:$0xf] %v3845
        %3878 = vst [vmem:[%s567 + $0x38] sm:$0xf] %v3846
        %3879 = vst [vmem:[%s567 + $0x3c] sm:$0xf] %v3847
        %3880 = vst [vmem:[%s567 + $0x40] sm:$0xf] %v3848
        %3881 = vst [vmem:[%s567 + $0x44] sm:$0xf] %v3849
        %3882 = vst [vmem:[%s567 + $0x48] sm:$0xf] %v3850
        %3883 = vst [vmem:[%s567 + $0x4c] sm:$0xf] %v3851
        %3884 = vst [vmem:[%s567 + $0x50] sm:$0xf] %v3852
        %3885 = vst [vmem:[%s567 + $0x54] sm:$0xf] %v3853
        %3886 = vst [vmem:[%s567 + $0x58] sm:$0xf] %v3854
        %3887 = vst [vmem:[%s567 + $0x5c] sm:$0xf] %v3855
        %3888 = vst [vmem:[%s567 + $0x60] sm:$0xf] %v3856
        %3889 = vst [vmem:[%s567 + $0x64] sm:$0xf] %v3857
        %3890 = vst [vmem:[%s567 + $0x68] sm:$0xf] %v3858
        %3891 = vst [vmem:[%s567 + $0x6c] sm:$0xf] %v3859
        %3892 = vst [vmem:[%s567 + $0x70] sm:$0xf] %v3860
        %3893 = vst [vmem:[%s567 + $0x74] sm:$0xf] %v3861
        %3894 = vst [vmem:[%s567 + $0x78] sm:$0xf] %v3862
        %3895 = vst [vmem:[%s567 + $0x7c] sm:$0xf] %v3863
      $region72: #{gmlp_language_model.3} parent=63 // pred_fallthru
        _
      %s3896 = smul.u32 32, %s26
      %p3897 = scmp.lt.s32.totalorder %s3896, 63
      %s3898 = scalar_select %p3897, %s3896, 63
      %s3899 = smul.addr %s3898, 4
      %s3900 = scalar_lea.vmem %s11, %s3899
      // Predicated region
      $region73: #{gmlp_language_model.3} parent=63 // pred_check
        %p3901 = pneg %p338
      $region74: #{gmlp_language_model.3} parent=63 // pred_check_branch
        %3903 = sbr.rel (%p3901) target = $region76
      $region75: #{gmlp_language_model.3} parent=63 // pred_region
        %s3904 = smul.u32 32, %s26
      $region76: #{gmlp_language_model.3} parent=63 // pred_fallthru
        _
    $region64: #{gmlp_language_model.3} parent=5 // pred_fallthru
      _
    %p3905 = scmp.le.s32.totalorder 2, %s17
    // Predicated region
    $region77: #{gmlp_language_model.3} parent=5 // pred_check
      %p3906 = pneg %p3905
    $region78: #{gmlp_language_model.3} parent=5 // pred_check_branch
      %3908 = sbr.rel (%p3906) target = $region80
    $region79: #{gmlp_language_model.3} parent=5 // pred_region
      %s3909 = ssub.s32 %s17, 2
      // Predicated region
      $region81: #{gmlp_language_model.3} parent=79 // pred_check
        %p3910 = pneg %p344
      $region82: #{gmlp_language_model.3} parent=79 // pred_check_branch
        %3912 = sbr.rel (%p3910) target = $region84
      $region83: #{gmlp_language_model.3} parent=79 // pred_region
        %s3913 = smul.u32 32, %s28
        %p3914 = scmp.lt.s32.totalorder %s3913, 63
        %s3915 = scalar_select %p3914, %s3913, 63
        %s3916 = smul.addr %s3915, 4
        %s3917 = scalar_lea.vmem %s11, %s3916
      $region84: #{gmlp_language_model.3} parent=79 // pred_fallthru
        _
    $region80: #{gmlp_language_model.3} parent=5 // pred_fallthru
      _
  $region6: #{gmlp_language_model.3} parent=0 // loop_footer
    %s21 = sadd.s32 1, %s17
  $region7: #{gmlp_language_model.3} parent=0 // loop_footer_branch
    %16 = sbr.rel target = $region3
  $region8: #{gmlp_language_model.3} parent=0 // loop_exit
    _

// kernel: gmlp_language_model.4
$region0: #{gmlp_language_model.4}
  #allocation0 [shape = 'u32[]', space=smem, size = 0x4, offset = 0x4, fixed_abs, tag = 'smem constant byte address 0x4 - core index']
  #allocation1 [shape = 'u32[72,128]{1,0:T(1,128)}', space=vmem, size = 0x9000, scoped, tag = 'internal scratch']
  #allocation2 [shape = 'f32[256,1]{1,0:T(8,128)}', space=vmem, size = 0x20000, scoped, tag = 'scratch operand']
  #allocation3 [shape = 'f32[256,1]{1,0:T(8,128)}', space=vmem, size = 0x20000, scoped, tag = 'scratch operand']
  %s0 = inlined_call_operand.vmem [shape: bf16[512,128], index: 0, kind: input, shape index: {}]
  %s1 = inlined_call_operand.vmem [shape: bf16[128,1024], index: 1, kind: input, shape index: {}]
  %s2 = inlined_call_operand.vmem [shape: f32[1,1024], index: 2, kind: input, shape index: {}]
  %s3 = inlined_call_operand.vmem [shape: bf16[512,1024], index: 3, kind: output, shape index: {0}]
  %s4 = inlined_call_operand.vmem [shape: f32[512,1], index: 4, kind: output, shape index: {1}]
  %5 = xla_tuple %s3, %s4
  %s6 = sld [smem:[#allocation0]]
  $region61: #{gmlp_language_model.4} parent=0
    _
  %s8 = ssub.s32 1, %s6
  %s9 = scalar_select 0, %s8, %s6
  loop: start=0, step=1, limit=4
  $region2: #{gmlp_language_model.4} parent=0 // loop_pre_header
    _
  $region3: #{gmlp_language_model.4} parent=0 // loop_header
    %s11 = sphi 0, %s15
    %p12 = scmp.ge.s32.totalorder %s11, 4
    %s18 = sphi 0, %s30
    %s19 = sphi 0, %s26
    %s20 = sphi 0, %s18
    %s21 = sphi 0, %s19
    %s22 = sphi 0, %s20
    %s23 = sphi 0, %s21
    %s33 = sphi 0, %s35
    %s36 = sphi 0, %s33
    %s37 = sphi 0, %s36
    %s53 = sphi 0, %s37
    %s59 = sphi 0, %s61
    %s62 = sphi 0, %s59
    %s63 = sphi 0, %s62
    %s79 = sphi 0, %s63
    %s85 = sphi 0, %s87
    %s88 = sphi 0, %s85
    %s89 = sphi 0, %s88
    %s105 = sphi 0, %s89
    %s113 = sphi 0, %s115
    %s116 = sphi 0, %s113
    %s117 = sphi 0, %s116
    %s133 = sphi 0, %s117
    %s139 = sphi 0, %s141
    %s142 = sphi 0, %s139
    %s143 = sphi 0, %s142
    %s159 = sphi 0, %s143
  $region4: #{gmlp_language_model.4} parent=0 // loop_header_branch
    %14 = sbr.rel (%p12) target = $region8
  $region5: #{gmlp_language_model.4} parent=0 // loop_body
    %s16 = ssub.s32 %s11, 1
    %s17 = ssub.s32 %s11, 2
    %s24 = sadd.s32 1, %s19
    %p25 = scmp.ge.s32.totalorder %s24, 1
    %s26 = scalar_select %p25, 0, %s24
    %s27 = sadd.s32 1, %s18
    %s28 = scalar_select %p25, %s27, %s18
    %p29 = scmp.ge.s32.totalorder %s28, 2
    %s30 = scalar_select %p29, 0, %s28
    %s31 = ssub.s32 %s18, %s30
    %p32 = scmp.eq.s32.totalorder %s31, 0
    %s34 = sadd.s32 %s33, 1
    %s35 = scalar_select %p32, %s33, %s34
    %p38 = pneg %p32
    %p39 = scmp.eq.s32.totalorder %s11, 1
    %p40 = por %p38, %p39
    %p41 = scmp.ne.s32.totalorder %s33, %s36
    %p42 = scmp.eq.s32.totalorder %s11, 0
    %p43 = por %p41, %p42
    %p44 = scmp.ne.s32.totalorder %s33, %s36
    %p45 = scmp.eq.s32.totalorder %s16, 1
    %p46 = por %p44, %p45
    %p47 = scmp.ne.s32.totalorder %s36, %s37
    %p48 = scmp.eq.s32.totalorder %s16, 0
    %p49 = por %p47, %p48
    %p50 = scmp.ne.s32.totalorder %s36, %s37
    %p51 = scmp.eq.s32.totalorder %s17, 1
    %p52 = por %p50, %p51
    %p54 = scmp.ne.s32.totalorder %s37, %s53
    %p55 = scmp.eq.s32.totalorder %s17, 0
    %p56 = por %p54, %p55
    %s57 = ssub.s32 %s19, %s26
    %p58 = scmp.eq.s32.totalorder %s57, 0
    %s60 = sadd.s32 %s59, 1
    %s61 = scalar_select %p58, %s59, %s60
    %p64 = pneg %p58
    %p65 = scmp.eq.s32.totalorder %s11, 1
    %p66 = por %p64, %p65
    %p67 = scmp.ne.s32.totalorder %s59, %s62
    %p68 = scmp.eq.s32.totalorder %s11, 0
    %p69 = por %p67, %p68
    %p70 = scmp.ne.s32.totalorder %s59, %s62
    %p71 = scmp.eq.s32.totalorder %s16, 1
    %p72 = por %p70, %p71
    %p73 = scmp.ne.s32.totalorder %s62, %s63
    %p74 = scmp.eq.s32.totalorder %s16, 0
    %p75 = por %p73, %p74
    %p76 = scmp.ne.s32.totalorder %s62, %s63
    %p77 = scmp.eq.s32.totalorder %s17, 1
    %p78 = por %p76, %p77
    %p80 = scmp.ne.s32.totalorder %s63, %s79
    %p81 = scmp.eq.s32.totalorder %s17, 0
    %p82 = por %p80, %p81
    %s83 = ssub.s32 %s19, %s26
    %p84 = scmp.eq.s32.totalorder %s83, 0
    %s86 = sadd.s32 %s85, 1
    %s87 = scalar_select %p84, %s85, %s86
    %p90 = pneg %p84
    %p91 = scmp.eq.s32.totalorder %s11, 1
    %p92 = por %p90, %p91
    %p93 = scmp.ne.s32.totalorder %s85, %s88
    %p94 = scmp.eq.s32.totalorder %s11, 0
    %p95 = por %p93, %p94
    %p96 = scmp.ne.s32.totalorder %s85, %s88
    %p97 = scmp.eq.s32.totalorder %s16, 1
    %p98 = por %p96, %p97
    %p99 = scmp.ne.s32.totalorder %s88, %s89
    %p100 = scmp.eq.s32.totalorder %s16, 0
    %p101 = por %p99, %p100
    %p102 = scmp.ne.s32.totalorder %s88, %s89
    %p103 = scmp.eq.s32.totalorder %s17, 1
    %p104 = por %p102, %p103
    %p106 = scmp.ne.s32.totalorder %s89, %s105
    %p107 = scmp.eq.s32.totalorder %s17, 0
    %p108 = por %p106, %p107
    %s109 = ssub.s32 %s18, %s30
    %s110 = ssub.s32 %s19, %s26
    %s111 = sor.u32 %s109, %s110
    %p112 = scmp.eq.s32.totalorder %s111, 0
    %s114 = sadd.s32 %s113, 1
    %s115 = scalar_select %p112, %s113, %s114
    %p118 = pneg %p112
    %p119 = scmp.eq.s32.totalorder %s11, 1
    %p120 = por %p118, %p119
    %p121 = scmp.ne.s32.totalorder %s113, %s116
    %p122 = scmp.eq.s32.totalorder %s11, 0
    %p123 = por %p121, %p122
    %p124 = scmp.ne.s32.totalorder %s113, %s116
    %p125 = scmp.eq.s32.totalorder %s16, 1
    %p126 = por %p124, %p125
    %p127 = scmp.ne.s32.totalorder %s116, %s117
    %p128 = scmp.eq.s32.totalorder %s16, 0
    %p129 = por %p127, %p128
    %p130 = scmp.ne.s32.totalorder %s116, %s117
    %p131 = scmp.eq.s32.totalorder %s17, 1
    %p132 = por %p130, %p131
    %p134 = scmp.ne.s32.totalorder %s117, %s133
    %p135 = scmp.eq.s32.totalorder %s17, 0
    %p136 = por %p134, %p135
    %s137 = ssub.s32 %s18, %s30
    %p138 = scmp.eq.s32.totalorder %s137, 0
    %s140 = sadd.s32 %s139, 1
    %s141 = scalar_select %p138, %s139, %s140
    %p144 = pneg %p138
    %p145 = scmp.eq.s32.totalorder %s11, 1
    %p146 = por %p144, %p145
    %p147 = scmp.ne.s32.totalorder %s139, %s142
    %p148 = scmp.eq.s32.totalorder %s11, 0
    %p149 = por %p147, %p148
    %p150 = scmp.ne.s32.totalorder %s139, %s142
    %p151 = scmp.eq.s32.totalorder %s16, 1
    %p152 = por %p150, %p151
    %p153 = scmp.ne.s32.totalorder %s142, %s143
    %p154 = scmp.eq.s32.totalorder %s16, 0
    %p155 = por %p153, %p154
    %p156 = scmp.ne.s32.totalorder %s142, %s143
    %p157 = scmp.eq.s32.totalorder %s17, 1
    %p158 = por %p156, %p157
    %p160 = scmp.ne.s32.totalorder %s143, %s159
    %p161 = scmp.eq.s32.totalorder %s17, 0
    %p162 = por %p160, %p161
    %p163 = scmp.le.s32.totalorder 1, %s11
    %p164 = scmp.lt.s32.totalorder %s11, 3
    %p165 = pnand %p163, %p164
    %p166 = pneg %p165
    // Predicated region
    $region9: #{gmlp_language_model.4} parent=5 // pred_check
      _
    $region10: #{gmlp_language_model.4} parent=5 // pred_check_branch
      %168 = sbr.rel (%p165) target = $region12
    $region11: #{gmlp_language_model.4} parent=5 // pred_region
      %s169 = ssub.s32 %s11, 1
      // Predicated region
      $region13: #{gmlp_language_model.4} parent=11 // pred_check
        %p170 = pneg %p75
      $region14: #{gmlp_language_model.4} parent=11 // pred_check_branch
        %172 = sbr.rel (%p170) target = $region16
      $region15: #{gmlp_language_model.4} parent=11 // pred_region
        %s173 = smul.u32 8, %s21
        %p174 = scmp.lt.s32.totalorder %s173, 7
        %s175 = scalar_select %p174, %s173, 7
        %s176 = smul.addr %s175, 4
        %s177 = scalar_lea.vmem %s1, %s176
        %s178 = smul.u32 8, %s21
      $region16: #{gmlp_language_model.4} parent=11 // pred_fallthru
        _
      // Predicated region
      $region17: #{gmlp_language_model.4} parent=11 // pred_check
        %p179 = pneg %p101
      $region18: #{gmlp_language_model.4} parent=11 // pred_check_branch
        %181 = sbr.rel (%p179) target = $region20
      $region19: #{gmlp_language_model.4} parent=11 // pred_region
        %s182 = smul.u32 8, %s21
        %p183 = scmp.lt.s32.totalorder %s182, 7
        %s184 = scalar_select %p183, %s182, 7
        %s185 = scalar_lea.vmem %s2, %s184
        %s186 = smul.u32 8, %s21
      $region20: #{gmlp_language_model.4} parent=11 // pred_fallthru
        _
    $region12: #{gmlp_language_model.4} parent=5 // pred_fallthru
      _
    %p187 = scmp.lt.s32.totalorder %s11, 2
    // Predicated region
    $region21: #{gmlp_language_model.4} parent=5 // pred_check
      %p188 = pneg %p187
    $region22: #{gmlp_language_model.4} parent=5 // pred_check_branch
      %190 = sbr.rel (%p188) target = $region24
    $region23: #{gmlp_language_model.4} parent=5 // pred_region
      // Predicated region
      $region25: #{gmlp_language_model.4} parent=23 // pred_check
        %p191 = pneg %p43
      $region26: #{gmlp_language_model.4} parent=23 // pred_check_branch
        %193 = sbr.rel (%p191) target = $region28
      $region27: #{gmlp_language_model.4} parent=23 // pred_region
        %s194 = smul.u32 32, %s18
        %p195 = scmp.lt.s32.totalorder %s194, 63
        %s196 = scalar_select %p195, %s194, 63
        %s197 = smul.addr %s196, 4
        %s198 = scalar_lea.vmem %s0, %s197
        %s199 = smul.u32 32, %s18
      $region28: #{gmlp_language_model.4} parent=23 // pred_fallthru
        _
    $region24: #{gmlp_language_model.4} parent=5 // pred_fallthru
      _
    %p200 = scmp.le.s32.totalorder 1, %s11
    %p201 = scmp.lt.s32.totalorder %s11, 3
    %p202 = pnand %p200, %p201
    %p203 = pneg %p202
    // Predicated region
    $region29: #{gmlp_language_model.4} parent=5 // pred_check
      _
    $region30: #{gmlp_language_model.4} parent=5 // pred_check_branch
      %205 = sbr.rel (%p202) target = $region32
    $region31: #{gmlp_language_model.4} parent=5 // pred_region
      %s206 = ssub.s32 %s11, 1
      %s207 = smul.u32 32, %s20
      %p208 = scmp.lt.s32.totalorder %s207, 63
      %s209 = scalar_select %p208, %s207, 63
      %s210 = smul.addr %s209, 4
      %s211 = scalar_lea.vmem %s0, %s210
      %p212 = pneg %p49
      %p213 = pneg %p46
      %s214 = smul.u32 8, %s21
      %p215 = scmp.lt.s32.totalorder %s214, 7
      %s216 = scalar_select %p215, %s214, 7
      %s217 = smul.addr %s216, 4
      %s218 = scalar_lea.vmem %s1, %s217
      %p219 = pneg %p75
      %p220 = pneg %p72
      %s221 = smul.u32 8, %s21
      %p222 = scmp.lt.s32.totalorder %s221, 7
      %s223 = scalar_select %p222, %s221, 7
      %s224 = scalar_lea.vmem %s2, %s223
      %p225 = pneg %p101
      %p226 = pneg %p98
      %p227 = pneg %p129
      %p228 = pneg %p126
      %s229 = smul.u32 32, %s20
      %s230 = smul.u32 8, %s21
      %p231 = scmp.lt.s32.totalorder %s229, 63
      %s232 = scalar_select %p231, %s229, 63
      %p233 = scmp.lt.s32.totalorder %s230, 7
      %s234 = scalar_select %p233, %s230, 7
      %s235 = smul.addr %s232, 8
      %s236 = sadd.s32 %s234, %s235
      %s237 = smul.addr %s236, 4
      %s238 = scalar_lea.vmem %s3, %s237
      %p239 = pneg %p155
      %p240 = pneg %p152
      %s241 = smul.u32 32, %s20
      %p242 = scmp.lt.s32.totalorder %s241, 63
      %s243 = scalar_select %p242, %s241, 63
      %s244 = smul.addr %s243, 8
      %s245 = scalar_lea.vmem %s4, %s244
      %s246 = smul.u32 32, %s20
      %p247 = scmp.lt.s32.totalorder %s246, 63
      %s248 = scalar_select %p247, %s246, 63
      %s249 = smul.addr %s248, 4
      %s250 = scalar_lea.vmem %s0, %s249
      %s251 = smul.u32 32, %s20
      %s252 = smul.u32 8, %s21
      %p253 = scmp.lt.s32.totalorder %s252, 7
      %s254 = scalar_select %p253, %s252, 7
      %s255 = smul.addr %s254, 4
      %s256 = scalar_lea.vmem %s1, %s255
      %s257 = smul.u32 8, %s21
      %s258 = smul.u32 8, %s21
      %p259 = scmp.lt.s32.totalorder %s258, 7
      %s260 = scalar_select %p259, %s258, 7
      %s261 = scalar_lea.vmem %s2, %s260
      %s262 = smul.u32 8, %s21
      %s263 = smul.u32 32, %s20
      %s264 = smul.u32 8, %s21
      %p265 = scmp.lt.s32.totalorder %s263, 63
      %s266 = scalar_select %p265, %s263, 63
      %p267 = scmp.lt.s32.totalorder %s264, 7
      %s268 = scalar_select %p267, %s264, 7
      %s269 = smul.addr %s266, 8
      %s270 = sadd.s32 %s268, %s269
      %s271 = smul.addr %s270, 4
      %s272 = scalar_lea.vmem %s3, %s271
      %s273 = smul.u32 32, %s20
      %s274 = smul.u32 8, %s21
      %s275 = smul.u32 32, %s20
      %p276 = scmp.lt.s32.totalorder %s275, 63
      %s277 = scalar_select %p276, %s275, 63
      %s278 = smul.addr %s277, 8
      %s279 = scalar_lea.vmem %s4, %s278
      %s280 = smul.u32 32, %s20
      %p281 = scmp.eq.s32.totalorder %s21, 0
      // Predicated region
      $region33: #{gmlp_language_model.4} parent=31 // pred_check
        %p282 = pneg %p281
      $region34: #{gmlp_language_model.4} parent=31 // pred_check_branch
        %284 = sbr.rel (%p282) target = $region36
      $region35: #{gmlp_language_model.4} parent=31 // pred_region
        %vm285 = vcmask 7168
        %286 = vst.msk [vmem:[#allocation2] sm:$0xff] %vm285, -inf
        %287 = vst.msk [vmem:[#allocation2 + $0x8] sm:$0xff] %vm285, -inf
        %288 = vst.msk [vmem:[#allocation2 + $0x10] sm:$0xff] %vm285, -inf
        %289 = vst.msk [vmem:[#allocation2 + $0x18] sm:$0xff] %vm285, -inf
        %290 = vst.msk [vmem:[#allocation2 + $0x20] sm:$0xff] %vm285, -inf
        %291 = vst.msk [vmem:[#allocation2 + $0x28] sm:$0xff] %vm285, -inf
        %292 = vst.msk [vmem:[#allocation2 + $0x30] sm:$0xff] %vm285, -inf
        %293 = vst.msk [vmem:[#allocation2 + $0x38] sm:$0xff] %vm285, -inf
        %294 = vst.msk [vmem:[#allocation2 + $0x40] sm:$0xff] %vm285, -inf
        %295 = vst.msk [vmem:[#allocation2 + $0x48] sm:$0xff] %vm285, -inf
        %296 = vst.msk [vmem:[#allocation2 + $0x50] sm:$0xff] %vm285, -inf
        %297 = vst.msk [vmem:[#allocation2 + $0x58] sm:$0xff] %vm285, -inf
        %298 = vst.msk [vmem:[#allocation2 + $0x60] sm:$0xff] %vm285, -inf
        %299 = vst.msk [vmem:[#allocation2 + $0x68] sm:$0xff] %vm285, -inf
        %300 = vst.msk [vmem:[#allocation2 + $0x70] sm:$0xff] %vm285, -inf
        %301 = vst.msk [vmem:[#allocation2 + $0x78] sm:$0xff] %vm285, -inf
        %302 = vst.msk [vmem:[#allocation2 + $0x80] sm:$0xff] %vm285, -inf
        %303 = vst.msk [vmem:[#allocation2 + $0x88] sm:$0xff] %vm285, -inf
        %304 = vst.msk [vmem:[#allocation2 + $0x90] sm:$0xff] %vm285, -inf
        %305 = vst.msk [vmem:[#allocation2 + $0x98] sm:$0xff] %vm285, -inf
        %306 = vst.msk [vmem:[#allocation2 + $0xa0] sm:$0xff] %vm285, -inf
        %307 = vst.msk [vmem:[#allocation2 + $0xa8] sm:$0xff] %vm285, -inf
        %308 = vst.msk [vmem:[#allocation2 + $0xb0] sm:$0xff] %vm285, -inf
        %309 = vst.msk [vmem:[#allocation2 + $0xb8] sm:$0xff] %vm285, -inf
        %310 = vst.msk [vmem:[#allocation2 + $0xc0] sm:$0xff] %vm285, -inf
        %311 = vst.msk [vmem:[#allocation2 + $0xc8] sm:$0xff] %vm285, -inf
        %312 = vst.msk [vmem:[#allocation2 + $0xd0] sm:$0xff] %vm285, -inf
        %313 = vst.msk [vmem:[#allocation2 + $0xd8] sm:$0xff] %vm285, -inf
        %314 = vst.msk [vmem:[#allocation2 + $0xe0] sm:$0xff] %vm285, -inf
        %315 = vst.msk [vmem:[#allocation2 + $0xe8] sm:$0xff] %vm285, -inf
        %316 = vst.msk [vmem:[#allocation2 + $0xf0] sm:$0xff] %vm285, -inf
        %317 = vst.msk [vmem:[#allocation2 + $0xf8] sm:$0xff] %vm285, -inf
        %318 = vst.msk [vmem:[#allocation3] sm:$0xff] %vm285, 0.0
        %319 = vst.msk [vmem:[#allocation3 + $0x8] sm:$0xff] %vm285, 0.0
        %320 = vst.msk [vmem:[#allocation3 + $0x10] sm:$0xff] %vm285, 0.0
        %321 = vst.msk [vmem:[#allocation3 + $0x18] sm:$0xff] %vm285, 0.0
        %322 = vst.msk [vmem:[#allocation3 + $0x20] sm:$0xff] %vm285, 0.0
        %323 = vst.msk [vmem:[#allocation3 + $0x28] sm:$0xff] %vm285, 0.0
        %324 = vst.msk [vmem:[#allocation3 + $0x30] sm:$0xff] %vm285, 0.0
        %325 = vst.msk [vmem:[#allocation3 + $0x38] sm:$0xff] %vm285, 0.0
        %326 = vst.msk [vmem:[#allocation3 + $0x40] sm:$0xff] %vm285, 0.0
        %327 = vst.msk [vmem:[#allocation3 + $0x48] sm:$0xff] %vm285, 0.0
        %328 = vst.msk [vmem:[#allocation3 + $0x50] sm:$0xff] %vm285, 0.0
        %329 = vst.msk [vmem:[#allocation3 + $0x58] sm:$0xff] %vm285, 0.0
        %330 = vst.msk [vmem:[#allocation3 + $0x60] sm:$0xff] %vm285, 0.0
        %331 = vst.msk [vmem:[#allocation3 + $0x68] sm:$0xff] %vm285, 0.0
        %332 = vst.msk [vmem:[#allocation3 + $0x70] sm:$0xff] %vm285, 0.0
        %333 = vst.msk [vmem:[#allocation3 + $0x78] sm:$0xff] %vm285, 0.0
        %334 = vst.msk [vmem:[#allocation3 + $0x80] sm:$0xff] %vm285, 0.0
        %335 = vst.msk [vmem:[#allocation3 + $0x88] sm:$0xff] %vm285, 0.0
        %336 = vst.msk [vmem:[#allocation3 + $0x90] sm:$0xff] %vm285, 0.0
        %337 = vst.msk [vmem:[#allocation3 + $0x98] sm:$0xff] %vm285, 0.0
        %338 = vst.msk [vmem:[#allocation3 + $0xa0] sm:$0xff] %vm285, 0.0
        %339 = vst.msk [vmem:[#allocation3 + $0xa8] sm:$0xff] %vm285, 0.0
        %340 = vst.msk [vmem:[#allocation3 + $0xb0] sm:$0xff] %vm285, 0.0
        %341 = vst.msk [vmem:[#allocation3 + $0xb8] sm:$0xff] %vm285, 0.0
        %342 = vst.msk [vmem:[#allocation3 + $0xc0] sm:$0xff] %vm285, 0.0
        %343 = vst.msk [vmem:[#allocation3 + $0xc8] sm:$0xff] %vm285, 0.0
        %344 = vst.msk [vmem:[#allocation3 + $0xd0] sm:$0xff] %vm285, 0.0
        %345 = vst.msk [vmem:[#allocation3 + $0xd8] sm:$0xff] %vm285, 0.0
        %346 = vst.msk [vmem:[#allocation3 + $0xe0] sm:$0xff] %vm285, 0.0
        %347 = vst.msk [vmem:[#allocation3 + $0xe8] sm:$0xff] %vm285, 0.0
        %348 = vst.msk [vmem:[#allocation3 + $0xf0] sm:$0xff] %vm285, 0.0
        %349 = vst.msk [vmem:[#allocation3 + $0xf8] sm:$0xff] %vm285, 0.0
      $region36: #{gmlp_language_model.4} parent=31 // pred_fallthru
        _
      %v350 = vld [vmem:[%s250] sm:$0xf]
      %v351 = vld [vmem:[%s250 + $0x4] sm:$0xf]
      %v352 = vld [vmem:[%s250 + $0x8] sm:$0xf]
      %v353 = vld [vmem:[%s250 + $0xc] sm:$0xf]
      %v354 = vld [vmem:[%s250 + $0x10] sm:$0xf]
      %v355 = vld [vmem:[%s250 + $0x14] sm:$0xf]
      %v356 = vld [vmem:[%s250 + $0x18] sm:$0xf]
      %v357 = vld [vmem:[%s250 + $0x1c] sm:$0xf]
      %v358 = vld [vmem:[%s250 + $0x20] sm:$0xf]
      %v359 = vld [vmem:[%s250 + $0x24] sm:$0xf]
      %v360 = vld [vmem:[%s250 + $0x28] sm:$0xf]
      %v361 = vld [vmem:[%s250 + $0x2c] sm:$0xf]
      %v362 = vld [vmem:[%s250 + $0x30] sm:$0xf]
      %v363 = vld [vmem:[%s250 + $0x34] sm:$0xf]
      %v364 = vld [vmem:[%s250 + $0x38] sm:$0xf]
      %v365 = vld [vmem:[%s250 + $0x3c] sm:$0xf]
      %v366 = vld [vmem:[%s250 + $0x40] sm:$0xf]
      %v367 = vld [vmem:[%s250 + $0x44] sm:$0xf]
      %v368 = vld [vmem:[%s250 + $0x48] sm:$0xf]
      %v369 = vld [vmem:[%s250 + $0x4c] sm:$0xf]
      %v370 = vld [vmem:[%s250 + $0x50] sm:$0xf]
      %v371 = vld [vmem:[%s250 + $0x54] sm:$0xf]
      %v372 = vld [vmem:[%s250 + $0x58] sm:$0xf]
      %v373 = vld [vmem:[%s250 + $0x5c] sm:$0xf]
      %v374 = vld [vmem:[%s250 + $0x60] sm:$0xf]
      %v375 = vld [vmem:[%s250 + $0x64] sm:$0xf]
      %v376 = vld [vmem:[%s250 + $0x68] sm:$0xf]
      %v377 = vld [vmem:[%s250 + $0x6c] sm:$0xf]
      %v378 = vld [vmem:[%s250 + $0x70] sm:$0xf]
      %v379 = vld [vmem:[%s250 + $0x74] sm:$0xf]
      %v380 = vld [vmem:[%s250 + $0x78] sm:$0xf]
      %v381 = vld [vmem:[%s250 + $0x7c] sm:$0xf]
      %v382 = vld [vmem:[%s256] sm:$0xff]
      %v383 = vld [vmem:[%s256 + $0x8] sm:$0xff]
      %v384 = vld [vmem:[%s256 + $0x10] sm:$0xff]
      %v385 = vld [vmem:[%s256 + $0x18] sm:$0xff]
      %v386 = vld [vmem:[%s256 + $0x20] sm:$0xff]
      %v387 = vld [vmem:[%s256 + $0x28] sm:$0xff]
      %v388 = vld [vmem:[%s256 + $0x30] sm:$0xff]
      %v389 = vld [vmem:[%s256 + $0x38] sm:$0xff]
      %v390 = vld [vmem:[%s256 + $0x40] sm:$0xff]
      %v391 = vld [vmem:[%s256 + $0x48] sm:$0xff]
      %v392 = vld [vmem:[%s256 + $0x50] sm:$0xff]
      %v393 = vld [vmem:[%s256 + $0x58] sm:$0xff]
      %v394 = vld [vmem:[%s256 + $0x60] sm:$0xff]
      %v395 = vld [vmem:[%s256 + $0x68] sm:$0xff]
      %v396 = vld [vmem:[%s256 + $0x70] sm:$0xff]
      %v397 = vld [vmem:[%s256 + $0x78] sm:$0xff]
      %v398 = vld [vmem:[%s256 + $0x80] sm:$0xff]
      %v399 = vld [vmem:[%s256 + $0x88] sm:$0xff]
      %v400 = vld [vmem:[%s256 + $0x90] sm:$0xff]
      %v401 = vld [vmem:[%s256 + $0x98] sm:$0xff]
      %v402 = vld [vmem:[%s256 + $0xa0] sm:$0xff]
      %v403 = vld [vmem:[%s256 + $0xa8] sm:$0xff]
      %v404 = vld [vmem:[%s256 + $0xb0] sm:$0xff]
      %v405 = vld [vmem:[%s256 + $0xb8] sm:$0xff]
      %v406 = vld [vmem:[%s256 + $0xc0] sm:$0xff]
      %v407 = vld [vmem:[%s256 + $0xc8] sm:$0xff]
      %v408 = vld [vmem:[%s256 + $0xd0] sm:$0xff]
      %v409 = vld [vmem:[%s256 + $0xd8] sm:$0xff]
      %v410 = vld [vmem:[%s256 + $0xe0] sm:$0xff]
      %v411 = vld [vmem:[%s256 + $0xe8] sm:$0xff]
      %v412 = vld [vmem:[%s256 + $0xf0] sm:$0xff]
      %v413 = vld [vmem:[%s256 + $0xf8] sm:$0xff]
      %v414 = vld [vmem:[%s256 + $0x100] sm:$0xff]
      %v415 = vld [vmem:[%s256 + $0x108] sm:$0xff]
      %v416 = vld [vmem:[%s256 + $0x110] sm:$0xff]
      %v417 = vld [vmem:[%s256 + $0x118] sm:$0xff]
      %v418 = vld [vmem:[%s256 + $0x120] sm:$0xff]
      %v419 = vld [vmem:[%s256 + $0x128] sm:$0xff]
      %v420 = vld [vmem:[%s256 + $0x130] sm:$0xff]
      %v421 = vld [vmem:[%s256 + $0x138] sm:$0xff]
      %v422 = vld [vmem:[%s256 + $0x140] sm:$0xff]
      %v423 = vld [vmem:[%s256 + $0x148] sm:$0xff]
      %v424 = vld [vmem:[%s256 + $0x150] sm:$0xff]
      %v425 = vld [vmem:[%s256 + $0x158] sm:$0xff]
      %v426 = vld [vmem:[%s256 + $0x160] sm:$0xff]
      %v427 = vld [vmem:[%s256 + $0x168] sm:$0xff]
      %v428 = vld [vmem:[%s256 + $0x170] sm:$0xff]
      %v429 = vld [vmem:[%s256 + $0x178] sm:$0xff]
      %v430 = vld [vmem:[%s256 + $0x180] sm:$0xff]
      %v431 = vld [vmem:[%s256 + $0x188] sm:$0xff]
      %v432 = vld [vmem:[%s256 + $0x190] sm:$0xff]
      %v433 = vld [vmem:[%s256 + $0x198] sm:$0xff]
      %v434 = vld [vmem:[%s256 + $0x1a0] sm:$0xff]
      %v435 = vld [vmem:[%s256 + $0x1a8] sm:$0xff]
      %v436 = vld [vmem:[%s256 + $0x1b0] sm:$0xff]
      %v437 = vld [vmem:[%s256 + $0x1b8] sm:$0xff]
      %v438 = vld [vmem:[%s256 + $0x1c0] sm:$0xff]
      %v439 = vld [vmem:[%s256 + $0x1c8] sm:$0xff]
      %v440 = vld [vmem:[%s256 + $0x1d0] sm:$0xff]
      %v441 = vld [vmem:[%s256 + $0x1d8] sm:$0xff]
      %v442 = vld [vmem:[%s256 + $0x1e0] sm:$0xff]
      %v443 = vld [vmem:[%s256 + $0x1e8] sm:$0xff]
      %v444 = vld [vmem:[%s256 + $0x1f0] sm:$0xff]
      %v445 = vld [vmem:[%s256 + $0x1f8] sm:$0xff]
      %v446 = vld [vmem:[%s261] sm:$0xff]
      %v448 = vperm.slane %v446, 0
      %v449 = vperm.slane %v446, 1
      %v450 = vperm.slane %v446, 2
      %v451 = vperm.slane %v446, 3
      %v452 = vperm.slane %v446, 4
      %v453 = vperm.slane %v446, 5
      %v454 = vperm.slane %v446, 6
      %v455 = vperm.slane %v446, 7
      %v496 = vunpack.c.l.b16 %v350
      %v497 = vunpack.c.l.b16 %v351
      %v498 = vunpack.c.l.b16 %v352
      %v499 = vunpack.c.l.b16 %v353
      %v500 = vunpack.c.l.b16 %v354
      %v501 = vunpack.c.l.b16 %v355
      %v502 = vunpack.c.l.b16 %v356
      %v503 = vunpack.c.l.b16 %v357
      %v504 = vunpack.c.l.b16 %v358
      %v505 = vunpack.c.l.b16 %v359
      %v506 = vunpack.c.l.b16 %v360
      %v507 = vunpack.c.l.b16 %v361
      %v508 = vunpack.c.l.b16 %v362
      %v509 = vunpack.c.l.b16 %v363
      %v510 = vunpack.c.l.b16 %v364
      %v511 = vunpack.c.l.b16 %v365
      %v512 = vunpack.c.l.b16 %v366
      %v513 = vunpack.c.l.b16 %v367
      %v514 = vunpack.c.l.b16 %v368
      %v515 = vunpack.c.l.b16 %v369
      %v516 = vunpack.c.l.b16 %v370
      %v517 = vunpack.c.l.b16 %v371
      %v518 = vunpack.c.l.b16 %v372
      %v519 = vunpack.c.l.b16 %v373
      %v520 = vunpack.c.l.b16 %v374
      %v521 = vunpack.c.l.b16 %v375
      %v522 = vunpack.c.l.b16 %v376
      %v523 = vunpack.c.l.b16 %v377
      %v524 = vunpack.c.l.b16 %v378
      %v525 = vunpack.c.l.b16 %v379
      %v526 = vunpack.c.l.b16 %v380
      %v527 = vunpack.c.l.b16 %v381
      %v528 = vpack.c.b16 %v497, %v496
      %v529 = vpack.c.b16 %v499, %v498
      %v530 = vpack.c.b16 %v501, %v500
      %v531 = vpack.c.b16 %v503, %v502
      %v532 = vpack.c.b16 %v505, %v504
      %v533 = vpack.c.b16 %v507, %v506
      %v534 = vpack.c.b16 %v509, %v508
      %v535 = vpack.c.b16 %v511, %v510
      %v536 = vpack.c.b16 %v513, %v512
      %v537 = vpack.c.b16 %v515, %v514
      %v538 = vpack.c.b16 %v517, %v516
      %v539 = vpack.c.b16 %v519, %v518
      %v540 = vpack.c.b16 %v521, %v520
      %v541 = vpack.c.b16 %v523, %v522
      %v542 = vpack.c.b16 %v525, %v524
      %v543 = vpack.c.b16 %v527, %v526
      %v624 = vunpack.c.l.b16 %v382
      %v625 = vunpack.c.h.b16 %v382
      %v626 = vunpack.c.l.b16 %v383
      %v627 = vunpack.c.h.b16 %v383
      %v628 = vunpack.c.l.b16 %v384
      %v629 = vunpack.c.h.b16 %v384
      %v630 = vunpack.c.l.b16 %v385
      %v631 = vunpack.c.h.b16 %v385
      %v632 = vunpack.c.l.b16 %v386
      %v633 = vunpack.c.h.b16 %v386
      %v634 = vunpack.c.l.b16 %v387
      %v635 = vunpack.c.h.b16 %v387
      %v636 = vunpack.c.l.b16 %v388
      %v637 = vunpack.c.h.b16 %v388
      %v638 = vunpack.c.l.b16 %v389
      %v639 = vunpack.c.h.b16 %v389
      %v640 = vunpack.c.l.b16 %v390
      %v641 = vunpack.c.h.b16 %v390
      %v642 = vunpack.c.l.b16 %v391
      %v643 = vunpack.c.h.b16 %v391
      %v644 = vunpack.c.l.b16 %v392
      %v645 = vunpack.c.h.b16 %v392
      %v646 = vunpack.c.l.b16 %v393
      %v647 = vunpack.c.h.b16 %v393
      %v648 = vunpack.c.l.b16 %v394
      %v649 = vunpack.c.h.b16 %v394
      %v650 = vunpack.c.l.b16 %v395
      %v651 = vunpack.c.h.b16 %v395
      %v652 = vunpack.c.l.b16 %v396
      %v653 = vunpack.c.h.b16 %v396
      %v654 = vunpack.c.l.b16 %v397
      %v655 = vunpack.c.h.b16 %v397
      %v656 = vunpack.c.l.b16 %v398
      %v657 = vunpack.c.h.b16 %v398
      %v658 = vunpack.c.l.b16 %v399
      %v659 = vunpack.c.h.b16 %v399
      %v660 = vunpack.c.l.b16 %v400
      %v661 = vunpack.c.h.b16 %v400
      %v662 = vunpack.c.l.b16 %v401
      %v663 = vunpack.c.h.b16 %v401
      %v664 = vunpack.c.l.b16 %v402
      %v665 = vunpack.c.h.b16 %v402
      %v666 = vunpack.c.l.b16 %v403
      %v667 = vunpack.c.h.b16 %v403
      %v668 = vunpack.c.l.b16 %v404
      %v669 = vunpack.c.h.b16 %v404
      %v670 = vunpack.c.l.b16 %v405
      %v671 = vunpack.c.h.b16 %v405
      %v672 = vunpack.c.l.b16 %v406
      %v673 = vunpack.c.h.b16 %v406
      %v674 = vunpack.c.l.b16 %v407
      %v675 = vunpack.c.h.b16 %v407
      %v676 = vunpack.c.l.b16 %v408
      %v677 = vunpack.c.h.b16 %v408
      %v678 = vunpack.c.l.b16 %v409
      %v679 = vunpack.c.h.b16 %v409
      %v680 = vunpack.c.l.b16 %v410
      %v681 = vunpack.c.h.b16 %v410
      %v682 = vunpack.c.l.b16 %v411
      %v683 = vunpack.c.h.b16 %v411
      %v684 = vunpack.c.l.b16 %v412
      %v685 = vunpack.c.h.b16 %v412
      %v686 = vunpack.c.l.b16 %v413
      %v687 = vunpack.c.h.b16 %v413
      %v688 = vunpack.c.l.b16 %v414
      %v689 = vunpack.c.h.b16 %v414
      %v690 = vunpack.c.l.b16 %v415
      %v691 = vunpack.c.h.b16 %v415
      %v692 = vunpack.c.l.b16 %v416
      %v693 = vunpack.c.h.b16 %v416
      %v694 = vunpack.c.l.b16 %v417
      %v695 = vunpack.c.h.b16 %v417
      %v696 = vunpack.c.l.b16 %v418
      %v697 = vunpack.c.h.b16 %v418
      %v698 = vunpack.c.l.b16 %v419
      %v699 = vunpack.c.h.b16 %v419
      %v700 = vunpack.c.l.b16 %v420
      %v701 = vunpack.c.h.b16 %v420
      %v702 = vunpack.c.l.b16 %v421
      %v703 = vunpack.c.h.b16 %v421
      %v704 = vunpack.c.l.b16 %v422
      %v705 = vunpack.c.h.b16 %v422
      %v706 = vunpack.c.l.b16 %v423
      %v707 = vunpack.c.h.b16 %v423
      %v708 = vunpack.c.l.b16 %v424
      %v709 = vunpack.c.h.b16 %v424
      %v710 = vunpack.c.l.b16 %v425
      %v711 = vunpack.c.h.b16 %v425
      %v712 = vunpack.c.l.b16 %v426
      %v713 = vunpack.c.h.b16 %v426
      %v714 = vunpack.c.l.b16 %v427
      %v715 = vunpack.c.h.b16 %v427
      %v716 = vunpack.c.l.b16 %v428
      %v717 = vunpack.c.h.b16 %v428
      %v718 = vunpack.c.l.b16 %v429
      %v719 = vunpack.c.h.b16 %v429
      %v720 = vunpack.c.l.b16 %v430
      %v721 = vunpack.c.h.b16 %v430
      %v722 = vunpack.c.l.b16 %v431
      %v723 = vunpack.c.h.b16 %v431
      %v724 = vunpack.c.l.b16 %v432
      %v725 = vunpack.c.h.b16 %v432
      %v726 = vunpack.c.l.b16 %v433
      %v727 = vunpack.c.h.b16 %v433
      %v728 = vunpack.c.l.b16 %v434
      %v729 = vunpack.c.h.b16 %v434
      %v730 = vunpack.c.l.b16 %v435
      %v731 = vunpack.c.h.b16 %v435
      %v732 = vunpack.c.l.b16 %v436
      %v733 = vunpack.c.h.b16 %v436
      %v734 = vunpack.c.l.b16 %v437
      %v735 = vunpack.c.h.b16 %v437
      %v736 = vunpack.c.l.b16 %v438
      %v737 = vunpack.c.h.b16 %v438
      %v738 = vunpack.c.l.b16 %v439
      %v739 = vunpack.c.h.b16 %v439
      %v740 = vunpack.c.l.b16 %v440
      %v741 = vunpack.c.h.b16 %v440
      %v742 = vunpack.c.l.b16 %v441
      %v743 = vunpack.c.h.b16 %v441
      %v744 = vunpack.c.l.b16 %v442
      %v745 = vunpack.c.h.b16 %v442
      %v746 = vunpack.c.l.b16 %v443
      %v747 = vunpack.c.h.b16 %v443
      %v748 = vunpack.c.l.b16 %v444
      %v749 = vunpack.c.h.b16 %v444
      %v750 = vunpack.c.l.b16 %v445
      %v751 = vunpack.c.h.b16 %v445
      %v752 = vpack.c.b16 %v632, %v624
      %v753 = vpack.c.b16 %v633, %v625
      %v754 = vpack.c.b16 %v634, %v626
      %v755 = vpack.c.b16 %v635, %v627
      %v756 = vpack.c.b16 %v636, %v628
      %v757 = vpack.c.b16 %v637, %v629
      %v758 = vpack.c.b16 %v638, %v630
      %v759 = vpack.c.b16 %v639, %v631
      %v760 = vpack.c.b16 %v648, %v640
      %v761 = vpack.c.b16 %v649, %v641
      %v762 = vpack.c.b16 %v650, %v642
      %v763 = vpack.c.b16 %v651, %v643
      %v764 = vpack.c.b16 %v652, %v644
      %v765 = vpack.c.b16 %v653, %v645
      %v766 = vpack.c.b16 %v654, %v646
      %v767 = vpack.c.b16 %v655, %v647
      %v768 = vpack.c.b16 %v664, %v656
      %v769 = vpack.c.b16 %v665, %v657
      %v770 = vpack.c.b16 %v666, %v658
      %v771 = vpack.c.b16 %v667, %v659
      %v772 = vpack.c.b16 %v668, %v660
      %v773 = vpack.c.b16 %v669, %v661
      %v774 = vpack.c.b16 %v670, %v662
      %v775 = vpack.c.b16 %v671, %v663
      %v776 = vpack.c.b16 %v680, %v672
      %v777 = vpack.c.b16 %v681, %v673
      %v778 = vpack.c.b16 %v682, %v674
      %v779 = vpack.c.b16 %v683, %v675
      %v780 = vpack.c.b16 %v684, %v676
      %v781 = vpack.c.b16 %v685, %v677
      %v782 = vpack.c.b16 %v686, %v678
      %v783 = vpack.c.b16 %v687, %v679
      %v784 = vpack.c.b16 %v696, %v688
      %v785 = vpack.c.b16 %v697, %v689
      %v786 = vpack.c.b16 %v698, %v690
      %v787 = vpack.c.b16 %v699, %v691
      %v788 = vpack.c.b16 %v700, %v692
      %v789 = vpack.c.b16 %v701, %v693
      %v790 = vpack.c.b16 %v702, %v694
      %v791 = vpack.c.b16 %v703, %v695
      %v792 = vpack.c.b16 %v712, %v704
      %v793 = vpack.c.b16 %v713, %v705
      %v794 = vpack.c.b16 %v714, %v706
      %v795 = vpack.c.b16 %v715, %v707
      %v796 = vpack.c.b16 %v716, %v708
      %v797 = vpack.c.b16 %v717, %v709
      %v798 = vpack.c.b16 %v718, %v710
      %v799 = vpack.c.b16 %v719, %v711
      %v800 = vpack.c.b16 %v728, %v720
      %v801 = vpack.c.b16 %v729, %v721
      %v802 = vpack.c.b16 %v730, %v722
      %v803 = vpack.c.b16 %v731, %v723
      %v804 = vpack.c.b16 %v732, %v724
      %v805 = vpack.c.b16 %v733, %v725
      %v806 = vpack.c.b16 %v734, %v726
      %v807 = vpack.c.b16 %v735, %v727
      %v808 = vpack.c.b16 %v744, %v736
      %v809 = vpack.c.b16 %v745, %v737
      %v810 = vpack.c.b16 %v746, %v738
      %v811 = vpack.c.b16 %v747, %v739
      %v812 = vpack.c.b16 %v748, %v740
      %v813 = vpack.c.b16 %v749, %v741
      %v814 = vpack.c.b16 %v750, %v742
      %v815 = vpack.c.b16 %v751, %v743
      %880 = vmatpush.bf16.msra.mxu0 %v808
      %881 = vmatpush.bf16.msra.mxu0 %v800
      %882 = vmatpush.bf16.msra.mxu0 %v792
      %883 = vmatpush.bf16.msra.mxu0 %v784
      %884 = vmatpush.bf16.msra.mxu0 %v776
      %885 = vmatpush.bf16.msra.mxu0 %v768
      %886 = vmatpush.bf16.msra.mxu0 %v760
      %887 = vmatpush.bf16.msra.mxu0 %v752
      %888 = vmatmul.bf16.gmra.mxu0 %v528
      %v889 = vpop.f32.mrf.mxu0
      %v890 = vadd.f32 %v448, %v889
      %v891 = vpop.f32.mrf.mxu0
      %v892 = vadd.f32 %v448, %v891
      %893 = vmatmul.bf16.gmra.mxu0 %v529
      %v894 = vpop.f32.mrf.mxu0
      %v895 = vadd.f32 %v448, %v894
      %v896 = vpop.f32.mrf.mxu0
      %v897 = vadd.f32 %v448, %v896
      %898 = vmatmul.bf16.gmra.mxu0 %v530
      %v899 = vpop.f32.mrf.mxu0
      %v900 = vadd.f32 %v448, %v899
      %v901 = vpop.f32.mrf.mxu0
      %v902 = vadd.f32 %v448, %v901
      %903 = vmatmul.bf16.gmra.mxu0 %v531
      %v904 = vpop.f32.mrf.mxu0
      %v905 = vadd.f32 %v448, %v904
      %v906 = vpop.f32.mrf.mxu0
      %v907 = vadd.f32 %v448, %v906
      %908 = vmatmul.bf16.gmra.mxu0 %v532
      %v909 = vpop.f32.mrf.mxu0
      %v910 = vadd.f32 %v448, %v909
      %v911 = vpop.f32.mrf.mxu0
      %v912 = vadd.f32 %v448, %v911
      %913 = vmatmul.bf16.gmra.mxu0 %v533
      %v914 = vpop.f32.mrf.mxu0
      %v915 = vadd.f32 %v448, %v914
      %v916 = vpop.f32.mrf.mxu0
      %v917 = vadd.f32 %v448, %v916
      %918 = vmatmul.bf16.gmra.mxu0 %v534
      %v919 = vpop.f32.mrf.mxu0
      %v920 = vadd.f32 %v448, %v919
      %v921 = vpop.f32.mrf.mxu0
      %v922 = vadd.f32 %v448, %v921
      %923 = vmatmul.bf16.gmra.mxu0 %v535
      %v924 = vpop.f32.mrf.mxu0
      %v925 = vadd.f32 %v448, %v924
      %v926 = vpop.f32.mrf.mxu0
      %v927 = vadd.f32 %v448, %v926
      %928 = vmatmul.bf16.gmra.mxu0 %v536
      %v929 = vpop.f32.mrf.mxu0
      %v930 = vadd.f32 %v448, %v929
      %v931 = vpop.f32.mrf.mxu0
      %v932 = vadd.f32 %v448, %v931
      %933 = vmatmul.bf16.gmra.mxu0 %v537
      %v934 = vpop.f32.mrf.mxu0
      %v935 = vadd.f32 %v448, %v934
      %v936 = vpop.f32.mrf.mxu0
      %v937 = vadd.f32 %v448, %v936
      %938 = vmatmul.bf16.gmra.mxu0 %v538
      %v939 = vpop.f32.mrf.mxu0
      %v940 = vadd.f32 %v448, %v939
      %v941 = vpop.f32.mrf.mxu0
      %v942 = vadd.f32 %v448, %v941
      %943 = vmatmul.bf16.gmra.mxu0 %v539
      %v944 = vpop.f32.mrf.mxu0
      %v945 = vadd.f32 %v448, %v944
      %v946 = vpop.f32.mrf.mxu0
      %v947 = vadd.f32 %v448, %v946
      %948 = vmatmul.bf16.gmra.mxu0 %v540
      %v949 = vpop.f32.mrf.mxu0
      %v950 = vadd.f32 %v448, %v949
      %v951 = vpop.f32.mrf.mxu0
      %v952 = vadd.f32 %v448, %v951
      %953 = vmatmul.bf16.gmra.mxu0 %v541
      %v954 = vpop.f32.mrf.mxu0
      %v955 = vadd.f32 %v448, %v954
      %v956 = vpop.f32.mrf.mxu0
      %v957 = vadd.f32 %v448, %v956
      %958 = vmatmul.bf16.gmra.mxu0 %v542
      %v959 = vpop.f32.mrf.mxu0
      %v960 = vadd.f32 %v448, %v959
      %v961 = vpop.f32.mrf.mxu0
      %v962 = vadd.f32 %v448, %v961
      %963 = vmatmul.bf16.gmra.mxu0 %v543
      %v964 = vpop.f32.mrf.mxu0
      %v965 = vadd.f32 %v448, %v964
      %v966 = vpop.f32.mrf.mxu0
      %v967 = vadd.f32 %v448, %v966
      %968 = vdwg.mxu0
      %969 = vmatpush.bf16.msra.mxu0 %v809
      %970 = vmatpush.bf16.msra.mxu0 %v801
      %971 = vmatpush.bf16.msra.mxu0 %v793
      %972 = vmatpush.bf16.msra.mxu0 %v785
      %973 = vmatpush.bf16.msra.mxu0 %v777
      %974 = vmatpush.bf16.msra.mxu0 %v769
      %975 = vmatpush.bf16.msra.mxu0 %v761
      %976 = vmatpush.bf16.msra.mxu0 %v753
      %977 = vmatmul.bf16.gmra.mxu0 %v528
      %v978 = vpop.f32.mrf.mxu0
      %v979 = vadd.f32 %v449, %v978
      %v980 = vpop.f32.mrf.mxu0
      %v981 = vadd.f32 %v449, %v980
      %982 = vmatmul.bf16.gmra.mxu0 %v529
      %v983 = vpop.f32.mrf.mxu0
      %v984 = vadd.f32 %v449, %v983
      %v985 = vpop.f32.mrf.mxu0
      %v986 = vadd.f32 %v449, %v985
      %987 = vmatmul.bf16.gmra.mxu0 %v530
      %v988 = vpop.f32.mrf.mxu0
      %v989 = vadd.f32 %v449, %v988
      %v990 = vpop.f32.mrf.mxu0
      %v991 = vadd.f32 %v449, %v990
      %992 = vmatmul.bf16.gmra.mxu0 %v531
      %v993 = vpop.f32.mrf.mxu0
      %v994 = vadd.f32 %v449, %v993
      %v995 = vpop.f32.mrf.mxu0
      %v996 = vadd.f32 %v449, %v995
      %997 = vmatmul.bf16.gmra.mxu0 %v532
      %v998 = vpop.f32.mrf.mxu0
      %v999 = vadd.f32 %v449, %v998
      %v1000 = vpop.f32.mrf.mxu0
      %v1001 = vadd.f32 %v449, %v1000
      %1002 = vmatmul.bf16.gmra.mxu0 %v533
      %v1003 = vpop.f32.mrf.mxu0
      %v1004 = vadd.f32 %v449, %v1003
      %v1005 = vpop.f32.mrf.mxu0
      %v1006 = vadd.f32 %v449, %v1005
      %1007 = vmatmul.bf16.gmra.mxu0 %v534
      %v1008 = vpop.f32.mrf.mxu0
      %v1009 = vadd.f32 %v449, %v1008
      %v1010 = vpop.f32.mrf.mxu0
      %v1011 = vadd.f32 %v449, %v1010
      %1012 = vmatmul.bf16.gmra.mxu0 %v535
      %v1013 = vpop.f32.mrf.mxu0
      %v1014 = vadd.f32 %v449, %v1013
      %v1015 = vpop.f32.mrf.mxu0
      %v1016 = vadd.f32 %v449, %v1015
      %1017 = vmatmul.bf16.gmra.mxu0 %v536
      %v1018 = vpop.f32.mrf.mxu0
      %v1019 = vadd.f32 %v449, %v1018
      %v1020 = vpop.f32.mrf.mxu0
      %v1021 = vadd.f32 %v449, %v1020
      %1022 = vmatmul.bf16.gmra.mxu0 %v537
      %v1023 = vpop.f32.mrf.mxu0
      %v1024 = vadd.f32 %v449, %v1023
      %v1025 = vpop.f32.mrf.mxu0
      %v1026 = vadd.f32 %v449, %v1025
      %1027 = vmatmul.bf16.gmra.mxu0 %v538
      %v1028 = vpop.f32.mrf.mxu0
      %v1029 = vadd.f32 %v449, %v1028
      %v1030 = vpop.f32.mrf.mxu0
      %v1031 = vadd.f32 %v449, %v1030
      %1032 = vmatmul.bf16.gmra.mxu0 %v539
      %v1033 = vpop.f32.mrf.mxu0
      %v1034 = vadd.f32 %v449, %v1033
      %v1035 = vpop.f32.mrf.mxu0
      %v1036 = vadd.f32 %v449, %v1035
      %1037 = vmatmul.bf16.gmra.mxu0 %v540
      %v1038 = vpop.f32.mrf.mxu0
      %v1039 = vadd.f32 %v449, %v1038
      %v1040 = vpop.f32.mrf.mxu0
      %v1041 = vadd.f32 %v449, %v1040
      %1042 = vmatmul.bf16.gmra.mxu0 %v541
      %v1043 = vpop.f32.mrf.mxu0
      %v1044 = vadd.f32 %v449, %v1043
      %v1045 = vpop.f32.mrf.mxu0
      %v1046 = vadd.f32 %v449, %v1045
      %1047 = vmatmul.bf16.gmra.mxu0 %v542
      %v1048 = vpop.f32.mrf.mxu0
      %v1049 = vadd.f32 %v449, %v1048
      %v1050 = vpop.f32.mrf.mxu0
      %v1051 = vadd.f32 %v449, %v1050
      %1052 = vmatmul.bf16.gmra.mxu0 %v543
      %v1053 = vpop.f32.mrf.mxu0
      %v1054 = vadd.f32 %v449, %v1053
      %v1055 = vpop.f32.mrf.mxu0
      %v1056 = vadd.f32 %v449, %v1055
      %1057 = vdwg.mxu0
      %1058 = vmatpush.bf16.msra.mxu0 %v810
      %1059 = vmatpush.bf16.msra.mxu0 %v802
      %1060 = vmatpush.bf16.msra.mxu0 %v794
      %1061 = vmatpush.bf16.msra.mxu0 %v786
      %1062 = vmatpush.bf16.msra.mxu0 %v778
      %1063 = vmatpush.bf16.msra.mxu0 %v770
      %1064 = vmatpush.bf16.msra.mxu0 %v762
      %1065 = vmatpush.bf16.msra.mxu0 %v754
      %1066 = vmatmul.bf16.gmra.mxu0 %v528
      %v1067 = vpop.f32.mrf.mxu0
      %v1068 = vadd.f32 %v450, %v1067
      %v1069 = vpop.f32.mrf.mxu0
      %v1070 = vadd.f32 %v450, %v1069
      %1071 = vmatmul.bf16.gmra.mxu0 %v529
      %v1072 = vpop.f32.mrf.mxu0
      %v1073 = vadd.f32 %v450, %v1072
      %v1074 = vpop.f32.mrf.mxu0
      %v1075 = vadd.f32 %v450, %v1074
      %1076 = vmatmul.bf16.gmra.mxu0 %v530
      %v1077 = vpop.f32.mrf.mxu0
      %v1078 = vadd.f32 %v450, %v1077
      %v1079 = vpop.f32.mrf.mxu0
      %v1080 = vadd.f32 %v450, %v1079
      %1081 = vmatmul.bf16.gmra.mxu0 %v531
      %v1082 = vpop.f32.mrf.mxu0
      %v1083 = vadd.f32 %v450, %v1082
      %v1084 = vpop.f32.mrf.mxu0
      %v1085 = vadd.f32 %v450, %v1084
      %1086 = vmatmul.bf16.gmra.mxu0 %v532
      %v1087 = vpop.f32.mrf.mxu0
      %v1088 = vadd.f32 %v450, %v1087
      %v1089 = vpop.f32.mrf.mxu0
      %v1090 = vadd.f32 %v450, %v1089
      %1091 = vmatmul.bf16.gmra.mxu0 %v533
      %v1092 = vpop.f32.mrf.mxu0
      %v1093 = vadd.f32 %v450, %v1092
      %v1094 = vpop.f32.mrf.mxu0
      %v1095 = vadd.f32 %v450, %v1094
      %1096 = vmatmul.bf16.gmra.mxu0 %v534
      %v1097 = vpop.f32.mrf.mxu0
      %v1098 = vadd.f32 %v450, %v1097
      %v1099 = vpop.f32.mrf.mxu0
      %v1100 = vadd.f32 %v450, %v1099
      %1101 = vmatmul.bf16.gmra.mxu0 %v535
      %v1102 = vpop.f32.mrf.mxu0
      %v1103 = vadd.f32 %v450, %v1102
      %v1104 = vpop.f32.mrf.mxu0
      %v1105 = vadd.f32 %v450, %v1104
      %1106 = vmatmul.bf16.gmra.mxu0 %v536
      %v1107 = vpop.f32.mrf.mxu0
      %v1108 = vadd.f32 %v450, %v1107
      %v1109 = vpop.f32.mrf.mxu0
      %v1110 = vadd.f32 %v450, %v1109
      %1111 = vmatmul.bf16.gmra.mxu0 %v537
      %v1112 = vpop.f32.mrf.mxu0
      %v1113 = vadd.f32 %v450, %v1112
      %v1114 = vpop.f32.mrf.mxu0
      %v1115 = vadd.f32 %v450, %v1114
      %1116 = vmatmul.bf16.gmra.mxu0 %v538
      %v1117 = vpop.f32.mrf.mxu0
      %v1118 = vadd.f32 %v450, %v1117
      %v1119 = vpop.f32.mrf.mxu0
      %v1120 = vadd.f32 %v450, %v1119
      %1121 = vmatmul.bf16.gmra.mxu0 %v539
      %v1122 = vpop.f32.mrf.mxu0
      %v1123 = vadd.f32 %v450, %v1122
      %v1124 = vpop.f32.mrf.mxu0
      %v1125 = vadd.f32 %v450, %v1124
      %1126 = vmatmul.bf16.gmra.mxu0 %v540
      %v1127 = vpop.f32.mrf.mxu0
      %v1128 = vadd.f32 %v450, %v1127
      %v1129 = vpop.f32.mrf.mxu0
      %v1130 = vadd.f32 %v450, %v1129
      %1131 = vmatmul.bf16.gmra.mxu0 %v541
      %v1132 = vpop.f32.mrf.mxu0
      %v1133 = vadd.f32 %v450, %v1132
      %v1134 = vpop.f32.mrf.mxu0
      %v1135 = vadd.f32 %v450, %v1134
      %1136 = vmatmul.bf16.gmra.mxu0 %v542
      %v1137 = vpop.f32.mrf.mxu0
      %v1138 = vadd.f32 %v450, %v1137
      %v1139 = vpop.f32.mrf.mxu0
      %v1140 = vadd.f32 %v450, %v1139
      %1141 = vmatmul.bf16.gmra.mxu0 %v543
      %v1142 = vpop.f32.mrf.mxu0
      %v1143 = vadd.f32 %v450, %v1142
      %v1144 = vpop.f32.mrf.mxu0
      %v1145 = vadd.f32 %v450, %v1144
      %1146 = vdwg.mxu0
      %1147 = vmatpush.bf16.msra.mxu0 %v811
      %1148 = vmatpush.bf16.msra.mxu0 %v803
      %1149 = vmatpush.bf16.msra.mxu0 %v795
      %1150 = vmatpush.bf16.msra.mxu0 %v787
      %1151 = vmatpush.bf16.msra.mxu0 %v779
      %1152 = vmatpush.bf16.msra.mxu0 %v771
      %1153 = vmatpush.bf16.msra.mxu0 %v763
      %1154 = vmatpush.bf16.msra.mxu0 %v755
      %1155 = vmatmul.bf16.gmra.mxu0 %v528
      %v1156 = vpop.f32.mrf.mxu0
      %v1157 = vadd.f32 %v451, %v1156
      %v1158 = vpop.f32.mrf.mxu0
      %v1159 = vadd.f32 %v451, %v1158
      %1160 = vmatmul.bf16.gmra.mxu0 %v529
      %v1161 = vpop.f32.mrf.mxu0
      %v1162 = vadd.f32 %v451, %v1161
      %v1163 = vpop.f32.mrf.mxu0
      %v1164 = vadd.f32 %v451, %v1163
      %1165 = vmatmul.bf16.gmra.mxu0 %v530
      %v1166 = vpop.f32.mrf.mxu0
      %v1167 = vadd.f32 %v451, %v1166
      %v1168 = vpop.f32.mrf.mxu0
      %v1169 = vadd.f32 %v451, %v1168
      %1170 = vmatmul.bf16.gmra.mxu0 %v531
      %v1171 = vpop.f32.mrf.mxu0
      %v1172 = vadd.f32 %v451, %v1171
      %v1173 = vpop.f32.mrf.mxu0
      %v1174 = vadd.f32 %v451, %v1173
      %1175 = vmatmul.bf16.gmra.mxu0 %v532
      %v1176 = vpop.f32.mrf.mxu0
      %v1177 = vadd.f32 %v451, %v1176
      %v1178 = vpop.f32.mrf.mxu0
      %v1179 = vadd.f32 %v451, %v1178
      %1180 = vmatmul.bf16.gmra.mxu0 %v533
      %v1181 = vpop.f32.mrf.mxu0
      %v1182 = vadd.f32 %v451, %v1181
      %v1183 = vpop.f32.mrf.mxu0
      %v1184 = vadd.f32 %v451, %v1183
      %1185 = vmatmul.bf16.gmra.mxu0 %v534
      %v1186 = vpop.f32.mrf.mxu0
      %v1187 = vadd.f32 %v451, %v1186
      %v1188 = vpop.f32.mrf.mxu0
      %v1189 = vadd.f32 %v451, %v1188
      %1190 = vmatmul.bf16.gmra.mxu0 %v535
      %v1191 = vpop.f32.mrf.mxu0
      %v1192 = vadd.f32 %v451, %v1191
      %v1193 = vpop.f32.mrf.mxu0
      %v1194 = vadd.f32 %v451, %v1193
      %1195 = vmatmul.bf16.gmra.mxu0 %v536
      %v1196 = vpop.f32.mrf.mxu0
      %v1197 = vadd.f32 %v451, %v1196
      %v1198 = vpop.f32.mrf.mxu0
      %v1199 = vadd.f32 %v451, %v1198
      %1200 = vmatmul.bf16.gmra.mxu0 %v537
      %v1201 = vpop.f32.mrf.mxu0
      %v1202 = vadd.f32 %v451, %v1201
      %v1203 = vpop.f32.mrf.mxu0
      %v1204 = vadd.f32 %v451, %v1203
      %1205 = vmatmul.bf16.gmra.mxu0 %v538
      %v1206 = vpop.f32.mrf.mxu0
      %v1207 = vadd.f32 %v451, %v1206
      %v1208 = vpop.f32.mrf.mxu0
      %v1209 = vadd.f32 %v451, %v1208
      %1210 = vmatmul.bf16.gmra.mxu0 %v539
      %v1211 = vpop.f32.mrf.mxu0
      %v1212 = vadd.f32 %v451, %v1211
      %v1213 = vpop.f32.mrf.mxu0
      %v1214 = vadd.f32 %v451, %v1213
      %1215 = vmatmul.bf16.gmra.mxu0 %v540
      %v1216 = vpop.f32.mrf.mxu0
      %v1217 = vadd.f32 %v451, %v1216
      %v1218 = vpop.f32.mrf.mxu0
      %v1219 = vadd.f32 %v451, %v1218
      %1220 = vmatmul.bf16.gmra.mxu0 %v541
      %v1221 = vpop.f32.mrf.mxu0
      %v1222 = vadd.f32 %v451, %v1221
      %v1223 = vpop.f32.mrf.mxu0
      %v1224 = vadd.f32 %v451, %v1223
      %1225 = vmatmul.bf16.gmra.mxu0 %v542
      %v1226 = vpop.f32.mrf.mxu0
      %v1227 = vadd.f32 %v451, %v1226
      %v1228 = vpop.f32.mrf.mxu0
      %v1229 = vadd.f32 %v451, %v1228
      %1230 = vmatmul.bf16.gmra.mxu0 %v543
      %v1231 = vpop.f32.mrf.mxu0
      %v1232 = vadd.f32 %v451, %v1231
      %v1233 = vpop.f32.mrf.mxu0
      %v1234 = vadd.f32 %v451, %v1233
      %1235 = vdwg.mxu0
      %1236 = vmatpush.bf16.msra.mxu0 %v812
      %1237 = vmatpush.bf16.msra.mxu0 %v804
      %1238 = vmatpush.bf16.msra.mxu0 %v796
      %1239 = vmatpush.bf16.msra.mxu0 %v788
      %1240 = vmatpush.bf16.msra.mxu0 %v780
      %1241 = vmatpush.bf16.msra.mxu0 %v772
      %1242 = vmatpush.bf16.msra.mxu0 %v764
      %1243 = vmatpush.bf16.msra.mxu0 %v756
      %1244 = vmatmul.bf16.gmra.mxu0 %v528
      %v1245 = vpop.f32.mrf.mxu0
      %v1246 = vadd.f32 %v452, %v1245
      %v1247 = vpop.f32.mrf.mxu0
      %v1248 = vadd.f32 %v452, %v1247
      %1249 = vmatmul.bf16.gmra.mxu0 %v529
      %v1250 = vpop.f32.mrf.mxu0
      %v1251 = vadd.f32 %v452, %v1250
      %v1252 = vpop.f32.mrf.mxu0
      %v1253 = vadd.f32 %v452, %v1252
      %1254 = vmatmul.bf16.gmra.mxu0 %v530
      %v1255 = vpop.f32.mrf.mxu0
      %v1256 = vadd.f32 %v452, %v1255
      %v1257 = vpop.f32.mrf.mxu0
      %v1258 = vadd.f32 %v452, %v1257
      %1259 = vmatmul.bf16.gmra.mxu0 %v531
      %v1260 = vpop.f32.mrf.mxu0
      %v1261 = vadd.f32 %v452, %v1260
      %v1262 = vpop.f32.mrf.mxu0
      %v1263 = vadd.f32 %v452, %v1262
      %1264 = vmatmul.bf16.gmra.mxu0 %v532
      %v1265 = vpop.f32.mrf.mxu0
      %v1266 = vadd.f32 %v452, %v1265
      %v1267 = vpop.f32.mrf.mxu0
      %v1268 = vadd.f32 %v452, %v1267
      %1269 = vmatmul.bf16.gmra.mxu0 %v533
      %v1270 = vpop.f32.mrf.mxu0
      %v1271 = vadd.f32 %v452, %v1270
      %v1272 = vpop.f32.mrf.mxu0
      %v1273 = vadd.f32 %v452, %v1272
      %1274 = vmatmul.bf16.gmra.mxu0 %v534
      %v1275 = vpop.f32.mrf.mxu0
      %v1276 = vadd.f32 %v452, %v1275
      %v1277 = vpop.f32.mrf.mxu0
      %v1278 = vadd.f32 %v452, %v1277
      %1279 = vmatmul.bf16.gmra.mxu0 %v535
      %v1280 = vpop.f32.mrf.mxu0
      %v1281 = vadd.f32 %v452, %v1280
      %v1282 = vpop.f32.mrf.mxu0
      %v1283 = vadd.f32 %v452, %v1282
      %1284 = vmatmul.bf16.gmra.mxu0 %v536
      %v1285 = vpop.f32.mrf.mxu0
      %v1286 = vadd.f32 %v452, %v1285
      %v1287 = vpop.f32.mrf.mxu0
      %v1288 = vadd.f32 %v452, %v1287
      %1289 = vmatmul.bf16.gmra.mxu0 %v537
      %v1290 = vpop.f32.mrf.mxu0
      %v1291 = vadd.f32 %v452, %v1290
      %v1292 = vpop.f32.mrf.mxu0
      %v1293 = vadd.f32 %v452, %v1292
      %1294 = vmatmul.bf16.gmra.mxu0 %v538
      %v1295 = vpop.f32.mrf.mxu0
      %v1296 = vadd.f32 %v452, %v1295
      %v1297 = vpop.f32.mrf.mxu0
      %v1298 = vadd.f32 %v452, %v1297
      %1299 = vmatmul.bf16.gmra.mxu0 %v539
      %v1300 = vpop.f32.mrf.mxu0
      %v1301 = vadd.f32 %v452, %v1300
      %v1302 = vpop.f32.mrf.mxu0
      %v1303 = vadd.f32 %v452, %v1302
      %1304 = vmatmul.bf16.gmra.mxu0 %v540
      %v1305 = vpop.f32.mrf.mxu0
      %v1306 = vadd.f32 %v452, %v1305
      %v1307 = vpop.f32.mrf.mxu0
      %v1308 = vadd.f32 %v452, %v1307
      %1309 = vmatmul.bf16.gmra.mxu0 %v541
      %v1310 = vpop.f32.mrf.mxu0
      %v1311 = vadd.f32 %v452, %v1310
      %v1312 = vpop.f32.mrf.mxu0
      %v1313 = vadd.f32 %v452, %v1312
      %1314 = vmatmul.bf16.gmra.mxu0 %v542
      %v1315 = vpop.f32.mrf.mxu0
      %v1316 = vadd.f32 %v452, %v1315
      %v1317 = vpop.f32.mrf.mxu0
      %v1318 = vadd.f32 %v452, %v1317
      %1319 = vmatmul.bf16.gmra.mxu0 %v543
      %v1320 = vpop.f32.mrf.mxu0
      %v1321 = vadd.f32 %v452, %v1320
      %v1322 = vpop.f32.mrf.mxu0
      %v1323 = vadd.f32 %v452, %v1322
      %1324 = vdwg.mxu0
      %1325 = vmatpush.bf16.msra.mxu0 %v813
      %1326 = vmatpush.bf16.msra.mxu0 %v805
      %1327 = vmatpush.bf16.msra.mxu0 %v797
      %1328 = vmatpush.bf16.msra.mxu0 %v789
      %1329 = vmatpush.bf16.msra.mxu0 %v781
      %1330 = vmatpush.bf16.msra.mxu0 %v773
      %1331 = vmatpush.bf16.msra.mxu0 %v765
      %1332 = vmatpush.bf16.msra.mxu0 %v757
      %1333 = vmatmul.bf16.gmra.mxu0 %v528
      %v1334 = vpop.f32.mrf.mxu0
      %v1335 = vadd.f32 %v453, %v1334
      %v1336 = vpop.f32.mrf.mxu0
      %v1337 = vadd.f32 %v453, %v1336
      %1338 = vmatmul.bf16.gmra.mxu0 %v529
      %v1339 = vpop.f32.mrf.mxu0
      %v1340 = vadd.f32 %v453, %v1339
      %v1341 = vpop.f32.mrf.mxu0
      %v1342 = vadd.f32 %v453, %v1341
      %1343 = vmatmul.bf16.gmra.mxu0 %v530
      %v1344 = vpop.f32.mrf.mxu0
      %v1345 = vadd.f32 %v453, %v1344
      %v1346 = vpop.f32.mrf.mxu0
      %v1347 = vadd.f32 %v453, %v1346
      %1348 = vmatmul.bf16.gmra.mxu0 %v531
      %v1349 = vpop.f32.mrf.mxu0
      %v1350 = vadd.f32 %v453, %v1349
      %v1351 = vpop.f32.mrf.mxu0
      %v1352 = vadd.f32 %v453, %v1351
      %1353 = vmatmul.bf16.gmra.mxu0 %v532
      %v1354 = vpop.f32.mrf.mxu0
      %v1355 = vadd.f32 %v453, %v1354
      %v1356 = vpop.f32.mrf.mxu0
      %v1357 = vadd.f32 %v453, %v1356
      %1358 = vmatmul.bf16.gmra.mxu0 %v533
      %v1359 = vpop.f32.mrf.mxu0
      %v1360 = vadd.f32 %v453, %v1359
      %v1361 = vpop.f32.mrf.mxu0
      %v1362 = vadd.f32 %v453, %v1361
      %1363 = vmatmul.bf16.gmra.mxu0 %v534
      %v1364 = vpop.f32.mrf.mxu0
      %v1365 = vadd.f32 %v453, %v1364
      %v1366 = vpop.f32.mrf.mxu0
      %v1367 = vadd.f32 %v453, %v1366
      %1368 = vmatmul.bf16.gmra.mxu0 %v535
      %v1369 = vpop.f32.mrf.mxu0
      %v1370 = vadd.f32 %v453, %v1369
      %v1371 = vpop.f32.mrf.mxu0
      %v1372 = vadd.f32 %v453, %v1371
      %1373 = vmatmul.bf16.gmra.mxu0 %v536
      %v1374 = vpop.f32.mrf.mxu0
      %v1375 = vadd.f32 %v453, %v1374
      %v1376 = vpop.f32.mrf.mxu0
      %v1377 = vadd.f32 %v453, %v1376
      %1378 = vmatmul.bf16.gmra.mxu0 %v537
      %v1379 = vpop.f32.mrf.mxu0
      %v1380 = vadd.f32 %v453, %v1379
      %v1381 = vpop.f32.mrf.mxu0
      %v1382 = vadd.f32 %v453, %v1381
      %1383 = vmatmul.bf16.gmra.mxu0 %v538
      %v1384 = vpop.f32.mrf.mxu0
      %v1385 = vadd.f32 %v453, %v1384
      %v1386 = vpop.f32.mrf.mxu0
      %v1387 = vadd.f32 %v453, %v1386
      %1388 = vmatmul.bf16.gmra.mxu0 %v539
      %v1389 = vpop.f32.mrf.mxu0
      %v1390 = vadd.f32 %v453, %v1389
      %v1391 = vpop.f32.mrf.mxu0
      %v1392 = vadd.f32 %v453, %v1391
      %1393 = vmatmul.bf16.gmra.mxu0 %v540
      %v1394 = vpop.f32.mrf.mxu0
      %v1395 = vadd.f32 %v453, %v1394
      %v1396 = vpop.f32.mrf.mxu0
      %v1397 = vadd.f32 %v453, %v1396
      %1398 = vmatmul.bf16.gmra.mxu0 %v541
      %v1399 = vpop.f32.mrf.mxu0
      %v1400 = vadd.f32 %v453, %v1399
      %v1401 = vpop.f32.mrf.mxu0
      %v1402 = vadd.f32 %v453, %v1401
      %1403 = vmatmul.bf16.gmra.mxu0 %v542
      %v1404 = vpop.f32.mrf.mxu0
      %v1405 = vadd.f32 %v453, %v1404
      %v1406 = vpop.f32.mrf.mxu0
      %v1407 = vadd.f32 %v453, %v1406
      %1408 = vmatmul.bf16.gmra.mxu0 %v543
      %v1409 = vpop.f32.mrf.mxu0
      %v1410 = vadd.f32 %v453, %v1409
      %v1411 = vpop.f32.mrf.mxu0
      %v1412 = vadd.f32 %v453, %v1411
      %1413 = vdwg.mxu0
      %1414 = vmatpush.bf16.msra.mxu0 %v814
      %1415 = vmatpush.bf16.msra.mxu0 %v806
      %1416 = vmatpush.bf16.msra.mxu0 %v798
      %1417 = vmatpush.bf16.msra.mxu0 %v790
      %1418 = vmatpush.bf16.msra.mxu0 %v782
      %1419 = vmatpush.bf16.msra.mxu0 %v774
      %1420 = vmatpush.bf16.msra.mxu0 %v766
      %1421 = vmatpush.bf16.msra.mxu0 %v758
      %1422 = vmatmul.bf16.gmra.mxu0 %v528
      %v1423 = vpop.f32.mrf.mxu0
      %v1424 = vadd.f32 %v454, %v1423
      %v1425 = vpop.f32.mrf.mxu0
      %v1426 = vadd.f32 %v454, %v1425
      %1427 = vmatmul.bf16.gmra.mxu0 %v529
      %v1428 = vpop.f32.mrf.mxu0
      %v1429 = vadd.f32 %v454, %v1428
      %v1430 = vpop.f32.mrf.mxu0
      %v1431 = vadd.f32 %v454, %v1430
      %1432 = vmatmul.bf16.gmra.mxu0 %v530
      %v1433 = vpop.f32.mrf.mxu0
      %v1434 = vadd.f32 %v454, %v1433
      %v1435 = vpop.f32.mrf.mxu0
      %v1436 = vadd.f32 %v454, %v1435
      %1437 = vmatmul.bf16.gmra.mxu0 %v531
      %v1438 = vpop.f32.mrf.mxu0
      %v1439 = vadd.f32 %v454, %v1438
      %v1440 = vpop.f32.mrf.mxu0
      %v1441 = vadd.f32 %v454, %v1440
      %1442 = vmatmul.bf16.gmra.mxu0 %v532
      %v1443 = vpop.f32.mrf.mxu0
      %v1444 = vadd.f32 %v454, %v1443
      %v1445 = vpop.f32.mrf.mxu0
      %v1446 = vadd.f32 %v454, %v1445
      %1447 = vmatmul.bf16.gmra.mxu0 %v533
      %v1448 = vpop.f32.mrf.mxu0
      %v1449 = vadd.f32 %v454, %v1448
      %v1450 = vpop.f32.mrf.mxu0
      %v1451 = vadd.f32 %v454, %v1450
      %1452 = vmatmul.bf16.gmra.mxu0 %v534
      %v1453 = vpop.f32.mrf.mxu0
      %v1454 = vadd.f32 %v454, %v1453
      %v1455 = vpop.f32.mrf.mxu0
      %v1456 = vadd.f32 %v454, %v1455
      %1457 = vmatmul.bf16.gmra.mxu0 %v535
      %v1458 = vpop.f32.mrf.mxu0
      %v1459 = vadd.f32 %v454, %v1458
      %v1460 = vpop.f32.mrf.mxu0
      %v1461 = vadd.f32 %v454, %v1460
      %1462 = vmatmul.bf16.gmra.mxu0 %v536
      %v1463 = vpop.f32.mrf.mxu0
      %v1464 = vadd.f32 %v454, %v1463
      %v1465 = vpop.f32.mrf.mxu0
      %v1466 = vadd.f32 %v454, %v1465
      %1467 = vmatmul.bf16.gmra.mxu0 %v537
      %v1468 = vpop.f32.mrf.mxu0
      %v1469 = vadd.f32 %v454, %v1468
      %v1470 = vpop.f32.mrf.mxu0
      %v1471 = vadd.f32 %v454, %v1470
      %1472 = vmatmul.bf16.gmra.mxu0 %v538
      %v1473 = vpop.f32.mrf.mxu0
      %v1474 = vadd.f32 %v454, %v1473
      %v1475 = vpop.f32.mrf.mxu0
      %v1476 = vadd.f32 %v454, %v1475
      %1477 = vmatmul.bf16.gmra.mxu0 %v539
      %v1478 = vpop.f32.mrf.mxu0
      %v1479 = vadd.f32 %v454, %v1478
      %v1480 = vpop.f32.mrf.mxu0
      %v1481 = vadd.f32 %v454, %v1480
      %1482 = vmatmul.bf16.gmra.mxu0 %v540
      %v1483 = vpop.f32.mrf.mxu0
      %v1484 = vadd.f32 %v454, %v1483
      %v1485 = vpop.f32.mrf.mxu0
      %v1486 = vadd.f32 %v454, %v1485
      %1487 = vmatmul.bf16.gmra.mxu0 %v541
      %v1488 = vpop.f32.mrf.mxu0
      %v1489 = vadd.f32 %v454, %v1488
      %v1490 = vpop.f32.mrf.mxu0
      %v1491 = vadd.f32 %v454, %v1490
      %1492 = vmatmul.bf16.gmra.mxu0 %v542
      %v1493 = vpop.f32.mrf.mxu0
      %v1494 = vadd.f32 %v454, %v1493
      %v1495 = vpop.f32.mrf.mxu0
      %v1496 = vadd.f32 %v454, %v1495
      %1497 = vmatmul.bf16.gmra.mxu0 %v543
      %v1498 = vpop.f32.mrf.mxu0
      %v1499 = vadd.f32 %v454, %v1498
      %v1500 = vpop.f32.mrf.mxu0
      %v1501 = vadd.f32 %v454, %v1500
      %1502 = vdwg.mxu0
      %1503 = vmatpush.bf16.msra.mxu0 %v815
      %1504 = vmatpush.bf16.msra.mxu0 %v807
      %1505 = vmatpush.bf16.msra.mxu0 %v799
      %1506 = vmatpush.bf16.msra.mxu0 %v791
      %1507 = vmatpush.bf16.msra.mxu0 %v783
      %1508 = vmatpush.bf16.msra.mxu0 %v775
      %1509 = vmatpush.bf16.msra.mxu0 %v767
      %1510 = vmatpush.bf16.msra.mxu0 %v759
      %1511 = vmatmul.bf16.gmra.mxu0 %v528
      %v1512 = vpop.f32.mrf.mxu0
      %v1513 = vadd.f32 %v455, %v1512
      %v1514 = vpop.f32.mrf.mxu0
      %v1515 = vadd.f32 %v455, %v1514
      %1516 = vmatmul.bf16.gmra.mxu0 %v529
      %v1517 = vpop.f32.mrf.mxu0
      %v1518 = vadd.f32 %v455, %v1517
      %v1519 = vpop.f32.mrf.mxu0
      %v1520 = vadd.f32 %v455, %v1519
      %1521 = vmatmul.bf16.gmra.mxu0 %v530
      %v1522 = vpop.f32.mrf.mxu0
      %v1523 = vadd.f32 %v455, %v1522
      %v1524 = vpop.f32.mrf.mxu0
      %v1525 = vadd.f32 %v455, %v1524
      %1526 = vmatmul.bf16.gmra.mxu0 %v531
      %v1527 = vpop.f32.mrf.mxu0
      %v1528 = vadd.f32 %v455, %v1527
      %v1529 = vpop.f32.mrf.mxu0
      %v1530 = vadd.f32 %v455, %v1529
      %1531 = vmatmul.bf16.gmra.mxu0 %v532
      %v1532 = vpop.f32.mrf.mxu0
      %v1533 = vadd.f32 %v455, %v1532
      %v1534 = vpop.f32.mrf.mxu0
      %v1535 = vadd.f32 %v455, %v1534
      %1536 = vmatmul.bf16.gmra.mxu0 %v533
      %v1537 = vpop.f32.mrf.mxu0
      %v1538 = vadd.f32 %v455, %v1537
      %v1539 = vpop.f32.mrf.mxu0
      %v1540 = vadd.f32 %v455, %v1539
      %1541 = vmatmul.bf16.gmra.mxu0 %v534
      %v1542 = vpop.f32.mrf.mxu0
      %v1543 = vadd.f32 %v455, %v1542
      %v1544 = vpop.f32.mrf.mxu0
      %v1545 = vadd.f32 %v455, %v1544
      %1546 = vmatmul.bf16.gmra.mxu0 %v535
      %v1547 = vpop.f32.mrf.mxu0
      %v1548 = vadd.f32 %v455, %v1547
      %v1549 = vpop.f32.mrf.mxu0
      %v1550 = vadd.f32 %v455, %v1549
      %1551 = vmatmul.bf16.gmra.mxu0 %v536
      %v1552 = vpop.f32.mrf.mxu0
      %v1553 = vadd.f32 %v455, %v1552
      %v1554 = vpop.f32.mrf.mxu0
      %v1555 = vadd.f32 %v455, %v1554
      %1556 = vmatmul.bf16.gmra.mxu0 %v537
      %v1557 = vpop.f32.mrf.mxu0
      %v1558 = vadd.f32 %v455, %v1557
      %v1559 = vpop.f32.mrf.mxu0
      %v1560 = vadd.f32 %v455, %v1559
      %1561 = vmatmul.bf16.gmra.mxu0 %v538
      %v1562 = vpop.f32.mrf.mxu0
      %v1563 = vadd.f32 %v455, %v1562
      %v1564 = vpop.f32.mrf.mxu0
      %v1565 = vadd.f32 %v455, %v1564
      %1566 = vmatmul.bf16.gmra.mxu0 %v539
      %v1567 = vpop.f32.mrf.mxu0
      %v1568 = vadd.f32 %v455, %v1567
      %v1569 = vpop.f32.mrf.mxu0
      %v1570 = vadd.f32 %v455, %v1569
      %1571 = vmatmul.bf16.gmra.mxu0 %v540
      %v1572 = vpop.f32.mrf.mxu0
      %v1573 = vadd.f32 %v455, %v1572
      %v1574 = vpop.f32.mrf.mxu0
      %v1575 = vadd.f32 %v455, %v1574
      %1576 = vmatmul.bf16.gmra.mxu0 %v541
      %v1577 = vpop.f32.mrf.mxu0
      %v1578 = vadd.f32 %v455, %v1577
      %v1579 = vpop.f32.mrf.mxu0
      %v1580 = vadd.f32 %v455, %v1579
      %1581 = vmatmul.bf16.gmra.mxu0 %v542
      %v1582 = vpop.f32.mrf.mxu0
      %v1583 = vadd.f32 %v455, %v1582
      %v1584 = vpop.f32.mrf.mxu0
      %v1585 = vadd.f32 %v455, %v1584
      %1586 = vmatmul.bf16.gmra.mxu0 %v543
      %v1587 = vpop.f32.mrf.mxu0
      %v1588 = vadd.f32 %v455, %v1587
      %v1589 = vpop.f32.mrf.mxu0
      %v1590 = vadd.f32 %v455, %v1589
      %1591 = vdwg.mxu0
      %v1592 = vpack.c.bf16 %v979, %v890
      %v1593 = vpack.c.bf16 %v1157, %v1068
      %v1594 = vpack.c.bf16 %v1335, %v1246
      %v1595 = vpack.c.bf16 %v1513, %v1424
      %v1596 = vpack.c.bf16 %v981, %v892
      %v1597 = vpack.c.bf16 %v1159, %v1070
      %v1598 = vpack.c.bf16 %v1337, %v1248
      %v1599 = vpack.c.bf16 %v1515, %v1426
      %v1600 = vpack.c.bf16 %v984, %v895
      %v1601 = vpack.c.bf16 %v1162, %v1073
      %v1602 = vpack.c.bf16 %v1340, %v1251
      %v1603 = vpack.c.bf16 %v1518, %v1429
      %v1604 = vpack.c.bf16 %v986, %v897
      %v1605 = vpack.c.bf16 %v1164, %v1075
      %v1606 = vpack.c.bf16 %v1342, %v1253
      %v1607 = vpack.c.bf16 %v1520, %v1431
      %v1608 = vpack.c.bf16 %v989, %v900
      %v1609 = vpack.c.bf16 %v1167, %v1078
      %v1610 = vpack.c.bf16 %v1345, %v1256
      %v1611 = vpack.c.bf16 %v1523, %v1434
      %v1612 = vpack.c.bf16 %v991, %v902
      %v1613 = vpack.c.bf16 %v1169, %v1080
      %v1614 = vpack.c.bf16 %v1347, %v1258
      %v1615 = vpack.c.bf16 %v1525, %v1436
      %v1616 = vpack.c.bf16 %v994, %v905
      %v1617 = vpack.c.bf16 %v1172, %v1083
      %v1618 = vpack.c.bf16 %v1350, %v1261
      %v1619 = vpack.c.bf16 %v1528, %v1439
      %v1620 = vpack.c.bf16 %v996, %v907
      %v1621 = vpack.c.bf16 %v1174, %v1085
      %v1622 = vpack.c.bf16 %v1352, %v1263
      %v1623 = vpack.c.bf16 %v1530, %v1441
      %v1624 = vpack.c.bf16 %v999, %v910
      %v1625 = vpack.c.bf16 %v1177, %v1088
      %v1626 = vpack.c.bf16 %v1355, %v1266
      %v1627 = vpack.c.bf16 %v1533, %v1444
      %v1628 = vpack.c.bf16 %v1001, %v912
      %v1629 = vpack.c.bf16 %v1179, %v1090
      %v1630 = vpack.c.bf16 %v1357, %v1268
      %v1631 = vpack.c.bf16 %v1535, %v1446
      %v1632 = vpack.c.bf16 %v1004, %v915
      %v1633 = vpack.c.bf16 %v1182, %v1093
      %v1634 = vpack.c.bf16 %v1360, %v1271
      %v1635 = vpack.c.bf16 %v1538, %v1449
      %v1636 = vpack.c.bf16 %v1006, %v917
      %v1637 = vpack.c.bf16 %v1184, %v1095
      %v1638 = vpack.c.bf16 %v1362, %v1273
      %v1639 = vpack.c.bf16 %v1540, %v1451
      %v1640 = vpack.c.bf16 %v1009, %v920
      %v1641 = vpack.c.bf16 %v1187, %v1098
      %v1642 = vpack.c.bf16 %v1365, %v1276
      %v1643 = vpack.c.bf16 %v1543, %v1454
      %v1644 = vpack.c.bf16 %v1011, %v922
      %v1645 = vpack.c.bf16 %v1189, %v1100
      %v1646 = vpack.c.bf16 %v1367, %v1278
      %v1647 = vpack.c.bf16 %v1545, %v1456
      %v1648 = vpack.c.bf16 %v1014, %v925
      %v1649 = vpack.c.bf16 %v1192, %v1103
      %v1650 = vpack.c.bf16 %v1370, %v1281
      %v1651 = vpack.c.bf16 %v1548, %v1459
      %v1652 = vpack.c.bf16 %v1016, %v927
      %v1653 = vpack.c.bf16 %v1194, %v1105
      %v1654 = vpack.c.bf16 %v1372, %v1283
      %v1655 = vpack.c.bf16 %v1550, %v1461
      %v1656 = vpack.c.bf16 %v1019, %v930
      %v1657 = vpack.c.bf16 %v1197, %v1108
      %v1658 = vpack.c.bf16 %v1375, %v1286
      %v1659 = vpack.c.bf16 %v1553, %v1464
      %v1660 = vpack.c.bf16 %v1021, %v932
      %v1661 = vpack.c.bf16 %v1199, %v1110
      %v1662 = vpack.c.bf16 %v1377, %v1288
      %v1663 = vpack.c.bf16 %v1555, %v1466
      %v1664 = vpack.c.bf16 %v1024, %v935
      %v1665 = vpack.c.bf16 %v1202, %v1113
      %v1666 = vpack.c.bf16 %v1380, %v1291
      %v1667 = vpack.c.bf16 %v1558, %v1469
      %v1668 = vpack.c.bf16 %v1026, %v937
      %v1669 = vpack.c.bf16 %v1204, %v1115
      %v1670 = vpack.c.bf16 %v1382, %v1293
      %v1671 = vpack.c.bf16 %v1560, %v1471
      %v1672 = vpack.c.bf16 %v1029, %v940
      %v1673 = vpack.c.bf16 %v1207, %v1118
      %v1674 = vpack.c.bf16 %v1385, %v1296
      %v1675 = vpack.c.bf16 %v1563, %v1474
      %v1676 = vpack.c.bf16 %v1031, %v942
      %v1677 = vpack.c.bf16 %v1209, %v1120
      %v1678 = vpack.c.bf16 %v1387, %v1298
      %v1679 = vpack.c.bf16 %v1565, %v1476
      %v1680 = vpack.c.bf16 %v1034, %v945
      %v1681 = vpack.c.bf16 %v1212, %v1123
      %v1682 = vpack.c.bf16 %v1390, %v1301
      %v1683 = vpack.c.bf16 %v1568, %v1479
      %v1684 = vpack.c.bf16 %v1036, %v947
      %v1685 = vpack.c.bf16 %v1214, %v1125
      %v1686 = vpack.c.bf16 %v1392, %v1303
      %v1687 = vpack.c.bf16 %v1570, %v1481
      %v1688 = vpack.c.bf16 %v1039, %v950
      %v1689 = vpack.c.bf16 %v1217, %v1128
      %v1690 = vpack.c.bf16 %v1395, %v1306
      %v1691 = vpack.c.bf16 %v1573, %v1484
      %v1692 = vpack.c.bf16 %v1041, %v952
      %v1693 = vpack.c.bf16 %v1219, %v1130
      %v1694 = vpack.c.bf16 %v1397, %v1308
      %v1695 = vpack.c.bf16 %v1575, %v1486
      %v1696 = vpack.c.bf16 %v1044, %v955
      %v1697 = vpack.c.bf16 %v1222, %v1133
      %v1698 = vpack.c.bf16 %v1400, %v1311
      %v1699 = vpack.c.bf16 %v1578, %v1489
      %v1700 = vpack.c.bf16 %v1046, %v957
      %v1701 = vpack.c.bf16 %v1224, %v1135
      %v1702 = vpack.c.bf16 %v1402, %v1313
      %v1703 = vpack.c.bf16 %v1580, %v1491
      %v1704 = vpack.c.bf16 %v1049, %v960
      %v1705 = vpack.c.bf16 %v1227, %v1138
      %v1706 = vpack.c.bf16 %v1405, %v1316
      %v1707 = vpack.c.bf16 %v1583, %v1494
      %v1708 = vpack.c.bf16 %v1051, %v962
      %v1709 = vpack.c.bf16 %v1229, %v1140
      %v1710 = vpack.c.bf16 %v1407, %v1318
      %v1711 = vpack.c.bf16 %v1585, %v1496
      %v1712 = vpack.c.bf16 %v1054, %v965
      %v1713 = vpack.c.bf16 %v1232, %v1143
      %v1714 = vpack.c.bf16 %v1410, %v1321
      %v1715 = vpack.c.bf16 %v1588, %v1499
      %v1716 = vpack.c.bf16 %v1056, %v967
      %v1717 = vpack.c.bf16 %v1234, %v1145
      %v1718 = vpack.c.bf16 %v1412, %v1323
      %v1719 = vpack.c.bf16 %v1590, %v1501
      %1720 = vst [vmem:[%s272] sm:$0xff] %v1592
      %1721 = vst [vmem:[%s272 + $0x8] sm:$0xff] %v1593
      %1722 = vst [vmem:[%s272 + $0x10] sm:$0xff] %v1594
      %1723 = vst [vmem:[%s272 + $0x18] sm:$0xff] %v1595
      %1724 = vst [vmem:[%s272 + $0x20] sm:$0xff] %v1596
      %1725 = vst [vmem:[%s272 + $0x28] sm:$0xff] %v1597
      %1726 = vst [vmem:[%s272 + $0x30] sm:$0xff] %v1598
      %1727 = vst [vmem:[%s272 + $0x38] sm:$0xff] %v1599
      %1728 = vst [vmem:[%s272 + $0x40] sm:$0xff] %v1600
      %1729 = vst [vmem:[%s272 + $0x48] sm:$0xff] %v1601
      %1730 = vst [vmem:[%s272 + $0x50] sm:$0xff] %v1602
      %1731 = vst [vmem:[%s272 + $0x58] sm:$0xff] %v1603
      %1732 = vst [vmem:[%s272 + $0x60] sm:$0xff] %v1604
      %1733 = vst [vmem:[%s272 + $0x68] sm:$0xff] %v1605
      %1734 = vst [vmem:[%s272 + $0x70] sm:$0xff] %v1606
      %1735 = vst [vmem:[%s272 + $0x78] sm:$0xff] %v1607
      %1736 = vst [vmem:[%s272 + $0x80] sm:$0xff] %v1608
      %1737 = vst [vmem:[%s272 + $0x88] sm:$0xff] %v1609
      %1738 = vst [vmem:[%s272 + $0x90] sm:$0xff] %v1610
      %1739 = vst [vmem:[%s272 + $0x98] sm:$0xff] %v1611
      %1740 = vst [vmem:[%s272 + $0xa0] sm:$0xff] %v1612
      %1741 = vst [vmem:[%s272 + $0xa8] sm:$0xff] %v1613
      %1742 = vst [vmem:[%s272 + $0xb0] sm:$0xff] %v1614
      %1743 = vst [vmem:[%s272 + $0xb8] sm:$0xff] %v1615
      %1744 = vst [vmem:[%s272 + $0xc0] sm:$0xff] %v1616
      %1745 = vst [vmem:[%s272 + $0xc8] sm:$0xff] %v1617
      %1746 = vst [vmem:[%s272 + $0xd0] sm:$0xff] %v1618
      %1747 = vst [vmem:[%s272 + $0xd8] sm:$0xff] %v1619
      %1748 = vst [vmem:[%s272 + $0xe0] sm:$0xff] %v1620
      %1749 = vst [vmem:[%s272 + $0xe8] sm:$0xff] %v1621
      %1750 = vst [vmem:[%s272 + $0xf0] sm:$0xff] %v1622
      %1751 = vst [vmem:[%s272 + $0xf8] sm:$0xff] %v1623
      %1752 = vst [vmem:[%s272 + $0x100] sm:$0xff] %v1624
      %1753 = vst [vmem:[%s272 + $0x108] sm:$0xff] %v1625
      %1754 = vst [vmem:[%s272 + $0x110] sm:$0xff] %v1626
      %1755 = vst [vmem:[%s272 + $0x118] sm:$0xff] %v1627
      %1756 = vst [vmem:[%s272 + $0x120] sm:$0xff] %v1628
      %1757 = vst [vmem:[%s272 + $0x128] sm:$0xff] %v1629
      %1758 = vst [vmem:[%s272 + $0x130] sm:$0xff] %v1630
      %1759 = vst [vmem:[%s272 + $0x138] sm:$0xff] %v1631
      %1760 = vst [vmem:[%s272 + $0x140] sm:$0xff] %v1632
      %1761 = vst [vmem:[%s272 + $0x148] sm:$0xff] %v1633
      %1762 = vst [vmem:[%s272 + $0x150] sm:$0xff] %v1634
      %1763 = vst [vmem:[%s272 + $0x158] sm:$0xff] %v1635
      %1764 = vst [vmem:[%s272 + $0x160] sm:$0xff] %v1636
      %1765 = vst [vmem:[%s272 + $0x168] sm:$0xff] %v1637
      %1766 = vst [vmem:[%s272 + $0x170] sm:$0xff] %v1638
      %1767 = vst [vmem:[%s272 + $0x178] sm:$0xff] %v1639
      %1768 = vst [vmem:[%s272 + $0x180] sm:$0xff] %v1640
      %1769 = vst [vmem:[%s272 + $0x188] sm:$0xff] %v1641
      %1770 = vst [vmem:[%s272 + $0x190] sm:$0xff] %v1642
      %1771 = vst [vmem:[%s272 + $0x198] sm:$0xff] %v1643
      %1772 = vst [vmem:[%s272 + $0x1a0] sm:$0xff] %v1644
      %1773 = vst [vmem:[%s272 + $0x1a8] sm:$0xff] %v1645
      %1774 = vst [vmem:[%s272 + $0x1b0] sm:$0xff] %v1646
      %1775 = vst [vmem:[%s272 + $0x1b8] sm:$0xff] %v1647
      %1776 = vst [vmem:[%s272 + $0x1c0] sm:$0xff] %v1648
      %1777 = vst [vmem:[%s272 + $0x1c8] sm:$0xff] %v1649
      %1778 = vst [vmem:[%s272 + $0x1d0] sm:$0xff] %v1650
      %1779 = vst [vmem:[%s272 + $0x1d8] sm:$0xff] %v1651
      %1780 = vst [vmem:[%s272 + $0x1e0] sm:$0xff] %v1652
      %1781 = vst [vmem:[%s272 + $0x1e8] sm:$0xff] %v1653
      %1782 = vst [vmem:[%s272 + $0x1f0] sm:$0xff] %v1654
      %1783 = vst [vmem:[%s272 + $0x1f8] sm:$0xff] %v1655
      %1784 = vst [vmem:[%s272 + $0x200] sm:$0xff] %v1656
      %1785 = vst [vmem:[%s272 + $0x208] sm:$0xff] %v1657
      %1786 = vst [vmem:[%s272 + $0x210] sm:$0xff] %v1658
      %1787 = vst [vmem:[%s272 + $0x218] sm:$0xff] %v1659
      %1788 = vst [vmem:[%s272 + $0x220] sm:$0xff] %v1660
      %1789 = vst [vmem:[%s272 + $0x228] sm:$0xff] %v1661
      %1790 = vst [vmem:[%s272 + $0x230] sm:$0xff] %v1662
      %1791 = vst [vmem:[%s272 + $0x238] sm:$0xff] %v1663
      %1792 = vst [vmem:[%s272 + $0x240] sm:$0xff] %v1664
      %1793 = vst [vmem:[%s272 + $0x248] sm:$0xff] %v1665
      %1794 = vst [vmem:[%s272 + $0x250] sm:$0xff] %v1666
      %1795 = vst [vmem:[%s272 + $0x258] sm:$0xff] %v1667
      %1796 = vst [vmem:[%s272 + $0x260] sm:$0xff] %v1668
      %1797 = vst [vmem:[%s272 + $0x268] sm:$0xff] %v1669
      %1798 = vst [vmem:[%s272 + $0x270] sm:$0xff] %v1670
      %1799 = vst [vmem:[%s272 + $0x278] sm:$0xff] %v1671
      %1800 = vst [vmem:[%s272 + $0x280] sm:$0xff] %v1672
      %1801 = vst [vmem:[%s272 + $0x288] sm:$0xff] %v1673
      %1802 = vst [vmem:[%s272 + $0x290] sm:$0xff] %v1674
      %1803 = vst [vmem:[%s272 + $0x298] sm:$0xff] %v1675
      %1804 = vst [vmem:[%s272 + $0x2a0] sm:$0xff] %v1676
      %1805 = vst [vmem:[%s272 + $0x2a8] sm:$0xff] %v1677
      %1806 = vst [vmem:[%s272 + $0x2b0] sm:$0xff] %v1678
      %1807 = vst [vmem:[%s272 + $0x2b8] sm:$0xff] %v1679
      %1808 = vst [vmem:[%s272 + $0x2c0] sm:$0xff] %v1680
      %1809 = vst [vmem:[%s272 + $0x2c8] sm:$0xff] %v1681
      %1810 = vst [vmem:[%s272 + $0x2d0] sm:$0xff] %v1682
      %1811 = vst [vmem:[%s272 + $0x2d8] sm:$0xff] %v1683
      %1812 = vst [vmem:[%s272 + $0x2e0] sm:$0xff] %v1684
      %1813 = vst [vmem:[%s272 + $0x2e8] sm:$0xff] %v1685
      %1814 = vst [vmem:[%s272 + $0x2f0] sm:$0xff] %v1686
      %1815 = vst [vmem:[%s272 + $0x2f8] sm:$0xff] %v1687
      %1816 = vst [vmem:[%s272 + $0x300] sm:$0xff] %v1688
      %1817 = vst [vmem:[%s272 + $0x308] sm:$0xff] %v1689
      %1818 = vst [vmem:[%s272 + $0x310] sm:$0xff] %v1690
      %1819 = vst [vmem:[%s272 + $0x318] sm:$0xff] %v1691
      %1820 = vst [vmem:[%s272 + $0x320] sm:$0xff] %v1692
      %1821 = vst [vmem:[%s272 + $0x328] sm:$0xff] %v1693
      %1822 = vst [vmem:[%s272 + $0x330] sm:$0xff] %v1694
      %1823 = vst [vmem:[%s272 + $0x338] sm:$0xff] %v1695
      %1824 = vst [vmem:[%s272 + $0x340] sm:$0xff] %v1696
      %1825 = vst [vmem:[%s272 + $0x348] sm:$0xff] %v1697
      %1826 = vst [vmem:[%s272 + $0x350] sm:$0xff] %v1698
      %1827 = vst [vmem:[%s272 + $0x358] sm:$0xff] %v1699
      %1828 = vst [vmem:[%s272 + $0x360] sm:$0xff] %v1700
      %1829 = vst [vmem:[%s272 + $0x368] sm:$0xff] %v1701
      %1830 = vst [vmem:[%s272 + $0x370] sm:$0xff] %v1702
      %1831 = vst [vmem:[%s272 + $0x378] sm:$0xff] %v1703
      %1832 = vst [vmem:[%s272 + $0x380] sm:$0xff] %v1704
      %1833 = vst [vmem:[%s272 + $0x388] sm:$0xff] %v1705
      %1834 = vst [vmem:[%s272 + $0x390] sm:$0xff] %v1706
      %1835 = vst [vmem:[%s272 + $0x398] sm:$0xff] %v1707
      %1836 = vst [vmem:[%s272 + $0x3a0] sm:$0xff] %v1708
      %1837 = vst [vmem:[%s272 + $0x3a8] sm:$0xff] %v1709
      %1838 = vst [vmem:[%s272 + $0x3b0] sm:$0xff] %v1710
      %1839 = vst [vmem:[%s272 + $0x3b8] sm:$0xff] %v1711
      %1840 = vst [vmem:[%s272 + $0x3c0] sm:$0xff] %v1712
      %1841 = vst [vmem:[%s272 + $0x3c8] sm:$0xff] %v1713
      %1842 = vst [vmem:[%s272 + $0x3d0] sm:$0xff] %v1714
      %1843 = vst [vmem:[%s272 + $0x3d8] sm:$0xff] %v1715
      %1844 = vst [vmem:[%s272 + $0x3e0] sm:$0xff] %v1716
      %1845 = vst [vmem:[%s272 + $0x3e8] sm:$0xff] %v1717
      %1846 = vst [vmem:[%s272 + $0x3f0] sm:$0xff] %v1718
      %1847 = vst [vmem:[%s272 + $0x3f8] sm:$0xff] %v1719
      %v1848 = vld [vmem:[#allocation2] sm:$0xff]
      %v1849 = vld [vmem:[#allocation2 + $0x8] sm:$0xff]
      %v1850 = vld [vmem:[#allocation2 + $0x10] sm:$0xff]
      %v1851 = vld [vmem:[#allocation2 + $0x18] sm:$0xff]
      %v1852 = vld [vmem:[#allocation2 + $0x20] sm:$0xff]
      %v1853 = vld [vmem:[#allocation2 + $0x28] sm:$0xff]
      %v1854 = vld [vmem:[#allocation2 + $0x30] sm:$0xff]
      %v1855 = vld [vmem:[#allocation2 + $0x38] sm:$0xff]
      %v1856 = vld [vmem:[#allocation2 + $0x40] sm:$0xff]
      %v1857 = vld [vmem:[#allocation2 + $0x48] sm:$0xff]
      %v1858 = vld [vmem:[#allocation2 + $0x50] sm:$0xff]
      %v1859 = vld [vmem:[#allocation2 + $0x58] sm:$0xff]
      %v1860 = vld [vmem:[#allocation2 + $0x60] sm:$0xff]
      %v1861 = vld [vmem:[#allocation2 + $0x68] sm:$0xff]
      %v1862 = vld [vmem:[#allocation2 + $0x70] sm:$0xff]
      %v1863 = vld [vmem:[#allocation2 + $0x78] sm:$0xff]
      %v1864 = vld [vmem:[#allocation2 + $0x80] sm:$0xff]
      %v1865 = vld [vmem:[#allocation2 + $0x88] sm:$0xff]
      %v1866 = vld [vmem:[#allocation2 + $0x90] sm:$0xff]
      %v1867 = vld [vmem:[#allocation2 + $0x98] sm:$0xff]
      %v1868 = vld [vmem:[#allocation2 + $0xa0] sm:$0xff]
      %v1869 = vld [vmem:[#allocation2 + $0xa8] sm:$0xff]
      %v1870 = vld [vmem:[#allocation2 + $0xb0] sm:$0xff]
      %v1871 = vld [vmem:[#allocation2 + $0xb8] sm:$0xff]
      %v1872 = vld [vmem:[#allocation2 + $0xc0] sm:$0xff]
      %v1873 = vld [vmem:[#allocation2 + $0xc8] sm:$0xff]
      %v1874 = vld [vmem:[#allocation2 + $0xd0] sm:$0xff]
      %v1875 = vld [vmem:[#allocation2 + $0xd8] sm:$0xff]
      %v1876 = vld [vmem:[#allocation2 + $0xe0] sm:$0xff]
      %v1877 = vld [vmem:[#allocation2 + $0xe8] sm:$0xff]
      %v1878 = vld [vmem:[#allocation2 + $0xf0] sm:$0xff]
      %v1879 = vld [vmem:[#allocation2 + $0xf8] sm:$0xff]
      %v1880 = vmax.f32 %v890, %v979
      %v1881 = vmax.f32 %v1880, %v1068
      %v1882 = vmax.f32 %v1881, %v1157
      %v1883 = vmax.f32 %v1882, %v1246
      %v1884 = vmax.f32 %v1883, %v1335
      %v1885 = vmax.f32 %v1884, %v1424
      %v1886 = vmax.f32 %v1885, %v1513
      %1887 = vmax.xlane.f32.xlu0 %v1886
      %v1888 = vpop.xlane.xlu0 %1887
      %v1889 = vmax.f32 %v892, %v981
      %v1890 = vmax.f32 %v1889, %v1070
      %v1891 = vmax.f32 %v1890, %v1159
      %v1892 = vmax.f32 %v1891, %v1248
      %v1893 = vmax.f32 %v1892, %v1337
      %v1894 = vmax.f32 %v1893, %v1426
      %v1895 = vmax.f32 %v1894, %v1515
      %1896 = vmax.xlane.f32.xlu0 %v1895
      %v1897 = vpop.xlane.xlu0 %1896
      %v1898 = vmax.f32 %v895, %v984
      %v1899 = vmax.f32 %v1898, %v1073
      %v1900 = vmax.f32 %v1899, %v1162
      %v1901 = vmax.f32 %v1900, %v1251
      %v1902 = vmax.f32 %v1901, %v1340
      %v1903 = vmax.f32 %v1902, %v1429
      %v1904 = vmax.f32 %v1903, %v1518
      %1905 = vmax.xlane.f32.xlu0 %v1904
      %v1906 = vpop.xlane.xlu0 %1905
      %v1907 = vmax.f32 %v897, %v986
      %v1908 = vmax.f32 %v1907, %v1075
      %v1909 = vmax.f32 %v1908, %v1164
      %v1910 = vmax.f32 %v1909, %v1253
      %v1911 = vmax.f32 %v1910, %v1342
      %v1912 = vmax.f32 %v1911, %v1431
      %v1913 = vmax.f32 %v1912, %v1520
      %1914 = vmax.xlane.f32.xlu0 %v1913
      %v1915 = vpop.xlane.xlu0 %1914
      %v1916 = vmax.f32 %v900, %v989
      %v1917 = vmax.f32 %v1916, %v1078
      %v1918 = vmax.f32 %v1917, %v1167
      %v1919 = vmax.f32 %v1918, %v1256
      %v1920 = vmax.f32 %v1919, %v1345
      %v1921 = vmax.f32 %v1920, %v1434
      %v1922 = vmax.f32 %v1921, %v1523
      %1923 = vmax.xlane.f32.xlu0 %v1922
      %v1924 = vpop.xlane.xlu0 %1923
      %v1925 = vmax.f32 %v902, %v991
      %v1926 = vmax.f32 %v1925, %v1080
      %v1927 = vmax.f32 %v1926, %v1169
      %v1928 = vmax.f32 %v1927, %v1258
      %v1929 = vmax.f32 %v1928, %v1347
      %v1930 = vmax.f32 %v1929, %v1436
      %v1931 = vmax.f32 %v1930, %v1525
      %1932 = vmax.xlane.f32.xlu0 %v1931
      %v1933 = vpop.xlane.xlu0 %1932
      %v1934 = vmax.f32 %v905, %v994
      %v1935 = vmax.f32 %v1934, %v1083
      %v1936 = vmax.f32 %v1935, %v1172
      %v1937 = vmax.f32 %v1936, %v1261
      %v1938 = vmax.f32 %v1937, %v1350
      %v1939 = vmax.f32 %v1938, %v1439
      %v1940 = vmax.f32 %v1939, %v1528
      %1941 = vmax.xlane.f32.xlu0 %v1940
      %v1942 = vpop.xlane.xlu0 %1941
      %v1943 = vmax.f32 %v907, %v996
      %v1944 = vmax.f32 %v1943, %v1085
      %v1945 = vmax.f32 %v1944, %v1174
      %v1946 = vmax.f32 %v1945, %v1263
      %v1947 = vmax.f32 %v1946, %v1352
      %v1948 = vmax.f32 %v1947, %v1441
      %v1949 = vmax.f32 %v1948, %v1530
      %1950 = vmax.xlane.f32.xlu0 %v1949
      %v1951 = vpop.xlane.xlu0 %1950
      %v1952 = vmax.f32 %v910, %v999
      %v1953 = vmax.f32 %v1952, %v1088
      %v1954 = vmax.f32 %v1953, %v1177
      %v1955 = vmax.f32 %v1954, %v1266
      %v1956 = vmax.f32 %v1955, %v1355
      %v1957 = vmax.f32 %v1956, %v1444
      %v1958 = vmax.f32 %v1957, %v1533
      %1959 = vmax.xlane.f32.xlu0 %v1958
      %v1960 = vpop.xlane.xlu0 %1959
      %v1961 = vmax.f32 %v912, %v1001
      %v1962 = vmax.f32 %v1961, %v1090
      %v1963 = vmax.f32 %v1962, %v1179
      %v1964 = vmax.f32 %v1963, %v1268
      %v1965 = vmax.f32 %v1964, %v1357
      %v1966 = vmax.f32 %v1965, %v1446
      %v1967 = vmax.f32 %v1966, %v1535
      %1968 = vmax.xlane.f32.xlu0 %v1967
      %v1969 = vpop.xlane.xlu0 %1968
      %v1970 = vmax.f32 %v915, %v1004
      %v1971 = vmax.f32 %v1970, %v1093
      %v1972 = vmax.f32 %v1971, %v1182
      %v1973 = vmax.f32 %v1972, %v1271
      %v1974 = vmax.f32 %v1973, %v1360
      %v1975 = vmax.f32 %v1974, %v1449
      %v1976 = vmax.f32 %v1975, %v1538
      %1977 = vmax.xlane.f32.xlu0 %v1976
      %v1978 = vpop.xlane.xlu0 %1977
      %v1979 = vmax.f32 %v917, %v1006
      %v1980 = vmax.f32 %v1979, %v1095
      %v1981 = vmax.f32 %v1980, %v1184
      %v1982 = vmax.f32 %v1981, %v1273
      %v1983 = vmax.f32 %v1982, %v1362
      %v1984 = vmax.f32 %v1983, %v1451
      %v1985 = vmax.f32 %v1984, %v1540
      %1986 = vmax.xlane.f32.xlu0 %v1985
      %v1987 = vpop.xlane.xlu0 %1986
      %v1988 = vmax.f32 %v920, %v1009
      %v1989 = vmax.f32 %v1988, %v1098
      %v1990 = vmax.f32 %v1989, %v1187
      %v1991 = vmax.f32 %v1990, %v1276
      %v1992 = vmax.f32 %v1991, %v1365
      %v1993 = vmax.f32 %v1992, %v1454
      %v1994 = vmax.f32 %v1993, %v1543
      %1995 = vmax.xlane.f32.xlu0 %v1994
      %v1996 = vpop.xlane.xlu0 %1995
      %v1997 = vmax.f32 %v922, %v1011
      %v1998 = vmax.f32 %v1997, %v1100
      %v1999 = vmax.f32 %v1998, %v1189
      %v2000 = vmax.f32 %v1999, %v1278
      %v2001 = vmax.f32 %v2000, %v1367
      %v2002 = vmax.f32 %v2001, %v1456
      %v2003 = vmax.f32 %v2002, %v1545
      %2004 = vmax.xlane.f32.xlu0 %v2003
      %v2005 = vpop.xlane.xlu0 %2004
      %v2006 = vmax.f32 %v925, %v1014
      %v2007 = vmax.f32 %v2006, %v1103
      %v2008 = vmax.f32 %v2007, %v1192
      %v2009 = vmax.f32 %v2008, %v1281
      %v2010 = vmax.f32 %v2009, %v1370
      %v2011 = vmax.f32 %v2010, %v1459
      %v2012 = vmax.f32 %v2011, %v1548
      %2013 = vmax.xlane.f32.xlu0 %v2012
      %v2014 = vpop.xlane.xlu0 %2013
      %v2015 = vmax.f32 %v927, %v1016
      %v2016 = vmax.f32 %v2015, %v1105
      %v2017 = vmax.f32 %v2016, %v1194
      %v2018 = vmax.f32 %v2017, %v1283
      %v2019 = vmax.f32 %v2018, %v1372
      %v2020 = vmax.f32 %v2019, %v1461
      %v2021 = vmax.f32 %v2020, %v1550
      %2022 = vmax.xlane.f32.xlu0 %v2021
      %v2023 = vpop.xlane.xlu0 %2022
      %v2024 = vmax.f32 %v930, %v1019
      %v2025 = vmax.f32 %v2024, %v1108
      %v2026 = vmax.f32 %v2025, %v1197
      %v2027 = vmax.f32 %v2026, %v1286
      %v2028 = vmax.f32 %v2027, %v1375
      %v2029 = vmax.f32 %v2028, %v1464
      %v2030 = vmax.f32 %v2029, %v1553
      %2031 = vmax.xlane.f32.xlu0 %v2030
      %v2032 = vpop.xlane.xlu0 %2031
      %v2033 = vmax.f32 %v932, %v1021
      %v2034 = vmax.f32 %v2033, %v1110
      %v2035 = vmax.f32 %v2034, %v1199
      %v2036 = vmax.f32 %v2035, %v1288
      %v2037 = vmax.f32 %v2036, %v1377
      %v2038 = vmax.f32 %v2037, %v1466
      %v2039 = vmax.f32 %v2038, %v1555
      %2040 = vmax.xlane.f32.xlu0 %v2039
      %v2041 = vpop.xlane.xlu0 %2040
      %v2042 = vmax.f32 %v935, %v1024
      %v2043 = vmax.f32 %v2042, %v1113
      %v2044 = vmax.f32 %v2043, %v1202
      %v2045 = vmax.f32 %v2044, %v1291
      %v2046 = vmax.f32 %v2045, %v1380
      %v2047 = vmax.f32 %v2046, %v1469
      %v2048 = vmax.f32 %v2047, %v1558
      %2049 = vmax.xlane.f32.xlu0 %v2048
      %v2050 = vpop.xlane.xlu0 %2049
      %v2051 = vmax.f32 %v937, %v1026
      %v2052 = vmax.f32 %v2051, %v1115
      %v2053 = vmax.f32 %v2052, %v1204
      %v2054 = vmax.f32 %v2053, %v1293
      %v2055 = vmax.f32 %v2054, %v1382
      %v2056 = vmax.f32 %v2055, %v1471
      %v2057 = vmax.f32 %v2056, %v1560
      %2058 = vmax.xlane.f32.xlu0 %v2057
      %v2059 = vpop.xlane.xlu0 %2058
      %v2060 = vmax.f32 %v940, %v1029
      %v2061 = vmax.f32 %v2060, %v1118
      %v2062 = vmax.f32 %v2061, %v1207
      %v2063 = vmax.f32 %v2062, %v1296
      %v2064 = vmax.f32 %v2063, %v1385
      %v2065 = vmax.f32 %v2064, %v1474
      %v2066 = vmax.f32 %v2065, %v1563
      %2067 = vmax.xlane.f32.xlu0 %v2066
      %v2068 = vpop.xlane.xlu0 %2067
      %v2069 = vmax.f32 %v942, %v1031
      %v2070 = vmax.f32 %v2069, %v1120
      %v2071 = vmax.f32 %v2070, %v1209
      %v2072 = vmax.f32 %v2071, %v1298
      %v2073 = vmax.f32 %v2072, %v1387
      %v2074 = vmax.f32 %v2073, %v1476
      %v2075 = vmax.f32 %v2074, %v1565
      %2076 = vmax.xlane.f32.xlu0 %v2075
      %v2077 = vpop.xlane.xlu0 %2076
      %v2078 = vmax.f32 %v945, %v1034
      %v2079 = vmax.f32 %v2078, %v1123
      %v2080 = vmax.f32 %v2079, %v1212
      %v2081 = vmax.f32 %v2080, %v1301
      %v2082 = vmax.f32 %v2081, %v1390
      %v2083 = vmax.f32 %v2082, %v1479
      %v2084 = vmax.f32 %v2083, %v1568
      %2085 = vmax.xlane.f32.xlu0 %v2084
      %v2086 = vpop.xlane.xlu0 %2085
      %v2087 = vmax.f32 %v947, %v1036
      %v2088 = vmax.f32 %v2087, %v1125
      %v2089 = vmax.f32 %v2088, %v1214
      %v2090 = vmax.f32 %v2089, %v1303
      %v2091 = vmax.f32 %v2090, %v1392
      %v2092 = vmax.f32 %v2091, %v1481
      %v2093 = vmax.f32 %v2092, %v1570
      %2094 = vmax.xlane.f32.xlu0 %v2093
      %v2095 = vpop.xlane.xlu0 %2094
      %v2096 = vmax.f32 %v950, %v1039
      %v2097 = vmax.f32 %v2096, %v1128
      %v2098 = vmax.f32 %v2097, %v1217
      %v2099 = vmax.f32 %v2098, %v1306
      %v2100 = vmax.f32 %v2099, %v1395
      %v2101 = vmax.f32 %v2100, %v1484
      %v2102 = vmax.f32 %v2101, %v1573
      %2103 = vmax.xlane.f32.xlu0 %v2102
      %v2104 = vpop.xlane.xlu0 %2103
      %v2105 = vmax.f32 %v952, %v1041
      %v2106 = vmax.f32 %v2105, %v1130
      %v2107 = vmax.f32 %v2106, %v1219
      %v2108 = vmax.f32 %v2107, %v1308
      %v2109 = vmax.f32 %v2108, %v1397
      %v2110 = vmax.f32 %v2109, %v1486
      %v2111 = vmax.f32 %v2110, %v1575
      %2112 = vmax.xlane.f32.xlu0 %v2111
      %v2113 = vpop.xlane.xlu0 %2112
      %v2114 = vmax.f32 %v955, %v1044
      %v2115 = vmax.f32 %v2114, %v1133
      %v2116 = vmax.f32 %v2115, %v1222
      %v2117 = vmax.f32 %v2116, %v1311
      %v2118 = vmax.f32 %v2117, %v1400
      %v2119 = vmax.f32 %v2118, %v1489
      %v2120 = vmax.f32 %v2119, %v1578
      %2121 = vmax.xlane.f32.xlu0 %v2120
      %v2122 = vpop.xlane.xlu0 %2121
      %v2123 = vmax.f32 %v957, %v1046
      %v2124 = vmax.f32 %v2123, %v1135
      %v2125 = vmax.f32 %v2124, %v1224
      %v2126 = vmax.f32 %v2125, %v1313
      %v2127 = vmax.f32 %v2126, %v1402
      %v2128 = vmax.f32 %v2127, %v1491
      %v2129 = vmax.f32 %v2128, %v1580
      %2130 = vmax.xlane.f32.xlu0 %v2129
      %v2131 = vpop.xlane.xlu0 %2130
      %v2132 = vmax.f32 %v960, %v1049
      %v2133 = vmax.f32 %v2132, %v1138
      %v2134 = vmax.f32 %v2133, %v1227
      %v2135 = vmax.f32 %v2134, %v1316
      %v2136 = vmax.f32 %v2135, %v1405
      %v2137 = vmax.f32 %v2136, %v1494
      %v2138 = vmax.f32 %v2137, %v1583
      %2139 = vmax.xlane.f32.xlu0 %v2138
      %v2140 = vpop.xlane.xlu0 %2139
      %v2141 = vmax.f32 %v962, %v1051
      %v2142 = vmax.f32 %v2141, %v1140
      %v2143 = vmax.f32 %v2142, %v1229
      %v2144 = vmax.f32 %v2143, %v1318
      %v2145 = vmax.f32 %v2144, %v1407
      %v2146 = vmax.f32 %v2145, %v1496
      %v2147 = vmax.f32 %v2146, %v1585
      %2148 = vmax.xlane.f32.xlu0 %v2147
      %v2149 = vpop.xlane.xlu0 %2148
      %v2150 = vmax.f32 %v965, %v1054
      %v2151 = vmax.f32 %v2150, %v1143
      %v2152 = vmax.f32 %v2151, %v1232
      %v2153 = vmax.f32 %v2152, %v1321
      %v2154 = vmax.f32 %v2153, %v1410
      %v2155 = vmax.f32 %v2154, %v1499
      %v2156 = vmax.f32 %v2155, %v1588
      %2157 = vmax.xlane.f32.xlu0 %v2156
      %v2158 = vpop.xlane.xlu0 %2157
      %v2159 = vmax.f32 %v967, %v1056
      %v2160 = vmax.f32 %v2159, %v1145
      %v2161 = vmax.f32 %v2160, %v1234
      %v2162 = vmax.f32 %v2161, %v1323
      %v2163 = vmax.f32 %v2162, %v1412
      %v2164 = vmax.f32 %v2163, %v1501
      %v2165 = vmax.f32 %v2164, %v1590
      %2166 = vmax.xlane.f32.xlu0 %v2165
      %v2167 = vpop.xlane.xlu0 %2166
      %v2168 = vmax.f32 %v1848, %v1888
      %v2169 = vmax.f32 %v1849, %v1897
      %v2170 = vmax.f32 %v1850, %v1906
      %v2171 = vmax.f32 %v1851, %v1915
      %v2172 = vmax.f32 %v1852, %v1924
      %v2173 = vmax.f32 %v1853, %v1933
      %v2174 = vmax.f32 %v1854, %v1942
      %v2175 = vmax.f32 %v1855, %v1951
      %v2176 = vmax.f32 %v1856, %v1960
      %v2177 = vmax.f32 %v1857, %v1969
      %v2178 = vmax.f32 %v1858, %v1978
      %v2179 = vmax.f32 %v1859, %v1987
      %v2180 = vmax.f32 %v1860, %v1996
      %v2181 = vmax.f32 %v1861, %v2005
      %v2182 = vmax.f32 %v1862, %v2014
      %v2183 = vmax.f32 %v1863, %v2023
      %v2184 = vmax.f32 %v1864, %v2032
      %v2185 = vmax.f32 %v1865, %v2041
      %v2186 = vmax.f32 %v1866, %v2050
      %v2187 = vmax.f32 %v1867, %v2059
      %v2188 = vmax.f32 %v1868, %v2068
      %v2189 = vmax.f32 %v1869, %v2077
      %v2190 = vmax.f32 %v1870, %v2086
      %v2191 = vmax.f32 %v1871, %v2095
      %v2192 = vmax.f32 %v1872, %v2104
      %v2193 = vmax.f32 %v1873, %v2113
      %v2194 = vmax.f32 %v1874, %v2122
      %v2195 = vmax.f32 %v1875, %v2131
      %v2196 = vmax.f32 %v1876, %v2140
      %v2197 = vmax.f32 %v1877, %v2149
      %v2198 = vmax.f32 %v1878, %v2158
      %v2199 = vmax.f32 %v1879, %v2167
      %v2200 = vld [vmem:[#allocation3] sm:$0xff]
      %v2201 = vld [vmem:[#allocation3 + $0x8] sm:$0xff]
      %v2202 = vld [vmem:[#allocation3 + $0x10] sm:$0xff]
      %v2203 = vld [vmem:[#allocation3 + $0x18] sm:$0xff]
      %v2204 = vld [vmem:[#allocation3 + $0x20] sm:$0xff]
      %v2205 = vld [vmem:[#allocation3 + $0x28] sm:$0xff]
      %v2206 = vld [vmem:[#allocation3 + $0x30] sm:$0xff]
      %v2207 = vld [vmem:[#allocation3 + $0x38] sm:$0xff]
      %v2208 = vld [vmem:[#allocation3 + $0x40] sm:$0xff]
      %v2209 = vld [vmem:[#allocation3 + $0x48] sm:$0xff]
      %v2210 = vld [vmem:[#allocation3 + $0x50] sm:$0xff]
      %v2211 = vld [vmem:[#allocation3 + $0x58] sm:$0xff]
      %v2212 = vld [vmem:[#allocation3 + $0x60] sm:$0xff]
      %v2213 = vld [vmem:[#allocation3 + $0x68] sm:$0xff]
      %v2214 = vld [vmem:[#allocation3 + $0x70] sm:$0xff]
      %v2215 = vld [vmem:[#allocation3 + $0x78] sm:$0xff]
      %v2216 = vld [vmem:[#allocation3 + $0x80] sm:$0xff]
      %v2217 = vld [vmem:[#allocation3 + $0x88] sm:$0xff]
      %v2218 = vld [vmem:[#allocation3 + $0x90] sm:$0xff]
      %v2219 = vld [vmem:[#allocation3 + $0x98] sm:$0xff]
      %v2220 = vld [vmem:[#allocation3 + $0xa0] sm:$0xff]
      %v2221 = vld [vmem:[#allocation3 + $0xa8] sm:$0xff]
      %v2222 = vld [vmem:[#allocation3 + $0xb0] sm:$0xff]
      %v2223 = vld [vmem:[#allocation3 + $0xb8] sm:$0xff]
      %v2224 = vld [vmem:[#allocation3 + $0xc0] sm:$0xff]
      %v2225 = vld [vmem:[#allocation3 + $0xc8] sm:$0xff]
      %v2226 = vld [vmem:[#allocation3 + $0xd0] sm:$0xff]
      %v2227 = vld [vmem:[#allocation3 + $0xd8] sm:$0xff]
      %v2228 = vld [vmem:[#allocation3 + $0xe0] sm:$0xff]
      %v2229 = vld [vmem:[#allocation3 + $0xe8] sm:$0xff]
      %v2230 = vld [vmem:[#allocation3 + $0xf0] sm:$0xff]
      %v2231 = vld [vmem:[#allocation3 + $0xf8] sm:$0xff]
      %v2232 = vsub.f32 %v1848, %v2168
      %v2233 = vsub.f32 %v1849, %v2169
      %v2234 = vsub.f32 %v1850, %v2170
      %v2235 = vsub.f32 %v1851, %v2171
      %v2236 = vsub.f32 %v1852, %v2172
      %v2237 = vsub.f32 %v1853, %v2173
      %v2238 = vsub.f32 %v1854, %v2174
      %v2239 = vsub.f32 %v1855, %v2175
      %v2240 = vsub.f32 %v1856, %v2176
      %v2241 = vsub.f32 %v1857, %v2177
      %v2242 = vsub.f32 %v1858, %v2178
      %v2243 = vsub.f32 %v1859, %v2179
      %v2244 = vsub.f32 %v1860, %v2180
      %v2245 = vsub.f32 %v1861, %v2181
      %v2246 = vsub.f32 %v1862, %v2182
      %v2247 = vsub.f32 %v1863, %v2183
      %v2248 = vsub.f32 %v1864, %v2184
      %v2249 = vsub.f32 %v1865, %v2185
      %v2250 = vsub.f32 %v1866, %v2186
      %v2251 = vsub.f32 %v1867, %v2187
      %v2252 = vsub.f32 %v1868, %v2188
      %v2253 = vsub.f32 %v1869, %v2189
      %v2254 = vsub.f32 %v1870, %v2190
      %v2255 = vsub.f32 %v1871, %v2191
      %v2256 = vsub.f32 %v1872, %v2192
      %v2257 = vsub.f32 %v1873, %v2193
      %v2258 = vsub.f32 %v1874, %v2194
      %v2259 = vsub.f32 %v1875, %v2195
      %v2260 = vsub.f32 %v1876, %v2196
      %v2261 = vsub.f32 %v1877, %v2197
      %v2262 = vsub.f32 %v1878, %v2198
      %v2263 = vsub.f32 %v1879, %v2199
      %v2264 = vmul.f32 %v2232, 1.442695
      %v2265 = vpow.pop %v2264
      %v2266 = vmul.f32 %v2233, 1.442695
      %v2267 = vpow.pop %v2266
      %v2268 = vmul.f32 %v2234, 1.442695
      %v2269 = vpow.pop %v2268
      %v2270 = vmul.f32 %v2235, 1.442695
      %v2271 = vpow.pop %v2270
      %v2272 = vmul.f32 %v2236, 1.442695
      %v2273 = vpow.pop %v2272
      %v2274 = vmul.f32 %v2237, 1.442695
      %v2275 = vpow.pop %v2274
      %v2276 = vmul.f32 %v2238, 1.442695
      %v2277 = vpow.pop %v2276
      %v2278 = vmul.f32 %v2239, 1.442695
      %v2279 = vpow.pop %v2278
      %v2280 = vmul.f32 %v2240, 1.442695
      %v2281 = vpow.pop %v2280
      %v2282 = vmul.f32 %v2241, 1.442695
      %v2283 = vpow.pop %v2282
      %v2284 = vmul.f32 %v2242, 1.442695
      %v2285 = vpow.pop %v2284
      %v2286 = vmul.f32 %v2243, 1.442695
      %v2287 = vpow.pop %v2286
      %v2288 = vmul.f32 %v2244, 1.442695
      %v2289 = vpow.pop %v2288
      %v2290 = vmul.f32 %v2245, 1.442695
      %v2291 = vpow.pop %v2290
      %v2292 = vmul.f32 %v2246, 1.442695
      %v2293 = vpow.pop %v2292
      %v2294 = vmul.f32 %v2247, 1.442695
      %v2295 = vpow.pop %v2294
      %v2296 = vmul.f32 %v2248, 1.442695
      %v2297 = vpow.pop %v2296
      %v2298 = vmul.f32 %v2249, 1.442695
      %v2299 = vpow.pop %v2298
      %v2300 = vmul.f32 %v2250, 1.442695
      %v2301 = vpow.pop %v2300
      %v2302 = vmul.f32 %v2251, 1.442695
      %v2303 = vpow.pop %v2302
      %v2304 = vmul.f32 %v2252, 1.442695
      %v2305 = vpow.pop %v2304
      %v2306 = vmul.f32 %v2253, 1.442695
      %v2307 = vpow.pop %v2306
      %v2308 = vmul.f32 %v2254, 1.442695
      %v2309 = vpow.pop %v2308
      %v2310 = vmul.f32 %v2255, 1.442695
      %v2311 = vpow.pop %v2310
      %v2312 = vmul.f32 %v2256, 1.442695
      %v2313 = vpow.pop %v2312
      %v2314 = vmul.f32 %v2257, 1.442695
      %v2315 = vpow.pop %v2314
      %v2316 = vmul.f32 %v2258, 1.442695
      %v2317 = vpow.pop %v2316
      %v2318 = vmul.f32 %v2259, 1.442695
      %v2319 = vpow.pop %v2318
      %v2320 = vmul.f32 %v2260, 1.442695
      %v2321 = vpow.pop %v2320
      %v2322 = vmul.f32 %v2261, 1.442695
      %v2323 = vpow.pop %v2322
      %v2324 = vmul.f32 %v2262, 1.442695
      %v2325 = vpow.pop %v2324
      %v2326 = vmul.f32 %v2263, 1.442695
      %v2327 = vpow.pop %v2326
      %v2328 = vmul.f32 %v2200, %v2265
      %v2329 = vmul.f32 %v2201, %v2267
      %v2330 = vmul.f32 %v2202, %v2269
      %v2331 = vmul.f32 %v2203, %v2271
      %v2332 = vmul.f32 %v2204, %v2273
      %v2333 = vmul.f32 %v2205, %v2275
      %v2334 = vmul.f32 %v2206, %v2277
      %v2335 = vmul.f32 %v2207, %v2279
      %v2336 = vmul.f32 %v2208, %v2281
      %v2337 = vmul.f32 %v2209, %v2283
      %v2338 = vmul.f32 %v2210, %v2285
      %v2339 = vmul.f32 %v2211, %v2287
      %v2340 = vmul.f32 %v2212, %v2289
      %v2341 = vmul.f32 %v2213, %v2291
      %v2342 = vmul.f32 %v2214, %v2293
      %v2343 = vmul.f32 %v2215, %v2295
      %v2344 = vmul.f32 %v2216, %v2297
      %v2345 = vmul.f32 %v2217, %v2299
      %v2346 = vmul.f32 %v2218, %v2301
      %v2347 = vmul.f32 %v2219, %v2303
      %v2348 = vmul.f32 %v2220, %v2305
      %v2349 = vmul.f32 %v2221, %v2307
      %v2350 = vmul.f32 %v2222, %v2309
      %v2351 = vmul.f32 %v2223, %v2311
      %v2352 = vmul.f32 %v2224, %v2313
      %v2353 = vmul.f32 %v2225, %v2315
      %v2354 = vmul.f32 %v2226, %v2317
      %v2355 = vmul.f32 %v2227, %v2319
      %v2356 = vmul.f32 %v2228, %v2321
      %v2357 = vmul.f32 %v2229, %v2323
      %v2358 = vmul.f32 %v2230, %v2325
      %v2359 = vmul.f32 %v2231, %v2327
      %2361 = vset.pattern.permute.xlu0 0
      %2362 = vperm.xlu0 %2361, %v2168
      %v2363 = vpop.permute.xlu0 %2362
      %2366 = vset.pattern.permute.xlu0 0
      %2367 = vperm.xlu0 %2366, %v2169
      %v2368 = vpop.permute.xlu0 %2367
      %2371 = vset.pattern.permute.xlu0 0
      %2372 = vperm.xlu0 %2371, %v2170
      %v2373 = vpop.permute.xlu0 %2372
      %2376 = vset.pattern.permute.xlu0 0
      %2377 = vperm.xlu0 %2376, %v2171
      %v2378 = vpop.permute.xlu0 %2377
      %2381 = vset.pattern.permute.xlu0 0
      %2382 = vperm.xlu0 %2381, %v2172
      %v2383 = vpop.permute.xlu0 %2382
      %2386 = vset.pattern.permute.xlu0 0
      %2387 = vperm.xlu0 %2386, %v2173
      %v2388 = vpop.permute.xlu0 %2387
      %2391 = vset.pattern.permute.xlu0 0
      %2392 = vperm.xlu0 %2391, %v2174
      %v2393 = vpop.permute.xlu0 %2392
      %2396 = vset.pattern.permute.xlu0 0
      %2397 = vperm.xlu0 %2396, %v2175
      %v2398 = vpop.permute.xlu0 %2397
      %2401 = vset.pattern.permute.xlu0 0
      %2402 = vperm.xlu0 %2401, %v2176
      %v2403 = vpop.permute.xlu0 %2402
      %2406 = vset.pattern.permute.xlu0 0
      %2407 = vperm.xlu0 %2406, %v2177
      %v2408 = vpop.permute.xlu0 %2407
      %2411 = vset.pattern.permute.xlu0 0
      %2412 = vperm.xlu0 %2411, %v2178
      %v2413 = vpop.permute.xlu0 %2412
      %2416 = vset.pattern.permute.xlu0 0
      %2417 = vperm.xlu0 %2416, %v2179
      %v2418 = vpop.permute.xlu0 %2417
      %2421 = vset.pattern.permute.xlu0 0
      %2422 = vperm.xlu0 %2421, %v2180
      %v2423 = vpop.permute.xlu0 %2422
      %2426 = vset.pattern.permute.xlu0 0
      %2427 = vperm.xlu0 %2426, %v2181
      %v2428 = vpop.permute.xlu0 %2427
      %2431 = vset.pattern.permute.xlu0 0
      %2432 = vperm.xlu0 %2431, %v2182
      %v2433 = vpop.permute.xlu0 %2432
      %2436 = vset.pattern.permute.xlu0 0
      %2437 = vperm.xlu0 %2436, %v2183
      %v2438 = vpop.permute.xlu0 %2437
      %2441 = vset.pattern.permute.xlu0 0
      %2442 = vperm.xlu0 %2441, %v2184
      %v2443 = vpop.permute.xlu0 %2442
      %2446 = vset.pattern.permute.xlu0 0
      %2447 = vperm.xlu0 %2446, %v2185
      %v2448 = vpop.permute.xlu0 %2447
      %2451 = vset.pattern.permute.xlu0 0
      %2452 = vperm.xlu0 %2451, %v2186
      %v2453 = vpop.permute.xlu0 %2452
      %2456 = vset.pattern.permute.xlu0 0
      %2457 = vperm.xlu0 %2456, %v2187
      %v2458 = vpop.permute.xlu0 %2457
      %2461 = vset.pattern.permute.xlu0 0
      %2462 = vperm.xlu0 %2461, %v2188
      %v2463 = vpop.permute.xlu0 %2462
      %2466 = vset.pattern.permute.xlu0 0
      %2467 = vperm.xlu0 %2466, %v2189
      %v2468 = vpop.permute.xlu0 %2467
      %2471 = vset.pattern.permute.xlu0 0
      %2472 = vperm.xlu0 %2471, %v2190
      %v2473 = vpop.permute.xlu0 %2472
      %2476 = vset.pattern.permute.xlu0 0
      %2477 = vperm.xlu0 %2476, %v2191
      %v2478 = vpop.permute.xlu0 %2477
      %2481 = vset.pattern.permute.xlu0 0
      %2482 = vperm.xlu0 %2481, %v2192
      %v2483 = vpop.permute.xlu0 %2482
      %2486 = vset.pattern.permute.xlu0 0
      %2487 = vperm.xlu0 %2486, %v2193
      %v2488 = vpop.permute.xlu0 %2487
      %2491 = vset.pattern.permute.xlu0 0
      %2492 = vperm.xlu0 %2491, %v2194
      %v2493 = vpop.permute.xlu0 %2492
      %2496 = vset.pattern.permute.xlu0 0
      %2497 = vperm.xlu0 %2496, %v2195
      %v2498 = vpop.permute.xlu0 %2497
      %2501 = vset.pattern.permute.xlu0 0
      %2502 = vperm.xlu0 %2501, %v2196
      %v2503 = vpop.permute.xlu0 %2502
      %2506 = vset.pattern.permute.xlu0 0
      %2507 = vperm.xlu0 %2506, %v2197
      %v2508 = vpop.permute.xlu0 %2507
      %2511 = vset.pattern.permute.xlu0 0
      %2512 = vperm.xlu0 %2511, %v2198
      %v2513 = vpop.permute.xlu0 %2512
      %2516 = vset.pattern.permute.xlu0 0
      %2517 = vperm.xlu0 %2516, %v2199
      %v2518 = vpop.permute.xlu0 %2517
      %v2520 = vsub.f32 %v890, %v2363
      %v2521 = vsub.f32 %v979, %v2363
      %v2522 = vsub.f32 %v1068, %v2363
      %v2523 = vsub.f32 %v1157, %v2363
      %v2524 = vsub.f32 %v1246, %v2363
      %v2525 = vsub.f32 %v1335, %v2363
      %v2526 = vsub.f32 %v1424, %v2363
      %v2527 = vsub.f32 %v1513, %v2363
      %v2528 = vsub.f32 %v892, %v2368
      %v2529 = vsub.f32 %v981, %v2368
      %v2530 = vsub.f32 %v1070, %v2368
      %v2531 = vsub.f32 %v1159, %v2368
      %v2532 = vsub.f32 %v1248, %v2368
      %v2533 = vsub.f32 %v1337, %v2368
      %v2534 = vsub.f32 %v1426, %v2368
      %v2535 = vsub.f32 %v1515, %v2368
      %v2536 = vsub.f32 %v895, %v2373
      %v2537 = vsub.f32 %v984, %v2373
      %v2538 = vsub.f32 %v1073, %v2373
      %v2539 = vsub.f32 %v1162, %v2373
      %v2540 = vsub.f32 %v1251, %v2373
      %v2541 = vsub.f32 %v1340, %v2373
      %v2542 = vsub.f32 %v1429, %v2373
      %v2543 = vsub.f32 %v1518, %v2373
      %v2544 = vsub.f32 %v897, %v2378
      %v2545 = vsub.f32 %v986, %v2378
      %v2546 = vsub.f32 %v1075, %v2378
      %v2547 = vsub.f32 %v1164, %v2378
      %v2548 = vsub.f32 %v1253, %v2378
      %v2549 = vsub.f32 %v1342, %v2378
      %v2550 = vsub.f32 %v1431, %v2378
      %v2551 = vsub.f32 %v1520, %v2378
      %v2552 = vsub.f32 %v900, %v2383
      %v2553 = vsub.f32 %v989, %v2383
      %v2554 = vsub.f32 %v1078, %v2383
      %v2555 = vsub.f32 %v1167, %v2383
      %v2556 = vsub.f32 %v1256, %v2383
      %v2557 = vsub.f32 %v1345, %v2383
      %v2558 = vsub.f32 %v1434, %v2383
      %v2559 = vsub.f32 %v1523, %v2383
      %v2560 = vsub.f32 %v902, %v2388
      %v2561 = vsub.f32 %v991, %v2388
      %v2562 = vsub.f32 %v1080, %v2388
      %v2563 = vsub.f32 %v1169, %v2388
      %v2564 = vsub.f32 %v1258, %v2388
      %v2565 = vsub.f32 %v1347, %v2388
      %v2566 = vsub.f32 %v1436, %v2388
      %v2567 = vsub.f32 %v1525, %v2388
      %v2568 = vsub.f32 %v905, %v2393
      %v2569 = vsub.f32 %v994, %v2393
      %v2570 = vsub.f32 %v1083, %v2393
      %v2571 = vsub.f32 %v1172, %v2393
      %v2572 = vsub.f32 %v1261, %v2393
      %v2573 = vsub.f32 %v1350, %v2393
      %v2574 = vsub.f32 %v1439, %v2393
      %v2575 = vsub.f32 %v1528, %v2393
      %v2576 = vsub.f32 %v907, %v2398
      %v2577 = vsub.f32 %v996, %v2398
      %v2578 = vsub.f32 %v1085, %v2398
      %v2579 = vsub.f32 %v1174, %v2398
      %v2580 = vsub.f32 %v1263, %v2398
      %v2581 = vsub.f32 %v1352, %v2398
      %v2582 = vsub.f32 %v1441, %v2398
      %v2583 = vsub.f32 %v1530, %v2398
      %v2584 = vsub.f32 %v910, %v2403
      %v2585 = vsub.f32 %v999, %v2403
      %v2586 = vsub.f32 %v1088, %v2403
      %v2587 = vsub.f32 %v1177, %v2403
      %v2588 = vsub.f32 %v1266, %v2403
      %v2589 = vsub.f32 %v1355, %v2403
      %v2590 = vsub.f32 %v1444, %v2403
      %v2591 = vsub.f32 %v1533, %v2403
      %v2592 = vsub.f32 %v912, %v2408
      %v2593 = vsub.f32 %v1001, %v2408
      %v2594 = vsub.f32 %v1090, %v2408
      %v2595 = vsub.f32 %v1179, %v2408
      %v2596 = vsub.f32 %v1268, %v2408
      %v2597 = vsub.f32 %v1357, %v2408
      %v2598 = vsub.f32 %v1446, %v2408
      %v2599 = vsub.f32 %v1535, %v2408
      %v2600 = vsub.f32 %v915, %v2413
      %v2601 = vsub.f32 %v1004, %v2413
      %v2602 = vsub.f32 %v1093, %v2413
      %v2603 = vsub.f32 %v1182, %v2413
      %v2604 = vsub.f32 %v1271, %v2413
      %v2605 = vsub.f32 %v1360, %v2413
      %v2606 = vsub.f32 %v1449, %v2413
      %v2607 = vsub.f32 %v1538, %v2413
      %v2608 = vsub.f32 %v917, %v2418
      %v2609 = vsub.f32 %v1006, %v2418
      %v2610 = vsub.f32 %v1095, %v2418
      %v2611 = vsub.f32 %v1184, %v2418
      %v2612 = vsub.f32 %v1273, %v2418
      %v2613 = vsub.f32 %v1362, %v2418
      %v2614 = vsub.f32 %v1451, %v2418
      %v2615 = vsub.f32 %v1540, %v2418
      %v2616 = vsub.f32 %v920, %v2423
      %v2617 = vsub.f32 %v1009, %v2423
      %v2618 = vsub.f32 %v1098, %v2423
      %v2619 = vsub.f32 %v1187, %v2423
      %v2620 = vsub.f32 %v1276, %v2423
      %v2621 = vsub.f32 %v1365, %v2423
      %v2622 = vsub.f32 %v1454, %v2423
      %v2623 = vsub.f32 %v1543, %v2423
      %v2624 = vsub.f32 %v922, %v2428
      %v2625 = vsub.f32 %v1011, %v2428
      %v2626 = vsub.f32 %v1100, %v2428
      %v2627 = vsub.f32 %v1189, %v2428
      %v2628 = vsub.f32 %v1278, %v2428
      %v2629 = vsub.f32 %v1367, %v2428
      %v2630 = vsub.f32 %v1456, %v2428
      %v2631 = vsub.f32 %v1545, %v2428
      %v2632 = vsub.f32 %v925, %v2433
      %v2633 = vsub.f32 %v1014, %v2433
      %v2634 = vsub.f32 %v1103, %v2433
      %v2635 = vsub.f32 %v1192, %v2433
      %v2636 = vsub.f32 %v1281, %v2433
      %v2637 = vsub.f32 %v1370, %v2433
      %v2638 = vsub.f32 %v1459, %v2433
      %v2639 = vsub.f32 %v1548, %v2433
      %v2640 = vsub.f32 %v927, %v2438
      %v2641 = vsub.f32 %v1016, %v2438
      %v2642 = vsub.f32 %v1105, %v2438
      %v2643 = vsub.f32 %v1194, %v2438
      %v2644 = vsub.f32 %v1283, %v2438
      %v2645 = vsub.f32 %v1372, %v2438
      %v2646 = vsub.f32 %v1461, %v2438
      %v2647 = vsub.f32 %v1550, %v2438
      %v2648 = vsub.f32 %v930, %v2443
      %v2649 = vsub.f32 %v1019, %v2443
      %v2650 = vsub.f32 %v1108, %v2443
      %v2651 = vsub.f32 %v1197, %v2443
      %v2652 = vsub.f32 %v1286, %v2443
      %v2653 = vsub.f32 %v1375, %v2443
      %v2654 = vsub.f32 %v1464, %v2443
      %v2655 = vsub.f32 %v1553, %v2443
      %v2656 = vsub.f32 %v932, %v2448
      %v2657 = vsub.f32 %v1021, %v2448
      %v2658 = vsub.f32 %v1110, %v2448
      %v2659 = vsub.f32 %v1199, %v2448
      %v2660 = vsub.f32 %v1288, %v2448
      %v2661 = vsub.f32 %v1377, %v2448
      %v2662 = vsub.f32 %v1466, %v2448
      %v2663 = vsub.f32 %v1555, %v2448
      %v2664 = vsub.f32 %v935, %v2453
      %v2665 = vsub.f32 %v1024, %v2453
      %v2666 = vsub.f32 %v1113, %v2453
      %v2667 = vsub.f32 %v1202, %v2453
      %v2668 = vsub.f32 %v1291, %v2453
      %v2669 = vsub.f32 %v1380, %v2453
      %v2670 = vsub.f32 %v1469, %v2453
      %v2671 = vsub.f32 %v1558, %v2453
      %v2672 = vsub.f32 %v937, %v2458
      %v2673 = vsub.f32 %v1026, %v2458
      %v2674 = vsub.f32 %v1115, %v2458
      %v2675 = vsub.f32 %v1204, %v2458
      %v2676 = vsub.f32 %v1293, %v2458
      %v2677 = vsub.f32 %v1382, %v2458
      %v2678 = vsub.f32 %v1471, %v2458
      %v2679 = vsub.f32 %v1560, %v2458
      %v2680 = vsub.f32 %v940, %v2463
      %v2681 = vsub.f32 %v1029, %v2463
      %v2682 = vsub.f32 %v1118, %v2463
      %v2683 = vsub.f32 %v1207, %v2463
      %v2684 = vsub.f32 %v1296, %v2463
      %v2685 = vsub.f32 %v1385, %v2463
      %v2686 = vsub.f32 %v1474, %v2463
      %v2687 = vsub.f32 %v1563, %v2463
      %v2688 = vsub.f32 %v942, %v2468
      %v2689 = vsub.f32 %v1031, %v2468
      %v2690 = vsub.f32 %v1120, %v2468
      %v2691 = vsub.f32 %v1209, %v2468
      %v2692 = vsub.f32 %v1298, %v2468
      %v2693 = vsub.f32 %v1387, %v2468
      %v2694 = vsub.f32 %v1476, %v2468
      %v2695 = vsub.f32 %v1565, %v2468
      %v2696 = vsub.f32 %v945, %v2473
      %v2697 = vsub.f32 %v1034, %v2473
      %v2698 = vsub.f32 %v1123, %v2473
      %v2699 = vsub.f32 %v1212, %v2473
      %v2700 = vsub.f32 %v1301, %v2473
      %v2701 = vsub.f32 %v1390, %v2473
      %v2702 = vsub.f32 %v1479, %v2473
      %v2703 = vsub.f32 %v1568, %v2473
      %v2704 = vsub.f32 %v947, %v2478
      %v2705 = vsub.f32 %v1036, %v2478
      %v2706 = vsub.f32 %v1125, %v2478
      %v2707 = vsub.f32 %v1214, %v2478
      %v2708 = vsub.f32 %v1303, %v2478
      %v2709 = vsub.f32 %v1392, %v2478
      %v2710 = vsub.f32 %v1481, %v2478
      %v2711 = vsub.f32 %v1570, %v2478
      %v2712 = vsub.f32 %v950, %v2483
      %v2713 = vsub.f32 %v1039, %v2483
      %v2714 = vsub.f32 %v1128, %v2483
      %v2715 = vsub.f32 %v1217, %v2483
      %v2716 = vsub.f32 %v1306, %v2483
      %v2717 = vsub.f32 %v1395, %v2483
      %v2718 = vsub.f32 %v1484, %v2483
      %v2719 = vsub.f32 %v1573, %v2483
      %v2720 = vsub.f32 %v952, %v2488
      %v2721 = vsub.f32 %v1041, %v2488
      %v2722 = vsub.f32 %v1130, %v2488
      %v2723 = vsub.f32 %v1219, %v2488
      %v2724 = vsub.f32 %v1308, %v2488
      %v2725 = vsub.f32 %v1397, %v2488
      %v2726 = vsub.f32 %v1486, %v2488
      %v2727 = vsub.f32 %v1575, %v2488
      %v2728 = vsub.f32 %v955, %v2493
      %v2729 = vsub.f32 %v1044, %v2493
      %v2730 = vsub.f32 %v1133, %v2493
      %v2731 = vsub.f32 %v1222, %v2493
      %v2732 = vsub.f32 %v1311, %v2493
      %v2733 = vsub.f32 %v1400, %v2493
      %v2734 = vsub.f32 %v1489, %v2493
      %v2735 = vsub.f32 %v1578, %v2493
      %v2736 = vsub.f32 %v957, %v2498
      %v2737 = vsub.f32 %v1046, %v2498
      %v2738 = vsub.f32 %v1135, %v2498
      %v2739 = vsub.f32 %v1224, %v2498
      %v2740 = vsub.f32 %v1313, %v2498
      %v2741 = vsub.f32 %v1402, %v2498
      %v2742 = vsub.f32 %v1491, %v2498
      %v2743 = vsub.f32 %v1580, %v2498
      %v2744 = vsub.f32 %v960, %v2503
      %v2745 = vsub.f32 %v1049, %v2503
      %v2746 = vsub.f32 %v1138, %v2503
      %v2747 = vsub.f32 %v1227, %v2503
      %v2748 = vsub.f32 %v1316, %v2503
      %v2749 = vsub.f32 %v1405, %v2503
      %v2750 = vsub.f32 %v1494, %v2503
      %v2751 = vsub.f32 %v1583, %v2503
      %v2752 = vsub.f32 %v962, %v2508
      %v2753 = vsub.f32 %v1051, %v2508
      %v2754 = vsub.f32 %v1140, %v2508
      %v2755 = vsub.f32 %v1229, %v2508
      %v2756 = vsub.f32 %v1318, %v2508
      %v2757 = vsub.f32 %v1407, %v2508
      %v2758 = vsub.f32 %v1496, %v2508
      %v2759 = vsub.f32 %v1585, %v2508
      %v2760 = vsub.f32 %v965, %v2513
      %v2761 = vsub.f32 %v1054, %v2513
      %v2762 = vsub.f32 %v1143, %v2513
      %v2763 = vsub.f32 %v1232, %v2513
      %v2764 = vsub.f32 %v1321, %v2513
      %v2765 = vsub.f32 %v1410, %v2513
      %v2766 = vsub.f32 %v1499, %v2513
      %v2767 = vsub.f32 %v1588, %v2513
      %v2768 = vsub.f32 %v967, %v2518
      %v2769 = vsub.f32 %v1056, %v2518
      %v2770 = vsub.f32 %v1145, %v2518
      %v2771 = vsub.f32 %v1234, %v2518
      %v2772 = vsub.f32 %v1323, %v2518
      %v2773 = vsub.f32 %v1412, %v2518
      %v2774 = vsub.f32 %v1501, %v2518
      %v2775 = vsub.f32 %v1590, %v2518
      %v2776 = vmul.f32 %v2520, 1.442695
      %v2777 = vpow.pop %v2776
      %v2778 = vmul.f32 %v2521, 1.442695
      %v2779 = vpow.pop %v2778
      %v2780 = vmul.f32 %v2522, 1.442695
      %v2781 = vpow.pop %v2780
      %v2782 = vmul.f32 %v2523, 1.442695
      %v2783 = vpow.pop %v2782
      %v2784 = vmul.f32 %v2524, 1.442695
      %v2785 = vpow.pop %v2784
      %v2786 = vmul.f32 %v2525, 1.442695
      %v2787 = vpow.pop %v2786
      %v2788 = vmul.f32 %v2526, 1.442695
      %v2789 = vpow.pop %v2788
      %v2790 = vmul.f32 %v2527, 1.442695
      %v2791 = vpow.pop %v2790
      %v2792 = vmul.f32 %v2528, 1.442695
      %v2793 = vpow.pop %v2792
      %v2794 = vmul.f32 %v2529, 1.442695
      %v2795 = vpow.pop %v2794
      %v2796 = vmul.f32 %v2530, 1.442695
      %v2797 = vpow.pop %v2796
      %v2798 = vmul.f32 %v2531, 1.442695
      %v2799 = vpow.pop %v2798
      %v2800 = vmul.f32 %v2532, 1.442695
      %v2801 = vpow.pop %v2800
      %v2802 = vmul.f32 %v2533, 1.442695
      %v2803 = vpow.pop %v2802
      %v2804 = vmul.f32 %v2534, 1.442695
      %v2805 = vpow.pop %v2804
      %v2806 = vmul.f32 %v2535, 1.442695
      %v2807 = vpow.pop %v2806
      %v2808 = vmul.f32 %v2536, 1.442695
      %v2809 = vpow.pop %v2808
      %v2810 = vmul.f32 %v2537, 1.442695
      %v2811 = vpow.pop %v2810
      %v2812 = vmul.f32 %v2538, 1.442695
      %v2813 = vpow.pop %v2812
      %v2814 = vmul.f32 %v2539, 1.442695
      %v2815 = vpow.pop %v2814
      %v2816 = vmul.f32 %v2540, 1.442695
      %v2817 = vpow.pop %v2816
      %v2818 = vmul.f32 %v2541, 1.442695
      %v2819 = vpow.pop %v2818
      %v2820 = vmul.f32 %v2542, 1.442695
      %v2821 = vpow.pop %v2820
      %v2822 = vmul.f32 %v2543, 1.442695
      %v2823 = vpow.pop %v2822
      %v2824 = vmul.f32 %v2544, 1.442695
      %v2825 = vpow.pop %v2824
      %v2826 = vmul.f32 %v2545, 1.442695
      %v2827 = vpow.pop %v2826
      %v2828 = vmul.f32 %v2546, 1.442695
      %v2829 = vpow.pop %v2828
      %v2830 = vmul.f32 %v2547, 1.442695
      %v2831 = vpow.pop %v2830
      %v2832 = vmul.f32 %v2548, 1.442695
      %v2833 = vpow.pop %v2832
      %v2834 = vmul.f32 %v2549, 1.442695
      %v2835 = vpow.pop %v2834
      %v2836 = vmul.f32 %v2550, 1.442695
      %v2837 = vpow.pop %v2836
      %v2838 = vmul.f32 %v2551, 1.442695
      %v2839 = vpow.pop %v2838
      %v2840 = vmul.f32 %v2552, 1.442695
      %v2841 = vpow.pop %v2840
      %v2842 = vmul.f32 %v2553, 1.442695
      %v2843 = vpow.pop %v2842
      %v2844 = vmul.f32 %v2554, 1.442695
      %v2845 = vpow.pop %v2844
      %v2846 = vmul.f32 %v2555, 1.442695
      %v2847 = vpow.pop %v2846
      %v2848 = vmul.f32 %v2556, 1.442695
      %v2849 = vpow.pop %v2848
      %v2850 = vmul.f32 %v2557, 1.442695
      %v2851 = vpow.pop %v2850
      %v2852 = vmul.f32 %v2558, 1.442695
      %v2853 = vpow.pop %v2852
      %v2854 = vmul.f32 %v2559, 1.442695
      %v2855 = vpow.pop %v2854
      %v2856 = vmul.f32 %v2560, 1.442695
      %v2857 = vpow.pop %v2856
      %v2858 = vmul.f32 %v2561, 1.442695
      %v2859 = vpow.pop %v2858
      %v2860 = vmul.f32 %v2562, 1.442695
      %v2861 = vpow.pop %v2860
      %v2862 = vmul.f32 %v2563, 1.442695
      %v2863 = vpow.pop %v2862
      %v2864 = vmul.f32 %v2564, 1.442695
      %v2865 = vpow.pop %v2864
      %v2866 = vmul.f32 %v2565, 1.442695
      %v2867 = vpow.pop %v2866
      %v2868 = vmul.f32 %v2566, 1.442695
      %v2869 = vpow.pop %v2868
      %v2870 = vmul.f32 %v2567, 1.442695
      %v2871 = vpow.pop %v2870
      %v2872 = vmul.f32 %v2568, 1.442695
      %v2873 = vpow.pop %v2872
      %v2874 = vmul.f32 %v2569, 1.442695
      %v2875 = vpow.pop %v2874
      %v2876 = vmul.f32 %v2570, 1.442695
      %v2877 = vpow.pop %v2876
      %v2878 = vmul.f32 %v2571, 1.442695
      %v2879 = vpow.pop %v2878
      %v2880 = vmul.f32 %v2572, 1.442695
      %v2881 = vpow.pop %v2880
      %v2882 = vmul.f32 %v2573, 1.442695
      %v2883 = vpow.pop %v2882
      %v2884 = vmul.f32 %v2574, 1.442695
      %v2885 = vpow.pop %v2884
      %v2886 = vmul.f32 %v2575, 1.442695
      %v2887 = vpow.pop %v2886
      %v2888 = vmul.f32 %v2576, 1.442695
      %v2889 = vpow.pop %v2888
      %v2890 = vmul.f32 %v2577, 1.442695
      %v2891 = vpow.pop %v2890
      %v2892 = vmul.f32 %v2578, 1.442695
      %v2893 = vpow.pop %v2892
      %v2894 = vmul.f32 %v2579, 1.442695
      %v2895 = vpow.pop %v2894
      %v2896 = vmul.f32 %v2580, 1.442695
      %v2897 = vpow.pop %v2896
      %v2898 = vmul.f32 %v2581, 1.442695
      %v2899 = vpow.pop %v2898
      %v2900 = vmul.f32 %v2582, 1.442695
      %v2901 = vpow.pop %v2900
      %v2902 = vmul.f32 %v2583, 1.442695
      %v2903 = vpow.pop %v2902
      %v2904 = vmul.f32 %v2584, 1.442695
      %v2905 = vpow.pop %v2904
      %v2906 = vmul.f32 %v2585, 1.442695
      %v2907 = vpow.pop %v2906
      %v2908 = vmul.f32 %v2586, 1.442695
      %v2909 = vpow.pop %v2908
      %v2910 = vmul.f32 %v2587, 1.442695
      %v2911 = vpow.pop %v2910
      %v2912 = vmul.f32 %v2588, 1.442695
      %v2913 = vpow.pop %v2912
      %v2914 = vmul.f32 %v2589, 1.442695
      %v2915 = vpow.pop %v2914
      %v2916 = vmul.f32 %v2590, 1.442695
      %v2917 = vpow.pop %v2916
      %v2918 = vmul.f32 %v2591, 1.442695
      %v2919 = vpow.pop %v2918
      %v2920 = vmul.f32 %v2592, 1.442695
      %v2921 = vpow.pop %v2920
      %v2922 = vmul.f32 %v2593, 1.442695
      %v2923 = vpow.pop %v2922
      %v2924 = vmul.f32 %v2594, 1.442695
      %v2925 = vpow.pop %v2924
      %v2926 = vmul.f32 %v2595, 1.442695
      %v2927 = vpow.pop %v2926
      %v2928 = vmul.f32 %v2596, 1.442695
      %v2929 = vpow.pop %v2928
      %v2930 = vmul.f32 %v2597, 1.442695
      %v2931 = vpow.pop %v2930
      %v2932 = vmul.f32 %v2598, 1.442695
      %v2933 = vpow.pop %v2932
      %v2934 = vmul.f32 %v2599, 1.442695
      %v2935 = vpow.pop %v2934
      %v2936 = vmul.f32 %v2600, 1.442695
      %v2937 = vpow.pop %v2936
      %v2938 = vmul.f32 %v2601, 1.442695
      %v2939 = vpow.pop %v2938
      %v2940 = vmul.f32 %v2602, 1.442695
      %v2941 = vpow.pop %v2940
      %v2942 = vmul.f32 %v2603, 1.442695
      %v2943 = vpow.pop %v2942
      %v2944 = vmul.f32 %v2604, 1.442695
      %v2945 = vpow.pop %v2944
      %v2946 = vmul.f32 %v2605, 1.442695
      %v2947 = vpow.pop %v2946
      %v2948 = vmul.f32 %v2606, 1.442695
      %v2949 = vpow.pop %v2948
      %v2950 = vmul.f32 %v2607, 1.442695
      %v2951 = vpow.pop %v2950
      %v2952 = vmul.f32 %v2608, 1.442695
      %v2953 = vpow.pop %v2952
      %v2954 = vmul.f32 %v2609, 1.442695
      %v2955 = vpow.pop %v2954
      %v2956 = vmul.f32 %v2610, 1.442695
      %v2957 = vpow.pop %v2956
      %v2958 = vmul.f32 %v2611, 1.442695
      %v2959 = vpow.pop %v2958
      %v2960 = vmul.f32 %v2612, 1.442695
      %v2961 = vpow.pop %v2960
      %v2962 = vmul.f32 %v2613, 1.442695
      %v2963 = vpow.pop %v2962
      %v2964 = vmul.f32 %v2614, 1.442695
      %v2965 = vpow.pop %v2964
      %v2966 = vmul.f32 %v2615, 1.442695
      %v2967 = vpow.pop %v2966
      %v2968 = vmul.f32 %v2616, 1.442695
      %v2969 = vpow.pop %v2968
      %v2970 = vmul.f32 %v2617, 1.442695
      %v2971 = vpow.pop %v2970
      %v2972 = vmul.f32 %v2618, 1.442695
      %v2973 = vpow.pop %v2972
      %v2974 = vmul.f32 %v2619, 1.442695
      %v2975 = vpow.pop %v2974
      %v2976 = vmul.f32 %v2620, 1.442695
      %v2977 = vpow.pop %v2976
      %v2978 = vmul.f32 %v2621, 1.442695
      %v2979 = vpow.pop %v2978
      %v2980 = vmul.f32 %v2622, 1.442695
      %v2981 = vpow.pop %v2980
      %v2982 = vmul.f32 %v2623, 1.442695
      %v2983 = vpow.pop %v2982
      %v2984 = vmul.f32 %v2624, 1.442695
      %v2985 = vpow.pop %v2984
      %v2986 = vmul.f32 %v2625, 1.442695
      %v2987 = vpow.pop %v2986
      %v2988 = vmul.f32 %v2626, 1.442695
      %v2989 = vpow.pop %v2988
      %v2990 = vmul.f32 %v2627, 1.442695
      %v2991 = vpow.pop %v2990
      %v2992 = vmul.f32 %v2628, 1.442695
      %v2993 = vpow.pop %v2992
      %v2994 = vmul.f32 %v2629, 1.442695
      %v2995 = vpow.pop %v2994
      %v2996 = vmul.f32 %v2630, 1.442695
      %v2997 = vpow.pop %v2996
      %v2998 = vmul.f32 %v2631, 1.442695
      %v2999 = vpow.pop %v2998
      %v3000 = vmul.f32 %v2632, 1.442695
      %v3001 = vpow.pop %v3000
      %v3002 = vmul.f32 %v2633, 1.442695
      %v3003 = vpow.pop %v3002
      %v3004 = vmul.f32 %v2634, 1.442695
      %v3005 = vpow.pop %v3004
      %v3006 = vmul.f32 %v2635, 1.442695
      %v3007 = vpow.pop %v3006
      %v3008 = vmul.f32 %v2636, 1.442695
      %v3009 = vpow.pop %v3008
      %v3010 = vmul.f32 %v2637, 1.442695
      %v3011 = vpow.pop %v3010
      %v3012 = vmul.f32 %v2638, 1.442695
      %v3013 = vpow.pop %v3012
      %v3014 = vmul.f32 %v2639, 1.442695
      %v3015 = vpow.pop %v3014
      %v3016 = vmul.f32 %v2640, 1.442695
      %v3017 = vpow.pop %v3016
      %v3018 = vmul.f32 %v2641, 1.442695
      %v3019 = vpow.pop %v3018
      %v3020 = vmul.f32 %v2642, 1.442695
      %v3021 = vpow.pop %v3020
      %v3022 = vmul.f32 %v2643, 1.442695
      %v3023 = vpow.pop %v3022
      %v3024 = vmul.f32 %v2644, 1.442695
      %v3025 = vpow.pop %v3024
      %v3026 = vmul.f32 %v2645, 1.442695
      %v3027 = vpow.pop %v3026
      %v3028 = vmul.f32 %v2646, 1.442695
      %v3029 = vpow.pop %v3028
      %v3030 = vmul.f32 %v2647, 1.442695
      %v3031 = vpow.pop %v3030
      %v3032 = vmul.f32 %v2648, 1.442695
      %v3033 = vpow.pop %v3032
      %v3034 = vmul.f32 %v2649, 1.442695
      %v3035 = vpow.pop %v3034
      %v3036 = vmul.f32 %v2650, 1.442695
      %v3037 = vpow.pop %v3036
      %v3038 = vmul.f32 %v2651, 1.442695
      %v3039 = vpow.pop %v3038
      %v3040 = vmul.f32 %v2652, 1.442695
      %v3041 = vpow.pop %v3040
      %v3042 = vmul.f32 %v2653, 1.442695
      %v3043 = vpow.pop %v3042
      %v3044 = vmul.f32 %v2654, 1.442695
      %v3045 = vpow.pop %v3044
      %v3046 = vmul.f32 %v2655, 1.442695
      %v3047 = vpow.pop %v3046
      %v3048 = vmul.f32 %v2656, 1.442695
      %v3049 = vpow.pop %v3048
      %v3050 = vmul.f32 %v2657, 1.442695
      %v3051 = vpow.pop %v3050
      %v3052 = vmul.f32 %v2658, 1.442695
      %v3053 = vpow.pop %v3052
      %v3054 = vmul.f32 %v2659, 1.442695
      %v3055 = vpow.pop %v3054
      %v3056 = vmul.f32 %v2660, 1.442695
      %v3057 = vpow.pop %v3056
      %v3058 = vmul.f32 %v2661, 1.442695
      %v3059 = vpow.pop %v3058
      %v3060 = vmul.f32 %v2662, 1.442695
      %v3061 = vpow.pop %v3060
      %v3062 = vmul.f32 %v2663, 1.442695
      %v3063 = vpow.pop %v3062
      %v3064 = vmul.f32 %v2664, 1.442695
      %v3065 = vpow.pop %v3064
      %v3066 = vmul.f32 %v2665, 1.442695
      %v3067 = vpow.pop %v3066
      %v3068 = vmul.f32 %v2666, 1.442695
      %v3069 = vpow.pop %v3068
      %v3070 = vmul.f32 %v2667, 1.442695
      %v3071 = vpow.pop %v3070
      %v3072 = vmul.f32 %v2668, 1.442695
      %v3073 = vpow.pop %v3072
      %v3074 = vmul.f32 %v2669, 1.442695
      %v3075 = vpow.pop %v3074
      %v3076 = vmul.f32 %v2670, 1.442695
      %v3077 = vpow.pop %v3076
      %v3078 = vmul.f32 %v2671, 1.442695
      %v3079 = vpow.pop %v3078
      %v3080 = vmul.f32 %v2672, 1.442695
      %v3081 = vpow.pop %v3080
      %v3082 = vmul.f32 %v2673, 1.442695
      %v3083 = vpow.pop %v3082
      %v3084 = vmul.f32 %v2674, 1.442695
      %v3085 = vpow.pop %v3084
      %v3086 = vmul.f32 %v2675, 1.442695
      %v3087 = vpow.pop %v3086
      %v3088 = vmul.f32 %v2676, 1.442695
      %v3089 = vpow.pop %v3088
      %v3090 = vmul.f32 %v2677, 1.442695
      %v3091 = vpow.pop %v3090
      %v3092 = vmul.f32 %v2678, 1.442695
      %v3093 = vpow.pop %v3092
      %v3094 = vmul.f32 %v2679, 1.442695
      %v3095 = vpow.pop %v3094
      %v3096 = vmul.f32 %v2680, 1.442695
      %v3097 = vpow.pop %v3096
      %v3098 = vmul.f32 %v2681, 1.442695
      %v3099 = vpow.pop %v3098
      %v3100 = vmul.f32 %v2682, 1.442695
      %v3101 = vpow.pop %v3100
      %v3102 = vmul.f32 %v2683, 1.442695
      %v3103 = vpow.pop %v3102
      %v3104 = vmul.f32 %v2684, 1.442695
      %v3105 = vpow.pop %v3104
      %v3106 = vmul.f32 %v2685, 1.442695
      %v3107 = vpow.pop %v3106
      %v3108 = vmul.f32 %v2686, 1.442695
      %v3109 = vpow.pop %v3108
      %v3110 = vmul.f32 %v2687, 1.442695
      %v3111 = vpow.pop %v3110
      %v3112 = vmul.f32 %v2688, 1.442695
      %v3113 = vpow.pop %v3112
      %v3114 = vmul.f32 %v2689, 1.442695
      %v3115 = vpow.pop %v3114
      %v3116 = vmul.f32 %v2690, 1.442695
      %v3117 = vpow.pop %v3116
      %v3118 = vmul.f32 %v2691, 1.442695
      %v3119 = vpow.pop %v3118
      %v3120 = vmul.f32 %v2692, 1.442695
      %v3121 = vpow.pop %v3120
      %v3122 = vmul.f32 %v2693, 1.442695
      %v3123 = vpow.pop %v3122
      %v3124 = vmul.f32 %v2694, 1.442695
      %v3125 = vpow.pop %v3124
      %v3126 = vmul.f32 %v2695, 1.442695
      %v3127 = vpow.pop %v3126
      %v3128 = vmul.f32 %v2696, 1.442695
      %v3129 = vpow.pop %v3128
      %v3130 = vmul.f32 %v2697, 1.442695
      %v3131 = vpow.pop %v3130
      %v3132 = vmul.f32 %v2698, 1.442695
      %v3133 = vpow.pop %v3132
      %v3134 = vmul.f32 %v2699, 1.442695
      %v3135 = vpow.pop %v3134
      %v3136 = vmul.f32 %v2700, 1.442695
      %v3137 = vpow.pop %v3136
      %v3138 = vmul.f32 %v2701, 1.442695
      %v3139 = vpow.pop %v3138
      %v3140 = vmul.f32 %v2702, 1.442695
      %v3141 = vpow.pop %v3140
      %v3142 = vmul.f32 %v2703, 1.442695
      %v3143 = vpow.pop %v3142
      %v3144 = vmul.f32 %v2704, 1.442695
      %v3145 = vpow.pop %v3144
      %v3146 = vmul.f32 %v2705, 1.442695
      %v3147 = vpow.pop %v3146
      %v3148 = vmul.f32 %v2706, 1.442695
      %v3149 = vpow.pop %v3148
      %v3150 = vmul.f32 %v2707, 1.442695
      %v3151 = vpow.pop %v3150
      %v3152 = vmul.f32 %v2708, 1.442695
      %v3153 = vpow.pop %v3152
      %v3154 = vmul.f32 %v2709, 1.442695
      %v3155 = vpow.pop %v3154
      %v3156 = vmul.f32 %v2710, 1.442695
      %v3157 = vpow.pop %v3156
      %v3158 = vmul.f32 %v2711, 1.442695
      %v3159 = vpow.pop %v3158
      %v3160 = vmul.f32 %v2712, 1.442695
      %v3161 = vpow.pop %v3160
      %v3162 = vmul.f32 %v2713, 1.442695
      %v3163 = vpow.pop %v3162
      %v3164 = vmul.f32 %v2714, 1.442695
      %v3165 = vpow.pop %v3164
      %v3166 = vmul.f32 %v2715, 1.442695
      %v3167 = vpow.pop %v3166
      %v3168 = vmul.f32 %v2716, 1.442695
      %v3169 = vpow.pop %v3168
      %v3170 = vmul.f32 %v2717, 1.442695
      %v3171 = vpow.pop %v3170
      %v3172 = vmul.f32 %v2718, 1.442695
      %v3173 = vpow.pop %v3172
      %v3174 = vmul.f32 %v2719, 1.442695
      %v3175 = vpow.pop %v3174
      %v3176 = vmul.f32 %v2720, 1.442695
      %v3177 = vpow.pop %v3176
      %v3178 = vmul.f32 %v2721, 1.442695
      %v3179 = vpow.pop %v3178
      %v3180 = vmul.f32 %v2722, 1.442695
      %v3181 = vpow.pop %v3180
      %v3182 = vmul.f32 %v2723, 1.442695
      %v3183 = vpow.pop %v3182
      %v3184 = vmul.f32 %v2724, 1.442695
      %v3185 = vpow.pop %v3184
      %v3186 = vmul.f32 %v2725, 1.442695
      %v3187 = vpow.pop %v3186
      %v3188 = vmul.f32 %v2726, 1.442695
      %v3189 = vpow.pop %v3188
      %v3190 = vmul.f32 %v2727, 1.442695
      %v3191 = vpow.pop %v3190
      %v3192 = vmul.f32 %v2728, 1.442695
      %v3193 = vpow.pop %v3192
      %v3194 = vmul.f32 %v2729, 1.442695
      %v3195 = vpow.pop %v3194
      %v3196 = vmul.f32 %v2730, 1.442695
      %v3197 = vpow.pop %v3196
      %v3198 = vmul.f32 %v2731, 1.442695
      %v3199 = vpow.pop %v3198
      %v3200 = vmul.f32 %v2732, 1.442695
      %v3201 = vpow.pop %v3200
      %v3202 = vmul.f32 %v2733, 1.442695
      %v3203 = vpow.pop %v3202
      %v3204 = vmul.f32 %v2734, 1.442695
      %v3205 = vpow.pop %v3204
      %v3206 = vmul.f32 %v2735, 1.442695
      %v3207 = vpow.pop %v3206
      %v3208 = vmul.f32 %v2736, 1.442695
      %v3209 = vpow.pop %v3208
      %v3210 = vmul.f32 %v2737, 1.442695
      %v3211 = vpow.pop %v3210
      %v3212 = vmul.f32 %v2738, 1.442695
      %v3213 = vpow.pop %v3212
      %v3214 = vmul.f32 %v2739, 1.442695
      %v3215 = vpow.pop %v3214
      %v3216 = vmul.f32 %v2740, 1.442695
      %v3217 = vpow.pop %v3216
      %v3218 = vmul.f32 %v2741, 1.442695
      %v3219 = vpow.pop %v3218
      %v3220 = vmul.f32 %v2742, 1.442695
      %v3221 = vpow.pop %v3220
      %v3222 = vmul.f32 %v2743, 1.442695
      %v3223 = vpow.pop %v3222
      %v3224 = vmul.f32 %v2744, 1.442695
      %v3225 = vpow.pop %v3224
      %v3226 = vmul.f32 %v2745, 1.442695
      %v3227 = vpow.pop %v3226
      %v3228 = vmul.f32 %v2746, 1.442695
      %v3229 = vpow.pop %v3228
      %v3230 = vmul.f32 %v2747, 1.442695
      %v3231 = vpow.pop %v3230
      %v3232 = vmul.f32 %v2748, 1.442695
      %v3233 = vpow.pop %v3232
      %v3234 = vmul.f32 %v2749, 1.442695
      %v3235 = vpow.pop %v3234
      %v3236 = vmul.f32 %v2750, 1.442695
      %v3237 = vpow.pop %v3236
      %v3238 = vmul.f32 %v2751, 1.442695
      %v3239 = vpow.pop %v3238
      %v3240 = vmul.f32 %v2752, 1.442695
      %v3241 = vpow.pop %v3240
      %v3242 = vmul.f32 %v2753, 1.442695
      %v3243 = vpow.pop %v3242
      %v3244 = vmul.f32 %v2754, 1.442695
      %v3245 = vpow.pop %v3244
      %v3246 = vmul.f32 %v2755, 1.442695
      %v3247 = vpow.pop %v3246
      %v3248 = vmul.f32 %v2756, 1.442695
      %v3249 = vpow.pop %v3248
      %v3250 = vmul.f32 %v2757, 1.442695
      %v3251 = vpow.pop %v3250
      %v3252 = vmul.f32 %v2758, 1.442695
      %v3253 = vpow.pop %v3252
      %v3254 = vmul.f32 %v2759, 1.442695
      %v3255 = vpow.pop %v3254
      %v3256 = vmul.f32 %v2760, 1.442695
      %v3257 = vpow.pop %v3256
      %v3258 = vmul.f32 %v2761, 1.442695
      %v3259 = vpow.pop %v3258
      %v3260 = vmul.f32 %v2762, 1.442695
      %v3261 = vpow.pop %v3260
      %v3262 = vmul.f32 %v2763, 1.442695
      %v3263 = vpow.pop %v3262
      %v3264 = vmul.f32 %v2764, 1.442695
      %v3265 = vpow.pop %v3264
      %v3266 = vmul.f32 %v2765, 1.442695
      %v3267 = vpow.pop %v3266
      %v3268 = vmul.f32 %v2766, 1.442695
      %v3269 = vpow.pop %v3268
      %v3270 = vmul.f32 %v2767, 1.442695
      %v3271 = vpow.pop %v3270
      %v3272 = vmul.f32 %v2768, 1.442695
      %v3273 = vpow.pop %v3272
      %v3274 = vmul.f32 %v2769, 1.442695
      %v3275 = vpow.pop %v3274
      %v3276 = vmul.f32 %v2770, 1.442695
      %v3277 = vpow.pop %v3276
      %v3278 = vmul.f32 %v2771, 1.442695
      %v3279 = vpow.pop %v3278
      %v3280 = vmul.f32 %v2772, 1.442695
      %v3281 = vpow.pop %v3280
      %v3282 = vmul.f32 %v2773, 1.442695
      %v3283 = vpow.pop %v3282
      %v3284 = vmul.f32 %v2774, 1.442695
      %v3285 = vpow.pop %v3284
      %v3286 = vmul.f32 %v2775, 1.442695
      %v3287 = vpow.pop %v3286
      %v3288 = vadd.f32 %v2777, %v2779
      %v3289 = vadd.f32 %v3288, %v2781
      %v3290 = vadd.f32 %v3289, %v2783
      %v3291 = vadd.f32 %v3290, %v2785
      %v3292 = vadd.f32 %v3291, %v2787
      %v3293 = vadd.f32 %v3292, %v2789
      %v3294 = vadd.f32 %v3293, %v2791
      %3295 = vadd.xlane.f32.xlu0 %v3294
      %v3296 = vpop.xlane.xlu0 %3295
      %v3297 = vadd.f32 %v2793, %v2795
      %v3298 = vadd.f32 %v3297, %v2797
      %v3299 = vadd.f32 %v3298, %v2799
      %v3300 = vadd.f32 %v3299, %v2801
      %v3301 = vadd.f32 %v3300, %v2803
      %v3302 = vadd.f32 %v3301, %v2805
      %v3303 = vadd.f32 %v3302, %v2807
      %3304 = vadd.xlane.f32.xlu0 %v3303
      %v3305 = vpop.xlane.xlu0 %3304
      %v3306 = vadd.f32 %v2809, %v2811
      %v3307 = vadd.f32 %v3306, %v2813
      %v3308 = vadd.f32 %v3307, %v2815
      %v3309 = vadd.f32 %v3308, %v2817
      %v3310 = vadd.f32 %v3309, %v2819
      %v3311 = vadd.f32 %v3310, %v2821
      %v3312 = vadd.f32 %v3311, %v2823
      %3313 = vadd.xlane.f32.xlu0 %v3312
      %v3314 = vpop.xlane.xlu0 %3313
      %v3315 = vadd.f32 %v2825, %v2827
      %v3316 = vadd.f32 %v3315, %v2829
      %v3317 = vadd.f32 %v3316, %v2831
      %v3318 = vadd.f32 %v3317, %v2833
      %v3319 = vadd.f32 %v3318, %v2835
      %v3320 = vadd.f32 %v3319, %v2837
      %v3321 = vadd.f32 %v3320, %v2839
      %3322 = vadd.xlane.f32.xlu0 %v3321
      %v3323 = vpop.xlane.xlu0 %3322
      %v3324 = vadd.f32 %v2841, %v2843
      %v3325 = vadd.f32 %v3324, %v2845
      %v3326 = vadd.f32 %v3325, %v2847
      %v3327 = vadd.f32 %v3326, %v2849
      %v3328 = vadd.f32 %v3327, %v2851
      %v3329 = vadd.f32 %v3328, %v2853
      %v3330 = vadd.f32 %v3329, %v2855
      %3331 = vadd.xlane.f32.xlu0 %v3330
      %v3332 = vpop.xlane.xlu0 %3331
      %v3333 = vadd.f32 %v2857, %v2859
      %v3334 = vadd.f32 %v3333, %v2861
      %v3335 = vadd.f32 %v3334, %v2863
      %v3336 = vadd.f32 %v3335, %v2865
      %v3337 = vadd.f32 %v3336, %v2867
      %v3338 = vadd.f32 %v3337, %v2869
      %v3339 = vadd.f32 %v3338, %v2871
      %3340 = vadd.xlane.f32.xlu0 %v3339
      %v3341 = vpop.xlane.xlu0 %3340
      %v3342 = vadd.f32 %v2873, %v2875
      %v3343 = vadd.f32 %v3342, %v2877
      %v3344 = vadd.f32 %v3343, %v2879
      %v3345 = vadd.f32 %v3344, %v2881
      %v3346 = vadd.f32 %v3345, %v2883
      %v3347 = vadd.f32 %v3346, %v2885
      %v3348 = vadd.f32 %v3347, %v2887
      %3349 = vadd.xlane.f32.xlu0 %v3348
      %v3350 = vpop.xlane.xlu0 %3349
      %v3351 = vadd.f32 %v2889, %v2891
      %v3352 = vadd.f32 %v3351, %v2893
      %v3353 = vadd.f32 %v3352, %v2895
      %v3354 = vadd.f32 %v3353, %v2897
      %v3355 = vadd.f32 %v3354, %v2899
      %v3356 = vadd.f32 %v3355, %v2901
      %v3357 = vadd.f32 %v3356, %v2903
      %3358 = vadd.xlane.f32.xlu0 %v3357
      %v3359 = vpop.xlane.xlu0 %3358
      %v3360 = vadd.f32 %v2905, %v2907
      %v3361 = vadd.f32 %v3360, %v2909
      %v3362 = vadd.f32 %v3361, %v2911
      %v3363 = vadd.f32 %v3362, %v2913
      %v3364 = vadd.f32 %v3363, %v2915
      %v3365 = vadd.f32 %v3364, %v2917
      %v3366 = vadd.f32 %v3365, %v2919
      %3367 = vadd.xlane.f32.xlu0 %v3366
      %v3368 = vpop.xlane.xlu0 %3367
      %v3369 = vadd.f32 %v2921, %v2923
      %v3370 = vadd.f32 %v3369, %v2925
      %v3371 = vadd.f32 %v3370, %v2927
      %v3372 = vadd.f32 %v3371, %v2929
      %v3373 = vadd.f32 %v3372, %v2931
      %v3374 = vadd.f32 %v3373, %v2933
      %v3375 = vadd.f32 %v3374, %v2935
      %3376 = vadd.xlane.f32.xlu0 %v3375
      %v3377 = vpop.xlane.xlu0 %3376
      %v3378 = vadd.f32 %v2937, %v2939
      %v3379 = vadd.f32 %v3378, %v2941
      %v3380 = vadd.f32 %v3379, %v2943
      %v3381 = vadd.f32 %v3380, %v2945
      %v3382 = vadd.f32 %v3381, %v2947
      %v3383 = vadd.f32 %v3382, %v2949
      %v3384 = vadd.f32 %v3383, %v2951
      %3385 = vadd.xlane.f32.xlu0 %v3384
      %v3386 = vpop.xlane.xlu0 %3385
      %v3387 = vadd.f32 %v2953, %v2955
      %v3388 = vadd.f32 %v3387, %v2957
      %v3389 = vadd.f32 %v3388, %v2959
      %v3390 = vadd.f32 %v3389, %v2961
      %v3391 = vadd.f32 %v3390, %v2963
      %v3392 = vadd.f32 %v3391, %v2965
      %v3393 = vadd.f32 %v3392, %v2967
      %3394 = vadd.xlane.f32.xlu0 %v3393
      %v3395 = vpop.xlane.xlu0 %3394
      %v3396 = vadd.f32 %v2969, %v2971
      %v3397 = vadd.f32 %v3396, %v2973
      %v3398 = vadd.f32 %v3397, %v2975
      %v3399 = vadd.f32 %v3398, %v2977
      %v3400 = vadd.f32 %v3399, %v2979
      %v3401 = vadd.f32 %v3400, %v2981
      %v3402 = vadd.f32 %v3401, %v2983
      %3403 = vadd.xlane.f32.xlu0 %v3402
      %v3404 = vpop.xlane.xlu0 %3403
      %v3405 = vadd.f32 %v2985, %v2987
      %v3406 = vadd.f32 %v3405, %v2989
      %v3407 = vadd.f32 %v3406, %v2991
      %v3408 = vadd.f32 %v3407, %v2993
      %v3409 = vadd.f32 %v3408, %v2995
      %v3410 = vadd.f32 %v3409, %v2997
      %v3411 = vadd.f32 %v3410, %v2999
      %3412 = vadd.xlane.f32.xlu0 %v3411
      %v3413 = vpop.xlane.xlu0 %3412
      %v3414 = vadd.f32 %v3001, %v3003
      %v3415 = vadd.f32 %v3414, %v3005
      %v3416 = vadd.f32 %v3415, %v3007
      %v3417 = vadd.f32 %v3416, %v3009
      %v3418 = vadd.f32 %v3417, %v3011
      %v3419 = vadd.f32 %v3418, %v3013
      %v3420 = vadd.f32 %v3419, %v3015
      %3421 = vadd.xlane.f32.xlu0 %v3420
      %v3422 = vpop.xlane.xlu0 %3421
      %v3423 = vadd.f32 %v3017, %v3019
      %v3424 = vadd.f32 %v3423, %v3021
      %v3425 = vadd.f32 %v3424, %v3023
      %v3426 = vadd.f32 %v3425, %v3025
      %v3427 = vadd.f32 %v3426, %v3027
      %v3428 = vadd.f32 %v3427, %v3029
      %v3429 = vadd.f32 %v3428, %v3031
      %3430 = vadd.xlane.f32.xlu0 %v3429
      %v3431 = vpop.xlane.xlu0 %3430
      %v3432 = vadd.f32 %v3033, %v3035
      %v3433 = vadd.f32 %v3432, %v3037
      %v3434 = vadd.f32 %v3433, %v3039
      %v3435 = vadd.f32 %v3434, %v3041
      %v3436 = vadd.f32 %v3435, %v3043
      %v3437 = vadd.f32 %v3436, %v3045
      %v3438 = vadd.f32 %v3437, %v3047
      %3439 = vadd.xlane.f32.xlu0 %v3438
      %v3440 = vpop.xlane.xlu0 %3439
      %v3441 = vadd.f32 %v3049, %v3051
      %v3442 = vadd.f32 %v3441, %v3053
      %v3443 = vadd.f32 %v3442, %v3055
      %v3444 = vadd.f32 %v3443, %v3057
      %v3445 = vadd.f32 %v3444, %v3059
      %v3446 = vadd.f32 %v3445, %v3061
      %v3447 = vadd.f32 %v3446, %v3063
      %3448 = vadd.xlane.f32.xlu0 %v3447
      %v3449 = vpop.xlane.xlu0 %3448
      %v3450 = vadd.f32 %v3065, %v3067
      %v3451 = vadd.f32 %v3450, %v3069
      %v3452 = vadd.f32 %v3451, %v3071
      %v3453 = vadd.f32 %v3452, %v3073
      %v3454 = vadd.f32 %v3453, %v3075
      %v3455 = vadd.f32 %v3454, %v3077
      %v3456 = vadd.f32 %v3455, %v3079
      %3457 = vadd.xlane.f32.xlu0 %v3456
      %v3458 = vpop.xlane.xlu0 %3457
      %v3459 = vadd.f32 %v3081, %v3083
      %v3460 = vadd.f32 %v3459, %v3085
      %v3461 = vadd.f32 %v3460, %v3087
      %v3462 = vadd.f32 %v3461, %v3089
      %v3463 = vadd.f32 %v3462, %v3091
      %v3464 = vadd.f32 %v3463, %v3093
      %v3465 = vadd.f32 %v3464, %v3095
      %3466 = vadd.xlane.f32.xlu0 %v3465
      %v3467 = vpop.xlane.xlu0 %3466
      %v3468 = vadd.f32 %v3097, %v3099
      %v3469 = vadd.f32 %v3468, %v3101
      %v3470 = vadd.f32 %v3469, %v3103
      %v3471 = vadd.f32 %v3470, %v3105
      %v3472 = vadd.f32 %v3471, %v3107
      %v3473 = vadd.f32 %v3472, %v3109
      %v3474 = vadd.f32 %v3473, %v3111
      %3475 = vadd.xlane.f32.xlu0 %v3474
      %v3476 = vpop.xlane.xlu0 %3475
      %v3477 = vadd.f32 %v3113, %v3115
      %v3478 = vadd.f32 %v3477, %v3117
      %v3479 = vadd.f32 %v3478, %v3119
      %v3480 = vadd.f32 %v3479, %v3121
      %v3481 = vadd.f32 %v3480, %v3123
      %v3482 = vadd.f32 %v3481, %v3125
      %v3483 = vadd.f32 %v3482, %v3127
      %3484 = vadd.xlane.f32.xlu0 %v3483
      %v3485 = vpop.xlane.xlu0 %3484
      %v3486 = vadd.f32 %v3129, %v3131
      %v3487 = vadd.f32 %v3486, %v3133
      %v3488 = vadd.f32 %v3487, %v3135
      %v3489 = vadd.f32 %v3488, %v3137
      %v3490 = vadd.f32 %v3489, %v3139
      %v3491 = vadd.f32 %v3490, %v3141
      %v3492 = vadd.f32 %v3491, %v3143
      %3493 = vadd.xlane.f32.xlu0 %v3492
      %v3494 = vpop.xlane.xlu0 %3493
      %v3495 = vadd.f32 %v3145, %v3147
      %v3496 = vadd.f32 %v3495, %v3149
      %v3497 = vadd.f32 %v3496, %v3151
      %v3498 = vadd.f32 %v3497, %v3153
      %v3499 = vadd.f32 %v3498, %v3155
      %v3500 = vadd.f32 %v3499, %v3157
      %v3501 = vadd.f32 %v3500, %v3159
      %3502 = vadd.xlane.f32.xlu0 %v3501
      %v3503 = vpop.xlane.xlu0 %3502
      %v3504 = vadd.f32 %v3161, %v3163
      %v3505 = vadd.f32 %v3504, %v3165
      %v3506 = vadd.f32 %v3505, %v3167
      %v3507 = vadd.f32 %v3506, %v3169
      %v3508 = vadd.f32 %v3507, %v3171
      %v3509 = vadd.f32 %v3508, %v3173
      %v3510 = vadd.f32 %v3509, %v3175
      %3511 = vadd.xlane.f32.xlu0 %v3510
      %v3512 = vpop.xlane.xlu0 %3511
      %v3513 = vadd.f32 %v3177, %v3179
      %v3514 = vadd.f32 %v3513, %v3181
      %v3515 = vadd.f32 %v3514, %v3183
      %v3516 = vadd.f32 %v3515, %v3185
      %v3517 = vadd.f32 %v3516, %v3187
      %v3518 = vadd.f32 %v3517, %v3189
      %v3519 = vadd.f32 %v3518, %v3191
      %3520 = vadd.xlane.f32.xlu0 %v3519
      %v3521 = vpop.xlane.xlu0 %3520
      %v3522 = vadd.f32 %v3193, %v3195
      %v3523 = vadd.f32 %v3522, %v3197
      %v3524 = vadd.f32 %v3523, %v3199
      %v3525 = vadd.f32 %v3524, %v3201
      %v3526 = vadd.f32 %v3525, %v3203
      %v3527 = vadd.f32 %v3526, %v3205
      %v3528 = vadd.f32 %v3527, %v3207
      %3529 = vadd.xlane.f32.xlu0 %v3528
      %v3530 = vpop.xlane.xlu0 %3529
      %v3531 = vadd.f32 %v3209, %v3211
      %v3532 = vadd.f32 %v3531, %v3213
      %v3533 = vadd.f32 %v3532, %v3215
      %v3534 = vadd.f32 %v3533, %v3217
      %v3535 = vadd.f32 %v3534, %v3219
      %v3536 = vadd.f32 %v3535, %v3221
      %v3537 = vadd.f32 %v3536, %v3223
      %3538 = vadd.xlane.f32.xlu0 %v3537
      %v3539 = vpop.xlane.xlu0 %3538
      %v3540 = vadd.f32 %v3225, %v3227
      %v3541 = vadd.f32 %v3540, %v3229
      %v3542 = vadd.f32 %v3541, %v3231
      %v3543 = vadd.f32 %v3542, %v3233
      %v3544 = vadd.f32 %v3543, %v3235
      %v3545 = vadd.f32 %v3544, %v3237
      %v3546 = vadd.f32 %v3545, %v3239
      %3547 = vadd.xlane.f32.xlu0 %v3546
      %v3548 = vpop.xlane.xlu0 %3547
      %v3549 = vadd.f32 %v3241, %v3243
      %v3550 = vadd.f32 %v3549, %v3245
      %v3551 = vadd.f32 %v3550, %v3247
      %v3552 = vadd.f32 %v3551, %v3249
      %v3553 = vadd.f32 %v3552, %v3251
      %v3554 = vadd.f32 %v3553, %v3253
      %v3555 = vadd.f32 %v3554, %v3255
      %3556 = vadd.xlane.f32.xlu0 %v3555
      %v3557 = vpop.xlane.xlu0 %3556
      %v3558 = vadd.f32 %v3257, %v3259
      %v3559 = vadd.f32 %v3558, %v3261
      %v3560 = vadd.f32 %v3559, %v3263
      %v3561 = vadd.f32 %v3560, %v3265
      %v3562 = vadd.f32 %v3561, %v3267
      %v3563 = vadd.f32 %v3562, %v3269
      %v3564 = vadd.f32 %v3563, %v3271
      %3565 = vadd.xlane.f32.xlu0 %v3564
      %v3566 = vpop.xlane.xlu0 %3565
      %v3567 = vadd.f32 %v3273, %v3275
      %v3568 = vadd.f32 %v3567, %v3277
      %v3569 = vadd.f32 %v3568, %v3279
      %v3570 = vadd.f32 %v3569, %v3281
      %v3571 = vadd.f32 %v3570, %v3283
      %v3572 = vadd.f32 %v3571, %v3285
      %v3573 = vadd.f32 %v3572, %v3287
      %3574 = vadd.xlane.f32.xlu0 %v3573
      %v3575 = vpop.xlane.xlu0 %3574
      %v3576 = vadd.f32 %v2328, %v3296
      %v3577 = vadd.f32 %v2329, %v3305
      %v3578 = vadd.f32 %v2330, %v3314
      %v3579 = vadd.f32 %v2331, %v3323
      %v3580 = vadd.f32 %v2332, %v3332
      %v3581 = vadd.f32 %v2333, %v3341
      %v3582 = vadd.f32 %v2334, %v3350
      %v3583 = vadd.f32 %v2335, %v3359
      %v3584 = vadd.f32 %v2336, %v3368
      %v3585 = vadd.f32 %v2337, %v3377
      %v3586 = vadd.f32 %v2338, %v3386
      %v3587 = vadd.f32 %v2339, %v3395
      %v3588 = vadd.f32 %v2340, %v3404
      %v3589 = vadd.f32 %v2341, %v3413
      %v3590 = vadd.f32 %v2342, %v3422
      %v3591 = vadd.f32 %v2343, %v3431
      %v3592 = vadd.f32 %v2344, %v3440
      %v3593 = vadd.f32 %v2345, %v3449
      %v3594 = vadd.f32 %v2346, %v3458
      %v3595 = vadd.f32 %v2347, %v3467
      %v3596 = vadd.f32 %v2348, %v3476
      %v3597 = vadd.f32 %v2349, %v3485
      %v3598 = vadd.f32 %v2350, %v3494
      %v3599 = vadd.f32 %v2351, %v3503
      %v3600 = vadd.f32 %v2352, %v3512
      %v3601 = vadd.f32 %v2353, %v3521
      %v3602 = vadd.f32 %v2354, %v3530
      %v3603 = vadd.f32 %v2355, %v3539
      %v3604 = vadd.f32 %v2356, %v3548
      %v3605 = vadd.f32 %v2357, %v3557
      %v3606 = vadd.f32 %v2358, %v3566
      %v3607 = vadd.f32 %v2359, %v3575
      %vm3608 = vcmask 7168
      %3609 = vst.msk [vmem:[#allocation3] sm:$0xff] %vm3608, %v3576
      %3610 = vst.msk [vmem:[#allocation3 + $0x8] sm:$0xff] %vm3608, %v3577
      %3611 = vst.msk [vmem:[#allocation3 + $0x10] sm:$0xff] %vm3608, %v3578
      %3612 = vst.msk [vmem:[#allocation3 + $0x18] sm:$0xff] %vm3608, %v3579
      %3613 = vst.msk [vmem:[#allocation3 + $0x20] sm:$0xff] %vm3608, %v3580
      %3614 = vst.msk [vmem:[#allocation3 + $0x28] sm:$0xff] %vm3608, %v3581
      %3615 = vst.msk [vmem:[#allocation3 + $0x30] sm:$0xff] %vm3608, %v3582
      %3616 = vst.msk [vmem:[#allocation3 + $0x38] sm:$0xff] %vm3608, %v3583
      %3617 = vst.msk [vmem:[#allocation3 + $0x40] sm:$0xff] %vm3608, %v3584
      %3618 = vst.msk [vmem:[#allocation3 + $0x48] sm:$0xff] %vm3608, %v3585
      %3619 = vst.msk [vmem:[#allocation3 + $0x50] sm:$0xff] %vm3608, %v3586
      %3620 = vst.msk [vmem:[#allocation3 + $0x58] sm:$0xff] %vm3608, %v3587
      %3621 = vst.msk [vmem:[#allocation3 + $0x60] sm:$0xff] %vm3608, %v3588
      %3622 = vst.msk [vmem:[#allocation3 + $0x68] sm:$0xff] %vm3608, %v3589
      %3623 = vst.msk [vmem:[#allocation3 + $0x70] sm:$0xff] %vm3608, %v3590
      %3624 = vst.msk [vmem:[#allocation3 + $0x78] sm:$0xff] %vm3608, %v3591
      %3625 = vst.msk [vmem:[#allocation3 + $0x80] sm:$0xff] %vm3608, %v3592
      %3626 = vst.msk [vmem:[#allocation3 + $0x88] sm:$0xff] %vm3608, %v3593
      %3627 = vst.msk [vmem:[#allocation3 + $0x90] sm:$0xff] %vm3608, %v3594
      %3628 = vst.msk [vmem:[#allocation3 + $0x98] sm:$0xff] %vm3608, %v3595
      %3629 = vst.msk [vmem:[#allocation3 + $0xa0] sm:$0xff] %vm3608, %v3596
      %3630 = vst.msk [vmem:[#allocation3 + $0xa8] sm:$0xff] %vm3608, %v3597
      %3631 = vst.msk [vmem:[#allocation3 + $0xb0] sm:$0xff] %vm3608, %v3598
      %3632 = vst.msk [vmem:[#allocation3 + $0xb8] sm:$0xff] %vm3608, %v3599
      %3633 = vst.msk [vmem:[#allocation3 + $0xc0] sm:$0xff] %vm3608, %v3600
      %3634 = vst.msk [vmem:[#allocation3 + $0xc8] sm:$0xff] %vm3608, %v3601
      %3635 = vst.msk [vmem:[#allocation3 + $0xd0] sm:$0xff] %vm3608, %v3602
      %3636 = vst.msk [vmem:[#allocation3 + $0xd8] sm:$0xff] %vm3608, %v3603
      %3637 = vst.msk [vmem:[#allocation3 + $0xe0] sm:$0xff] %vm3608, %v3604
      %3638 = vst.msk [vmem:[#allocation3 + $0xe8] sm:$0xff] %vm3608, %v3605
      %3639 = vst.msk [vmem:[#allocation3 + $0xf0] sm:$0xff] %vm3608, %v3606
      %3640 = vst.msk [vmem:[#allocation3 + $0xf8] sm:$0xff] %vm3608, %v3607
      %3641 = vst.msk [vmem:[#allocation2] sm:$0xff] %vm3608, %v2168
      %3642 = vst.msk [vmem:[#allocation2 + $0x8] sm:$0xff] %vm3608, %v2169
      %3643 = vst.msk [vmem:[#allocation2 + $0x10] sm:$0xff] %vm3608, %v2170
      %3644 = vst.msk [vmem:[#allocation2 + $0x18] sm:$0xff] %vm3608, %v2171
      %3645 = vst.msk [vmem:[#allocation2 + $0x20] sm:$0xff] %vm3608, %v2172
      %3646 = vst.msk [vmem:[#allocation2 + $0x28] sm:$0xff] %vm3608, %v2173
      %3647 = vst.msk [vmem:[#allocation2 + $0x30] sm:$0xff] %vm3608, %v2174
      %3648 = vst.msk [vmem:[#allocation2 + $0x38] sm:$0xff] %vm3608, %v2175
      %3649 = vst.msk [vmem:[#allocation2 + $0x40] sm:$0xff] %vm3608, %v2176
      %3650 = vst.msk [vmem:[#allocation2 + $0x48] sm:$0xff] %vm3608, %v2177
      %3651 = vst.msk [vmem:[#allocation2 + $0x50] sm:$0xff] %vm3608, %v2178
      %3652 = vst.msk [vmem:[#allocation2 + $0x58] sm:$0xff] %vm3608, %v2179
      %3653 = vst.msk [vmem:[#allocation2 + $0x60] sm:$0xff] %vm3608, %v2180
      %3654 = vst.msk [vmem:[#allocation2 + $0x68] sm:$0xff] %vm3608, %v2181
      %3655 = vst.msk [vmem:[#allocation2 + $0x70] sm:$0xff] %vm3608, %v2182
      %3656 = vst.msk [vmem:[#allocation2 + $0x78] sm:$0xff] %vm3608, %v2183
      %3657 = vst.msk [vmem:[#allocation2 + $0x80] sm:$0xff] %vm3608, %v2184
      %3658 = vst.msk [vmem:[#allocation2 + $0x88] sm:$0xff] %vm3608, %v2185
      %3659 = vst.msk [vmem:[#allocation2 + $0x90] sm:$0xff] %vm3608, %v2186
      %3660 = vst.msk [vmem:[#allocation2 + $0x98] sm:$0xff] %vm3608, %v2187
      %3661 = vst.msk [vmem:[#allocation2 + $0xa0] sm:$0xff] %vm3608, %v2188
      %3662 = vst.msk [vmem:[#allocation2 + $0xa8] sm:$0xff] %vm3608, %v2189
      %3663 = vst.msk [vmem:[#allocation2 + $0xb0] sm:$0xff] %vm3608, %v2190
      %3664 = vst.msk [vmem:[#allocation2 + $0xb8] sm:$0xff] %vm3608, %v2191
      %3665 = vst.msk [vmem:[#allocation2 + $0xc0] sm:$0xff] %vm3608, %v2192
      %3666 = vst.msk [vmem:[#allocation2 + $0xc8] sm:$0xff] %vm3608, %v2193
      %3667 = vst.msk [vmem:[#allocation2 + $0xd0] sm:$0xff] %vm3608, %v2194
      %3668 = vst.msk [vmem:[#allocation2 + $0xd8] sm:$0xff] %vm3608, %v2195
      %3669 = vst.msk [vmem:[#allocation2 + $0xe0] sm:$0xff] %vm3608, %v2196
      %3670 = vst.msk [vmem:[#allocation2 + $0xe8] sm:$0xff] %vm3608, %v2197
      %3671 = vst.msk [vmem:[#allocation2 + $0xf0] sm:$0xff] %vm3608, %v2198
      %3672 = vst.msk [vmem:[#allocation2 + $0xf8] sm:$0xff] %vm3608, %v2199
      // Predicated region
      $region37: #{gmlp_language_model.4} parent=31 // pred_check
        %p3673 = pneg %p281
      $region38: #{gmlp_language_model.4} parent=31 // pred_check_branch
        %3675 = sbr.rel (%p3673) target = $region40
      $region39: #{gmlp_language_model.4} parent=31 // pred_region
        %v3676 = vld [vmem:[#allocation2] sm:$0xff]
        %v3677 = vld [vmem:[#allocation2 + $0x8] sm:$0xff]
        %v3678 = vld [vmem:[#allocation2 + $0x10] sm:$0xff]
        %v3679 = vld [vmem:[#allocation2 + $0x18] sm:$0xff]
        %v3680 = vld [vmem:[#allocation2 + $0x20] sm:$0xff]
        %v3681 = vld [vmem:[#allocation2 + $0x28] sm:$0xff]
        %v3682 = vld [vmem:[#allocation2 + $0x30] sm:$0xff]
        %v3683 = vld [vmem:[#allocation2 + $0x38] sm:$0xff]
        %v3684 = vld [vmem:[#allocation2 + $0x40] sm:$0xff]
        %v3685 = vld [vmem:[#allocation2 + $0x48] sm:$0xff]
        %v3686 = vld [vmem:[#allocation2 + $0x50] sm:$0xff]
        %v3687 = vld [vmem:[#allocation2 + $0x58] sm:$0xff]
        %v3688 = vld [vmem:[#allocation2 + $0x60] sm:$0xff]
        %v3689 = vld [vmem:[#allocation2 + $0x68] sm:$0xff]
        %v3690 = vld [vmem:[#allocation2 + $0x70] sm:$0xff]
        %v3691 = vld [vmem:[#allocation2 + $0x78] sm:$0xff]
        %v3692 = vld [vmem:[#allocation2 + $0x80] sm:$0xff]
        %v3693 = vld [vmem:[#allocation2 + $0x88] sm:$0xff]
        %v3694 = vld [vmem:[#allocation2 + $0x90] sm:$0xff]
        %v3695 = vld [vmem:[#allocation2 + $0x98] sm:$0xff]
        %v3696 = vld [vmem:[#allocation2 + $0xa0] sm:$0xff]
        %v3697 = vld [vmem:[#allocation2 + $0xa8] sm:$0xff]
        %v3698 = vld [vmem:[#allocation2 + $0xb0] sm:$0xff]
        %v3699 = vld [vmem:[#allocation2 + $0xb8] sm:$0xff]
        %v3700 = vld [vmem:[#allocation2 + $0xc0] sm:$0xff]
        %v3701 = vld [vmem:[#allocation2 + $0xc8] sm:$0xff]
        %v3702 = vld [vmem:[#allocation2 + $0xd0] sm:$0xff]
        %v3703 = vld [vmem:[#allocation2 + $0xd8] sm:$0xff]
        %v3704 = vld [vmem:[#allocation2 + $0xe0] sm:$0xff]
        %v3705 = vld [vmem:[#allocation2 + $0xe8] sm:$0xff]
        %v3706 = vld [vmem:[#allocation2 + $0xf0] sm:$0xff]
        %v3707 = vld [vmem:[#allocation2 + $0xf8] sm:$0xff]
        %v3708 = vld [vmem:[#allocation3] sm:$0xff]
        %v3709 = vld [vmem:[#allocation3 + $0x8] sm:$0xff]
        %v3710 = vld [vmem:[#allocation3 + $0x10] sm:$0xff]
        %v3711 = vld [vmem:[#allocation3 + $0x18] sm:$0xff]
        %v3712 = vld [vmem:[#allocation3 + $0x20] sm:$0xff]
        %v3713 = vld [vmem:[#allocation3 + $0x28] sm:$0xff]
        %v3714 = vld [vmem:[#allocation3 + $0x30] sm:$0xff]
        %v3715 = vld [vmem:[#allocation3 + $0x38] sm:$0xff]
        %v3716 = vld [vmem:[#allocation3 + $0x40] sm:$0xff]
        %v3717 = vld [vmem:[#allocation3 + $0x48] sm:$0xff]
        %v3718 = vld [vmem:[#allocation3 + $0x50] sm:$0xff]
        %v3719 = vld [vmem:[#allocation3 + $0x58] sm:$0xff]
        %v3720 = vld [vmem:[#allocation3 + $0x60] sm:$0xff]
        %v3721 = vld [vmem:[#allocation3 + $0x68] sm:$0xff]
        %v3722 = vld [vmem:[#allocation3 + $0x70] sm:$0xff]
        %v3723 = vld [vmem:[#allocation3 + $0x78] sm:$0xff]
        %v3724 = vld [vmem:[#allocation3 + $0x80] sm:$0xff]
        %v3725 = vld [vmem:[#allocation3 + $0x88] sm:$0xff]
        %v3726 = vld [vmem:[#allocation3 + $0x90] sm:$0xff]
        %v3727 = vld [vmem:[#allocation3 + $0x98] sm:$0xff]
        %v3728 = vld [vmem:[#allocation3 + $0xa0] sm:$0xff]
        %v3729 = vld [vmem:[#allocation3 + $0xa8] sm:$0xff]
        %v3730 = vld [vmem:[#allocation3 + $0xb0] sm:$0xff]
        %v3731 = vld [vmem:[#allocation3 + $0xb8] sm:$0xff]
        %v3732 = vld [vmem:[#allocation3 + $0xc0] sm:$0xff]
        %v3733 = vld [vmem:[#allocation3 + $0xc8] sm:$0xff]
        %v3734 = vld [vmem:[#allocation3 + $0xd0] sm:$0xff]
        %v3735 = vld [vmem:[#allocation3 + $0xd8] sm:$0xff]
        %v3736 = vld [vmem:[#allocation3 + $0xe0] sm:$0xff]
        %v3737 = vld [vmem:[#allocation3 + $0xe8] sm:$0xff]
        %v3738 = vld [vmem:[#allocation3 + $0xf0] sm:$0xff]
        %v3739 = vld [vmem:[#allocation3 + $0xf8] sm:$0xff]
        %v3740 = vlog2.pop %v3708
        %v3741 = vmul.f32 %v3740, 0.6931472
        %v3742 = vlog2.pop %v3709
        %v3743 = vmul.f32 %v3742, 0.6931472
        %v3744 = vlog2.pop %v3710
        %v3745 = vmul.f32 %v3744, 0.6931472
        %v3746 = vlog2.pop %v3711
        %v3747 = vmul.f32 %v3746, 0.6931472
        %v3748 = vlog2.pop %v3712
        %v3749 = vmul.f32 %v3748, 0.6931472
        %v3750 = vlog2.pop %v3713
        %v3751 = vmul.f32 %v3750, 0.6931472
        %v3752 = vlog2.pop %v3714
        %v3753 = vmul.f32 %v3752, 0.6931472
        %v3754 = vlog2.pop %v3715
        %v3755 = vmul.f32 %v3754, 0.6931472
        %v3756 = vlog2.pop %v3716
        %v3757 = vmul.f32 %v3756, 0.6931472
        %v3758 = vlog2.pop %v3717
        %v3759 = vmul.f32 %v3758, 0.6931472
        %v3760 = vlog2.pop %v3718
        %v3761 = vmul.f32 %v3760, 0.6931472
        %v3762 = vlog2.pop %v3719
        %v3763 = vmul.f32 %v3762, 0.6931472
        %v3764 = vlog2.pop %v3720
        %v3765 = vmul.f32 %v3764, 0.6931472
        %v3766 = vlog2.pop %v3721
        %v3767 = vmul.f32 %v3766, 0.6931472
        %v3768 = vlog2.pop %v3722
        %v3769 = vmul.f32 %v3768, 0.6931472
        %v3770 = vlog2.pop %v3723
        %v3771 = vmul.f32 %v3770, 0.6931472
        %v3772 = vlog2.pop %v3724
        %v3773 = vmul.f32 %v3772, 0.6931472
        %v3774 = vlog2.pop %v3725
        %v3775 = vmul.f32 %v3774, 0.6931472
        %v3776 = vlog2.pop %v3726
        %v3777 = vmul.f32 %v3776, 0.6931472
        %v3778 = vlog2.pop %v3727
        %v3779 = vmul.f32 %v3778, 0.6931472
        %v3780 = vlog2.pop %v3728
        %v3781 = vmul.f32 %v3780, 0.6931472
        %v3782 = vlog2.pop %v3729
        %v3783 = vmul.f32 %v3782, 0.6931472
        %v3784 = vlog2.pop %v3730
        %v3785 = vmul.f32 %v3784, 0.6931472
        %v3786 = vlog2.pop %v3731
        %v3787 = vmul.f32 %v3786, 0.6931472
        %v3788 = vlog2.pop %v3732
        %v3789 = vmul.f32 %v3788, 0.6931472
        %v3790 = vlog2.pop %v3733
        %v3791 = vmul.f32 %v3790, 0.6931472
        %v3792 = vlog2.pop %v3734
        %v3793 = vmul.f32 %v3792, 0.6931472
        %v3794 = vlog2.pop %v3735
        %v3795 = vmul.f32 %v3794, 0.6931472
        %v3796 = vlog2.pop %v3736
        %v3797 = vmul.f32 %v3796, 0.6931472
        %v3798 = vlog2.pop %v3737
        %v3799 = vmul.f32 %v3798, 0.6931472
        %v3800 = vlog2.pop %v3738
        %v3801 = vmul.f32 %v3800, 0.6931472
        %v3802 = vlog2.pop %v3739
        %v3803 = vmul.f32 %v3802, 0.6931472
        %v3804 = vadd.f32 %v3676, %v3741
        %v3805 = vadd.f32 %v3677, %v3743
        %v3806 = vadd.f32 %v3678, %v3745
        %v3807 = vadd.f32 %v3679, %v3747
        %v3808 = vadd.f32 %v3680, %v3749
        %v3809 = vadd.f32 %v3681, %v3751
        %v3810 = vadd.f32 %v3682, %v3753
        %v3811 = vadd.f32 %v3683, %v3755
        %v3812 = vadd.f32 %v3684, %v3757
        %v3813 = vadd.f32 %v3685, %v3759
        %v3814 = vadd.f32 %v3686, %v3761
        %v3815 = vadd.f32 %v3687, %v3763
        %v3816 = vadd.f32 %v3688, %v3765
        %v3817 = vadd.f32 %v3689, %v3767
        %v3818 = vadd.f32 %v3690, %v3769
        %v3819 = vadd.f32 %v3691, %v3771
        %v3820 = vadd.f32 %v3692, %v3773
        %v3821 = vadd.f32 %v3693, %v3775
        %v3822 = vadd.f32 %v3694, %v3777
        %v3823 = vadd.f32 %v3695, %v3779
        %v3824 = vadd.f32 %v3696, %v3781
        %v3825 = vadd.f32 %v3697, %v3783
        %v3826 = vadd.f32 %v3698, %v3785
        %v3827 = vadd.f32 %v3699, %v3787
        %v3828 = vadd.f32 %v3700, %v3789
        %v3829 = vadd.f32 %v3701, %v3791
        %v3830 = vadd.f32 %v3702, %v3793
        %v3831 = vadd.f32 %v3703, %v3795
        %v3832 = vadd.f32 %v3704, %v3797
        %v3833 = vadd.f32 %v3705, %v3799
        %v3834 = vadd.f32 %v3706, %v3801
        %v3835 = vadd.f32 %v3707, %v3803
        %3836 = vst.msk [vmem:[%s279] sm:$0xff] %vm3608, %v3804
        %3837 = vst.msk [vmem:[%s279 + $0x8] sm:$0xff] %vm3608, %v3805
        %3838 = vst.msk [vmem:[%s279 + $0x10] sm:$0xff] %vm3608, %v3806
        %3839 = vst.msk [vmem:[%s279 + $0x18] sm:$0xff] %vm3608, %v3807
        %3840 = vst.msk [vmem:[%s279 + $0x20] sm:$0xff] %vm3608, %v3808
        %3841 = vst.msk [vmem:[%s279 + $0x28] sm:$0xff] %vm3608, %v3809
        %3842 = vst.msk [vmem:[%s279 + $0x30] sm:$0xff] %vm3608, %v3810
        %3843 = vst.msk [vmem:[%s279 + $0x38] sm:$0xff] %vm3608, %v3811
        %3844 = vst.msk [vmem:[%s279 + $0x40] sm:$0xff] %vm3608, %v3812
        %3845 = vst.msk [vmem:[%s279 + $0x48] sm:$0xff] %vm3608, %v3813
        %3846 = vst.msk [vmem:[%s279 + $0x50] sm:$0xff] %vm3608, %v3814
        %3847 = vst.msk [vmem:[%s279 + $0x58] sm:$0xff] %vm3608, %v3815
        %3848 = vst.msk [vmem:[%s279 + $0x60] sm:$0xff] %vm3608, %v3816
        %3849 = vst.msk [vmem:[%s279 + $0x68] sm:$0xff] %vm3608, %v3817
        %3850 = vst.msk [vmem:[%s279 + $0x70] sm:$0xff] %vm3608, %v3818
        %3851 = vst.msk [vmem:[%s279 + $0x78] sm:$0xff] %vm3608, %v3819
        %3852 = vst.msk [vmem:[%s279 + $0x80] sm:$0xff] %vm3608, %v3820
        %3853 = vst.msk [vmem:[%s279 + $0x88] sm:$0xff] %vm3608, %v3821
        %3854 = vst.msk [vmem:[%s279 + $0x90] sm:$0xff] %vm3608, %v3822
        %3855 = vst.msk [vmem:[%s279 + $0x98] sm:$0xff] %vm3608, %v3823
        %3856 = vst.msk [vmem:[%s279 + $0xa0] sm:$0xff] %vm3608, %v3824
        %3857 = vst.msk [vmem:[%s279 + $0xa8] sm:$0xff] %vm3608, %v3825
        %3858 = vst.msk [vmem:[%s279 + $0xb0] sm:$0xff] %vm3608, %v3826
        %3859 = vst.msk [vmem:[%s279 + $0xb8] sm:$0xff] %vm3608, %v3827
        %3860 = vst.msk [vmem:[%s279 + $0xc0] sm:$0xff] %vm3608, %v3828
        %3861 = vst.msk [vmem:[%s279 + $0xc8] sm:$0xff] %vm3608, %v3829
        %3862 = vst.msk [vmem:[%s279 + $0xd0] sm:$0xff] %vm3608, %v3830
        %3863 = vst.msk [vmem:[%s279 + $0xd8] sm:$0xff] %vm3608, %v3831
        %3864 = vst.msk [vmem:[%s279 + $0xe0] sm:$0xff] %vm3608, %v3832
        %3865 = vst.msk [vmem:[%s279 + $0xe8] sm:$0xff] %vm3608, %v3833
        %3866 = vst.msk [vmem:[%s279 + $0xf0] sm:$0xff] %vm3608, %v3834
        %3867 = vst.msk [vmem:[%s279 + $0xf8] sm:$0xff] %vm3608, %v3835
      $region40: #{gmlp_language_model.4} parent=31 // pred_fallthru
        _
      %s3868 = smul.u32 32, %s20
      %s3869 = smul.u32 8, %s21
      %p3870 = scmp.lt.s32.totalorder %s3868, 63
      %s3871 = scalar_select %p3870, %s3868, 63
      %p3872 = scmp.lt.s32.totalorder %s3869, 7
      %s3873 = scalar_select %p3872, %s3869, 7
      %s3874 = smul.addr %s3871, 8
      %s3875 = sadd.s32 %s3873, %s3874
      %s3876 = smul.addr %s3875, 4
      %s3877 = scalar_lea.vmem %s3, %s3876
      %s3878 = smul.u32 32, %s20
      %p3879 = scmp.lt.s32.totalorder %s3878, 63
      %s3880 = scalar_select %p3879, %s3878, 63
      %s3881 = smul.addr %s3880, 8
      %s3882 = scalar_lea.vmem %s4, %s3881
      // Predicated region
      $region41: #{gmlp_language_model.4} parent=31 // pred_check
        %p3883 = pneg %p126
      $region42: #{gmlp_language_model.4} parent=31 // pred_check_branch
        %3885 = sbr.rel (%p3883) target = $region44
      $region43: #{gmlp_language_model.4} parent=31 // pred_region
        %s3886 = smul.u32 32, %s20
        %s3887 = smul.u32 8, %s21
      $region44: #{gmlp_language_model.4} parent=31 // pred_fallthru
        _
      // Predicated region
      $region45: #{gmlp_language_model.4} parent=31 // pred_check
        %p3888 = pneg %p152
      $region46: #{gmlp_language_model.4} parent=31 // pred_check_branch
        %3890 = sbr.rel (%p3888) target = $region48
      $region47: #{gmlp_language_model.4} parent=31 // pred_region
        %s3891 = smul.u32 32, %s20
      $region48: #{gmlp_language_model.4} parent=31 // pred_fallthru
        _
    $region32: #{gmlp_language_model.4} parent=5 // pred_fallthru
      _
    %p3892 = scmp.le.s32.totalorder 2, %s11
    // Predicated region
    $region49: #{gmlp_language_model.4} parent=5 // pred_check
      %p3893 = pneg %p3892
    $region50: #{gmlp_language_model.4} parent=5 // pred_check_branch
      %3895 = sbr.rel (%p3893) target = $region52
    $region51: #{gmlp_language_model.4} parent=5 // pred_region
      %s3896 = ssub.s32 %s11, 2
      // Predicated region
      $region53: #{gmlp_language_model.4} parent=51 // pred_check
        %p3897 = pneg %p132
      $region54: #{gmlp_language_model.4} parent=51 // pred_check_branch
        %3899 = sbr.rel (%p3897) target = $region56
      $region55: #{gmlp_language_model.4} parent=51 // pred_region
        %s3900 = smul.u32 32, %s22
        %s3901 = smul.u32 8, %s23
        %p3902 = scmp.lt.s32.totalorder %s3900, 63
        %s3903 = scalar_select %p3902, %s3900, 63
        %p3904 = scmp.lt.s32.totalorder %s3901, 7
        %s3905 = scalar_select %p3904, %s3901, 7
        %s3906 = smul.addr %s3903, 8
        %s3907 = sadd.s32 %s3905, %s3906
        %s3908 = smul.addr %s3907, 4
        %s3909 = scalar_lea.vmem %s3, %s3908
      $region56: #{gmlp_language_model.4} parent=51 // pred_fallthru
        _
      // Predicated region
      $region57: #{gmlp_language_model.4} parent=51 // pred_check
        %p3910 = pneg %p158
      $region58: #{gmlp_language_model.4} parent=51 // pred_check_branch
        %3912 = sbr.rel (%p3910) target = $region60
      $region59: #{gmlp_language_model.4} parent=51 // pred_region
        %s3913 = smul.u32 32, %s22
        %p3914 = scmp.lt.s32.totalorder %s3913, 63
        %s3915 = scalar_select %p3914, %s3913, 63
        %s3916 = smul.addr %s3915, 8
        %s3917 = scalar_lea.vmem %s4, %s3916
      $region60: #{gmlp_language_model.4} parent=51 // pred_fallthru
        _
    $region52: #{gmlp_language_model.4} parent=5 // pred_fallthru
      _
  $region6: #{gmlp_language_model.4} parent=0 // loop_footer
    %s15 = sadd.s32 1, %s11
  $region7: #{gmlp_language_model.4} parent=0 // loop_footer_branch
    %10 = sbr.rel target = $region3
  $region8: #{gmlp_language_model.4} parent=0 // loop_exit
    _

</llo_original>
